<compile_context>
chip_gen: v6e
topology: v6e:2x2x1
jax: 0.10.0
libtpu: 0.0.40
codegen_flags: <defaults>
</compile_context>

<pallas_src>
import functools

import jax
import jax.numpy as jnp
import numpy as np
from jax.experimental import pallas as pl
from jax.experimental.pallas import tpu as pltpu

LANE = 128
HID = 512          # 448 hidden width zero-padded to 512 for exact MXU tiling
VMEM_LIMIT_CONV = 32 * 1024 * 1024
VMEM_LIMIT_TAIL = 48 * 1024 * 1024


def _round_up(x, m):
    return (x + m - 1) // m * m


def _pick_tm(M, tm_max):
    """Pick an M-tile: multiple of 8, <= tm_max.

    Prefers an exact divisor of M (zero padding waste) that gives >= 2 grid steps
    (v7x has 2 TensorCores; the M axis is marked "parallel").  Falls back to an
    ~even 2+ way split with minimal padding; tiny M collapses to a single 8-row tile.
    """
    M8 = _round_up(max(M, 1), 8)
    cap = max(8, (min(tm_max, M8) // 8) * 8)
    for t in range(cap, 7, -8):
        if M % t == 0 and M // t >= 2:
            return t
    if M8 <= 8:
        return 8
    n_tiles = max(2, -(-M8 // cap))
    return max(8, _round_up(-(-M // n_tiles), 8))


# ----------------------------- Pallas kernels ------------------------------ #

def _gemm_bias_relu_kernel(x_ref, w_ref, b_ref, o_ref):
    """o = relu(x @ w + b); bf16 operands, fp32 accumulate, bias/ReLU in fp32."""
    acc = jnp.dot(x_ref[...], w_ref[...], preferred_element_type=jnp.float32)
    o_ref[...] = jnp.maximum(acc + b_ref[...], 0.0).astype(o_ref.dtype)


def pallas_gemm_bias_relu(x, w, b, *, out_dtype=jnp.bfloat16, tm_max=512):
    """Tiled-over-M fused GEMM+bias+ReLU.

    x: (M, K) bf16, w: (K, C_out) bf16, b: (1, C_out) f32.  K is small for the conv
    GEMMs (<= 576) so it stays a single full block.  Output keeps the true C_out so
    downstream reshapes are free bitcasts (no lane-compaction copies).
    """
    M, K = x.shape
    K2, Nout = w.shape
    assert K == K2
    TM = _pick_tm(M, tm_max)
    M_in = M
    if M < TM:                                   # single partial block -> pad (tiny case)
        x = jnp.pad(x, ((0, TM - M), (0, 0)))
        M = TM
    grid = (pl.cdiv(M, TM),)
    cost = pl.CostEstimate(
        flops=2 * M * K * Nout,
        transcendentals=0,
        bytes_accessed=(M * K * x.dtype.itemsize
                        + K * Nout * w.dtype.itemsize
                        + Nout * 4
                        + M * Nout * np.dtype(out_dtype).itemsize),
    )
    y = pl.pallas_call(
        _gemm_bias_relu_kernel,
        out_shape=jax.ShapeDtypeStruct((M, Nout), out_dtype),
        grid=grid,
        in_specs=[
            pl.BlockSpec((TM, K), lambda i: (i, 0)),
            pl.BlockSpec((K, Nout), lambda i: (0, 0)),
            pl.BlockSpec((1, Nout), lambda i: (0, 0)),
        ],
        out_specs=pl.BlockSpec((TM, Nout), lambda i: (i, 0)),
        compiler_params=pltpu.CompilerParams(
            dimension_semantics=("parallel",),
            vmem_limit_bytes=VMEM_LIMIT_CONV),
        cost_estimate=cost,
    )(x, w, b)
    return y if M_in == M else y[:M_in]


def _mlp_tail_kernel(x_ref, fc1w_ref, fc1b_ref, fc2w_ref, fc2b_ref,
                     a1w_ref, a1b_ref, a2w_ref, a2b_ref,
                     exw_ref, exb_ref, hw_ref, hb_ref,
                     policy_ref, values_ref):
    """Fused MLP tail: fc1 -> fc2 -> {actor1 -> actor2, extra -> +feat -> heads}.

    All intermediate activations stay on-chip; dots in bf16, fp32 accumulation.
    The hidden 448 dim is zero-padded to 512 (exact MXU tiles); padded lanes stay 0.
    """
    bf16, f32 = jnp.bfloat16, jnp.float32
    x = x_ref[...]
    h = jnp.maximum(
        jnp.dot(x, fc1w_ref[...], preferred_element_type=f32) + fc1b_ref[...], 0.0)
    feat = jnp.maximum(
        jnp.dot(h.astype(bf16), fc2w_ref[...], preferred_element_type=f32) + fc2b_ref[...], 0.0)
    feat16 = feat.astype(bf16)
    # actor
    a = jnp.maximum(
        jnp.dot(feat16, a1w_ref[...], preferred_element_type=f32) + a1b_ref[...], 0.0)
    policy = jnp.dot(a.astype(bf16), a2w_ref[...], preferred_element_type=f32) + a2b_ref[...]
    # extra_layer(feat) + feat, then both critic heads as one packed GEMM
    extra = jnp.maximum(
        jnp.dot(feat16, exw_ref[...], preferred_element_type=f32) + exb_ref[...], 0.0)
    res = (extra + feat).astype(bf16)
    values = jnp.dot(res, hw_ref[...], preferred_element_type=f32) + hb_ref[...]
    policy_ref[...] = policy.astype(policy_ref.dtype)
    values_ref[...] = values.astype(values_ref.dtype)


_TAIL_WEIGHT_NAMES = ("fc1_w", "fc1_b", "fc2_w", "fc2_b",
                      "actor1_w", "actor1_b", "actor2_w", "actor2_b",
                      "extra_w", "extra_b", "heads_w", "heads_b")


def pallas_mlp_tail(x, params, *, tm_max=256):
    """x: (M, 3136) bf16 -> (policy_padded (M,128) f32, values_padded (M,128) f32)."""
    M, K = x.shape
    TM = _pick_tm(M, tm_max)
    M_in = M
    if M < TM:
        x = jnp.pad(x, ((0, TM - M), (0, 0)))
        M = TM
    grid = (pl.cdiv(M, TM),)

    weights = [params[k] for k in _TAIL_WEIGHT_NAMES]
    in_specs = [pl.BlockSpec((TM, K), lambda i: (i, 0))]
    for wgt in weights:
        # Constant across the grid -> one resident buffer is enough (no double-buffer).
        in_specs.append(pl.BlockSpec(wgt.shape, lambda i: (0, 0),
                                     pipeline_mode=pl.Buffered(1)))

    wbytes = sum(int(np.prod(w.shape)) * w.dtype.itemsize for w in weights)
    flops_per_row = 2 * (K * 256 + 256 * HID + HID * HID + HID * LANE
                         + HID * HID + HID * LANE)
    cost = pl.CostEstimate(
        flops=M * flops_per_row,
        transcendentals=0,
        bytes_accessed=M * K * x.dtype.itemsize + wbytes + 2 * M * LANE * 4,
    )

    policy, values = pl.pallas_call(
        _mlp_tail_kernel,
        out_shape=(jax.ShapeDtypeStruct((M, LANE), jnp.float32),
                   jax.ShapeDtypeStruct((M, LANE), jnp.float32)),
        grid=grid,
        in_specs=in_specs,
        out_specs=(pl.BlockSpec((TM, LANE), lambda i: (i, 0)),
                   pl.BlockSpec((TM, LANE), lambda i: (i, 0))),
        compiler_params=pltpu.CompilerParams(
            dimension_semantics=("parallel",),
            vmem_limit_bytes=VMEM_LIMIT_TAIL),
        cost_estimate=cost,
    )(x, *weights)
    if M_in != M:
        policy, values = policy[:M_in], values[:M_in]
    return policy, values


# ------------------------------ conv via im2col ---------------------------- #

def _im2col_conv1_nchw(state, k=8, stride=4):
    """(N, C, H, W) f32 NCHW -> (N*oh*ow, C*k*k) bf16 patches.

    Rows ordered (n, h, w); cols ordered (c, kh, kw) to match the torch conv1
    weight flatten.  The NCHW->patch transpose and the f32->bf16 cast fuse into
    this one XLA copy (no separate NHWC relayout pass over the input)."""
    N, C, H, W = state.shape
    oh = (H - k) // stride + 1
    ow = (W - k) // stride + 1
    taps = []
    for kh in range(k):
        for kw in range(k):
            taps.append(state[:, :, kh:kh + stride * (oh - 1) + 1:stride,
                              kw:kw + stride * (ow - 1) + 1:stride])   # (N, C, oh, ow)
    p = jnp.stack(taps, axis=2)                    # (N, C, k*k, oh, ow)
    p = jnp.transpose(p, (0, 3, 4, 1, 2))          # (N, oh, ow, C, k*k)
    return p.reshape(N * oh * ow, C * k * k).astype(jnp.bfloat16), oh, ow


def _im2col_nhwc(x, k, stride):
    """x: (N, H, W, C) -> patches (N*oh*ow, k*k*C), cols ordered (kh, kw, c)."""
    N, H, W, C = x.shape
    oh = (H - k) // stride + 1
    ow = (W - k) // stride + 1
    cols = []
    for i in range(k):
        for j in range(k):
            cols.append(x[:, i:i + stride * (oh - 1) + 1:stride,
                          j:j + stride * (ow - 1) + 1:stride, :])
    patches = jnp.stack(cols, axis=3)              # (N, oh, ow, k*k, C)
    return patches.reshape(N * oh * ow, k * k * C), oh, ow


# ------------------------------ parameters --------------------------------- #

def _prep_conv_w_chw(w):
    """torch (C_out, C_in, KH, KW) -> (C_in*KH*KW, C_out) bf16, cols = (c, kh, kw)."""
    c_out = w.shape[0]
    return jnp.asarray(w.reshape(c_out, -1).T, dtype=jnp.bfloat16)


def _prep_conv_w_hwc(w):
    """torch (C_out, C_in, KH, KW) -> (KH*KW*C_in, C_out) bf16, cols = (kh, kw, c)."""
    c_out = w.shape[0]
    return jnp.asarray(jnp.transpose(w, (2, 3, 1, 0)).reshape(-1, c_out),
                       dtype=jnp.bfloat16)


def _prep_linear_w(w, pad_in_to=None, pad_out_to=None):
    """torch (out, in) -> (in[_pad], out[_pad]) bf16, zero padding (exact semantics)."""
    wt = w.T
    pi = 0 if pad_in_to is None else max(0, pad_in_to - wt.shape[0])
    po = 0 if pad_out_to is None else max(0, pad_out_to - wt.shape[1])
    if pi or po:
        wt = jnp.pad(wt, ((0, pi), (0, po)))
    return wt.astype(jnp.bfloat16)


def _zeros_bias(n):
    return jnp.zeros((1, n), jnp.float32)


def init_params(key, output_size):
    """Synthetic init mirroring the torch module (orthogonal weights, same gains,
    zero biases), pre-converted once into the padded / transposed / bf16 kernel layout."""
    assert output_size <= LANE
    ortho = jax.nn.initializers.orthogonal
    ks = jax.random.split(key, 10)
    g2 = float(np.sqrt(2.0))

    conv1 = ortho(g2)(ks[0], (32, 4 * 8 * 8), jnp.float32).reshape(32, 4, 8, 8)
    conv2 = ortho(g2)(ks[1], (64, 32 * 4 * 4), jnp.float32).reshape(64, 32, 4, 4)
    conv3 = ortho(g2)(ks[2], (64, 64 * 3 * 3), jnp.float32).reshape(64, 64, 3, 3)
    fc1 = ortho(g2)(ks[3], (256, 7 * 7 * 64), jnp.float32)      # torch in-axis = (c, h, w)
    fc2 = ortho(g2)(ks[4], (448, 256), jnp.float32)
    actor1 = ortho(0.01)(ks[5], (448, 448), jnp.float32)
    actor2 = ortho(0.01)(ks[6], (output_size, 448), jnp.float32)
    extra = ortho(0.1)(ks[7], (448, 448), jnp.float32)
    cext = ortho(0.01)(ks[8], (1, 448), jnp.float32)
    cint = ortho(0.01)(ks[9], (1, 448), jnp.float32)

    # Re-order fc1's input axis from torch's NCHW flatten (c,h,w) to our (h,w,c) flatten.
    fc1_hwc = fc1.reshape(256, 64, 7, 7).transpose(0, 2, 3, 1).reshape(256, 7 * 7 * 64)

    return {
        "conv1_w": _prep_conv_w_chw(conv1), "conv1_b": _zeros_bias(32),
        "conv2_w": _prep_conv_w_hwc(conv2), "conv2_b": _zeros_bias(64),
        "conv3_w": _prep_conv_w_hwc(conv3), "conv3_b": _zeros_bias(64),
        "fc1_w": _prep_linear_w(fc1_hwc), "fc1_b": _zeros_bias(256),
        "fc2_w": _prep_linear_w(fc2, pad_out_to=HID), "fc2_b": _zeros_bias(HID),
        "actor1_w": _prep_linear_w(actor1, pad_in_to=HID, pad_out_to=HID),
        "actor1_b": _zeros_bias(HID),
        "actor2_w": _prep_linear_w(actor2, pad_in_to=HID, pad_out_to=LANE),
        "actor2_b": _zeros_bias(LANE),
        "extra_w": _prep_linear_w(extra, pad_in_to=HID, pad_out_to=HID),
        "extra_b": _zeros_bias(HID),
        # critic_ext / critic_int packed as one (512, 2) head, zero-padded to 128 lanes
        "heads_w": _prep_linear_w(jnp.concatenate([cext, cint], axis=0),
                                  pad_in_to=HID, pad_out_to=LANE),
        "heads_b": _zeros_bias(LANE),
    }


# ------------------------------ forward pass -------------------------------- #

def forward(params, state, *, output_size):
    """state: (N, 4, 84, 84) NCHW fp32.  Returns (policy, value_ext, value_int) in fp32."""
    N = state.shape[0]

    # Conv(4->32, k8, s4) + ReLU : patches built straight from NCHW f32 (cast fused).
    p, oh, ow = _im2col_conv1_nchw(state, 8, 4)
    x = pallas_gemm_bias_relu(p, params["conv1_w"], params["conv1_b"])     # (N*400, 32)
    x = x.reshape(N, oh, ow, 32)                                           # free bitcast

    # Conv(32->64, k4, s2) + ReLU
    p, oh, ow = _im2col_nhwc(x, 4, 2)
    x = pallas_gemm_bias_relu(p, params["conv2_w"], params["conv2_b"])     # (N*81, 64)
    x = x.reshape(N, oh, ow, 64)                                           # free bitcast

    # Conv(64->64, k3, s1) + ReLU
    p, oh, ow = _im2col_nhwc(x, 3, 1)
    x = pallas_gemm_bias_relu(p, params["conv3_w"], params["conv3_b"])     # (N*49, 64)
    flat = x.reshape(N, oh * ow * 64)                                      # free bitcast, (h,w,c)

    # Fused fc1 / fc2 / actor / extra+residual / critic heads — single pallas_call
    policy_pad, values_pad = pallas_mlp_tail(flat, params)
    policy = policy_pad[:, :output_size]
    value_ext = values_pad[:, 0:1]
    value_int = values_pad[:, 1:2]
    return policy, value_ext, value_int


if __name__ == "__main__":
    key = jax.random.PRNGKey(0)
    pkey, xkey = jax.random.split(key)
    output_size = 6
    batch = 2

    params = init_params(pkey, output_size)
    state = jax.random.normal(xkey, (batch, 4, 84, 84), dtype=jnp.float32)

    fwd = jax.jit(functools.partial(forward, output_size=output_size))
    policy, value_ext, value_int = fwd(params, state)
    jax.block_until_ready((policy, value_ext, value_int))

    assert policy.shape == (batch, output_size)
    assert value_ext.shape == (batch, 1)
    assert value_int.shape == (batch, 1)
    assert policy.dtype == jnp.float32
    assert bool(jnp.all(jnp.isfinite(policy)))
    assert bool(jnp.all(jnp.isfinite(value_ext)))
    assert bool(jnp.all(jnp.isfinite(value_int)))

    print("KERNEL_OK")
</pallas_src>

<mosaic_0001>
module attributes {stable_mosaic.version = 11 : i64} {
  func.func @_gemm_bias_relu_kernel(%arg0: i32, %arg1: memref<400x256xbf16, #tpu.memory_space<vmem>>, %arg2: memref<256x32xbf16, #tpu.memory_space<vmem>>, %arg3: memref<1x32xf32, #tpu.memory_space<vmem>>, %arg4: memref<400x32xbf16, #tpu.memory_space<vmem>>) attributes {dimension_semantics = [#tpu.dimension_semantics<parallel>], iteration_bounds = array<i64: 2>, scalar_prefetch = 0 : i64, scratch_operands = 0 : i64, tpu.core_type = #tpu.core_type<tc>, window_params = [{transform_indices = @transform_0, window_bounds = array<i64: 400, 256>}, {pipeline_mode = #tpu.pipeline_mode<synchronous>, transform_indices = @transform_1, window_bounds = array<i64: 256, 32>}, {pipeline_mode = #tpu.pipeline_mode<synchronous>, transform_indices = @transform_2, window_bounds = array<i64: 1, 32>}, {transform_indices = @transform_3, window_bounds = array<i64: 400, 32>}]} {
    %c0 = arith.constant 0 : index
    %c0_0 = arith.constant 0 : index
    %0 = vector.load %arg1[%c0, %c0_0] : memref<400x256xbf16, #tpu.memory_space<vmem>>, vector<400x256xbf16>
    %c0_1 = arith.constant 0 : index
    %c0_2 = arith.constant 0 : index
    %1 = vector.load %arg2[%c0_1, %c0_2] : memref<256x32xbf16, #tpu.memory_space<vmem>>, vector<256x32xbf16>
    %cst = arith.constant dense<0.000000e+00> : vector<400x32xf32>
    %2 = tpu.matmul %0, %1, %cst {dimension_numbers = #tpu.dot_dimension_numbers<[1], [0], [0], [1], [0, 0, 1, 1], [], []>} : vector<400x256xbf16>, vector<256x32xbf16>, vector<400x32xf32> -> vector<400x32xf32>
    %c0_3 = arith.constant 0 : index
    %c0_4 = arith.constant 0 : index
    %3 = vector.load %arg3[%c0_3, %c0_4] : memref<1x32xf32, #tpu.memory_space<vmem>>, vector<1x32xf32>
    %4 = vector.broadcast %3 : vector<1x32xf32> to vector<400x32xf32>
    %5 = arith.addf %2, %4 : vector<400x32xf32>
    %cst_5 = arith.constant 0.000000e+00 : f32
    %6 = vector.broadcast %cst_5 : f32 to vector<400x32xf32>
    %7 = arith.maximumf %5, %6 : vector<400x32xf32>
    %8 = arith.truncf %7 : vector<400x32xf32> to vector<400x32xbf16>
    %c0_6 = arith.constant 0 : index
    %c0_7 = arith.constant 0 : index
    %9 = vector.load %arg4[%c0_6, %c0_7] : memref<400x32xbf16, #tpu.memory_space<vmem>>, vector<400x32xbf16>
    tpu.vector_store %arg4[%c0_6, %c0_7], %8 {strides = array<i32>} : memref<400x32xbf16, #tpu.memory_space<vmem>>, vector<400x32xbf16>,
    return
  }
  func.func @transform_0(%arg0: i32) -> (i32, i32) {
    %c0_i32 = arith.constant 0 : i32
    %c0_i32_0 = arith.constant 0 : i32
    return %arg0, %c0_i32 : i32, i32
  }
  func.func @transform_1(%arg0: i32) -> (i32, i32) {
    %c0_i32 = arith.constant 0 : i32
    %c0_i32_0 = arith.constant 0 : i32
    %c0_i32_1 = arith.constant 0 : i32
    return %c0_i32, %c0_i32_0 : i32, i32
  }
  func.func @transform_2(%arg0: i32) -> (i32, i32) {
    %c0_i32 = arith.constant 0 : i32
    %c0_i32_0 = arith.constant 0 : i32
    %c0_i32_1 = arith.constant 0 : i32
    return %c0_i32, %c0_i32_0 : i32, i32
  }
  func.func @transform_3(%arg0: i32) -> (i32, i32) {
    %c0_i32 = arith.constant 0 : i32
    %c0_i32_0 = arith.constant 0 : i32
    return %arg0, %c0_i32 : i32, i32
  }
}

module attributes {stable_mosaic.version = 11 : i64} {
  func.func @_gemm_bias_relu_kernel(%arg0: i32, %arg1: memref<88x512xbf16, #tpu.memory_space<vmem>>, %arg2: memref<512x64xbf16, #tpu.memory_space<vmem>>, %arg3: memref<1x64xf32, #tpu.memory_space<vmem>>, %arg4: memref<88x64xbf16, #tpu.memory_space<vmem>>) attributes {dimension_semantics = [#tpu.dimension_semantics<parallel>], iteration_bounds = array<i64: 2>, scalar_prefetch = 0 : i64, scratch_operands = 0 : i64, tpu.core_type = #tpu.core_type<tc>, window_params = [{transform_indices = @transform_0, window_bounds = array<i64: 88, 512>}, {pipeline_mode = #tpu.pipeline_mode<synchronous>, transform_indices = @transform_1, window_bounds = array<i64: 512, 64>}, {pipeline_mode = #tpu.pipeline_mode<synchronous>, transform_indices = @transform_2, window_bounds = array<i64: 1, 64>}, {transform_indices = @transform_3, window_bounds = array<i64: 88, 64>}]} {
    %c0 = arith.constant 0 : index
    %c0_0 = arith.constant 0 : index
    %0 = vector.load %arg1[%c0, %c0_0] : memref<88x512xbf16, #tpu.memory_space<vmem>>, vector<88x512xbf16>
    %c0_1 = arith.constant 0 : index
    %c0_2 = arith.constant 0 : index
    %1 = vector.load %arg2[%c0_1, %c0_2] : memref<512x64xbf16, #tpu.memory_space<vmem>>, vector<512x64xbf16>
    %cst = arith.constant dense<0.000000e+00> : vector<88x64xf32>
    %2 = tpu.matmul %0, %1, %cst {dimension_numbers = #tpu.dot_dimension_numbers<[1], [0], [0], [1], [0, 0, 1, 1], [], []>} : vector<88x512xbf16>, vector<512x64xbf16>, vector<88x64xf32> -> vector<88x64xf32>
    %c0_3 = arith.constant 0 : index
    %c0_4 = arith.constant 0 : index
    %3 = vector.load %arg3[%c0_3, %c0_4] : memref<1x64xf32, #tpu.memory_space<vmem>>, vector<1x64xf32>
    %4 = vector.broadcast %3 : vector<1x64xf32> to vector<88x64xf32>
    %5 = arith.addf %2, %4 : vector<88x64xf32>
    %cst_5 = arith.constant 0.000000e+00 : f32
    %6 = vector.broadcast %cst_5 : f32 to vector<88x64xf32>
    %7 = arith.maximumf %5, %6 : vector<88x64xf32>
    %8 = arith.truncf %7 : vector<88x64xf32> to vector<88x64xbf16>
    %c0_6 = arith.constant 0 : index
    %c0_7 = arith.constant 0 : index
    %9 = vector.load %arg4[%c0_6, %c0_7] : memref<88x64xbf16, #tpu.memory_space<vmem>>, vector<88x64xbf16>
    tpu.vector_store %arg4[%c0_6, %c0_7], %8 {strides = array<i32>} : memref<88x64xbf16, #tpu.memory_space<vmem>>, vector<88x64xbf16>,
    return
  }
  func.func @transform_0(%arg0: i32) -> (i32, i32) {
    %c0_i32 = arith.constant 0 : i32
    %c0_i32_0 = arith.constant 0 : i32
    return %arg0, %c0_i32 : i32, i32
  }
  func.func @transform_1(%arg0: i32) -> (i32, i32) {
    %c0_i32 = arith.constant 0 : i32
    %c0_i32_0 = arith.constant 0 : i32
    %c0_i32_1 = arith.constant 0 : i32
    return %c0_i32, %c0_i32_0 : i32, i32
  }
  func.func @transform_2(%arg0: i32) -> (i32, i32) {
    %c0_i32 = arith.constant 0 : i32
    %c0_i32_0 = arith.constant 0 : i32
    %c0_i32_1 = arith.constant 0 : i32
    return %c0_i32, %c0_i32_0 : i32, i32
  }
  func.func @transform_3(%arg0: i32) -> (i32, i32) {
    %c0_i32 = arith.constant 0 : i32
    %c0_i32_0 = arith.constant 0 : i32
    return %arg0, %c0_i32 : i32, i32
  }
}

module attributes {stable_mosaic.version = 11 : i64} {
  func.func @_gemm_bias_relu_kernel(%arg0: i32, %arg1: memref<56x576xbf16, #tpu.memory_space<vmem>>, %arg2: memref<576x64xbf16, #tpu.memory_space<vmem>>, %arg3: memref<1x64xf32, #tpu.memory_space<vmem>>, %arg4: memref<56x64xbf16, #tpu.memory_space<vmem>>) attributes {dimension_semantics = [#tpu.dimension_semantics<parallel>], iteration_bounds = array<i64: 2>, scalar_prefetch = 0 : i64, scratch_operands = 0 : i64, tpu.core_type = #tpu.core_type<tc>, window_params = [{transform_indices = @transform_0, window_bounds = array<i64: 56, 576>}, {pipeline_mode = #tpu.pipeline_mode<synchronous>, transform_indices = @transform_1, window_bounds = array<i64: 576, 64>}, {pipeline_mode = #tpu.pipeline_mode<synchronous>, transform_indices = @transform_2, window_bounds = array<i64: 1, 64>}, {transform_indices = @transform_3, window_bounds = array<i64: 56, 64>}]} {
    %c0 = arith.constant 0 : index
    %c0_0 = arith.constant 0 : index
    %0 = vector.load %arg1[%c0, %c0_0] : memref<56x576xbf16, #tpu.memory_space<vmem>>, vector<56x576xbf16>
    %c0_1 = arith.constant 0 : index
    %c0_2 = arith.constant 0 : index
    %1 = vector.load %arg2[%c0_1, %c0_2] : memref<576x64xbf16, #tpu.memory_space<vmem>>, vector<576x64xbf16>
    %cst = arith.constant dense<0.000000e+00> : vector<56x64xf32>
    %2 = tpu.matmul %0, %1, %cst {dimension_numbers = #tpu.dot_dimension_numbers<[1], [0], [0], [1], [0, 0, 1, 1], [], []>} : vector<56x576xbf16>, vector<576x64xbf16>, vector<56x64xf32> -> vector<56x64xf32>
    %c0_3 = arith.constant 0 : index
    %c0_4 = arith.constant 0 : index
    %3 = vector.load %arg3[%c0_3, %c0_4] : memref<1x64xf32, #tpu.memory_space<vmem>>, vector<1x64xf32>
    %4 = vector.broadcast %3 : vector<1x64xf32> to vector<56x64xf32>
    %5 = arith.addf %2, %4 : vector<56x64xf32>
    %cst_5 = arith.constant 0.000000e+00 : f32
    %6 = vector.broadcast %cst_5 : f32 to vector<56x64xf32>
    %7 = arith.maximumf %5, %6 : vector<56x64xf32>
    %8 = arith.truncf %7 : vector<56x64xf32> to vector<56x64xbf16>
    %c0_6 = arith.constant 0 : index
    %c0_7 = arith.constant 0 : index
    %9 = vector.load %arg4[%c0_6, %c0_7] : memref<56x64xbf16, #tpu.memory_space<vmem>>, vector<56x64xbf16>
    tpu.vector_store %arg4[%c0_6, %c0_7], %8 {strides = array<i32>} : memref<56x64xbf16, #tpu.memory_space<vmem>>, vector<56x64xbf16>,
    return
  }
  func.func @transform_0(%arg0: i32) -> (i32, i32) {
    %c0_i32 = arith.constant 0 : i32
    %c0_i32_0 = arith.constant 0 : i32
    return %arg0, %c0_i32 : i32, i32
  }
  func.func @transform_1(%arg0: i32) -> (i32, i32) {
    %c0_i32 = arith.constant 0 : i32
    %c0_i32_0 = arith.constant 0 : i32
    %c0_i32_1 = arith.constant 0 : i32
    return %c0_i32, %c0_i32_0 : i32, i32
  }
  func.func @transform_2(%arg0: i32) -> (i32, i32) {
    %c0_i32 = arith.constant 0 : i32
    %c0_i32_0 = arith.constant 0 : i32
    %c0_i32_1 = arith.constant 0 : i32
    return %c0_i32, %c0_i32_0 : i32, i32
  }
  func.func @transform_3(%arg0: i32) -> (i32, i32) {
    %c0_i32 = arith.constant 0 : i32
    %c0_i32_0 = arith.constant 0 : i32
    return %arg0, %c0_i32 : i32, i32
  }
}

module attributes {stable_mosaic.version = 11 : i64} {
  func.func @_mlp_tail_kernel(%arg0: i32, %arg1: memref<8x3136xbf16, #tpu.memory_space<vmem>>, %arg2: memref<3136x256xbf16, #tpu.memory_space<vmem>>, %arg3: memref<1x256xf32, #tpu.memory_space<vmem>>, %arg4: memref<256x512xbf16, #tpu.memory_space<vmem>>, %arg5: memref<1x512xf32, #tpu.memory_space<vmem>>, %arg6: memref<512x512xbf16, #tpu.memory_space<vmem>>, %arg7: memref<1x512xf32, #tpu.memory_space<vmem>>, %arg8: memref<512x128xbf16, #tpu.memory_space<vmem>>, %arg9: memref<1x128xf32, #tpu.memory_space<vmem>>, %arg10: memref<512x512xbf16, #tpu.memory_space<vmem>>, %arg11: memref<1x512xf32, #tpu.memory_space<vmem>>, %arg12: memref<512x128xbf16, #tpu.memory_space<vmem>>, %arg13: memref<1x128xf32, #tpu.memory_space<vmem>>, %arg14: memref<8x128xf32, #tpu.memory_space<vmem>>, %arg15: memref<8x128xf32, #tpu.memory_space<vmem>>) attributes {dimension_semantics = [#tpu.dimension_semantics<parallel>], iteration_bounds = array<i64: 1>, scalar_prefetch = 0 : i64, scratch_operands = 0 : i64, tpu.core_type = #tpu.core_type<tc>, window_params = [{transform_indices = @transform_0, window_bounds = array<i64: 8, 3136>}, {pipeline_mode = #tpu.pipeline_mode<synchronous>, transform_indices = @transform_1, window_bounds = array<i64: 3136, 256>}, {pipeline_mode = #tpu.pipeline_mode<synchronous>, transform_indices = @transform_2, window_bounds = array<i64: 1, 256>}, {pipeline_mode = #tpu.pipeline_mode<synchronous>, transform_indices = @transform_3, window_bounds = array<i64: 256, 512>}, {pipeline_mode = #tpu.pipeline_mode<synchronous>, transform_indices = @transform_4, window_bounds = array<i64: 1, 512>}, {pipeline_mode = #tpu.pipeline_mode<synchronous>, transform_indices = @transform_5, window_bounds = array<i64: 512, 512>}, {pipeline_mode = #tpu.pipeline_mode<synchronous>, transform_indices = @transform_6, window_bounds = array<i64: 1, 512>}, {pipeline_mode = #tpu.pipeline_mode<synchronous>, transform_indices = @transform_7, window_bounds = array<i64: 512, 128>}, {pipeline_mode = #tpu.pipeline_mode<synchronous>, transform_indices = @transform_8, window_bounds = array<i64: 1, 128>}, {pipeline_mode = #tpu.pipeline_mode<synchronous>, transform_indices = @transform_9, window_bounds = array<i64: 512, 512>}, {pipeline_mode = #tpu.pipeline_mode<synchronous>, transform_indices = @transform_10, window_bounds = array<i64: 1, 512>}, {pipeline_mode = #tpu.pipeline_mode<synchronous>, transform_indices = @transform_11, window_bounds = array<i64: 512, 128>}, {pipeline_mode = #tpu.pipeline_mode<synchronous>, transform_indices = @transform_12, window_bounds = array<i64: 1, 128>}, {transform_indices = @transform_13, window_bounds = array<i64: 8, 128>}, {transform_indices = @transform_14, window_bounds = array<i64: 8, 128>}]} {
    %c0 = arith.constant 0 : index
    %c0_0 = arith.constant 0 : index
    %0 = vector.load %arg1[%c0, %c0_0] : memref<8x3136xbf16, #tpu.memory_space<vmem>>, vector<8x3136xbf16>
    %c0_1 = arith.constant 0 : index
    %c0_2 = arith.constant 0 : index
    %1 = vector.load %arg2[%c0_1, %c0_2] : memref<3136x256xbf16, #tpu.memory_space<vmem>>, vector<3136x256xbf16>
    %cst = arith.constant dense<0.000000e+00> : vector<8x256xf32>
    %2 = tpu.matmul %0, %1, %cst {dimension_numbers = #tpu.dot_dimension_numbers<[1], [0], [0], [1], [0, 0, 1, 1], [], []>} : vector<8x3136xbf16>, vector<3136x256xbf16>, vector<8x256xf32> -> vector<8x256xf32>
    %c0_3 = arith.constant 0 : index
    %c0_4 = arith.constant 0 : index
    %3 = vector.load %arg3[%c0_3, %c0_4] : memref<1x256xf32, #tpu.memory_space<vmem>>, vector<1x256xf32>
    %4 = vector.broadcast %3 : vector<1x256xf32> to vector<8x256xf32>
    %5 = arith.addf %2, %4 : vector<8x256xf32>
    %cst_5 = arith.constant 0.000000e+00 : f32
    %6 = vector.broadcast %cst_5 : f32 to vector<8x256xf32>
    %7 = arith.maximumf %5, %6 : vector<8x256xf32>
    %8 = arith.truncf %7 : vector<8x256xf32> to vector<8x256xbf16>
    %c0_6 = arith.constant 0 : index
    %c0_7 = arith.constant 0 : index
    %9 = vector.load %arg4[%c0_6, %c0_7] : memref<256x512xbf16, #tpu.memory_space<vmem>>, vector<256x512xbf16>
    %cst_8 = arith.constant dense<0.000000e+00> : vector<8x512xf32>
    %10 = tpu.matmul %8, %9, %cst_8 {dimension_numbers = #tpu.dot_dimension_numbers<[1], [0], [0], [1], [0, 0, 1, 1], [], []>} : vector<8x256xbf16>, vector<256x512xbf16>, vector<8x512xf32> -> vector<8x512xf32>
    %c0_9 = arith.constant 0 : index
    %c0_10 = arith.constant 0 : index
    %11 = vector.load %arg5[%c0_9, %c0_10] : memref<1x512xf32, #tpu.memory_space<vmem>>, vector<1x512xf32>
    %12 = vector.broadcast %11 : vector<1x512xf32> to vector<8x512xf32>
    %13 = arith.addf %10, %12 : vector<8x512xf32>
    %cst_11 = arith.constant 0.000000e+00 : f32
    %14 = vector.broadcast %cst_11 : f32 to vector<8x512xf32>
    %15 = arith.maximumf %13, %14 : vector<8x512xf32>
    %16 = arith.truncf %15 : vector<8x512xf32> to vector<8x512xbf16>
    %c0_12 = arith.constant 0 : index
    %c0_13 = arith.constant 0 : index
    %17 = vector.load %arg6[%c0_12, %c0_13] : memref<512x512xbf16, #tpu.memory_space<vmem>>, vector<512x512xbf16>
    %cst_14 = arith.constant dense<0.000000e+00> : vector<8x512xf32>
    %18 = tpu.matmul %16, %17, %cst_14 {dimension_numbers = #tpu.dot_dimension_numbers<[1], [0], [0], [1], [0, 0, 1, 1], [], []>} : vector<8x512xbf16>, vector<512x512xbf16>, vector<8x512xf32> -> vector<8x512xf32>
    %c0_15 = arith.constant 0 : index
    %c0_16 = arith.constant 0 : index
    %19 = vector.load %arg7[%c0_15, %c0_16] : memref<1x512xf32, #tpu.memory_space<vmem>>, vector<1x512xf32>
    %20 = vector.broadcast %19 : vector<1x512xf32> to vector<8x512xf32>
    %21 = arith.addf %18, %20 : vector<8x512xf32>
    %cst_17 = arith.constant 0.000000e+00 : f32
    %22 = vector.broadcast %cst_17 : f32 to vector<8x512xf32>
    %23 = arith.maximumf %21, %22 : vector<8x512xf32>
    %24 = arith.truncf %23 : vector<8x512xf32> to vector<8x512xbf16>
    %c0_18 = arith.constant 0 : index
    %c0_19 = arith.constant 0 : index
    %25 = vector.load %arg8[%c0_18, %c0_19] : memref<512x128xbf16, #tpu.memory_space<vmem>>, vector<512x128xbf16>
    %cst_20 = arith.constant dense<0.000000e+00> : vector<8x128xf32>
    %26 = tpu.matmul %24, %25, %cst_20 {dimension_numbers = #tpu.dot_dimension_numbers<[1], [0], [0], [1], [0, 0, 1, 1], [], []>} : vector<8x512xbf16>, vector<512x128xbf16>, vector<8x128xf32> -> vector<8x128xf32>
    %c0_21 = arith.constant 0 : index
    %c0_22 = arith.constant 0 : index
    %27 = vector.load %arg9[%c0_21, %c0_22] : memref<1x128xf32, #tpu.memory_space<vmem>>, vector<1x128xf32>
    %28 = vector.broadcast %27 : vector<1x128xf32> to vector<8x128xf32>
    %29 = arith.addf %26, %28 : vector<8x128xf32>
    %c0_23 = arith.constant 0 : index
    %c0_24 = arith.constant 0 : index
    %30 = vector.load %arg10[%c0_23, %c0_24] : memref<512x512xbf16, #tpu.memory_space<vmem>>, vector<512x512xbf16>
    %cst_25 = arith.constant dense<0.000000e+00> : vector<8x512xf32>
    %31 = tpu.matmul %16, %30, %cst_25 {dimension_numbers = #tpu.dot_dimension_numbers<[1], [0], [0], [1], [0, 0, 1, 1], [], []>} : vector<8x512xbf16>, vector<512x512xbf16>, vector<8x512xf32> -> vector<8x512xf32>
    %c0_26 = arith.constant 0 : index
    %c0_27 = arith.constant 0 : index
    %32 = vector.load %arg11[%c0_26, %c0_27] : memref<1x512xf32, #tpu.memory_space<vmem>>, vector<1x512xf32>
    %33 = vector.broadcast %32 : vector<1x512xf32> to vector<8x512xf32>
    %34 = arith.addf %31, %33 : vector<8x512xf32>
    %cst_28 = arith.constant 0.000000e+00 : f32
    %35 = vector.broadcast %cst_28 : f32 to vector<8x512xf32>
    %36 = arith.maximumf %34, %35 : vector<8x512xf32>
    %37 = arith.addf %36, %15 : vector<8x512xf32>
    %38 = arith.truncf %37 : vector<8x512xf32> to vector<8x512xbf16>
    %c0_29 = arith.constant 0 : index
    %c0_30 = arith.constant 0 : index
    %39 = vector.load %arg12[%c0_29, %c0_30] : memref<512x128xbf16, #tpu.memory_space<vmem>>, vector<512x128xbf16>
    %cst_31 = arith.constant dense<0.000000e+00> : vector<8x128xf32>
    %40 = tpu.matmul %38, %39, %cst_31 {dimension_numbers = #tpu.dot_dimension_numbers<[1], [0], [0], [1], [0, 0, 1, 1], [], []>} : vector<8x512xbf16>, vector<512x128xbf16>, vector<8x128xf32> -> vector<8x128xf32>
    %c0_32 = arith.constant 0 : index
    %c0_33 = arith.constant 0 : index
    %41 = vector.load %arg13[%c0_32, %c0_33] : memref<1x128xf32, #tpu.memory_space<vmem>>, vector<1x128xf32>
    %42 = vector.broadcast %41 : vector<1x128xf32> to vector<8x128xf32>
    %43 = arith.addf %40, %42 : vector<8x128xf32>
    %c0_34 = arith.constant 0 : index
    %c0_35 = arith.constant 0 : index
    %44 = vector.load %arg14[%c0_34, %c0_35] : memref<8x128xf32, #tpu.memory_space<vmem>>, vector<8x128xf32>
    tpu.vector_store %arg14[%c0_34, %c0_35], %29 {strides = array<i32>} : memref<8x128xf32, #tpu.memory_space<vmem>>, vector<8x128xf32>,
    %c0_36 = arith.constant 0 : index
    %c0_37 = arith.constant 0 : index
    %45 = vector.load %arg15[%c0_36, %c0_37] : memref<8x128xf32, #tpu.memory_space<vmem>>, vector<8x128xf32>
    tpu.vector_store %arg15[%c0_36, %c0_37], %43 {strides = array<i32>} : memref<8x128xf32, #tpu.memory_space<vmem>>, vector<8x128xf32>,
    return
  }
  func.func @transform_0(%arg0: i32) -> (i32, i32) {
    %c0_i32 = arith.constant 0 : i32
    %c0_i32_0 = arith.constant 0 : i32
    return %arg0, %c0_i32 : i32, i32
  }
  func.func @transform_1(%arg0: i32) -> (i32, i32) {
    %c0_i32 = arith.constant 0 : i32
    %c0_i32_0 = arith.constant 0 : i32
    %c0_i32_1 = arith.constant 0 : i32
    return %c0_i32, %c0_i32_0 : i32, i32
  }
  func.func @transform_2(%arg0: i32) -> (i32, i32) {
    %c0_i32 = arith.constant 0 : i32
    %c0_i32_0 = arith.constant 0 : i32
    %c0_i32_1 = arith.constant 0 : i32
    return %c0_i32, %c0_i32_0 : i32, i32
  }
  func.func @transform_3(%arg0: i32) -> (i32, i32) {
    %c0_i32 = arith.constant 0 : i32
    %c0_i32_0 = arith.constant 0 : i32
    %c0_i32_1 = arith.constant 0 : i32
    return %c0_i32, %c0_i32_0 : i32, i32
  }
  func.func @transform_4(%arg0: i32) -> (i32, i32) {
    %c0_i32 = arith.constant 0 : i32
    %c0_i32_0 = arith.constant 0 : i32
    %c0_i32_1 = arith.constant 0 : i32
    return %c0_i32, %c0_i32_0 : i32, i32
  }
  func.func @transform_5(%arg0: i32) -> (i32, i32) {
    %c0_i32 = arith.constant 0 : i32
    %c0_i32_0 = arith.constant 0 : i32
    %c0_i32_1 = arith.constant 0 : i32
    return %c0_i32, %c0_i32_0 : i32, i32
  }
  func.func @transform_6(%arg0: i32) -> (i32, i32) {
    %c0_i32 = arith.constant 0 : i32
    %c0_i32_0 = arith.constant 0 : i32
    %c0_i32_1 = arith.constant 0 : i32
    return %c0_i32, %c0_i32_0 : i32, i32
  }
  func.func @transform_7(%arg0: i32) -> (i32, i32) {
    %c0_i32 = arith.constant 0 : i32
    %c0_i32_0 = arith.constant 0 : i32
    %c0_i32_1 = arith.constant 0 : i32
    return %c0_i32, %c0_i32_0 : i32, i32
  }
  func.func @transform_8(%arg0: i32) -> (i32, i32) {
    %c0_i32 = arith.constant 0 : i32
    %c0_i32_0 = arith.constant 0 : i32
    %c0_i32_1 = arith.constant 0 : i32
    return %c0_i32, %c0_i32_0 : i32, i32
  }
  func.func @transform_9(%arg0: i32) -> (i32, i32) {
    %c0_i32 = arith.constant 0 : i32
    %c0_i32_0 = arith.constant 0 : i32
    %c0_i32_1 = arith.constant 0 : i32
    return %c0_i32, %c0_i32_0 : i32, i32
  }
  func.func @transform_10(%arg0: i32) -> (i32, i32) {
    %c0_i32 = arith.constant 0 : i32
    %c0_i32_0 = arith.constant 0 : i32
    %c0_i32_1 = arith.constant 0 : i32
    return %c0_i32, %c0_i32_0 : i32, i32
  }
  func.func @transform_11(%arg0: i32) -> (i32, i32) {
    %c0_i32 = arith.constant 0 : i32
    %c0_i32_0 = arith.constant 0 : i32
    %c0_i32_1 = arith.constant 0 : i32
    return %c0_i32, %c0_i32_0 : i32, i32
  }
  func.func @transform_12(%arg0: i32) -> (i32, i32) {
    %c0_i32 = arith.constant 0 : i32
    %c0_i32_0 = arith.constant 0 : i32
    %c0_i32_1 = arith.constant 0 : i32
    return %c0_i32, %c0_i32_0 : i32, i32
  }
  func.func @transform_13(%arg0: i32) -> (i32, i32) {
    %c0_i32 = arith.constant 0 : i32
    %c0_i32_0 = arith.constant 0 : i32
    return %arg0, %c0_i32 : i32, i32
  }
  func.func @transform_14(%arg0: i32) -> (i32, i32) {
    %c0_i32 = arith.constant 0 : i32
    %c0_i32_0 = arith.constant 0 : i32
    return %arg0, %c0_i32 : i32, i32
  }
}

</mosaic_0001>

<llo_original>
// kernel: forward.4
$region0: #{forward.4}
  #allocation0 [shape = 'u32[]', space=smem, size = 0x4, offset = 0x4, fixed_abs, tag = 'smem constant byte address 0x4 - core index']
  #allocation1 [shape = 'u32[144,128]{1,0:T(1,128)}', space=vmem, size = 0x12000, scoped, tag = 'internal scratch']
  %s0 = inlined_call_operand.vmem [shape: bf16[800,256], index: 0, kind: input, shape index: {}]
  %s1 = inlined_call_operand.vmem [shape: bf16[256,32], index: 1, kind: input, shape index: {}]
  %s2 = inlined_call_operand.vmem [shape: f32[1,32], index: 2, kind: input, shape index: {}]
  %s3 = inlined_call_operand.vmem [shape: bf16[800,32], index: 3, kind: output, shape index: {}]
  %s4 = sld [smem:[#allocation0]]
  $region45: #{forward.4} parent=0
    _
  %s6 = ssub.s32 1, %s4
  %s7 = scalar_select 0, %s6, %s4
  loop: start=0, step=1, limit=4
  $region2: #{forward.4} parent=0 // loop_pre_header
    _
  $region3: #{forward.4} parent=0 // loop_header
    %s9 = sphi 0, %s13
    %p10 = scmp.ge.s32.totalorder %s9, 4
    %s19 = sphi 0, %s21
    %s22 = sphi 0, %s19
    %s23 = sphi 0, %s22
    %s39 = sphi 0, %s23
    %s43 = sphi 0, %s43
    %s45 = sphi 0, %s43
    %s46 = sphi 0, %s45
    %s60 = sphi 0, %s46
    %s64 = sphi 0, %s64
    %s66 = sphi 0, %s64
    %s67 = sphi 0, %s66
    %s81 = sphi 0, %s67
    %s87 = sphi 0, %s89
    %s90 = sphi 0, %s87
    %s91 = sphi 0, %s90
    %s107 = sphi 0, %s91
  $region4: #{forward.4} parent=0 // loop_header_branch
    %12 = sbr.rel (%p10) target = $region8
  $region5: #{forward.4} parent=0 // loop_body
    %s14 = ssub.s32 %s9, 1
    %s15 = ssub.s32 %s9, 2
    %s16 = sadd.s32 %s9, 1
    %s17 = ssub.s32 %s9, %s16
    %p18 = scmp.eq.s32.totalorder %s17, 0
    %s20 = sadd.s32 %s19, 1
    %s21 = scalar_select %p18, %s19, %s20
    %p24 = pneg %p18
    %p25 = scmp.eq.s32.totalorder %s9, 1
    %p26 = por %p24, %p25
    %p27 = scmp.ne.s32.totalorder %s19, %s22
    %p28 = scmp.eq.s32.totalorder %s9, 0
    %p29 = por %p27, %p28
    %p30 = scmp.ne.s32.totalorder %s19, %s22
    %p31 = scmp.eq.s32.totalorder %s14, 1
    %p32 = por %p30, %p31
    %p33 = scmp.ne.s32.totalorder %s22, %s23
    %p34 = scmp.eq.s32.totalorder %s14, 0
    %p35 = por %p33, %p34
    %p36 = scmp.ne.s32.totalorder %s22, %s23
    %p37 = scmp.eq.s32.totalorder %s15, 1
    %p38 = por %p36, %p37
    %p40 = scmp.ne.s32.totalorder %s23, %s39
    %p41 = scmp.eq.s32.totalorder %s15, 0
    %p42 = por %p40, %p41
    %s44 = sadd.s32 %s43, 1
    %p47 = scmp.eq.s32.totalorder %s9, 1
    %p48 = scmp.ne.s32.totalorder %s43, %s45
    %p49 = scmp.eq.s32.totalorder %s9, 0
    %p50 = por %p48, %p49
    %p51 = scmp.ne.s32.totalorder %s43, %s45
    %p52 = scmp.eq.s32.totalorder %s14, 1
    %p53 = por %p51, %p52
    %p54 = scmp.ne.s32.totalorder %s45, %s46
    %p55 = scmp.eq.s32.totalorder %s14, 0
    %p56 = por %p54, %p55
    %p57 = scmp.ne.s32.totalorder %s45, %s46
    %p58 = scmp.eq.s32.totalorder %s15, 1
    %p59 = por %p57, %p58
    %p61 = scmp.ne.s32.totalorder %s46, %s60
    %p62 = scmp.eq.s32.totalorder %s15, 0
    %p63 = por %p61, %p62
    %s65 = sadd.s32 %s64, 1
    %p68 = scmp.eq.s32.totalorder %s9, 1
    %p69 = scmp.ne.s32.totalorder %s64, %s66
    %p70 = scmp.eq.s32.totalorder %s9, 0
    %p71 = por %p69, %p70
    %p72 = scmp.ne.s32.totalorder %s64, %s66
    %p73 = scmp.eq.s32.totalorder %s14, 1
    %p74 = por %p72, %p73
    %p75 = scmp.ne.s32.totalorder %s66, %s67
    %p76 = scmp.eq.s32.totalorder %s14, 0
    %p77 = por %p75, %p76
    %p78 = scmp.ne.s32.totalorder %s66, %s67
    %p79 = scmp.eq.s32.totalorder %s15, 1
    %p80 = por %p78, %p79
    %p82 = scmp.ne.s32.totalorder %s67, %s81
    %p83 = scmp.eq.s32.totalorder %s15, 0
    %p84 = por %p82, %p83
    %s85 = ssub.s32 %s9, %s16
    %p86 = scmp.eq.s32.totalorder %s85, 0
    %s88 = sadd.s32 %s87, 1
    %s89 = scalar_select %p86, %s87, %s88
    %p92 = pneg %p86
    %p93 = scmp.eq.s32.totalorder %s9, 1
    %p94 = por %p92, %p93
    %p95 = scmp.ne.s32.totalorder %s87, %s90
    %p96 = scmp.eq.s32.totalorder %s9, 0
    %p97 = por %p95, %p96
    %p98 = scmp.ne.s32.totalorder %s87, %s90
    %p99 = scmp.eq.s32.totalorder %s14, 1
    %p100 = por %p98, %p99
    %p101 = scmp.ne.s32.totalorder %s90, %s91
    %p102 = scmp.eq.s32.totalorder %s14, 0
    %p103 = por %p101, %p102
    %p104 = scmp.ne.s32.totalorder %s90, %s91
    %p105 = scmp.eq.s32.totalorder %s15, 1
    %p106 = por %p104, %p105
    %p108 = scmp.ne.s32.totalorder %s91, %s107
    %p109 = scmp.eq.s32.totalorder %s15, 0
    %p110 = por %p108, %p109
    %p111 = scmp.le.s32.totalorder 1, %s9
    %p112 = scmp.lt.s32.totalorder %s9, 3
    %p113 = pnand %p111, %p112
    %p114 = pneg %p113
    // Predicated region
    $region9: #{forward.4} parent=5 // pred_check
      _
    $region10: #{forward.4} parent=5 // pred_check_branch
      %116 = sbr.rel (%p113) target = $region12
    $region11: #{forward.4} parent=5 // pred_region
      %s117 = ssub.s32 %s9, 1
      // Predicated region
      $region13: #{forward.4} parent=11 // pred_check
        %p118 = pneg %p56
      $region14: #{forward.4} parent=11 // pred_check_branch
        %120 = sbr.rel (%p118) target = $region16
      $region15: #{forward.4} parent=11 // pred_region
        _
      $region16: #{forward.4} parent=11 // pred_fallthru
        _
      // Predicated region
      $region17: #{forward.4} parent=11 // pred_check
        %p121 = pneg %p77
      $region18: #{forward.4} parent=11 // pred_check_branch
        %123 = sbr.rel (%p121) target = $region20
      $region19: #{forward.4} parent=11 // pred_region
        _
      $region20: #{forward.4} parent=11 // pred_fallthru
        _
    $region12: #{forward.4} parent=5 // pred_fallthru
      _
    %p124 = scmp.lt.s32.totalorder %s9, 2
    // Predicated region
    $region21: #{forward.4} parent=5 // pred_check
      %p125 = pneg %p124
    $region22: #{forward.4} parent=5 // pred_check_branch
      %127 = sbr.rel (%p125) target = $region24
    $region23: #{forward.4} parent=5 // pred_region
      // Predicated region
      $region25: #{forward.4} parent=23 // pred_check
        %p128 = pneg %p29
      $region26: #{forward.4} parent=23 // pred_check_branch
        %130 = sbr.rel (%p128) target = $region28
      $region27: #{forward.4} parent=23 // pred_region
        %s131 = smul.u32 50, %s9
        %p132 = scmp.lt.s32.totalorder %s131, 99
        %s133 = scalar_select %p132, %s131, 99
        %s134 = smul.addr %s133, 2
        %s135 = smul.addr %s134, 4
        %s136 = scalar_lea.vmem %s0, %s135
        %s137 = smul.u32 50, %s9
      $region28: #{forward.4} parent=23 // pred_fallthru
        _
    $region24: #{forward.4} parent=5 // pred_fallthru
      _
    %p138 = scmp.le.s32.totalorder 1, %s9
    %p139 = scmp.lt.s32.totalorder %s9, 3
    %p140 = pnand %p138, %p139
    %p141 = pneg %p140
    // Predicated region
    $region29: #{forward.4} parent=5 // pred_check
      _
    $region30: #{forward.4} parent=5 // pred_check_branch
      %143 = sbr.rel (%p140) target = $region32
    $region31: #{forward.4} parent=5 // pred_region
      %s144 = ssub.s32 %s9, 1
      %s145 = smul.u32 50, %s14
      %p146 = scmp.lt.s32.totalorder %s145, 99
      %s147 = scalar_select %p146, %s145, 99
      %s148 = smul.addr %s147, 2
      %s149 = smul.addr %s148, 4
      %s150 = scalar_lea.vmem %s0, %s149
      %p151 = pneg %p35
      %p152 = pneg %p32
      %p153 = pneg %p56
      %p154 = pneg %p53
      %p155 = pneg %p77
      %p156 = pneg %p74
      %p157 = pneg %p103
      %p158 = pneg %p100
      %s159 = smul.u32 50, %s14
      %p160 = scmp.lt.s32.totalorder %s159, 99
      %s161 = scalar_select %p160, %s159, 99
      %s162 = smul.addr %s161, 4
      %s163 = scalar_lea.vmem %s3, %s162
      %s164 = smul.u32 50, %s14
      %p165 = scmp.lt.s32.totalorder %s164, 99
      %s166 = scalar_select %p165, %s164, 99
      %s167 = smul.addr %s166, 2
      %s168 = smul.addr %s167, 4
      %s169 = scalar_lea.vmem %s0, %s168
      %s170 = smul.u32 50, %s14
      %s171 = smul.u32 50, %s14
      %p172 = scmp.lt.s32.totalorder %s171, 99
      %s173 = scalar_select %p172, %s171, 99
      %s174 = smul.addr %s173, 4
      %s175 = scalar_lea.vmem %s3, %s174
      %s176 = smul.u32 50, %s14
      %v178 = vld [vmem:[%s169] sm:$0xff]
      %v179 = vld [vmem:[%s169 + $0x8] sm:$0xff]
      %v180 = vld [vmem:[%s169 + $0x10] sm:$0xff]
      %v181 = vld [vmem:[%s169 + $0x18] sm:$0xff]
      %v182 = vld [vmem:[%s169 + $0x20] sm:$0xff]
      %v183 = vld [vmem:[%s169 + $0x28] sm:$0xff]
      %v184 = vld [vmem:[%s169 + $0x30] sm:$0xff]
      %v185 = vld [vmem:[%s169 + $0x38] sm:$0xff]
      %v186 = vld [vmem:[%s169 + $0x40] sm:$0xff]
      %v187 = vld [vmem:[%s169 + $0x48] sm:$0xff]
      %v188 = vld [vmem:[%s169 + $0x50] sm:$0xff]
      %v189 = vld [vmem:[%s169 + $0x58] sm:$0xff]
      %v190 = vld [vmem:[%s169 + $0x60] sm:$0xff]
      %v191 = vld [vmem:[%s169 + $0x68] sm:$0xff]
      %v192 = vld [vmem:[%s169 + $0x70] sm:$0xff]
      %v193 = vld [vmem:[%s169 + $0x78] sm:$0xff]
      %v194 = vld [vmem:[%s169 + $0x80] sm:$0xff]
      %v195 = vld [vmem:[%s169 + $0x88] sm:$0xff]
      %v196 = vld [vmem:[%s169 + $0x90] sm:$0xff]
      %v197 = vld [vmem:[%s169 + $0x98] sm:$0xff]
      %v198 = vld [vmem:[%s169 + $0xa0] sm:$0xff]
      %v199 = vld [vmem:[%s169 + $0xa8] sm:$0xff]
      %v200 = vld [vmem:[%s169 + $0xb0] sm:$0xff]
      %v201 = vld [vmem:[%s169 + $0xb8] sm:$0xff]
      %v202 = vld [vmem:[%s169 + $0xc0] sm:$0xff]
      %v203 = vld [vmem:[%s169 + $0xc8] sm:$0xff]
      %v204 = vld [vmem:[%s169 + $0xd0] sm:$0xff]
      %v205 = vld [vmem:[%s169 + $0xd8] sm:$0xff]
      %v206 = vld [vmem:[%s169 + $0xe0] sm:$0xff]
      %v207 = vld [vmem:[%s169 + $0xe8] sm:$0xff]
      %v208 = vld [vmem:[%s169 + $0xf0] sm:$0xff]
      %v209 = vld [vmem:[%s169 + $0xf8] sm:$0xff]
      %v210 = vld [vmem:[%s169 + $0x100] sm:$0xff]
      %v211 = vld [vmem:[%s169 + $0x108] sm:$0xff]
      %v212 = vld [vmem:[%s169 + $0x110] sm:$0xff]
      %v213 = vld [vmem:[%s169 + $0x118] sm:$0xff]
      %v214 = vld [vmem:[%s169 + $0x120] sm:$0xff]
      %v215 = vld [vmem:[%s169 + $0x128] sm:$0xff]
      %v216 = vld [vmem:[%s169 + $0x130] sm:$0xff]
      %v217 = vld [vmem:[%s169 + $0x138] sm:$0xff]
      %v218 = vld [vmem:[%s169 + $0x140] sm:$0xff]
      %v219 = vld [vmem:[%s169 + $0x148] sm:$0xff]
      %v220 = vld [vmem:[%s169 + $0x150] sm:$0xff]
      %v221 = vld [vmem:[%s169 + $0x158] sm:$0xff]
      %v222 = vld [vmem:[%s169 + $0x160] sm:$0xff]
      %v223 = vld [vmem:[%s169 + $0x168] sm:$0xff]
      %v224 = vld [vmem:[%s169 + $0x170] sm:$0xff]
      %v225 = vld [vmem:[%s169 + $0x178] sm:$0xff]
      %v226 = vld [vmem:[%s169 + $0x180] sm:$0xff]
      %v227 = vld [vmem:[%s169 + $0x188] sm:$0xff]
      %v228 = vld [vmem:[%s1] sm:$0xf]
      %v229 = vld [vmem:[%s1 + $0x4] sm:$0xf]
      %v230 = vld [vmem:[%s1 + $0x8] sm:$0xf]
      %v231 = vld [vmem:[%s1 + $0xc] sm:$0xf]
      %v232 = vld [vmem:[%s1 + $0x10] sm:$0xf]
      %v233 = vld [vmem:[%s1 + $0x14] sm:$0xf]
      %v234 = vld [vmem:[%s1 + $0x18] sm:$0xf]
      %v235 = vld [vmem:[%s1 + $0x1c] sm:$0xf]
      %v236 = vld [vmem:[%s1 + $0x20] sm:$0xf]
      %v237 = vld [vmem:[%s1 + $0x24] sm:$0xf]
      %v238 = vld [vmem:[%s1 + $0x28] sm:$0xf]
      %v239 = vld [vmem:[%s1 + $0x2c] sm:$0xf]
      %v240 = vld [vmem:[%s1 + $0x30] sm:$0xf]
      %v241 = vld [vmem:[%s1 + $0x34] sm:$0xf]
      %v242 = vld [vmem:[%s1 + $0x38] sm:$0xf]
      %v243 = vld [vmem:[%s1 + $0x3c] sm:$0xf]
      %v244 = vld [vmem:[%s1 + $0x40] sm:$0xf]
      %v245 = vld [vmem:[%s1 + $0x44] sm:$0xf]
      %v246 = vld [vmem:[%s1 + $0x48] sm:$0xf]
      %v247 = vld [vmem:[%s1 + $0x4c] sm:$0xf]
      %v248 = vld [vmem:[%s1 + $0x50] sm:$0xf]
      %v249 = vld [vmem:[%s1 + $0x54] sm:$0xf]
      %v250 = vld [vmem:[%s1 + $0x58] sm:$0xf]
      %v251 = vld [vmem:[%s1 + $0x5c] sm:$0xf]
      %v252 = vld [vmem:[%s1 + $0x60] sm:$0xf]
      %v253 = vld [vmem:[%s1 + $0x64] sm:$0xf]
      %v254 = vld [vmem:[%s1 + $0x68] sm:$0xf]
      %v255 = vld [vmem:[%s1 + $0x6c] sm:$0xf]
      %v256 = vld [vmem:[%s1 + $0x70] sm:$0xf]
      %v257 = vld [vmem:[%s1 + $0x74] sm:$0xf]
      %v258 = vld [vmem:[%s1 + $0x78] sm:$0xf]
      %v259 = vld [vmem:[%s1 + $0x7c] sm:$0xf]
      %v260 = vld [vmem:[%s2] sm:$0x1]
      %v262 = vlaneseq
      %v263 = vshrl.u32 %v262, 7
      %v264 = vsub.s32 0, %v263
      %v265 = vrot.slane %v260, %v264
      %v317 = vunpack.c.l.b16 %v178
      %v318 = vunpack.c.h.b16 %v178
      %v319 = vunpack.c.l.b16 %v179
      %v320 = vunpack.c.h.b16 %v179
      %v321 = vunpack.c.l.b16 %v180
      %v322 = vunpack.c.h.b16 %v180
      %v323 = vunpack.c.l.b16 %v181
      %v324 = vunpack.c.h.b16 %v181
      %v325 = vunpack.c.l.b16 %v182
      %v326 = vunpack.c.h.b16 %v182
      %v327 = vunpack.c.l.b16 %v183
      %v328 = vunpack.c.h.b16 %v183
      %v329 = vunpack.c.l.b16 %v184
      %v330 = vunpack.c.h.b16 %v184
      %v331 = vunpack.c.l.b16 %v185
      %v332 = vunpack.c.h.b16 %v185
      %v333 = vunpack.c.l.b16 %v186
      %v334 = vunpack.c.h.b16 %v186
      %v335 = vunpack.c.l.b16 %v187
      %v336 = vunpack.c.h.b16 %v187
      %v337 = vunpack.c.l.b16 %v188
      %v338 = vunpack.c.h.b16 %v188
      %v339 = vunpack.c.l.b16 %v189
      %v340 = vunpack.c.h.b16 %v189
      %v341 = vunpack.c.l.b16 %v190
      %v342 = vunpack.c.h.b16 %v190
      %v343 = vunpack.c.l.b16 %v191
      %v344 = vunpack.c.h.b16 %v191
      %v345 = vunpack.c.l.b16 %v192
      %v346 = vunpack.c.h.b16 %v192
      %v347 = vunpack.c.l.b16 %v193
      %v348 = vunpack.c.h.b16 %v193
      %v349 = vunpack.c.l.b16 %v194
      %v350 = vunpack.c.h.b16 %v194
      %v351 = vunpack.c.l.b16 %v195
      %v352 = vunpack.c.h.b16 %v195
      %v353 = vunpack.c.l.b16 %v196
      %v354 = vunpack.c.h.b16 %v196
      %v355 = vunpack.c.l.b16 %v197
      %v356 = vunpack.c.h.b16 %v197
      %v357 = vunpack.c.l.b16 %v198
      %v358 = vunpack.c.h.b16 %v198
      %v359 = vunpack.c.l.b16 %v199
      %v360 = vunpack.c.h.b16 %v199
      %v361 = vunpack.c.l.b16 %v200
      %v362 = vunpack.c.h.b16 %v200
      %v363 = vunpack.c.l.b16 %v201
      %v364 = vunpack.c.h.b16 %v201
      %v365 = vunpack.c.l.b16 %v202
      %v366 = vunpack.c.h.b16 %v202
      %v367 = vunpack.c.l.b16 %v203
      %v368 = vunpack.c.h.b16 %v203
      %v369 = vunpack.c.l.b16 %v204
      %v370 = vunpack.c.h.b16 %v204
      %v371 = vunpack.c.l.b16 %v205
      %v372 = vunpack.c.h.b16 %v205
      %v373 = vunpack.c.l.b16 %v206
      %v374 = vunpack.c.h.b16 %v206
      %v375 = vunpack.c.l.b16 %v207
      %v376 = vunpack.c.h.b16 %v207
      %v377 = vunpack.c.l.b16 %v208
      %v378 = vunpack.c.h.b16 %v208
      %v379 = vunpack.c.l.b16 %v209
      %v380 = vunpack.c.h.b16 %v209
      %v381 = vunpack.c.l.b16 %v210
      %v382 = vunpack.c.h.b16 %v210
      %v383 = vunpack.c.l.b16 %v211
      %v384 = vunpack.c.h.b16 %v211
      %v385 = vunpack.c.l.b16 %v212
      %v386 = vunpack.c.h.b16 %v212
      %v387 = vunpack.c.l.b16 %v213
      %v388 = vunpack.c.h.b16 %v213
      %v389 = vunpack.c.l.b16 %v214
      %v390 = vunpack.c.h.b16 %v214
      %v391 = vunpack.c.l.b16 %v215
      %v392 = vunpack.c.h.b16 %v215
      %v393 = vunpack.c.l.b16 %v216
      %v394 = vunpack.c.h.b16 %v216
      %v395 = vunpack.c.l.b16 %v217
      %v396 = vunpack.c.h.b16 %v217
      %v397 = vunpack.c.l.b16 %v218
      %v398 = vunpack.c.h.b16 %v218
      %v399 = vunpack.c.l.b16 %v219
      %v400 = vunpack.c.h.b16 %v219
      %v401 = vunpack.c.l.b16 %v220
      %v402 = vunpack.c.h.b16 %v220
      %v403 = vunpack.c.l.b16 %v221
      %v404 = vunpack.c.h.b16 %v221
      %v405 = vunpack.c.l.b16 %v222
      %v406 = vunpack.c.h.b16 %v222
      %v407 = vunpack.c.l.b16 %v223
      %v408 = vunpack.c.h.b16 %v223
      %v409 = vunpack.c.l.b16 %v224
      %v410 = vunpack.c.h.b16 %v224
      %v411 = vunpack.c.l.b16 %v225
      %v412 = vunpack.c.h.b16 %v225
      %v413 = vunpack.c.l.b16 %v226
      %v414 = vunpack.c.h.b16 %v226
      %v415 = vunpack.c.l.b16 %v227
      %v416 = vunpack.c.h.b16 %v227
      %v417 = vpack.c.b16 %v319, %v317
      %v418 = vpack.c.b16 %v320, %v318
      %v419 = vpack.c.b16 %v323, %v321
      %v420 = vpack.c.b16 %v324, %v322
      %v421 = vpack.c.b16 %v327, %v325
      %v422 = vpack.c.b16 %v328, %v326
      %v423 = vpack.c.b16 %v331, %v329
      %v424 = vpack.c.b16 %v332, %v330
      %v425 = vpack.c.b16 %v335, %v333
      %v426 = vpack.c.b16 %v336, %v334
      %v427 = vpack.c.b16 %v339, %v337
      %v428 = vpack.c.b16 %v340, %v338
      %v429 = vpack.c.b16 %v343, %v341
      %v430 = vpack.c.b16 %v344, %v342
      %v431 = vpack.c.b16 %v347, %v345
      %v432 = vpack.c.b16 %v348, %v346
      %v433 = vpack.c.b16 %v351, %v349
      %v434 = vpack.c.b16 %v352, %v350
      %v435 = vpack.c.b16 %v355, %v353
      %v436 = vpack.c.b16 %v356, %v354
      %v437 = vpack.c.b16 %v359, %v357
      %v438 = vpack.c.b16 %v360, %v358
      %v439 = vpack.c.b16 %v363, %v361
      %v440 = vpack.c.b16 %v364, %v362
      %v441 = vpack.c.b16 %v367, %v365
      %v442 = vpack.c.b16 %v368, %v366
      %v443 = vpack.c.b16 %v371, %v369
      %v444 = vpack.c.b16 %v372, %v370
      %v445 = vpack.c.b16 %v375, %v373
      %v446 = vpack.c.b16 %v376, %v374
      %v447 = vpack.c.b16 %v379, %v377
      %v448 = vpack.c.b16 %v380, %v378
      %v449 = vpack.c.b16 %v383, %v381
      %v450 = vpack.c.b16 %v384, %v382
      %v451 = vpack.c.b16 %v387, %v385
      %v452 = vpack.c.b16 %v388, %v386
      %v453 = vpack.c.b16 %v391, %v389
      %v454 = vpack.c.b16 %v392, %v390
      %v455 = vpack.c.b16 %v395, %v393
      %v456 = vpack.c.b16 %v396, %v394
      %v457 = vpack.c.b16 %v399, %v397
      %v458 = vpack.c.b16 %v400, %v398
      %v459 = vpack.c.b16 %v403, %v401
      %v460 = vpack.c.b16 %v404, %v402
      %v461 = vpack.c.b16 %v407, %v405
      %v462 = vpack.c.b16 %v408, %v406
      %v463 = vpack.c.b16 %v411, %v409
      %v464 = vpack.c.b16 %v412, %v410
      %v465 = vpack.c.b16 %v415, %v413
      %v466 = vpack.c.b16 %v416, %v414
      %v549 = vunpack.c.l.b16 %v228
      %v550 = vunpack.c.l.b16 %v229
      %v551 = vunpack.c.l.b16 %v230
      %v552 = vunpack.c.l.b16 %v231
      %v553 = vunpack.c.l.b16 %v232
      %v554 = vunpack.c.l.b16 %v233
      %v555 = vunpack.c.l.b16 %v234
      %v556 = vunpack.c.l.b16 %v235
      %v557 = vunpack.c.l.b16 %v236
      %v558 = vunpack.c.l.b16 %v237
      %v559 = vunpack.c.l.b16 %v238
      %v560 = vunpack.c.l.b16 %v239
      %v561 = vunpack.c.l.b16 %v240
      %v562 = vunpack.c.l.b16 %v241
      %v563 = vunpack.c.l.b16 %v242
      %v564 = vunpack.c.l.b16 %v243
      %v565 = vunpack.c.l.b16 %v244
      %v566 = vunpack.c.l.b16 %v245
      %v567 = vunpack.c.l.b16 %v246
      %v568 = vunpack.c.l.b16 %v247
      %v569 = vunpack.c.l.b16 %v248
      %v570 = vunpack.c.l.b16 %v249
      %v571 = vunpack.c.l.b16 %v250
      %v572 = vunpack.c.l.b16 %v251
      %v573 = vunpack.c.l.b16 %v252
      %v574 = vunpack.c.l.b16 %v253
      %v575 = vunpack.c.l.b16 %v254
      %v576 = vunpack.c.l.b16 %v255
      %v577 = vunpack.c.l.b16 %v256
      %v578 = vunpack.c.l.b16 %v257
      %v579 = vunpack.c.l.b16 %v258
      %v580 = vunpack.c.l.b16 %v259
      %v581 = vpack.c.b16 %v550, %v549
      %v582 = vpack.c.b16 %v552, %v551
      %v583 = vpack.c.b16 %v554, %v553
      %v584 = vpack.c.b16 %v556, %v555
      %v585 = vpack.c.b16 %v558, %v557
      %v586 = vpack.c.b16 %v560, %v559
      %v587 = vpack.c.b16 %v562, %v561
      %v588 = vpack.c.b16 %v564, %v563
      %v589 = vpack.c.b16 %v566, %v565
      %v590 = vpack.c.b16 %v568, %v567
      %v591 = vpack.c.b16 %v570, %v569
      %v592 = vpack.c.b16 %v572, %v571
      %v593 = vpack.c.b16 %v574, %v573
      %v594 = vpack.c.b16 %v576, %v575
      %v595 = vpack.c.b16 %v578, %v577
      %v596 = vpack.c.b16 %v580, %v579
      %613 = vmatprep.subr.bf16.mxu0 0
      %614 = vmatpush1.bf16.msra.mxu0 %v588
      %615 = vmatprep.subr.bf16.mxu0 0
      %616 = vmatpush1.bf16.msra.mxu0 %v587
      %617 = vmatprep.subr.bf16.mxu0 0
      %618 = vmatpush1.bf16.msra.mxu0 %v586
      %619 = vmatprep.subr.bf16.mxu0 0
      %620 = vmatpush1.bf16.msra.mxu0 %v585
      %621 = vmatprep.subr.bf16.mxu0 0
      %622 = vmatpush1.bf16.msra.mxu0 %v584
      %623 = vmatprep.subr.bf16.mxu0 0
      %624 = vmatpush1.bf16.msra.mxu0 %v583
      %625 = vmatprep.subr.bf16.mxu0 0
      %626 = vmatpush1.bf16.msra.mxu0 %v582
      %627 = vmatprep.subr.bf16.mxu0 0
      %628 = vmatpush1.bf16.msra.mxu0 %v581
      %629 = vmatprep.subr.bf16.mxu0 0
      %630 = vmatpush2.bf16.msra.mxu0 %v596
      %631 = vmatprep.subr.bf16.mxu0 0
      %632 = vmatpush2.bf16.msra.mxu0 %v595
      %633 = vmatprep.subr.bf16.mxu0 0
      %634 = vmatpush2.bf16.msra.mxu0 %v594
      %635 = vmatprep.subr.bf16.mxu0 0
      %636 = vmatpush2.bf16.msra.mxu0 %v593
      %637 = vmatprep.subr.bf16.mxu0 0
      %638 = vmatpush2.bf16.msra.mxu0 %v592
      %639 = vmatprep.subr.bf16.mxu0 0
      %640 = vmatpush2.bf16.msra.mxu0 %v591
      %641 = vmatprep.subr.bf16.mxu0 0
      %642 = vmatpush2.bf16.msra.mxu0 %v590
      %643 = vmatprep.subr.bf16.mxu0 0
      %644 = vmatpush2.bf16.msra.mxu0 %v589
      %645 = vmatprep.mubr.bf16.mxu0 %v418
      %646 = vmatmul.mubr.bf16.gmra.mxu0 %v417
      %v647 = vpop.f32.mrf.mxu0
      %v648 = vadd.f32 %v265, %v647
      %v649 = vpop.f32.mrf.mxu0
      %v650 = vpop.f32.mrf.mxu0
      %v651 = vadd.f32 %v265, %v650
      %v652 = vpop.f32.mrf.mxu0
      %653 = vmatprep.mubr.bf16.mxu0 %v420
      %654 = vmatmul.mubr.bf16.gmra.mxu0 %v419
      %v655 = vpop.f32.mrf.mxu0
      %v656 = vadd.f32 %v265, %v655
      %v657 = vpop.f32.mrf.mxu0
      %v658 = vpop.f32.mrf.mxu0
      %v659 = vadd.f32 %v265, %v658
      %v660 = vpop.f32.mrf.mxu0
      %661 = vmatprep.mubr.bf16.mxu0 %v422
      %662 = vmatmul.mubr.bf16.gmra.mxu0 %v421
      %v663 = vpop.f32.mrf.mxu0
      %v664 = vadd.f32 %v265, %v663
      %v665 = vpop.f32.mrf.mxu0
      %v666 = vpop.f32.mrf.mxu0
      %v667 = vadd.f32 %v265, %v666
      %v668 = vpop.f32.mrf.mxu0
      %669 = vmatprep.mubr.bf16.mxu0 %v424
      %670 = vmatmul.mubr.bf16.gmra.mxu0 %v423
      %v671 = vpop.f32.mrf.mxu0
      %v672 = vadd.f32 %v265, %v671
      %v673 = vpop.f32.mrf.mxu0
      %v674 = vpop.f32.mrf.mxu0
      %v675 = vadd.f32 %v265, %v674
      %v676 = vpop.f32.mrf.mxu0
      %677 = vmatprep.mubr.bf16.mxu0 %v426
      %678 = vmatmul.mubr.bf16.gmra.mxu0 %v425
      %v679 = vpop.f32.mrf.mxu0
      %v680 = vadd.f32 %v265, %v679
      %v681 = vpop.f32.mrf.mxu0
      %v682 = vpop.f32.mrf.mxu0
      %v683 = vadd.f32 %v265, %v682
      %v684 = vpop.f32.mrf.mxu0
      %685 = vmatprep.mubr.bf16.mxu0 %v428
      %686 = vmatmul.mubr.bf16.gmra.mxu0 %v427
      %v687 = vpop.f32.mrf.mxu0
      %v688 = vadd.f32 %v265, %v687
      %v689 = vpop.f32.mrf.mxu0
      %v690 = vpop.f32.mrf.mxu0
      %v691 = vadd.f32 %v265, %v690
      %v692 = vpop.f32.mrf.mxu0
      %693 = vmatprep.mubr.bf16.mxu0 %v430
      %694 = vmatmul.mubr.bf16.gmra.mxu0 %v429
      %v695 = vpop.f32.mrf.mxu0
      %v696 = vadd.f32 %v265, %v695
      %v697 = vpop.f32.mrf.mxu0
      %v698 = vpop.f32.mrf.mxu0
      %v699 = vadd.f32 %v265, %v698
      %v700 = vpop.f32.mrf.mxu0
      %701 = vmatprep.mubr.bf16.mxu0 %v432
      %702 = vmatmul.mubr.bf16.gmra.mxu0 %v431
      %v703 = vpop.f32.mrf.mxu0
      %v704 = vadd.f32 %v265, %v703
      %v705 = vpop.f32.mrf.mxu0
      %v706 = vpop.f32.mrf.mxu0
      %v707 = vadd.f32 %v265, %v706
      %v708 = vpop.f32.mrf.mxu0
      %709 = vmatprep.mubr.bf16.mxu0 %v434
      %710 = vmatmul.mubr.bf16.gmra.mxu0 %v433
      %v711 = vpop.f32.mrf.mxu0
      %v712 = vadd.f32 %v265, %v711
      %v713 = vpop.f32.mrf.mxu0
      %v714 = vpop.f32.mrf.mxu0
      %v715 = vadd.f32 %v265, %v714
      %v716 = vpop.f32.mrf.mxu0
      %717 = vmatprep.mubr.bf16.mxu0 %v436
      %718 = vmatmul.mubr.bf16.gmra.mxu0 %v435
      %v719 = vpop.f32.mrf.mxu0
      %v720 = vadd.f32 %v265, %v719
      %v721 = vpop.f32.mrf.mxu0
      %v722 = vpop.f32.mrf.mxu0
      %v723 = vadd.f32 %v265, %v722
      %v724 = vpop.f32.mrf.mxu0
      %725 = vmatprep.mubr.bf16.mxu0 %v438
      %726 = vmatmul.mubr.bf16.gmra.mxu0 %v437
      %v727 = vpop.f32.mrf.mxu0
      %v728 = vadd.f32 %v265, %v727
      %v729 = vpop.f32.mrf.mxu0
      %v730 = vpop.f32.mrf.mxu0
      %v731 = vadd.f32 %v265, %v730
      %v732 = vpop.f32.mrf.mxu0
      %733 = vmatprep.mubr.bf16.mxu0 %v440
      %734 = vmatmul.mubr.bf16.gmra.mxu0 %v439
      %v735 = vpop.f32.mrf.mxu0
      %v736 = vadd.f32 %v265, %v735
      %v737 = vpop.f32.mrf.mxu0
      %v738 = vpop.f32.mrf.mxu0
      %v739 = vadd.f32 %v265, %v738
      %v740 = vpop.f32.mrf.mxu0
      %741 = vmatprep.mubr.bf16.mxu0 %v442
      %742 = vmatmul.mubr.bf16.gmra.mxu0 %v441
      %v743 = vpop.f32.mrf.mxu0
      %v744 = vadd.f32 %v265, %v743
      %v745 = vpop.f32.mrf.mxu0
      %v746 = vpop.f32.mrf.mxu0
      %v747 = vadd.f32 %v265, %v746
      %v748 = vpop.f32.mrf.mxu0
      %749 = vmatprep.mubr.bf16.mxu0 %v444
      %750 = vmatmul.mubr.bf16.gmra.mxu0 %v443
      %v751 = vpop.f32.mrf.mxu0
      %v752 = vadd.f32 %v265, %v751
      %v753 = vpop.f32.mrf.mxu0
      %v754 = vpop.f32.mrf.mxu0
      %v755 = vadd.f32 %v265, %v754
      %v756 = vpop.f32.mrf.mxu0
      %757 = vmatprep.mubr.bf16.mxu0 %v446
      %758 = vmatmul.mubr.bf16.gmra.mxu0 %v445
      %v759 = vpop.f32.mrf.mxu0
      %v760 = vadd.f32 %v265, %v759
      %v761 = vpop.f32.mrf.mxu0
      %v762 = vpop.f32.mrf.mxu0
      %v763 = vadd.f32 %v265, %v762
      %v764 = vpop.f32.mrf.mxu0
      %765 = vmatprep.mubr.bf16.mxu0 %v448
      %766 = vmatmul.mubr.bf16.gmra.mxu0 %v447
      %v767 = vpop.f32.mrf.mxu0
      %v768 = vadd.f32 %v265, %v767
      %v769 = vpop.f32.mrf.mxu0
      %v770 = vpop.f32.mrf.mxu0
      %v771 = vadd.f32 %v265, %v770
      %v772 = vpop.f32.mrf.mxu0
      %773 = vmatprep.mubr.bf16.mxu0 %v450
      %774 = vmatmul.mubr.bf16.gmra.mxu0 %v449
      %v775 = vpop.f32.mrf.mxu0
      %v776 = vadd.f32 %v265, %v775
      %v777 = vpop.f32.mrf.mxu0
      %v778 = vpop.f32.mrf.mxu0
      %v779 = vadd.f32 %v265, %v778
      %v780 = vpop.f32.mrf.mxu0
      %781 = vmatprep.mubr.bf16.mxu0 %v452
      %782 = vmatmul.mubr.bf16.gmra.mxu0 %v451
      %v783 = vpop.f32.mrf.mxu0
      %v784 = vadd.f32 %v265, %v783
      %v785 = vpop.f32.mrf.mxu0
      %v786 = vpop.f32.mrf.mxu0
      %v787 = vadd.f32 %v265, %v786
      %v788 = vpop.f32.mrf.mxu0
      %789 = vmatprep.mubr.bf16.mxu0 %v454
      %790 = vmatmul.mubr.bf16.gmra.mxu0 %v453
      %v791 = vpop.f32.mrf.mxu0
      %v792 = vadd.f32 %v265, %v791
      %v793 = vpop.f32.mrf.mxu0
      %v794 = vpop.f32.mrf.mxu0
      %v795 = vadd.f32 %v265, %v794
      %v796 = vpop.f32.mrf.mxu0
      %797 = vmatprep.mubr.bf16.mxu0 %v456
      %798 = vmatmul.mubr.bf16.gmra.mxu0 %v455
      %v799 = vpop.f32.mrf.mxu0
      %v800 = vadd.f32 %v265, %v799
      %v801 = vpop.f32.mrf.mxu0
      %v802 = vpop.f32.mrf.mxu0
      %v803 = vadd.f32 %v265, %v802
      %v804 = vpop.f32.mrf.mxu0
      %805 = vmatprep.mubr.bf16.mxu0 %v458
      %806 = vmatmul.mubr.bf16.gmra.mxu0 %v457
      %v807 = vpop.f32.mrf.mxu0
      %v808 = vadd.f32 %v265, %v807
      %v809 = vpop.f32.mrf.mxu0
      %v810 = vpop.f32.mrf.mxu0
      %v811 = vadd.f32 %v265, %v810
      %v812 = vpop.f32.mrf.mxu0
      %813 = vmatprep.mubr.bf16.mxu0 %v460
      %814 = vmatmul.mubr.bf16.gmra.mxu0 %v459
      %v815 = vpop.f32.mrf.mxu0
      %v816 = vadd.f32 %v265, %v815
      %v817 = vpop.f32.mrf.mxu0
      %v818 = vpop.f32.mrf.mxu0
      %v819 = vadd.f32 %v265, %v818
      %v820 = vpop.f32.mrf.mxu0
      %821 = vmatprep.mubr.bf16.mxu0 %v462
      %822 = vmatmul.mubr.bf16.gmra.mxu0 %v461
      %v823 = vpop.f32.mrf.mxu0
      %v824 = vadd.f32 %v265, %v823
      %v825 = vpop.f32.mrf.mxu0
      %v826 = vpop.f32.mrf.mxu0
      %v827 = vadd.f32 %v265, %v826
      %v828 = vpop.f32.mrf.mxu0
      %829 = vmatprep.mubr.bf16.mxu0 %v464
      %830 = vmatmul.mubr.bf16.gmra.mxu0 %v463
      %v831 = vpop.f32.mrf.mxu0
      %v832 = vadd.f32 %v265, %v831
      %v833 = vpop.f32.mrf.mxu0
      %v834 = vpop.f32.mrf.mxu0
      %v835 = vadd.f32 %v265, %v834
      %v836 = vpop.f32.mrf.mxu0
      %837 = vmatprep.mubr.bf16.mxu0 %v466
      %838 = vmatmul.mubr.bf16.gmra.mxu0 %v465
      %v839 = vpop.f32.mrf.mxu0
      %v840 = vadd.f32 %v265, %v839
      %v841 = vpop.f32.mrf.mxu0
      %v842 = vpop.f32.mrf.mxu0
      %v843 = vadd.f32 %v265, %v842
      %v844 = vpop.f32.mrf.mxu0
      %845 = vdwg.mxu0
      %v846 = vmax.f32 %v648, 0.0
      %v847 = vmax.f32 %v651, 0.0
      %v848 = vmax.f32 %v656, 0.0
      %v849 = vmax.f32 %v659, 0.0
      %v850 = vmax.f32 %v664, 0.0
      %v851 = vmax.f32 %v667, 0.0
      %v852 = vmax.f32 %v672, 0.0
      %v853 = vmax.f32 %v675, 0.0
      %v854 = vmax.f32 %v680, 0.0
      %v855 = vmax.f32 %v683, 0.0
      %v856 = vmax.f32 %v688, 0.0
      %v857 = vmax.f32 %v691, 0.0
      %v858 = vmax.f32 %v696, 0.0
      %v859 = vmax.f32 %v699, 0.0
      %v860 = vmax.f32 %v704, 0.0
      %v861 = vmax.f32 %v707, 0.0
      %v862 = vmax.f32 %v712, 0.0
      %v863 = vmax.f32 %v715, 0.0
      %v864 = vmax.f32 %v720, 0.0
      %v865 = vmax.f32 %v723, 0.0
      %v866 = vmax.f32 %v728, 0.0
      %v867 = vmax.f32 %v731, 0.0
      %v868 = vmax.f32 %v736, 0.0
      %v869 = vmax.f32 %v739, 0.0
      %v870 = vmax.f32 %v744, 0.0
      %v871 = vmax.f32 %v747, 0.0
      %v872 = vmax.f32 %v752, 0.0
      %v873 = vmax.f32 %v755, 0.0
      %v874 = vmax.f32 %v760, 0.0
      %v875 = vmax.f32 %v763, 0.0
      %v876 = vmax.f32 %v768, 0.0
      %v877 = vmax.f32 %v771, 0.0
      %v878 = vmax.f32 %v776, 0.0
      %v879 = vmax.f32 %v779, 0.0
      %v880 = vmax.f32 %v784, 0.0
      %v881 = vmax.f32 %v787, 0.0
      %v882 = vmax.f32 %v792, 0.0
      %v883 = vmax.f32 %v795, 0.0
      %v884 = vmax.f32 %v800, 0.0
      %v885 = vmax.f32 %v803, 0.0
      %v886 = vmax.f32 %v808, 0.0
      %v887 = vmax.f32 %v811, 0.0
      %v888 = vmax.f32 %v816, 0.0
      %v889 = vmax.f32 %v819, 0.0
      %v890 = vmax.f32 %v824, 0.0
      %v891 = vmax.f32 %v827, 0.0
      %v892 = vmax.f32 %v832, 0.0
      %v893 = vmax.f32 %v835, 0.0
      %v894 = vmax.f32 %v840, 0.0
      %v895 = vmax.f32 %v843, 0.0
      %v896 = vpack.c.bf16 %v847, %v846
      %v897 = vpack.c.bf16 %v849, %v848
      %v898 = vpack.c.bf16 %v851, %v850
      %v899 = vpack.c.bf16 %v853, %v852
      %v900 = vpack.c.bf16 %v855, %v854
      %v901 = vpack.c.bf16 %v857, %v856
      %v902 = vpack.c.bf16 %v859, %v858
      %v903 = vpack.c.bf16 %v861, %v860
      %v904 = vpack.c.bf16 %v863, %v862
      %v905 = vpack.c.bf16 %v865, %v864
      %v906 = vpack.c.bf16 %v867, %v866
      %v907 = vpack.c.bf16 %v869, %v868
      %v908 = vpack.c.bf16 %v871, %v870
      %v909 = vpack.c.bf16 %v873, %v872
      %v910 = vpack.c.bf16 %v875, %v874
      %v911 = vpack.c.bf16 %v877, %v876
      %v912 = vpack.c.bf16 %v879, %v878
      %v913 = vpack.c.bf16 %v881, %v880
      %v914 = vpack.c.bf16 %v883, %v882
      %v915 = vpack.c.bf16 %v885, %v884
      %v916 = vpack.c.bf16 %v887, %v886
      %v917 = vpack.c.bf16 %v889, %v888
      %v918 = vpack.c.bf16 %v891, %v890
      %v919 = vpack.c.bf16 %v893, %v892
      %v920 = vpack.c.bf16 %v895, %v894
      %v946 = vunpack.c.l.b16 %v896
      %v947 = vunpack.c.h.b16 %v896
      %v948 = vunpack.c.l.b16 %v897
      %v949 = vunpack.c.h.b16 %v897
      %v950 = vunpack.c.l.b16 %v898
      %v951 = vunpack.c.h.b16 %v898
      %v952 = vunpack.c.l.b16 %v899
      %v953 = vunpack.c.h.b16 %v899
      %v954 = vunpack.c.l.b16 %v900
      %v955 = vunpack.c.h.b16 %v900
      %v956 = vunpack.c.l.b16 %v901
      %v957 = vunpack.c.h.b16 %v901
      %v958 = vunpack.c.l.b16 %v902
      %v959 = vunpack.c.h.b16 %v902
      %v960 = vunpack.c.l.b16 %v903
      %v961 = vunpack.c.h.b16 %v903
      %v962 = vunpack.c.l.b16 %v904
      %v963 = vunpack.c.h.b16 %v904
      %v964 = vunpack.c.l.b16 %v905
      %v965 = vunpack.c.h.b16 %v905
      %v966 = vunpack.c.l.b16 %v906
      %v967 = vunpack.c.h.b16 %v906
      %v968 = vunpack.c.l.b16 %v907
      %v969 = vunpack.c.h.b16 %v907
      %v970 = vunpack.c.l.b16 %v908
      %v971 = vunpack.c.h.b16 %v908
      %v972 = vunpack.c.l.b16 %v909
      %v973 = vunpack.c.h.b16 %v909
      %v974 = vunpack.c.l.b16 %v910
      %v975 = vunpack.c.h.b16 %v910
      %v976 = vunpack.c.l.b16 %v911
      %v977 = vunpack.c.h.b16 %v911
      %v978 = vunpack.c.l.b16 %v912
      %v979 = vunpack.c.h.b16 %v912
      %v980 = vunpack.c.l.b16 %v913
      %v981 = vunpack.c.h.b16 %v913
      %v982 = vunpack.c.l.b16 %v914
      %v983 = vunpack.c.h.b16 %v914
      %v984 = vunpack.c.l.b16 %v915
      %v985 = vunpack.c.h.b16 %v915
      %v986 = vunpack.c.l.b16 %v916
      %v987 = vunpack.c.h.b16 %v916
      %v988 = vunpack.c.l.b16 %v917
      %v989 = vunpack.c.h.b16 %v917
      %v990 = vunpack.c.l.b16 %v918
      %v991 = vunpack.c.h.b16 %v918
      %v992 = vunpack.c.l.b16 %v919
      %v993 = vunpack.c.h.b16 %v919
      %v994 = vunpack.c.l.b16 %v920
      %v995 = vunpack.c.h.b16 %v920
      %v996 = vpack.c.b16 %v946, %v946
      %v997 = vpack.c.b16 %v947, %v947
      %v998 = vpack.c.b16 %v948, %v948
      %v999 = vpack.c.b16 %v949, %v949
      %v1000 = vpack.c.b16 %v950, %v950
      %v1001 = vpack.c.b16 %v951, %v951
      %v1002 = vpack.c.b16 %v952, %v952
      %v1003 = vpack.c.b16 %v953, %v953
      %v1004 = vpack.c.b16 %v954, %v954
      %v1005 = vpack.c.b16 %v955, %v955
      %v1006 = vpack.c.b16 %v956, %v956
      %v1007 = vpack.c.b16 %v957, %v957
      %v1008 = vpack.c.b16 %v958, %v958
      %v1009 = vpack.c.b16 %v959, %v959
      %v1010 = vpack.c.b16 %v960, %v960
      %v1011 = vpack.c.b16 %v961, %v961
      %v1012 = vpack.c.b16 %v962, %v962
      %v1013 = vpack.c.b16 %v963, %v963
      %v1014 = vpack.c.b16 %v964, %v964
      %v1015 = vpack.c.b16 %v965, %v965
      %v1016 = vpack.c.b16 %v966, %v966
      %v1017 = vpack.c.b16 %v967, %v967
      %v1018 = vpack.c.b16 %v968, %v968
      %v1019 = vpack.c.b16 %v969, %v969
      %v1020 = vpack.c.b16 %v970, %v970
      %v1021 = vpack.c.b16 %v971, %v971
      %v1022 = vpack.c.b16 %v972, %v972
      %v1023 = vpack.c.b16 %v973, %v973
      %v1024 = vpack.c.b16 %v974, %v974
      %v1025 = vpack.c.b16 %v975, %v975
      %v1026 = vpack.c.b16 %v976, %v976
      %v1027 = vpack.c.b16 %v977, %v977
      %v1028 = vpack.c.b16 %v978, %v978
      %v1029 = vpack.c.b16 %v979, %v979
      %v1030 = vpack.c.b16 %v980, %v980
      %v1031 = vpack.c.b16 %v981, %v981
      %v1032 = vpack.c.b16 %v982, %v982
      %v1033 = vpack.c.b16 %v983, %v983
      %v1034 = vpack.c.b16 %v984, %v984
      %v1035 = vpack.c.b16 %v985, %v985
      %v1036 = vpack.c.b16 %v986, %v986
      %v1037 = vpack.c.b16 %v987, %v987
      %v1038 = vpack.c.b16 %v988, %v988
      %v1039 = vpack.c.b16 %v989, %v989
      %v1040 = vpack.c.b16 %v990, %v990
      %v1041 = vpack.c.b16 %v991, %v991
      %v1042 = vpack.c.b16 %v992, %v992
      %v1043 = vpack.c.b16 %v993, %v993
      %v1044 = vpack.c.b16 %v994, %v994
      %v1045 = vpack.c.b16 %v995, %v995
      %vm1096 = vcmask 257024
      %1097 = vst.msk [vmem:[%s175] sm:$0xf] %vm1096, %v996
      %1098 = vst.msk [vmem:[%s175 + $0x4] sm:$0xf] %vm1096, %v997
      %1099 = vst.msk [vmem:[%s175 + $0x8] sm:$0xf] %vm1096, %v998
      %1100 = vst.msk [vmem:[%s175 + $0xc] sm:$0xf] %vm1096, %v999
      %1101 = vst.msk [vmem:[%s175 + $0x10] sm:$0xf] %vm1096, %v1000
      %1102 = vst.msk [vmem:[%s175 + $0x14] sm:$0xf] %vm1096, %v1001
      %1103 = vst.msk [vmem:[%s175 + $0x18] sm:$0xf] %vm1096, %v1002
      %1104 = vst.msk [vmem:[%s175 + $0x1c] sm:$0xf] %vm1096, %v1003
      %1105 = vst.msk [vmem:[%s175 + $0x20] sm:$0xf] %vm1096, %v1004
      %1106 = vst.msk [vmem:[%s175 + $0x24] sm:$0xf] %vm1096, %v1005
      %1107 = vst.msk [vmem:[%s175 + $0x28] sm:$0xf] %vm1096, %v1006
      %1108 = vst.msk [vmem:[%s175 + $0x2c] sm:$0xf] %vm1096, %v1007
      %1109 = vst.msk [vmem:[%s175 + $0x30] sm:$0xf] %vm1096, %v1008
      %1110 = vst.msk [vmem:[%s175 + $0x34] sm:$0xf] %vm1096, %v1009
      %1111 = vst.msk [vmem:[%s175 + $0x38] sm:$0xf] %vm1096, %v1010
      %1112 = vst.msk [vmem:[%s175 + $0x3c] sm:$0xf] %vm1096, %v1011
      %1113 = vst.msk [vmem:[%s175 + $0x40] sm:$0xf] %vm1096, %v1012
      %1114 = vst.msk [vmem:[%s175 + $0x44] sm:$0xf] %vm1096, %v1013
      %1115 = vst.msk [vmem:[%s175 + $0x48] sm:$0xf] %vm1096, %v1014
      %1116 = vst.msk [vmem:[%s175 + $0x4c] sm:$0xf] %vm1096, %v1015
      %1117 = vst.msk [vmem:[%s175 + $0x50] sm:$0xf] %vm1096, %v1016
      %1118 = vst.msk [vmem:[%s175 + $0x54] sm:$0xf] %vm1096, %v1017
      %1119 = vst.msk [vmem:[%s175 + $0x58] sm:$0xf] %vm1096, %v1018
      %1120 = vst.msk [vmem:[%s175 + $0x5c] sm:$0xf] %vm1096, %v1019
      %1121 = vst.msk [vmem:[%s175 + $0x60] sm:$0xf] %vm1096, %v1020
      %1122 = vst.msk [vmem:[%s175 + $0x64] sm:$0xf] %vm1096, %v1021
      %1123 = vst.msk [vmem:[%s175 + $0x68] sm:$0xf] %vm1096, %v1022
      %1124 = vst.msk [vmem:[%s175 + $0x6c] sm:$0xf] %vm1096, %v1023
      %1125 = vst.msk [vmem:[%s175 + $0x70] sm:$0xf] %vm1096, %v1024
      %1126 = vst.msk [vmem:[%s175 + $0x74] sm:$0xf] %vm1096, %v1025
      %1127 = vst.msk [vmem:[%s175 + $0x78] sm:$0xf] %vm1096, %v1026
      %1128 = vst.msk [vmem:[%s175 + $0x7c] sm:$0xf] %vm1096, %v1027
      %1129 = vst.msk [vmem:[%s175 + $0x80] sm:$0xf] %vm1096, %v1028
      %1130 = vst.msk [vmem:[%s175 + $0x84] sm:$0xf] %vm1096, %v1029
      %1131 = vst.msk [vmem:[%s175 + $0x88] sm:$0xf] %vm1096, %v1030
      %1132 = vst.msk [vmem:[%s175 + $0x8c] sm:$0xf] %vm1096, %v1031
      %1133 = vst.msk [vmem:[%s175 + $0x90] sm:$0xf] %vm1096, %v1032
      %1134 = vst.msk [vmem:[%s175 + $0x94] sm:$0xf] %vm1096, %v1033
      %1135 = vst.msk [vmem:[%s175 + $0x98] sm:$0xf] %vm1096, %v1034
      %1136 = vst.msk [vmem:[%s175 + $0x9c] sm:$0xf] %vm1096, %v1035
      %1137 = vst.msk [vmem:[%s175 + $0xa0] sm:$0xf] %vm1096, %v1036
      %1138 = vst.msk [vmem:[%s175 + $0xa4] sm:$0xf] %vm1096, %v1037
      %1139 = vst.msk [vmem:[%s175 + $0xa8] sm:$0xf] %vm1096, %v1038
      %1140 = vst.msk [vmem:[%s175 + $0xac] sm:$0xf] %vm1096, %v1039
      %1141 = vst.msk [vmem:[%s175 + $0xb0] sm:$0xf] %vm1096, %v1040
      %1142 = vst.msk [vmem:[%s175 + $0xb4] sm:$0xf] %vm1096, %v1041
      %1143 = vst.msk [vmem:[%s175 + $0xb8] sm:$0xf] %vm1096, %v1042
      %1144 = vst.msk [vmem:[%s175 + $0xbc] sm:$0xf] %vm1096, %v1043
      %1145 = vst.msk [vmem:[%s175 + $0xc0] sm:$0xf] %vm1096, %v1044
      %1146 = vst.msk [vmem:[%s175 + $0xc4] sm:$0xf] %vm1096, %v1045
      %s1147 = smul.u32 50, %s14
      %p1148 = scmp.lt.s32.totalorder %s1147, 99
      %s1149 = scalar_select %p1148, %s1147, 99
      %s1150 = smul.addr %s1149, 4
      %s1151 = scalar_lea.vmem %s3, %s1150
      // Predicated region
      $region33: #{forward.4} parent=31 // pred_check
        %p1152 = pneg %p100
      $region34: #{forward.4} parent=31 // pred_check_branch
        %1154 = sbr.rel (%p1152) target = $region36
      $region35: #{forward.4} parent=31 // pred_region
        %s1155 = smul.u32 50, %s14
      $region36: #{forward.4} parent=31 // pred_fallthru
        _
    $region32: #{forward.4} parent=5 // pred_fallthru
      _
    %p1156 = scmp.le.s32.totalorder 2, %s9
    // Predicated region
    $region37: #{forward.4} parent=5 // pred_check
      %p1157 = pneg %p1156
    $region38: #{forward.4} parent=5 // pred_check_branch
      %1159 = sbr.rel (%p1157) target = $region40
    $region39: #{forward.4} parent=5 // pred_region
      %s1160 = ssub.s32 %s9, 2
      // Predicated region
      $region41: #{forward.4} parent=39 // pred_check
        %p1161 = pneg %p106
      $region42: #{forward.4} parent=39 // pred_check_branch
        %1163 = sbr.rel (%p1161) target = $region44
      $region43: #{forward.4} parent=39 // pred_region
        %s1164 = smul.u32 50, %s15
        %p1165 = scmp.lt.s32.totalorder %s1164, 99
        %s1166 = scalar_select %p1165, %s1164, 99
        %s1167 = smul.addr %s1166, 4
        %s1168 = scalar_lea.vmem %s3, %s1167
      $region44: #{forward.4} parent=39 // pred_fallthru
        _
    $region40: #{forward.4} parent=5 // pred_fallthru
      _
  $region6: #{forward.4} parent=0 // loop_footer
    %s13 = sadd.s32 1, %s9
  $region7: #{forward.4} parent=0 // loop_footer_branch
    %8 = sbr.rel target = $region3
  $region8: #{forward.4} parent=0 // loop_exit
    _

// kernel: forward.5
$region0: #{forward.5}
  #allocation0 [shape = 'u32[]', space=smem, size = 0x4, offset = 0x4, fixed_abs, tag = 'smem constant byte address 0x4 - core index']
  #allocation1 [shape = 'u32[144,128]{1,0:T(1,128)}', space=vmem, size = 0x12000, scoped, tag = 'internal scratch']
  %s0 = inlined_call_operand.vmem [shape: bf16[162,512], index: 0, kind: input, shape index: {}]
  %s1 = inlined_call_operand.vmem [shape: bf16[512,64], index: 1, kind: input, shape index: {}]
  %s2 = inlined_call_operand.vmem [shape: f32[1,64], index: 2, kind: input, shape index: {}]
  %s3 = inlined_call_operand.vmem [shape: bf16[162,64], index: 3, kind: output, shape index: {}]
  %s4 = sld [smem:[#allocation0]]
  $region89: #{forward.5} parent=0
    _
  %s6 = ssub.s32 1, %s4
  %s7 = scalar_select 0, %s6, %s4
  $region1: #{forward.5} parent=0
    #allocation2 [shape = 'u8[45056]{0}', space=vmem, size = 0xb000, scoped, tag = 'output window, operand 0']
    loop: start=0, step=1, limit=4
    $region2: #{forward.5} parent=1 // loop_pre_header
      _
    $region3: #{forward.5} parent=1 // loop_header
      %s9 = sphi 0, %s13
      %p10 = scmp.ge.s32.totalorder %s9, 4
      %s19 = sphi 0, %s21
      %s22 = sphi 0, %s19
      %s23 = sphi 0, %s22
      %s39 = sphi 0, %s23
      %s43 = sphi 0, %s43
      %s45 = sphi 0, %s43
      %s46 = sphi 0, %s45
      %s60 = sphi 0, %s46
      %s64 = sphi 0, %s64
      %s66 = sphi 0, %s64
      %s67 = sphi 0, %s66
      %s81 = sphi 0, %s67
      %s87 = sphi 0, %s89
      %s90 = sphi 0, %s87
      %s91 = sphi 0, %s90
      %s107 = sphi 0, %s91
    $region4: #{forward.5} parent=1 // loop_header_branch
      %12 = sbr.rel (%p10) target = $region8
    $region5: #{forward.5} parent=1 // loop_body
      %s14 = ssub.s32 %s9, 1
      %s15 = ssub.s32 %s9, 2
      %s16 = sadd.s32 %s9, 1
      %s17 = ssub.s32 %s9, %s16
      %p18 = scmp.eq.s32.totalorder %s17, 0
      %s20 = sadd.s32 %s19, 1
      %s21 = scalar_select %p18, %s19, %s20
      %p24 = pneg %p18
      %p25 = scmp.eq.s32.totalorder %s9, 1
      %p26 = por %p24, %p25
      %p27 = scmp.ne.s32.totalorder %s19, %s22
      %p28 = scmp.eq.s32.totalorder %s9, 0
      %p29 = por %p27, %p28
      %p30 = scmp.ne.s32.totalorder %s19, %s22
      %p31 = scmp.eq.s32.totalorder %s14, 1
      %p32 = por %p30, %p31
      %p33 = scmp.ne.s32.totalorder %s22, %s23
      %p34 = scmp.eq.s32.totalorder %s14, 0
      %p35 = por %p33, %p34
      %p36 = scmp.ne.s32.totalorder %s22, %s23
      %p37 = scmp.eq.s32.totalorder %s15, 1
      %p38 = por %p36, %p37
      %p40 = scmp.ne.s32.totalorder %s23, %s39
      %p41 = scmp.eq.s32.totalorder %s15, 0
      %p42 = por %p40, %p41
      %s44 = sadd.s32 %s43, 1
      %p47 = scmp.eq.s32.totalorder %s9, 1
      %p48 = scmp.ne.s32.totalorder %s43, %s45
      %p49 = scmp.eq.s32.totalorder %s9, 0
      %p50 = por %p48, %p49
      %p51 = scmp.ne.s32.totalorder %s43, %s45
      %p52 = scmp.eq.s32.totalorder %s14, 1
      %p53 = por %p51, %p52
      %p54 = scmp.ne.s32.totalorder %s45, %s46
      %p55 = scmp.eq.s32.totalorder %s14, 0
      %p56 = por %p54, %p55
      %p57 = scmp.ne.s32.totalorder %s45, %s46
      %p58 = scmp.eq.s32.totalorder %s15, 1
      %p59 = por %p57, %p58
      %p61 = scmp.ne.s32.totalorder %s46, %s60
      %p62 = scmp.eq.s32.totalorder %s15, 0
      %p63 = por %p61, %p62
      %s65 = sadd.s32 %s64, 1
      %p68 = scmp.eq.s32.totalorder %s9, 1
      %p69 = scmp.ne.s32.totalorder %s64, %s66
      %p70 = scmp.eq.s32.totalorder %s9, 0
      %p71 = por %p69, %p70
      %p72 = scmp.ne.s32.totalorder %s64, %s66
      %p73 = scmp.eq.s32.totalorder %s14, 1
      %p74 = por %p72, %p73
      %p75 = scmp.ne.s32.totalorder %s66, %s67
      %p76 = scmp.eq.s32.totalorder %s14, 0
      %p77 = por %p75, %p76
      %p78 = scmp.ne.s32.totalorder %s66, %s67
      %p79 = scmp.eq.s32.totalorder %s15, 1
      %p80 = por %p78, %p79
      %p82 = scmp.ne.s32.totalorder %s67, %s81
      %p83 = scmp.eq.s32.totalorder %s15, 0
      %p84 = por %p82, %p83
      %s85 = ssub.s32 %s9, %s16
      %p86 = scmp.eq.s32.totalorder %s85, 0
      %s88 = sadd.s32 %s87, 1
      %s89 = scalar_select %p86, %s87, %s88
      %p92 = pneg %p86
      %p93 = scmp.eq.s32.totalorder %s9, 1
      %p94 = por %p92, %p93
      %p95 = scmp.ne.s32.totalorder %s87, %s90
      %p96 = scmp.eq.s32.totalorder %s9, 0
      %p97 = por %p95, %p96
      %p98 = scmp.ne.s32.totalorder %s87, %s90
      %p99 = scmp.eq.s32.totalorder %s14, 1
      %p100 = por %p98, %p99
      %p101 = scmp.ne.s32.totalorder %s90, %s91
      %p102 = scmp.eq.s32.totalorder %s14, 0
      %p103 = por %p101, %p102
      %p104 = scmp.ne.s32.totalorder %s90, %s91
      %p105 = scmp.eq.s32.totalorder %s15, 1
      %p106 = por %p104, %p105
      %p108 = scmp.ne.s32.totalorder %s91, %s107
      %p109 = scmp.eq.s32.totalorder %s15, 0
      %p110 = por %p108, %p109
      %p111 = scmp.le.s32.totalorder 1, %s9
      %p112 = scmp.lt.s32.totalorder %s9, 3
      %p113 = pnand %p111, %p112
      %p114 = pneg %p113
      // Predicated region
      $region9: #{forward.5} parent=5 // pred_check
        _
      $region10: #{forward.5} parent=5 // pred_check_branch
        %116 = sbr.rel (%p113) target = $region12
      $region11: #{forward.5} parent=5 // pred_region
        %s117 = ssub.s32 %s9, 1
        // Predicated region
        $region13: #{forward.5} parent=11 // pred_check
          %p118 = pneg %p56
        $region14: #{forward.5} parent=11 // pred_check_branch
          %120 = sbr.rel (%p118) target = $region16
        $region15: #{forward.5} parent=11 // pred_region
          _
        $region16: #{forward.5} parent=11 // pred_fallthru
          _
        // Predicated region
        $region17: #{forward.5} parent=11 // pred_check
          %p121 = pneg %p77
        $region18: #{forward.5} parent=11 // pred_check_branch
          %123 = sbr.rel (%p121) target = $region20
        $region19: #{forward.5} parent=11 // pred_region
          _
        $region20: #{forward.5} parent=11 // pred_fallthru
          _
      $region12: #{forward.5} parent=5 // pred_fallthru
        _
      %p124 = scmp.lt.s32.totalorder %s9, 2
      // Predicated region
      $region21: #{forward.5} parent=5 // pred_check
        %p125 = pneg %p124
      $region22: #{forward.5} parent=5 // pred_check_branch
        %127 = sbr.rel (%p125) target = $region24
      $region23: #{forward.5} parent=5 // pred_region
        // Predicated region
        $region25: #{forward.5} parent=23 // pred_check
          %p128 = pneg %p29
        $region26: #{forward.5} parent=23 // pred_check_branch
          %130 = sbr.rel (%p128) target = $region28
        $region27: #{forward.5} parent=23 // pred_region
          %s131 = smul.u32 11, %s9
          %s132 = ssub.s32 21, %s131
          %p133 = scmp.lt.s32.totalorder %s132, 11
          %s134 = scalar_select %p133, %s132, 11
          %s135 = smul.u32 64, %s134
          %s136 = smul.u32 %s135, 4
          %p137 = scmp.lt.s32.totalorder %s131, 20
          %s138 = scalar_select %p137, %s131, 20
          %s139 = smul.addr %s138, 4
          %s140 = smul.addr %s139, 4
          %s141 = scalar_lea.vmem %s0, %s140
          %s142 = smul.u32 11, %s9
          %s143 = ssub.s32 21, %s142
          %p144 = scmp.lt.s32.totalorder %s143, 11
          %s145 = scalar_select %p144, %s143, 11
          %s146 = smul.u32 64, %s145
          %s147 = smul.u32 %s146, 4
        $region28: #{forward.5} parent=23 // pred_fallthru
          _
      $region24: #{forward.5} parent=5 // pred_fallthru
        _
      %p148 = scmp.le.s32.totalorder 1, %s9
      %p149 = scmp.lt.s32.totalorder %s9, 3
      %p150 = pnand %p148, %p149
      %p151 = pneg %p150
      // Predicated region
      $region29: #{forward.5} parent=5 // pred_check
        _
      $region30: #{forward.5} parent=5 // pred_check_branch
        %153 = sbr.rel (%p150) target = $region32
      $region31: #{forward.5} parent=5 // pred_region
        %s154 = ssub.s32 %s9, 1
        %s155 = smul.u32 11, %s14
        %s156 = ssub.s32 21, %s155
        %p157 = scmp.lt.s32.totalorder %s156, 11
        %s158 = scalar_select %p157, %s156, 11
        %s159 = smul.u32 64, %s158
        %s160 = smul.u32 %s159, 4
        %p161 = scmp.lt.s32.totalorder %s155, 20
        %s162 = scalar_select %p161, %s155, 20
        %s163 = smul.addr %s162, 4
        %s164 = smul.addr %s163, 4
        %s165 = scalar_lea.vmem %s0, %s164
        %p166 = pneg %p35
        %p167 = pneg %p32
        %p168 = pneg %p56
        %p169 = pneg %p53
        %p170 = pneg %p77
        %p171 = pneg %p74
        %p172 = pneg %p103
        %p173 = pneg %p100
        %s174 = sand.u32 %s90, 1
        %s175 = sand.u32 %s90, 1
        %s176 = smul.addr %s175, 44
        %s177 = scalar_lea.vmem [#allocation2], %s176
        %s178 = smul.u32 11, %s14
        %s179 = ssub.s32 21, %s178
        %p180 = scmp.lt.s32.totalorder %s179, 11
        %s181 = scalar_select %p180, %s179, 11
        %s182 = smul.u32 64, %s181
        %s183 = smul.u32 %s182, 4
        %p184 = scmp.lt.s32.totalorder %s178, 20
        %s185 = scalar_select %p184, %s178, 20
        %s186 = smul.addr %s185, 4
        %s187 = smul.addr %s186, 4
        %s188 = scalar_lea.vmem %s0, %s187
        %s189 = smul.u32 11, %s14
        %s190 = ssub.s32 21, %s189
        %p191 = scmp.lt.s32.totalorder %s190, 11
        %s192 = scalar_select %p191, %s190, 11
        %s193 = smul.u32 64, %s192
        %s194 = smul.u32 %s193, 4
        %s195 = smul.u32 11, %s14
        %s196 = ssub.s32 21, %s195
        %p197 = scmp.lt.s32.totalorder %s196, 11
        %s198 = scalar_select %p197, %s196, 11
        %s199 = smul.u32 64, %s198
        %v201 = vld [vmem:[%s188] sm:$0xff]
        %v202 = vld [vmem:[%s188 + $0x8] sm:$0xff]
        %v203 = vld [vmem:[%s188 + $0x10] sm:$0xff]
        %v204 = vld [vmem:[%s188 + $0x18] sm:$0xff]
        %v205 = vld [vmem:[%s188 + $0x20] sm:$0xff]
        %v206 = vld [vmem:[%s188 + $0x28] sm:$0xff]
        %v207 = vld [vmem:[%s188 + $0x30] sm:$0xff]
        %v208 = vld [vmem:[%s188 + $0x38] sm:$0xff]
        %v209 = vld [vmem:[%s188 + $0x40] sm:$0xff]
        %v210 = vld [vmem:[%s188 + $0x48] sm:$0xff]
        %v211 = vld [vmem:[%s188 + $0x50] sm:$0xff]
        %v212 = vld [vmem:[%s188 + $0x58] sm:$0xff]
        %v213 = vld [vmem:[%s188 + $0x60] sm:$0xff]
        %v214 = vld [vmem:[%s188 + $0x68] sm:$0xff]
        %v215 = vld [vmem:[%s188 + $0x70] sm:$0xff]
        %v216 = vld [vmem:[%s188 + $0x78] sm:$0xff]
        %v217 = vld [vmem:[%s188 + $0x80] sm:$0xff]
        %v218 = vld [vmem:[%s188 + $0x88] sm:$0xff]
        %v219 = vld [vmem:[%s188 + $0x90] sm:$0xff]
        %v220 = vld [vmem:[%s188 + $0x98] sm:$0xff]
        %v221 = vld [vmem:[%s188 + $0xa0] sm:$0xff]
        %v222 = vld [vmem:[%s188 + $0xa8] sm:$0xff]
        %v223 = vld [vmem:[%s1] sm:$0xf]
        %v224 = vld [vmem:[%s1 + $0x4] sm:$0xf]
        %v225 = vld [vmem:[%s1 + $0x8] sm:$0xf]
        %v226 = vld [vmem:[%s1 + $0xc] sm:$0xf]
        %v227 = vld [vmem:[%s1 + $0x10] sm:$0xf]
        %v228 = vld [vmem:[%s1 + $0x14] sm:$0xf]
        %v229 = vld [vmem:[%s1 + $0x18] sm:$0xf]
        %v230 = vld [vmem:[%s1 + $0x1c] sm:$0xf]
        %v231 = vld [vmem:[%s1 + $0x20] sm:$0xf]
        %v232 = vld [vmem:[%s1 + $0x24] sm:$0xf]
        %v233 = vld [vmem:[%s1 + $0x28] sm:$0xf]
        %v234 = vld [vmem:[%s1 + $0x2c] sm:$0xf]
        %v235 = vld [vmem:[%s1 + $0x30] sm:$0xf]
        %v236 = vld [vmem:[%s1 + $0x34] sm:$0xf]
        %v237 = vld [vmem:[%s1 + $0x38] sm:$0xf]
        %v238 = vld [vmem:[%s1 + $0x3c] sm:$0xf]
        %v239 = vld [vmem:[%s1 + $0x40] sm:$0xf]
        %v240 = vld [vmem:[%s1 + $0x44] sm:$0xf]
        %v241 = vld [vmem:[%s1 + $0x48] sm:$0xf]
        %v242 = vld [vmem:[%s1 + $0x4c] sm:$0xf]
        %v243 = vld [vmem:[%s1 + $0x50] sm:$0xf]
        %v244 = vld [vmem:[%s1 + $0x54] sm:$0xf]
        %v245 = vld [vmem:[%s1 + $0x58] sm:$0xf]
        %v246 = vld [vmem:[%s1 + $0x5c] sm:$0xf]
        %v247 = vld [vmem:[%s1 + $0x60] sm:$0xf]
        %v248 = vld [vmem:[%s1 + $0x64] sm:$0xf]
        %v249 = vld [vmem:[%s1 + $0x68] sm:$0xf]
        %v250 = vld [vmem:[%s1 + $0x6c] sm:$0xf]
        %v251 = vld [vmem:[%s1 + $0x70] sm:$0xf]
        %v252 = vld [vmem:[%s1 + $0x74] sm:$0xf]
        %v253 = vld [vmem:[%s1 + $0x78] sm:$0xf]
        %v254 = vld [vmem:[%s1 + $0x7c] sm:$0xf]
        %v255 = vld [vmem:[%s1 + $0x80] sm:$0xf]
        %v256 = vld [vmem:[%s1 + $0x84] sm:$0xf]
        %v257 = vld [vmem:[%s1 + $0x88] sm:$0xf]
        %v258 = vld [vmem:[%s1 + $0x8c] sm:$0xf]
        %v259 = vld [vmem:[%s1 + $0x90] sm:$0xf]
        %v260 = vld [vmem:[%s1 + $0x94] sm:$0xf]
        %v261 = vld [vmem:[%s1 + $0x98] sm:$0xf]
        %v262 = vld [vmem:[%s1 + $0x9c] sm:$0xf]
        %v263 = vld [vmem:[%s1 + $0xa0] sm:$0xf]
        %v264 = vld [vmem:[%s1 + $0xa4] sm:$0xf]
        %v265 = vld [vmem:[%s1 + $0xa8] sm:$0xf]
        %v266 = vld [vmem:[%s1 + $0xac] sm:$0xf]
        %v267 = vld [vmem:[%s1 + $0xb0] sm:$0xf]
        %v268 = vld [vmem:[%s1 + $0xb4] sm:$0xf]
        %v269 = vld [vmem:[%s1 + $0xb8] sm:$0xf]
        %v270 = vld [vmem:[%s1 + $0xbc] sm:$0xf]
        %v271 = vld [vmem:[%s1 + $0xc0] sm:$0xf]
        %v272 = vld [vmem:[%s1 + $0xc4] sm:$0xf]
        %v273 = vld [vmem:[%s1 + $0xc8] sm:$0xf]
        %v274 = vld [vmem:[%s1 + $0xcc] sm:$0xf]
        %v275 = vld [vmem:[%s1 + $0xd0] sm:$0xf]
        %v276 = vld [vmem:[%s1 + $0xd4] sm:$0xf]
        %v277 = vld [vmem:[%s1 + $0xd8] sm:$0xf]
        %v278 = vld [vmem:[%s1 + $0xdc] sm:$0xf]
        %v279 = vld [vmem:[%s1 + $0xe0] sm:$0xf]
        %v280 = vld [vmem:[%s1 + $0xe4] sm:$0xf]
        %v281 = vld [vmem:[%s1 + $0xe8] sm:$0xf]
        %v282 = vld [vmem:[%s1 + $0xec] sm:$0xf]
        %v283 = vld [vmem:[%s1 + $0xf0] sm:$0xf]
        %v284 = vld [vmem:[%s1 + $0xf4] sm:$0xf]
        %v285 = vld [vmem:[%s1 + $0xf8] sm:$0xf]
        %v286 = vld [vmem:[%s1 + $0xfc] sm:$0xf]
        %v287 = vld [vmem:[%s2] sm:$0x1]
        %v289 = vlaneseq
        %v290 = vshrl.u32 %v289, 7
        %v291 = vsub.s32 0, %v290
        %v292 = vrot.slane %v287, %v291
        %v316 = vunpack.c.l.b16 %v201
        %v317 = vunpack.c.h.b16 %v201
        %v318 = vunpack.c.l.b16 %v202
        %v319 = vunpack.c.h.b16 %v202
        %v320 = vunpack.c.l.b16 %v203
        %v321 = vunpack.c.h.b16 %v203
        %v322 = vunpack.c.l.b16 %v204
        %v323 = vunpack.c.h.b16 %v204
        %v324 = vunpack.c.l.b16 %v205
        %v325 = vunpack.c.h.b16 %v205
        %v326 = vunpack.c.l.b16 %v206
        %v327 = vunpack.c.h.b16 %v206
        %v328 = vunpack.c.l.b16 %v207
        %v329 = vunpack.c.h.b16 %v207
        %v330 = vunpack.c.l.b16 %v208
        %v331 = vunpack.c.h.b16 %v208
        %v332 = vunpack.c.l.b16 %v209
        %v333 = vunpack.c.h.b16 %v209
        %v334 = vunpack.c.l.b16 %v210
        %v335 = vunpack.c.h.b16 %v210
        %v336 = vunpack.c.l.b16 %v211
        %v337 = vunpack.c.h.b16 %v211
        %v338 = vunpack.c.l.b16 %v212
        %v339 = vunpack.c.h.b16 %v212
        %v340 = vunpack.c.l.b16 %v213
        %v341 = vunpack.c.h.b16 %v213
        %v342 = vunpack.c.l.b16 %v214
        %v343 = vunpack.c.h.b16 %v214
        %v344 = vunpack.c.l.b16 %v215
        %v345 = vunpack.c.h.b16 %v215
        %v346 = vunpack.c.l.b16 %v216
        %v347 = vunpack.c.h.b16 %v216
        %v348 = vunpack.c.l.b16 %v217
        %v349 = vunpack.c.h.b16 %v217
        %v350 = vunpack.c.l.b16 %v218
        %v351 = vunpack.c.h.b16 %v218
        %v352 = vunpack.c.l.b16 %v219
        %v353 = vunpack.c.h.b16 %v219
        %v354 = vunpack.c.l.b16 %v220
        %v355 = vunpack.c.h.b16 %v220
        %v356 = vunpack.c.l.b16 %v221
        %v357 = vunpack.c.h.b16 %v221
        %v358 = vunpack.c.l.b16 %v222
        %v359 = vunpack.c.h.b16 %v222
        %v360 = vpack.c.b16 %v320, %v316
        %v361 = vpack.c.b16 %v321, %v317
        %v362 = vpack.c.b16 %v322, %v318
        %v363 = vpack.c.b16 %v323, %v319
        %v364 = vpack.c.b16 %v328, %v324
        %v365 = vpack.c.b16 %v329, %v325
        %v366 = vpack.c.b16 %v330, %v326
        %v367 = vpack.c.b16 %v331, %v327
        %v368 = vpack.c.b16 %v336, %v332
        %v369 = vpack.c.b16 %v337, %v333
        %v370 = vpack.c.b16 %v338, %v334
        %v371 = vpack.c.b16 %v339, %v335
        %v372 = vpack.c.b16 %v344, %v340
        %v373 = vpack.c.b16 %v345, %v341
        %v374 = vpack.c.b16 %v346, %v342
        %v375 = vpack.c.b16 %v347, %v343
        %v376 = vpack.c.b16 %v352, %v348
        %v377 = vpack.c.b16 %v353, %v349
        %v378 = vpack.c.b16 %v354, %v350
        %v379 = vpack.c.b16 %v355, %v351
        %v380 = vpack.c.b16 %v356, %v356
        %v381 = vpack.c.b16 %v357, %v357
        %v382 = vpack.c.b16 %v358, %v358
        %v383 = vpack.c.b16 %v359, %v359
        %v472 = vunpack.c.l.b16 %v223
        %v473 = vunpack.c.l.b16 %v224
        %v474 = vunpack.c.l.b16 %v225
        %v475 = vunpack.c.l.b16 %v226
        %v476 = vunpack.c.l.b16 %v227
        %v477 = vunpack.c.l.b16 %v228
        %v478 = vunpack.c.l.b16 %v229
        %v479 = vunpack.c.l.b16 %v230
        %v480 = vunpack.c.l.b16 %v231
        %v481 = vunpack.c.l.b16 %v232
        %v482 = vunpack.c.l.b16 %v233
        %v483 = vunpack.c.l.b16 %v234
        %v484 = vunpack.c.l.b16 %v235
        %v485 = vunpack.c.l.b16 %v236
        %v486 = vunpack.c.l.b16 %v237
        %v487 = vunpack.c.l.b16 %v238
        %v488 = vunpack.c.l.b16 %v239
        %v489 = vunpack.c.l.b16 %v240
        %v490 = vunpack.c.l.b16 %v241
        %v491 = vunpack.c.l.b16 %v242
        %v492 = vunpack.c.l.b16 %v243
        %v493 = vunpack.c.l.b16 %v244
        %v494 = vunpack.c.l.b16 %v245
        %v495 = vunpack.c.l.b16 %v246
        %v496 = vunpack.c.l.b16 %v247
        %v497 = vunpack.c.l.b16 %v248
        %v498 = vunpack.c.l.b16 %v249
        %v499 = vunpack.c.l.b16 %v250
        %v500 = vunpack.c.l.b16 %v251
        %v501 = vunpack.c.l.b16 %v252
        %v502 = vunpack.c.l.b16 %v253
        %v503 = vunpack.c.l.b16 %v254
        %v504 = vunpack.c.l.b16 %v255
        %v505 = vunpack.c.l.b16 %v256
        %v506 = vunpack.c.l.b16 %v257
        %v507 = vunpack.c.l.b16 %v258
        %v508 = vunpack.c.l.b16 %v259
        %v509 = vunpack.c.l.b16 %v260
        %v510 = vunpack.c.l.b16 %v261
        %v511 = vunpack.c.l.b16 %v262
        %v512 = vunpack.c.l.b16 %v263
        %v513 = vunpack.c.l.b16 %v264
        %v514 = vunpack.c.l.b16 %v265
        %v515 = vunpack.c.l.b16 %v266
        %v516 = vunpack.c.l.b16 %v267
        %v517 = vunpack.c.l.b16 %v268
        %v518 = vunpack.c.l.b16 %v269
        %v519 = vunpack.c.l.b16 %v270
        %v520 = vunpack.c.l.b16 %v271
        %v521 = vunpack.c.l.b16 %v272
        %v522 = vunpack.c.l.b16 %v273
        %v523 = vunpack.c.l.b16 %v274
        %v524 = vunpack.c.l.b16 %v275
        %v525 = vunpack.c.l.b16 %v276
        %v526 = vunpack.c.l.b16 %v277
        %v527 = vunpack.c.l.b16 %v278
        %v528 = vunpack.c.l.b16 %v279
        %v529 = vunpack.c.l.b16 %v280
        %v530 = vunpack.c.l.b16 %v281
        %v531 = vunpack.c.l.b16 %v282
        %v532 = vunpack.c.l.b16 %v283
        %v533 = vunpack.c.l.b16 %v284
        %v534 = vunpack.c.l.b16 %v285
        %v535 = vunpack.c.l.b16 %v286
        %v536 = vpack.c.b16 %v473, %v472
        %v537 = vpack.c.b16 %v475, %v474
        %v538 = vpack.c.b16 %v477, %v476
        %v539 = vpack.c.b16 %v479, %v478
        %v540 = vpack.c.b16 %v481, %v480
        %v541 = vpack.c.b16 %v483, %v482
        %v542 = vpack.c.b16 %v485, %v484
        %v543 = vpack.c.b16 %v487, %v486
        %v544 = vpack.c.b16 %v489, %v488
        %v545 = vpack.c.b16 %v491, %v490
        %v546 = vpack.c.b16 %v493, %v492
        %v547 = vpack.c.b16 %v495, %v494
        %v548 = vpack.c.b16 %v497, %v496
        %v549 = vpack.c.b16 %v499, %v498
        %v550 = vpack.c.b16 %v501, %v500
        %v551 = vpack.c.b16 %v503, %v502
        %v552 = vpack.c.b16 %v505, %v504
        %v553 = vpack.c.b16 %v507, %v506
        %v554 = vpack.c.b16 %v509, %v508
        %v555 = vpack.c.b16 %v511, %v510
        %v556 = vpack.c.b16 %v513, %v512
        %v557 = vpack.c.b16 %v515, %v514
        %v558 = vpack.c.b16 %v517, %v516
        %v559 = vpack.c.b16 %v519, %v518
        %v560 = vpack.c.b16 %v521, %v520
        %v561 = vpack.c.b16 %v523, %v522
        %v562 = vpack.c.b16 %v525, %v524
        %v563 = vpack.c.b16 %v527, %v526
        %v564 = vpack.c.b16 %v529, %v528
        %v565 = vpack.c.b16 %v531, %v530
        %v566 = vpack.c.b16 %v533, %v532
        %v567 = vpack.c.b16 %v535, %v534
        %600 = vmatprep.subr.bf16.mxu0 0
        %601 = vmatpush1.bf16.msra.mxu0 %v543
        %602 = vmatprep.subr.bf16.mxu0 0
        %603 = vmatpush1.bf16.msra.mxu0 %v542
        %604 = vmatprep.subr.bf16.mxu0 0
        %605 = vmatpush1.bf16.msra.mxu0 %v541
        %606 = vmatprep.subr.bf16.mxu0 0
        %607 = vmatpush1.bf16.msra.mxu0 %v540
        %608 = vmatprep.subr.bf16.mxu0 0
        %609 = vmatpush1.bf16.msra.mxu0 %v539
        %610 = vmatprep.subr.bf16.mxu0 0
        %611 = vmatpush1.bf16.msra.mxu0 %v538
        %612 = vmatprep.subr.bf16.mxu0 0
        %613 = vmatpush1.bf16.msra.mxu0 %v537
        %614 = vmatprep.subr.bf16.mxu0 0
        %615 = vmatpush1.bf16.msra.mxu0 %v536
        %616 = vmatprep.subr.bf16.mxu0 0
        %617 = vmatpush2.bf16.msra.mxu0 %v551
        %618 = vmatprep.subr.bf16.mxu0 0
        %619 = vmatpush2.bf16.msra.mxu0 %v550
        %620 = vmatprep.subr.bf16.mxu0 0
        %621 = vmatpush2.bf16.msra.mxu0 %v549
        %622 = vmatprep.subr.bf16.mxu0 0
        %623 = vmatpush2.bf16.msra.mxu0 %v548
        %624 = vmatprep.subr.bf16.mxu0 0
        %625 = vmatpush2.bf16.msra.mxu0 %v547
        %626 = vmatprep.subr.bf16.mxu0 0
        %627 = vmatpush2.bf16.msra.mxu0 %v546
        %628 = vmatprep.subr.bf16.mxu0 0
        %629 = vmatpush2.bf16.msra.mxu0 %v545
        %630 = vmatprep.subr.bf16.mxu0 0
        %631 = vmatpush2.bf16.msra.mxu0 %v544
        %632 = vmatprep.mubr.bf16.mxu0 %v361
        %633 = vmatmul.mubr.bf16.gmra.mxu0 %v360
        %v634 = vpop.f32.mrf.mxu0
        %v635 = vadd.f32 %v292, %v634
        %v636 = vpop.f32.mrf.mxu0
        %v637 = vpop.f32.mrf.mxu0
        %v638 = vadd.f32 %v292, %v637
        %v639 = vpop.f32.mrf.mxu0
        %640 = vmatprep.mubr.bf16.mxu0 %v365
        %641 = vmatmul.mubr.bf16.gmra.mxu0 %v364
        %v642 = vpop.f32.mrf.mxu0
        %v643 = vadd.f32 %v292, %v642
        %v644 = vpop.f32.mrf.mxu0
        %v645 = vpop.f32.mrf.mxu0
        %v646 = vadd.f32 %v292, %v645
        %v647 = vpop.f32.mrf.mxu0
        %648 = vmatprep.mubr.bf16.mxu0 %v369
        %649 = vmatmul.mubr.bf16.gmra.mxu0 %v368
        %v650 = vpop.f32.mrf.mxu0
        %v651 = vadd.f32 %v292, %v650
        %v652 = vpop.f32.mrf.mxu0
        %v653 = vpop.f32.mrf.mxu0
        %v654 = vadd.f32 %v292, %v653
        %v655 = vpop.f32.mrf.mxu0
        %656 = vmatprep.mubr.bf16.mxu0 %v373
        %657 = vmatmul.mubr.bf16.gmra.mxu0 %v372
        %v658 = vpop.f32.mrf.mxu0
        %v659 = vadd.f32 %v292, %v658
        %v660 = vpop.f32.mrf.mxu0
        %v661 = vpop.f32.mrf.mxu0
        %v662 = vadd.f32 %v292, %v661
        %v663 = vpop.f32.mrf.mxu0
        %664 = vmatprep.mubr.bf16.mxu0 %v377
        %665 = vmatmul.mubr.bf16.gmra.mxu0 %v376
        %v666 = vpop.f32.mrf.mxu0
        %v667 = vadd.f32 %v292, %v666
        %v668 = vpop.f32.mrf.mxu0
        %v669 = vpop.f32.mrf.mxu0
        %v670 = vadd.f32 %v292, %v669
        %v671 = vpop.f32.mrf.mxu0
        %672 = vmatprep.mubr.bf16.mxu0 %v381
        %673 = vmatmul.mubr.bf16.gmra.mxu0 %v380
        %v674 = vpop.f32.mrf.mxu0
        %v675 = vadd.f32 %v292, %v674
        %v676 = vpop.f32.mrf.mxu0
        %v677 = vpop.f32.mrf.mxu0
        %v678 = vpop.f32.mrf.mxu0
        %679 = vdwg.mxu0
        %680 = vmatprep.subr.bf16.mxu0 0
        %681 = vmatpush1.bf16.msra.mxu0 %v559
        %682 = vmatprep.subr.bf16.mxu0 0
        %683 = vmatpush1.bf16.msra.mxu0 %v558
        %684 = vmatprep.subr.bf16.mxu0 0
        %685 = vmatpush1.bf16.msra.mxu0 %v557
        %686 = vmatprep.subr.bf16.mxu0 0
        %687 = vmatpush1.bf16.msra.mxu0 %v556
        %688 = vmatprep.subr.bf16.mxu0 0
        %689 = vmatpush1.bf16.msra.mxu0 %v555
        %690 = vmatprep.subr.bf16.mxu0 0
        %691 = vmatpush1.bf16.msra.mxu0 %v554
        %692 = vmatprep.subr.bf16.mxu0 0
        %693 = vmatpush1.bf16.msra.mxu0 %v553
        %694 = vmatprep.subr.bf16.mxu0 0
        %695 = vmatpush1.bf16.msra.mxu0 %v552
        %696 = vmatprep.subr.bf16.mxu0 0
        %697 = vmatpush2.bf16.msra.mxu0 %v567
        %698 = vmatprep.subr.bf16.mxu0 0
        %699 = vmatpush2.bf16.msra.mxu0 %v566
        %700 = vmatprep.subr.bf16.mxu0 0
        %701 = vmatpush2.bf16.msra.mxu0 %v565
        %702 = vmatprep.subr.bf16.mxu0 0
        %703 = vmatpush2.bf16.msra.mxu0 %v564
        %704 = vmatprep.subr.bf16.mxu0 0
        %705 = vmatpush2.bf16.msra.mxu0 %v563
        %706 = vmatprep.subr.bf16.mxu0 0
        %707 = vmatpush2.bf16.msra.mxu0 %v562
        %708 = vmatprep.subr.bf16.mxu0 0
        %709 = vmatpush2.bf16.msra.mxu0 %v561
        %710 = vmatprep.subr.bf16.mxu0 0
        %711 = vmatpush2.bf16.msra.mxu0 %v560
        %712 = vmatprep.mubr.bf16.mxu0 %v363
        %713 = vmatmul.mubr.bf16.gmra.mxu0 %v362
        %v714 = vpop.f32.mrf.mxu0
        %v715 = vadd.f32 %v635, %v714
        %v716 = vpop.f32.mrf.mxu0
        %v717 = vpop.f32.mrf.mxu0
        %v718 = vadd.f32 %v638, %v717
        %v719 = vpop.f32.mrf.mxu0
        %720 = vmatprep.mubr.bf16.mxu0 %v367
        %721 = vmatmul.mubr.bf16.gmra.mxu0 %v366
        %v722 = vpop.f32.mrf.mxu0
        %v723 = vadd.f32 %v643, %v722
        %v724 = vpop.f32.mrf.mxu0
        %v725 = vpop.f32.mrf.mxu0
        %v726 = vadd.f32 %v646, %v725
        %v727 = vpop.f32.mrf.mxu0
        %728 = vmatprep.mubr.bf16.mxu0 %v371
        %729 = vmatmul.mubr.bf16.gmra.mxu0 %v370
        %v730 = vpop.f32.mrf.mxu0
        %v731 = vadd.f32 %v651, %v730
        %v732 = vpop.f32.mrf.mxu0
        %v733 = vpop.f32.mrf.mxu0
        %v734 = vadd.f32 %v654, %v733
        %v735 = vpop.f32.mrf.mxu0
        %736 = vmatprep.mubr.bf16.mxu0 %v375
        %737 = vmatmul.mubr.bf16.gmra.mxu0 %v374
        %v738 = vpop.f32.mrf.mxu0
        %v739 = vadd.f32 %v659, %v738
        %v740 = vpop.f32.mrf.mxu0
        %v741 = vpop.f32.mrf.mxu0
        %v742 = vadd.f32 %v662, %v741
        %v743 = vpop.f32.mrf.mxu0
        %744 = vmatprep.mubr.bf16.mxu0 %v379
        %745 = vmatmul.mubr.bf16.gmra.mxu0 %v378
        %v746 = vpop.f32.mrf.mxu0
        %v747 = vadd.f32 %v667, %v746
        %v748 = vpop.f32.mrf.mxu0
        %v749 = vpop.f32.mrf.mxu0
        %v750 = vadd.f32 %v670, %v749
        %v751 = vpop.f32.mrf.mxu0
        %752 = vmatprep.mubr.bf16.mxu0 %v383
        %753 = vmatmul.mubr.bf16.gmra.mxu0 %v382
        %v754 = vpop.f32.mrf.mxu0
        %v755 = vadd.f32 %v675, %v754
        %v756 = vpop.f32.mrf.mxu0
        %v757 = vpop.f32.mrf.mxu0
        %v758 = vpop.f32.mrf.mxu0
        %759 = vdwg.mxu0
        %v760 = vmax.f32 %v715, 0.0
        %v761 = vmax.f32 %v718, 0.0
        %v762 = vmax.f32 %v723, 0.0
        %v763 = vmax.f32 %v726, 0.0
        %v764 = vmax.f32 %v731, 0.0
        %v765 = vmax.f32 %v734, 0.0
        %v766 = vmax.f32 %v739, 0.0
        %v767 = vmax.f32 %v742, 0.0
        %v768 = vmax.f32 %v747, 0.0
        %v769 = vmax.f32 %v750, 0.0
        %v770 = vmax.f32 %v755, 0.0
        %v771 = vpack.c.bf16 %v761, %v760
        %v772 = vpack.c.bf16 %v763, %v762
        %v773 = vpack.c.bf16 %v765, %v764
        %v774 = vpack.c.bf16 %v767, %v766
        %v775 = vpack.c.bf16 %v769, %v768
        %v776 = vpack.c.bf16 %v770, %v770
        %v783 = vunpack.c.l.b16 %v771
        %v784 = vunpack.c.h.b16 %v771
        %v785 = vunpack.c.l.b16 %v772
        %v786 = vunpack.c.h.b16 %v772
        %v787 = vunpack.c.l.b16 %v773
        %v788 = vunpack.c.h.b16 %v773
        %v789 = vunpack.c.l.b16 %v774
        %v790 = vunpack.c.h.b16 %v774
        %v791 = vunpack.c.l.b16 %v775
        %v792 = vunpack.c.h.b16 %v775
        %v793 = vunpack.c.l.b16 %v776
        %v794 = vpack.c.b16 %v783, %v783
        %v795 = vpack.c.b16 %v784, %v784
        %v796 = vpack.c.b16 %v785, %v785
        %v797 = vpack.c.b16 %v786, %v786
        %v798 = vpack.c.b16 %v787, %v787
        %v799 = vpack.c.b16 %v788, %v788
        %v800 = vpack.c.b16 %v789, %v789
        %v801 = vpack.c.b16 %v790, %v790
        %v802 = vpack.c.b16 %v791, %v791
        %v803 = vpack.c.b16 %v792, %v792
        %v804 = vpack.c.b16 %v793, %v793
        %vm816 = vcmask 519168
        %817 = vst.msk [vmem:[%s177] sm:$0xf] %vm816, %v794
        %818 = vst.msk [vmem:[%s177 + $0x4] sm:$0xf] %vm816, %v795
        %819 = vst.msk [vmem:[%s177 + $0x8] sm:$0xf] %vm816, %v796
        %820 = vst.msk [vmem:[%s177 + $0xc] sm:$0xf] %vm816, %v797
        %821 = vst.msk [vmem:[%s177 + $0x10] sm:$0xf] %vm816, %v798
        %822 = vst.msk [vmem:[%s177 + $0x14] sm:$0xf] %vm816, %v799
        %823 = vst.msk [vmem:[%s177 + $0x18] sm:$0xf] %vm816, %v800
        %824 = vst.msk [vmem:[%s177 + $0x1c] sm:$0xf] %vm816, %v801
        %825 = vst.msk [vmem:[%s177 + $0x20] sm:$0xf] %vm816, %v802
        %826 = vst.msk [vmem:[%s177 + $0x24] sm:$0xf] %vm816, %v803
        %827 = vst.msk [vmem:[%s177 + $0x28] sm:$0xf] %vm816, %v804
        %s828 = sand.u32 %s90, 1
        %s829 = sand.u32 %s90, 1
        %s830 = smul.addr %s829, 44
        %s831 = scalar_lea.vmem [#allocation2], %s830
        // Predicated region
        $region33: #{forward.5} parent=31 // pred_check
          %p832 = pneg %p100
        $region34: #{forward.5} parent=31 // pred_check_branch
          %834 = sbr.rel (%p832) target = $region36
        $region35: #{forward.5} parent=31 // pred_region
          %s835 = smul.u32 11, %s14
          %s836 = ssub.s32 21, %s835
          %p837 = scmp.lt.s32.totalorder %s836, 11
          %s838 = scalar_select %p837, %s836, 11
          %s839 = smul.u32 64, %s838
          %p840 = scmp.ne.s32.totalorder 0, %s839
          %s841 = smul.addr %s835, 4
          %s842 = scalar_lea.vmem %s3, %s841
          // Predicated region
          $region37: #{forward.5} parent=35 // pred_check
            %p843 = pneg %p840
          $region38: #{forward.5} parent=35 // pred_check_branch
            %845 = sbr.rel (%p843) target = $region40
          $region39: #{forward.5} parent=35 // pred_region
            // Predicated region
            $region41: #{forward.5} parent=39 // pred_check
              _
            $region42: #{forward.5} parent=39 // pred_check_branch
              %847 = sbr.rel target = $region44
            $region43: #{forward.5} parent=39 // pred_region
              // Predicated region
              $region63: #{forward.5} parent=43 // pred_check
                _
              $region64: #{forward.5} parent=43 // pred_check_branch
                %918 = sbr.rel (0) target = $region66
              $region65: #{forward.5} parent=43 // pred_region
                %s920 = ssub.s32 16, 1
                %s921 = sdiv.u32.pop %s838, 11
                %s922 = srem.u32.pop %s838, 11
                // While loop
                $region67: #{forward.5} parent=65 // loop_pre_header
                  _
                $region68: #{forward.5} parent=65 // loop_header
                  %s924 = sphi 0, %s926
                  %p925 = scmp.ge.s32.totalorder %s924, %s921
                  %s929 = sphi 0, %s956
                  %s930 = sphi %s831, %s959
                  %s931 = sphi %s842, %s960
                $region69: #{forward.5} parent=65 // loop_header_branch
                  %928 = sbr.rel (%p925) target = $region73
                $region70: #{forward.5} parent=65 // loop_body
                  %v932 = vld [vmem:[%s930] sm:%s920]
                  %933 = vst [vmem:[%s931] sm:%s920] %v932
                  %v934 = vld [vmem:[%s930 + $0x4] sm:%s920]
                  %935 = vst [vmem:[%s931 + $0x4] sm:%s920] %v934
                  %v936 = vld [vmem:[%s930 + $0x8] sm:%s920]
                  %937 = vst [vmem:[%s931 + $0x8] sm:%s920] %v936
                  %v938 = vld [vmem:[%s930 + $0xc] sm:%s920]
                  %939 = vst [vmem:[%s931 + $0xc] sm:%s920] %v938
                  %v940 = vld [vmem:[%s930 + $0x10] sm:%s920]
                  %941 = vst [vmem:[%s931 + $0x10] sm:%s920] %v940
                  %v942 = vld [vmem:[%s930 + $0x14] sm:%s920]
                  %943 = vst [vmem:[%s931 + $0x14] sm:%s920] %v942
                  %v944 = vld [vmem:[%s930 + $0x18] sm:%s920]
                  %945 = vst [vmem:[%s931 + $0x18] sm:%s920] %v944
                  %v946 = vld [vmem:[%s930 + $0x1c] sm:%s920]
                  %947 = vst [vmem:[%s931 + $0x1c] sm:%s920] %v946
                  %v948 = vld [vmem:[%s930 + $0x20] sm:%s920]
                  %949 = vst [vmem:[%s931 + $0x20] sm:%s920] %v948
                  %v950 = vld [vmem:[%s930 + $0x24] sm:%s920]
                  %951 = vst [vmem:[%s931 + $0x24] sm:%s920] %v950
                  %v952 = vld [vmem:[%s930 + $0x28] sm:%s920]
                  %953 = vst [vmem:[%s931 + $0x28] sm:%s920] %v952
                  %s954 = sadd.s32 1, %s929
                  %p955 = scmp.ge.s32.totalorder %s954, %s921
                  %s956 = scalar_select %p955, 0, %s954
                  %s957 = smul.u32 %s956, 44
                  %s958 = smul.u32 %s956, 44
                  %s959 = scalar_lea.vmem %s831, %s957 [#allocation2]
                  %s960 = scalar_lea.vmem %s842, %s958
                $region71: #{forward.5} parent=65 // loop_footer
                  %s926 = sadd.s32 %s924, 1
                $region72: #{forward.5} parent=65 // loop_footer_branch
                  %923 = sbr.rel target = $region68
                $region73: #{forward.5} parent=65 // loop_exit
                  _
                %s961 = sdiv.u32.pop %s838, 11
                %s962 = srem.u32.pop %s838, 11
                %s963 = smul.u32 %s961, 11
                %s964 = smul.u32 4, %s963
                %s965 = scalar_lea.vmem %s831, %s964 [#allocation2]
                %s966 = smul.u32 4, %s963
                %s967 = scalar_lea.vmem %s842, %s966
                // While loop
                $region74: #{forward.5} parent=65 // loop_pre_header
                  _
                $region75: #{forward.5} parent=65 // loop_header
                  %s969 = sphi 0, %s971
                  %p970 = scmp.ge.s32.totalorder %s969, %s962
                  %s974 = sphi 0, %s981
                  %s975 = sphi %s965, %s984
                  %s976 = sphi %s967, %s985
                $region76: #{forward.5} parent=65 // loop_header_branch
                  %973 = sbr.rel (%p970) target = $region80
                $region77: #{forward.5} parent=65 // loop_body
                  %v977 = vld [vmem:[%s975] sm:%s920]
                  %978 = vst [vmem:[%s976] sm:%s920] %v977
                  %s979 = sadd.s32 1, %s974
                  %p980 = scmp.ge.s32.totalorder %s979, %s962
                  %s981 = scalar_select %p980, 0, %s979
                  %s982 = smul.u32 %s981, 4
                  %s983 = smul.u32 %s981, 4
                  %s984 = scalar_lea.vmem %s965, %s982 [#allocation2]
                  %s985 = scalar_lea.vmem %s967, %s983
                $region78: #{forward.5} parent=65 // loop_footer
                  %s971 = sadd.s32 %s969, 1
                $region79: #{forward.5} parent=65 // loop_footer_branch
                  %968 = sbr.rel target = $region75
                $region80: #{forward.5} parent=65 // loop_exit
                  _
              $region66: #{forward.5} parent=43 // pred_fallthru
                _
            $region44: #{forward.5} parent=39 // pred_fallthru
              _
            // Predicated region
            $region45: #{forward.5} parent=39 // pred_check
              _
            $region46: #{forward.5} parent=39 // pred_check_branch
              %849 = sbr.rel (0) target = $region48
            $region47: #{forward.5} parent=39 // pred_region
              %s851 = ssub.s32 16, 1
              %s852 = sdiv.u32.pop %s838, 11
              %s853 = srem.u32.pop %s838, 11
              // While loop
              $region49: #{forward.5} parent=47 // loop_pre_header
                _
              $region50: #{forward.5} parent=47 // loop_header
                %s855 = sphi 0, %s857
                %p856 = scmp.ge.s32.totalorder %s855, %s852
                %s860 = sphi 0, %s887
                %s861 = sphi %s831, %s890
                %s862 = sphi %s842, %s891
              $region51: #{forward.5} parent=47 // loop_header_branch
                %859 = sbr.rel (%p856) target = $region55
              $region52: #{forward.5} parent=47 // loop_body
                %v863 = vld [vmem:[%s861] sm:%s851]
                %864 = vst [vmem:[%s862] sm:%s851] %v863
                %v865 = vld [vmem:[%s861 + $0x4] sm:%s851]
                %866 = vst [vmem:[%s862 + $0x4] sm:%s851] %v865
                %v867 = vld [vmem:[%s861 + $0x8] sm:%s851]
                %868 = vst [vmem:[%s862 + $0x8] sm:%s851] %v867
                %v869 = vld [vmem:[%s861 + $0xc] sm:%s851]
                %870 = vst [vmem:[%s862 + $0xc] sm:%s851] %v869
                %v871 = vld [vmem:[%s861 + $0x10] sm:%s851]
                %872 = vst [vmem:[%s862 + $0x10] sm:%s851] %v871
                %v873 = vld [vmem:[%s861 + $0x14] sm:%s851]
                %874 = vst [vmem:[%s862 + $0x14] sm:%s851] %v873
                %v875 = vld [vmem:[%s861 + $0x18] sm:%s851]
                %876 = vst [vmem:[%s862 + $0x18] sm:%s851] %v875
                %v877 = vld [vmem:[%s861 + $0x1c] sm:%s851]
                %878 = vst [vmem:[%s862 + $0x1c] sm:%s851] %v877
                %v879 = vld [vmem:[%s861 + $0x20] sm:%s851]
                %880 = vst [vmem:[%s862 + $0x20] sm:%s851] %v879
                %v881 = vld [vmem:[%s861 + $0x24] sm:%s851]
                %882 = vst [vmem:[%s862 + $0x24] sm:%s851] %v881
                %v883 = vld [vmem:[%s861 + $0x28] sm:%s851]
                %884 = vst [vmem:[%s862 + $0x28] sm:%s851] %v883
                %s885 = sadd.s32 1, %s860
                %p886 = scmp.ge.s32.totalorder %s885, %s852
                %s887 = scalar_select %p886, 0, %s885
                %s888 = smul.u32 %s887, 44
                %s889 = smul.u32 %s887, 44
                %s890 = scalar_lea.vmem %s831, %s888 [#allocation2]
                %s891 = scalar_lea.vmem %s842, %s889
              $region53: #{forward.5} parent=47 // loop_footer
                %s857 = sadd.s32 %s855, 1
              $region54: #{forward.5} parent=47 // loop_footer_branch
                %854 = sbr.rel target = $region50
              $region55: #{forward.5} parent=47 // loop_exit
                _
              %s892 = sdiv.u32.pop %s838, 11
              %s893 = srem.u32.pop %s838, 11
              %s894 = smul.u32 %s892, 11
              %s895 = smul.u32 4, %s894
              %s896 = scalar_lea.vmem %s831, %s895 [#allocation2]
              %s897 = smul.u32 4, %s894
              %s898 = scalar_lea.vmem %s842, %s897
              // While loop
              $region56: #{forward.5} parent=47 // loop_pre_header
                _
              $region57: #{forward.5} parent=47 // loop_header
                %s900 = sphi 0, %s902
                %p901 = scmp.ge.s32.totalorder %s900, %s893
                %s905 = sphi 0, %s912
                %s906 = sphi %s896, %s915
                %s907 = sphi %s898, %s916
              $region58: #{forward.5} parent=47 // loop_header_branch
                %904 = sbr.rel (%p901) target = $region62
              $region59: #{forward.5} parent=47 // loop_body
                %v908 = vld [vmem:[%s906] sm:%s851]
                %909 = vst [vmem:[%s907] sm:%s851] %v908
                %s910 = sadd.s32 1, %s905
                %p911 = scmp.ge.s32.totalorder %s910, %s893
                %s912 = scalar_select %p911, 0, %s910
                %s913 = smul.u32 %s912, 4
                %s914 = smul.u32 %s912, 4
                %s915 = scalar_lea.vmem %s896, %s913 [#allocation2]
                %s916 = scalar_lea.vmem %s898, %s914
              $region60: #{forward.5} parent=47 // loop_footer
                %s902 = sadd.s32 %s900, 1
              $region61: #{forward.5} parent=47 // loop_footer_branch
                %899 = sbr.rel target = $region57
              $region62: #{forward.5} parent=47 // loop_exit
                _
            $region48: #{forward.5} parent=39 // pred_fallthru
              _
          $region40: #{forward.5} parent=35 // pred_fallthru
            _
          %986 = vnop
        $region36: #{forward.5} parent=31 // pred_fallthru
          _
      $region32: #{forward.5} parent=5 // pred_fallthru
        _
      %p987 = scmp.le.s32.totalorder 2, %s9
      // Predicated region
      $region81: #{forward.5} parent=5 // pred_check
        %p988 = pneg %p987
      $region82: #{forward.5} parent=5 // pred_check_branch
        %990 = sbr.rel (%p988) target = $region84
      $region83: #{forward.5} parent=5 // pred_region
        %s991 = ssub.s32 %s9, 2
        // Predicated region
        $region85: #{forward.5} parent=83 // pred_check
          %p992 = pneg %p106
        $region86: #{forward.5} parent=83 // pred_check_branch
          %994 = sbr.rel (%p992) target = $region88
        $region87: #{forward.5} parent=83 // pred_region
          %s995 = sand.u32 %s91, 1
          %s996 = sand.u32 %s91, 1
          %s997 = smul.addr %s996, 44
          %s998 = scalar_lea.vmem [#allocation2], %s997
        $region88: #{forward.5} parent=83 // pred_fallthru
          _
      $region84: #{forward.5} parent=5 // pred_fallthru
        _
    $region6: #{forward.5} parent=1 // loop_footer
      %s13 = sadd.s32 1, %s9
    $region7: #{forward.5} parent=1 // loop_footer_branch
      %8 = sbr.rel target = $region3
    $region8: #{forward.5} parent=1 // loop_exit
      _

// kernel: forward.6
$region0: #{forward.6}
  #allocation0 [shape = 'u32[]', space=smem, size = 0x4, offset = 0x4, fixed_abs, tag = 'smem constant byte address 0x4 - core index']
  #allocation1 [shape = 'u32[144,128]{1,0:T(1,128)}', space=vmem, size = 0x12000, scoped, tag = 'internal scratch']
  %s0 = inlined_call_operand.vmem [shape: bf16[98,576], index: 0, kind: input, shape index: {}]
  %s1 = inlined_call_operand.vmem [shape: bf16[576,64], index: 1, kind: input, shape index: {}]
  %s2 = inlined_call_operand.vmem [shape: f32[1,64], index: 2, kind: input, shape index: {}]
  %s3 = inlined_call_operand.vmem [shape: bf16[98,64], index: 3, kind: output, shape index: {}]
  %s4 = sld [smem:[#allocation0]]
  $region89: #{forward.6} parent=0
    _
  %s6 = ssub.s32 1, %s4
  %s7 = scalar_select 0, %s6, %s4
  $region1: #{forward.6} parent=0
    #allocation2 [shape = 'u8[28672]{0}', space=vmem, size = 0x7000, scoped, tag = 'output window, operand 0']
    loop: start=0, step=1, limit=4
    $region2: #{forward.6} parent=1 // loop_pre_header
      _
    $region3: #{forward.6} parent=1 // loop_header
      %s9 = sphi 0, %s13
      %p10 = scmp.ge.s32.totalorder %s9, 4
      %s19 = sphi 0, %s21
      %s22 = sphi 0, %s19
      %s23 = sphi 0, %s22
      %s39 = sphi 0, %s23
      %s43 = sphi 0, %s43
      %s45 = sphi 0, %s43
      %s46 = sphi 0, %s45
      %s60 = sphi 0, %s46
      %s64 = sphi 0, %s64
      %s66 = sphi 0, %s64
      %s67 = sphi 0, %s66
      %s81 = sphi 0, %s67
      %s87 = sphi 0, %s89
      %s90 = sphi 0, %s87
      %s91 = sphi 0, %s90
      %s107 = sphi 0, %s91
    $region4: #{forward.6} parent=1 // loop_header_branch
      %12 = sbr.rel (%p10) target = $region8
    $region5: #{forward.6} parent=1 // loop_body
      %s14 = ssub.s32 %s9, 1
      %s15 = ssub.s32 %s9, 2
      %s16 = sadd.s32 %s9, 1
      %s17 = ssub.s32 %s9, %s16
      %p18 = scmp.eq.s32.totalorder %s17, 0
      %s20 = sadd.s32 %s19, 1
      %s21 = scalar_select %p18, %s19, %s20
      %p24 = pneg %p18
      %p25 = scmp.eq.s32.totalorder %s9, 1
      %p26 = por %p24, %p25
      %p27 = scmp.ne.s32.totalorder %s19, %s22
      %p28 = scmp.eq.s32.totalorder %s9, 0
      %p29 = por %p27, %p28
      %p30 = scmp.ne.s32.totalorder %s19, %s22
      %p31 = scmp.eq.s32.totalorder %s14, 1
      %p32 = por %p30, %p31
      %p33 = scmp.ne.s32.totalorder %s22, %s23
      %p34 = scmp.eq.s32.totalorder %s14, 0
      %p35 = por %p33, %p34
      %p36 = scmp.ne.s32.totalorder %s22, %s23
      %p37 = scmp.eq.s32.totalorder %s15, 1
      %p38 = por %p36, %p37
      %p40 = scmp.ne.s32.totalorder %s23, %s39
      %p41 = scmp.eq.s32.totalorder %s15, 0
      %p42 = por %p40, %p41
      %s44 = sadd.s32 %s43, 1
      %p47 = scmp.eq.s32.totalorder %s9, 1
      %p48 = scmp.ne.s32.totalorder %s43, %s45
      %p49 = scmp.eq.s32.totalorder %s9, 0
      %p50 = por %p48, %p49
      %p51 = scmp.ne.s32.totalorder %s43, %s45
      %p52 = scmp.eq.s32.totalorder %s14, 1
      %p53 = por %p51, %p52
      %p54 = scmp.ne.s32.totalorder %s45, %s46
      %p55 = scmp.eq.s32.totalorder %s14, 0
      %p56 = por %p54, %p55
      %p57 = scmp.ne.s32.totalorder %s45, %s46
      %p58 = scmp.eq.s32.totalorder %s15, 1
      %p59 = por %p57, %p58
      %p61 = scmp.ne.s32.totalorder %s46, %s60
      %p62 = scmp.eq.s32.totalorder %s15, 0
      %p63 = por %p61, %p62
      %s65 = sadd.s32 %s64, 1
      %p68 = scmp.eq.s32.totalorder %s9, 1
      %p69 = scmp.ne.s32.totalorder %s64, %s66
      %p70 = scmp.eq.s32.totalorder %s9, 0
      %p71 = por %p69, %p70
      %p72 = scmp.ne.s32.totalorder %s64, %s66
      %p73 = scmp.eq.s32.totalorder %s14, 1
      %p74 = por %p72, %p73
      %p75 = scmp.ne.s32.totalorder %s66, %s67
      %p76 = scmp.eq.s32.totalorder %s14, 0
      %p77 = por %p75, %p76
      %p78 = scmp.ne.s32.totalorder %s66, %s67
      %p79 = scmp.eq.s32.totalorder %s15, 1
      %p80 = por %p78, %p79
      %p82 = scmp.ne.s32.totalorder %s67, %s81
      %p83 = scmp.eq.s32.totalorder %s15, 0
      %p84 = por %p82, %p83
      %s85 = ssub.s32 %s9, %s16
      %p86 = scmp.eq.s32.totalorder %s85, 0
      %s88 = sadd.s32 %s87, 1
      %s89 = scalar_select %p86, %s87, %s88
      %p92 = pneg %p86
      %p93 = scmp.eq.s32.totalorder %s9, 1
      %p94 = por %p92, %p93
      %p95 = scmp.ne.s32.totalorder %s87, %s90
      %p96 = scmp.eq.s32.totalorder %s9, 0
      %p97 = por %p95, %p96
      %p98 = scmp.ne.s32.totalorder %s87, %s90
      %p99 = scmp.eq.s32.totalorder %s14, 1
      %p100 = por %p98, %p99
      %p101 = scmp.ne.s32.totalorder %s90, %s91
      %p102 = scmp.eq.s32.totalorder %s14, 0
      %p103 = por %p101, %p102
      %p104 = scmp.ne.s32.totalorder %s90, %s91
      %p105 = scmp.eq.s32.totalorder %s15, 1
      %p106 = por %p104, %p105
      %p108 = scmp.ne.s32.totalorder %s91, %s107
      %p109 = scmp.eq.s32.totalorder %s15, 0
      %p110 = por %p108, %p109
      %p111 = scmp.le.s32.totalorder 1, %s9
      %p112 = scmp.lt.s32.totalorder %s9, 3
      %p113 = pnand %p111, %p112
      %p114 = pneg %p113
      // Predicated region
      $region9: #{forward.6} parent=5 // pred_check
        _
      $region10: #{forward.6} parent=5 // pred_check_branch
        %116 = sbr.rel (%p113) target = $region12
      $region11: #{forward.6} parent=5 // pred_region
        %s117 = ssub.s32 %s9, 1
        // Predicated region
        $region13: #{forward.6} parent=11 // pred_check
          %p118 = pneg %p56
        $region14: #{forward.6} parent=11 // pred_check_branch
          %120 = sbr.rel (%p118) target = $region16
        $region15: #{forward.6} parent=11 // pred_region
          _
        $region16: #{forward.6} parent=11 // pred_fallthru
          _
        // Predicated region
        $region17: #{forward.6} parent=11 // pred_check
          %p121 = pneg %p77
        $region18: #{forward.6} parent=11 // pred_check_branch
          %123 = sbr.rel (%p121) target = $region20
        $region19: #{forward.6} parent=11 // pred_region
          _
        $region20: #{forward.6} parent=11 // pred_fallthru
          _
      $region12: #{forward.6} parent=5 // pred_fallthru
        _
      %p124 = scmp.lt.s32.totalorder %s9, 2
      // Predicated region
      $region21: #{forward.6} parent=5 // pred_check
        %p125 = pneg %p124
      $region22: #{forward.6} parent=5 // pred_check_branch
        %127 = sbr.rel (%p125) target = $region24
      $region23: #{forward.6} parent=5 // pred_region
        // Predicated region
        $region25: #{forward.6} parent=23 // pred_check
          %p128 = pneg %p29
        $region26: #{forward.6} parent=23 // pred_check_branch
          %130 = sbr.rel (%p128) target = $region28
        $region27: #{forward.6} parent=23 // pred_region
          %s131 = smul.u32 7, %s9
          %s132 = ssub.s32 13, %s131
          %p133 = scmp.lt.s32.totalorder %s132, 7
          %s134 = scalar_select %p133, %s132, 7
          %s135 = smul.u32 64, %s134
          %s136 = smul.u32 %s135, 5
          %p137 = scmp.lt.s32.totalorder %s131, 12
          %s138 = scalar_select %p137, %s131, 12
          %s139 = smul.addr %s138, 5
          %s140 = smul.addr %s139, 4
          %s141 = scalar_lea.vmem %s0, %s140
          %s142 = smul.u32 7, %s9
          %s143 = ssub.s32 13, %s142
          %p144 = scmp.lt.s32.totalorder %s143, 7
          %s145 = scalar_select %p144, %s143, 7
          %s146 = smul.u32 64, %s145
          %s147 = smul.u32 %s146, 5
        $region28: #{forward.6} parent=23 // pred_fallthru
          _
      $region24: #{forward.6} parent=5 // pred_fallthru
        _
      %p148 = scmp.le.s32.totalorder 1, %s9
      %p149 = scmp.lt.s32.totalorder %s9, 3
      %p150 = pnand %p148, %p149
      %p151 = pneg %p150
      // Predicated region
      $region29: #{forward.6} parent=5 // pred_check
        _
      $region30: #{forward.6} parent=5 // pred_check_branch
        %153 = sbr.rel (%p150) target = $region32
      $region31: #{forward.6} parent=5 // pred_region
        %s154 = ssub.s32 %s9, 1
        %s155 = smul.u32 7, %s14
        %s156 = ssub.s32 13, %s155
        %p157 = scmp.lt.s32.totalorder %s156, 7
        %s158 = scalar_select %p157, %s156, 7
        %s159 = smul.u32 64, %s158
        %s160 = smul.u32 %s159, 5
        %p161 = scmp.lt.s32.totalorder %s155, 12
        %s162 = scalar_select %p161, %s155, 12
        %s163 = smul.addr %s162, 5
        %s164 = smul.addr %s163, 4
        %s165 = scalar_lea.vmem %s0, %s164
        %p166 = pneg %p35
        %p167 = pneg %p32
        %p168 = pneg %p56
        %p169 = pneg %p53
        %p170 = pneg %p77
        %p171 = pneg %p74
        %p172 = pneg %p103
        %p173 = pneg %p100
        %s174 = sand.u32 %s90, 1
        %s175 = sand.u32 %s90, 1
        %s176 = smul.addr %s175, 28
        %s177 = scalar_lea.vmem [#allocation2], %s176
        %s178 = smul.u32 7, %s14
        %s179 = ssub.s32 13, %s178
        %p180 = scmp.lt.s32.totalorder %s179, 7
        %s181 = scalar_select %p180, %s179, 7
        %s182 = smul.u32 64, %s181
        %s183 = smul.u32 %s182, 5
        %p184 = scmp.lt.s32.totalorder %s178, 12
        %s185 = scalar_select %p184, %s178, 12
        %s186 = smul.addr %s185, 5
        %s187 = smul.addr %s186, 4
        %s188 = scalar_lea.vmem %s0, %s187
        %s189 = smul.u32 7, %s14
        %s190 = ssub.s32 13, %s189
        %p191 = scmp.lt.s32.totalorder %s190, 7
        %s192 = scalar_select %p191, %s190, 7
        %s193 = smul.u32 64, %s192
        %s194 = smul.u32 %s193, 5
        %s195 = smul.u32 7, %s14
        %s196 = ssub.s32 13, %s195
        %p197 = scmp.lt.s32.totalorder %s196, 7
        %s198 = scalar_select %p197, %s196, 7
        %s199 = smul.u32 64, %s198
        %v201 = vld [vmem:[%s188] sm:$0xff]
        %v202 = vld [vmem:[%s188 + $0x8] sm:$0xff]
        %v203 = vld [vmem:[%s188 + $0x10] sm:$0xf]
        %v204 = vld [vmem:[%s188 + $0x14] sm:$0xff]
        %v205 = vld [vmem:[%s188 + $0x1c] sm:$0xff]
        %v206 = vld [vmem:[%s188 + $0x24] sm:$0xf]
        %v207 = vld [vmem:[%s188 + $0x28] sm:$0xff]
        %v208 = vld [vmem:[%s188 + $0x30] sm:$0xff]
        %v209 = vld [vmem:[%s188 + $0x38] sm:$0xf]
        %v210 = vld [vmem:[%s188 + $0x3c] sm:$0xff]
        %v211 = vld [vmem:[%s188 + $0x44] sm:$0xff]
        %v212 = vld [vmem:[%s188 + $0x4c] sm:$0xf]
        %v213 = vld [vmem:[%s188 + $0x50] sm:$0xff]
        %v214 = vld [vmem:[%s188 + $0x58] sm:$0xff]
        %v215 = vld [vmem:[%s188 + $0x60] sm:$0xf]
        %v216 = vld [vmem:[%s188 + $0x64] sm:$0xff]
        %v217 = vld [vmem:[%s188 + $0x6c] sm:$0xff]
        %v218 = vld [vmem:[%s188 + $0x74] sm:$0xf]
        %v219 = vld [vmem:[%s188 + $0x78] sm:$0xff]
        %v220 = vld [vmem:[%s188 + $0x80] sm:$0xff]
        %v221 = vld [vmem:[%s188 + $0x88] sm:$0xf]
        %v222 = vld [vmem:[%s1] sm:$0xf]
        %v223 = vld [vmem:[%s1 + $0x4] sm:$0xf]
        %v224 = vld [vmem:[%s1 + $0x8] sm:$0xf]
        %v225 = vld [vmem:[%s1 + $0xc] sm:$0xf]
        %v226 = vld [vmem:[%s1 + $0x10] sm:$0xf]
        %v227 = vld [vmem:[%s1 + $0x14] sm:$0xf]
        %v228 = vld [vmem:[%s1 + $0x18] sm:$0xf]
        %v229 = vld [vmem:[%s1 + $0x1c] sm:$0xf]
        %v230 = vld [vmem:[%s1 + $0x20] sm:$0xf]
        %v231 = vld [vmem:[%s1 + $0x24] sm:$0xf]
        %v232 = vld [vmem:[%s1 + $0x28] sm:$0xf]
        %v233 = vld [vmem:[%s1 + $0x2c] sm:$0xf]
        %v234 = vld [vmem:[%s1 + $0x30] sm:$0xf]
        %v235 = vld [vmem:[%s1 + $0x34] sm:$0xf]
        %v236 = vld [vmem:[%s1 + $0x38] sm:$0xf]
        %v237 = vld [vmem:[%s1 + $0x3c] sm:$0xf]
        %v238 = vld [vmem:[%s1 + $0x40] sm:$0xf]
        %v239 = vld [vmem:[%s1 + $0x44] sm:$0xf]
        %v240 = vld [vmem:[%s1 + $0x48] sm:$0xf]
        %v241 = vld [vmem:[%s1 + $0x4c] sm:$0xf]
        %v242 = vld [vmem:[%s1 + $0x50] sm:$0xf]
        %v243 = vld [vmem:[%s1 + $0x54] sm:$0xf]
        %v244 = vld [vmem:[%s1 + $0x58] sm:$0xf]
        %v245 = vld [vmem:[%s1 + $0x5c] sm:$0xf]
        %v246 = vld [vmem:[%s1 + $0x60] sm:$0xf]
        %v247 = vld [vmem:[%s1 + $0x64] sm:$0xf]
        %v248 = vld [vmem:[%s1 + $0x68] sm:$0xf]
        %v249 = vld [vmem:[%s1 + $0x6c] sm:$0xf]
        %v250 = vld [vmem:[%s1 + $0x70] sm:$0xf]
        %v251 = vld [vmem:[%s1 + $0x74] sm:$0xf]
        %v252 = vld [vmem:[%s1 + $0x78] sm:$0xf]
        %v253 = vld [vmem:[%s1 + $0x7c] sm:$0xf]
        %v254 = vld [vmem:[%s1 + $0x80] sm:$0xf]
        %v255 = vld [vmem:[%s1 + $0x84] sm:$0xf]
        %v256 = vld [vmem:[%s1 + $0x88] sm:$0xf]
        %v257 = vld [vmem:[%s1 + $0x8c] sm:$0xf]
        %v258 = vld [vmem:[%s1 + $0x90] sm:$0xf]
        %v259 = vld [vmem:[%s1 + $0x94] sm:$0xf]
        %v260 = vld [vmem:[%s1 + $0x98] sm:$0xf]
        %v261 = vld [vmem:[%s1 + $0x9c] sm:$0xf]
        %v262 = vld [vmem:[%s1 + $0xa0] sm:$0xf]
        %v263 = vld [vmem:[%s1 + $0xa4] sm:$0xf]
        %v264 = vld [vmem:[%s1 + $0xa8] sm:$0xf]
        %v265 = vld [vmem:[%s1 + $0xac] sm:$0xf]
        %v266 = vld [vmem:[%s1 + $0xb0] sm:$0xf]
        %v267 = vld [vmem:[%s1 + $0xb4] sm:$0xf]
        %v268 = vld [vmem:[%s1 + $0xb8] sm:$0xf]
        %v269 = vld [vmem:[%s1 + $0xbc] sm:$0xf]
        %v270 = vld [vmem:[%s1 + $0xc0] sm:$0xf]
        %v271 = vld [vmem:[%s1 + $0xc4] sm:$0xf]
        %v272 = vld [vmem:[%s1 + $0xc8] sm:$0xf]
        %v273 = vld [vmem:[%s1 + $0xcc] sm:$0xf]
        %v274 = vld [vmem:[%s1 + $0xd0] sm:$0xf]
        %v275 = vld [vmem:[%s1 + $0xd4] sm:$0xf]
        %v276 = vld [vmem:[%s1 + $0xd8] sm:$0xf]
        %v277 = vld [vmem:[%s1 + $0xdc] sm:$0xf]
        %v278 = vld [vmem:[%s1 + $0xe0] sm:$0xf]
        %v279 = vld [vmem:[%s1 + $0xe4] sm:$0xf]
        %v280 = vld [vmem:[%s1 + $0xe8] sm:$0xf]
        %v281 = vld [vmem:[%s1 + $0xec] sm:$0xf]
        %v282 = vld [vmem:[%s1 + $0xf0] sm:$0xf]
        %v283 = vld [vmem:[%s1 + $0xf4] sm:$0xf]
        %v284 = vld [vmem:[%s1 + $0xf8] sm:$0xf]
        %v285 = vld [vmem:[%s1 + $0xfc] sm:$0xf]
        %v286 = vld [vmem:[%s1 + $0x100] sm:$0xf]
        %v287 = vld [vmem:[%s1 + $0x104] sm:$0xf]
        %v288 = vld [vmem:[%s1 + $0x108] sm:$0xf]
        %v289 = vld [vmem:[%s1 + $0x10c] sm:$0xf]
        %v290 = vld [vmem:[%s1 + $0x110] sm:$0xf]
        %v291 = vld [vmem:[%s1 + $0x114] sm:$0xf]
        %v292 = vld [vmem:[%s1 + $0x118] sm:$0xf]
        %v293 = vld [vmem:[%s1 + $0x11c] sm:$0xf]
        %v294 = vld [vmem:[%s2] sm:$0x1]
        %v296 = vlaneseq
        %v297 = vshrl.u32 %v296, 7
        %v298 = vsub.s32 0, %v297
        %v299 = vrot.slane %v294, %v298
        %v322 = vunpack.c.l.b16 %v201
        %v323 = vunpack.c.h.b16 %v201
        %v324 = vunpack.c.l.b16 %v202
        %v325 = vunpack.c.h.b16 %v202
        %v326 = vunpack.c.l.b16 %v203
        %v327 = vunpack.c.l.b16 %v204
        %v328 = vunpack.c.h.b16 %v204
        %v329 = vunpack.c.l.b16 %v205
        %v330 = vunpack.c.h.b16 %v205
        %v331 = vunpack.c.l.b16 %v206
        %v332 = vunpack.c.l.b16 %v207
        %v333 = vunpack.c.h.b16 %v207
        %v334 = vunpack.c.l.b16 %v208
        %v335 = vunpack.c.h.b16 %v208
        %v336 = vunpack.c.l.b16 %v209
        %v337 = vunpack.c.l.b16 %v210
        %v338 = vunpack.c.h.b16 %v210
        %v339 = vunpack.c.l.b16 %v211
        %v340 = vunpack.c.h.b16 %v211
        %v341 = vunpack.c.l.b16 %v212
        %v342 = vunpack.c.l.b16 %v213
        %v343 = vunpack.c.h.b16 %v213
        %v344 = vunpack.c.l.b16 %v214
        %v345 = vunpack.c.h.b16 %v214
        %v346 = vunpack.c.l.b16 %v215
        %v347 = vunpack.c.l.b16 %v216
        %v348 = vunpack.c.h.b16 %v216
        %v349 = vunpack.c.l.b16 %v217
        %v350 = vunpack.c.h.b16 %v217
        %v351 = vunpack.c.l.b16 %v218
        %v352 = vunpack.c.l.b16 %v219
        %v353 = vunpack.c.h.b16 %v219
        %v354 = vunpack.c.l.b16 %v220
        %v355 = vunpack.c.h.b16 %v220
        %v356 = vunpack.c.l.b16 %v221
        %v357 = vpack.c.b16 %v327, %v322
        %v358 = vpack.c.b16 %v328, %v323
        %v359 = vpack.c.b16 %v329, %v324
        %v360 = vpack.c.b16 %v330, %v325
        %v361 = vpack.c.b16 %v331, %v326
        %v362 = vpack.c.b16 %v337, %v332
        %v363 = vpack.c.b16 %v338, %v333
        %v364 = vpack.c.b16 %v339, %v334
        %v365 = vpack.c.b16 %v340, %v335
        %v366 = vpack.c.b16 %v341, %v336
        %v367 = vpack.c.b16 %v347, %v342
        %v368 = vpack.c.b16 %v348, %v343
        %v369 = vpack.c.b16 %v349, %v344
        %v370 = vpack.c.b16 %v350, %v345
        %v371 = vpack.c.b16 %v351, %v346
        %v372 = vpack.c.b16 %v352, %v352
        %v373 = vpack.c.b16 %v353, %v353
        %v374 = vpack.c.b16 %v354, %v354
        %v375 = vpack.c.b16 %v355, %v355
        %v376 = vpack.c.b16 %v356, %v356
        %v465 = vunpack.c.l.b16 %v222
        %v466 = vunpack.c.l.b16 %v223
        %v467 = vunpack.c.l.b16 %v224
        %v468 = vunpack.c.l.b16 %v225
        %v469 = vunpack.c.l.b16 %v226
        %v470 = vunpack.c.l.b16 %v227
        %v471 = vunpack.c.l.b16 %v228
        %v472 = vunpack.c.l.b16 %v229
        %v473 = vunpack.c.l.b16 %v230
        %v474 = vunpack.c.l.b16 %v231
        %v475 = vunpack.c.l.b16 %v232
        %v476 = vunpack.c.l.b16 %v233
        %v477 = vunpack.c.l.b16 %v234
        %v478 = vunpack.c.l.b16 %v235
        %v479 = vunpack.c.l.b16 %v236
        %v480 = vunpack.c.l.b16 %v237
        %v481 = vunpack.c.l.b16 %v238
        %v482 = vunpack.c.l.b16 %v239
        %v483 = vunpack.c.l.b16 %v240
        %v484 = vunpack.c.l.b16 %v241
        %v485 = vunpack.c.l.b16 %v242
        %v486 = vunpack.c.l.b16 %v243
        %v487 = vunpack.c.l.b16 %v244
        %v488 = vunpack.c.l.b16 %v245
        %v489 = vunpack.c.l.b16 %v246
        %v490 = vunpack.c.l.b16 %v247
        %v491 = vunpack.c.l.b16 %v248
        %v492 = vunpack.c.l.b16 %v249
        %v493 = vunpack.c.l.b16 %v250
        %v494 = vunpack.c.l.b16 %v251
        %v495 = vunpack.c.l.b16 %v252
        %v496 = vunpack.c.l.b16 %v253
        %v497 = vunpack.c.l.b16 %v254
        %v498 = vunpack.c.l.b16 %v255
        %v499 = vunpack.c.l.b16 %v256
        %v500 = vunpack.c.l.b16 %v257
        %v501 = vunpack.c.l.b16 %v258
        %v502 = vunpack.c.l.b16 %v259
        %v503 = vunpack.c.l.b16 %v260
        %v504 = vunpack.c.l.b16 %v261
        %v505 = vunpack.c.l.b16 %v262
        %v506 = vunpack.c.l.b16 %v263
        %v507 = vunpack.c.l.b16 %v264
        %v508 = vunpack.c.l.b16 %v265
        %v509 = vunpack.c.l.b16 %v266
        %v510 = vunpack.c.l.b16 %v267
        %v511 = vunpack.c.l.b16 %v268
        %v512 = vunpack.c.l.b16 %v269
        %v513 = vunpack.c.l.b16 %v270
        %v514 = vunpack.c.l.b16 %v271
        %v515 = vunpack.c.l.b16 %v272
        %v516 = vunpack.c.l.b16 %v273
        %v517 = vunpack.c.l.b16 %v274
        %v518 = vunpack.c.l.b16 %v275
        %v519 = vunpack.c.l.b16 %v276
        %v520 = vunpack.c.l.b16 %v277
        %v521 = vunpack.c.l.b16 %v278
        %v522 = vunpack.c.l.b16 %v279
        %v523 = vunpack.c.l.b16 %v280
        %v524 = vunpack.c.l.b16 %v281
        %v525 = vunpack.c.l.b16 %v282
        %v526 = vunpack.c.l.b16 %v283
        %v527 = vunpack.c.l.b16 %v284
        %v528 = vunpack.c.l.b16 %v285
        %v529 = vunpack.c.l.b16 %v286
        %v530 = vunpack.c.l.b16 %v287
        %v531 = vunpack.c.l.b16 %v288
        %v532 = vunpack.c.l.b16 %v289
        %v533 = vunpack.c.l.b16 %v290
        %v534 = vunpack.c.l.b16 %v291
        %v535 = vunpack.c.l.b16 %v292
        %v536 = vunpack.c.l.b16 %v293
        %v537 = vpack.c.b16 %v466, %v465
        %v538 = vpack.c.b16 %v468, %v467
        %v539 = vpack.c.b16 %v470, %v469
        %v540 = vpack.c.b16 %v472, %v471
        %v541 = vpack.c.b16 %v474, %v473
        %v542 = vpack.c.b16 %v476, %v475
        %v543 = vpack.c.b16 %v478, %v477
        %v544 = vpack.c.b16 %v480, %v479
        %v545 = vpack.c.b16 %v482, %v481
        %v546 = vpack.c.b16 %v484, %v483
        %v547 = vpack.c.b16 %v486, %v485
        %v548 = vpack.c.b16 %v488, %v487
        %v549 = vpack.c.b16 %v490, %v489
        %v550 = vpack.c.b16 %v492, %v491
        %v551 = vpack.c.b16 %v494, %v493
        %v552 = vpack.c.b16 %v496, %v495
        %v553 = vpack.c.b16 %v498, %v497
        %v554 = vpack.c.b16 %v500, %v499
        %v555 = vpack.c.b16 %v502, %v501
        %v556 = vpack.c.b16 %v504, %v503
        %v557 = vpack.c.b16 %v506, %v505
        %v558 = vpack.c.b16 %v508, %v507
        %v559 = vpack.c.b16 %v510, %v509
        %v560 = vpack.c.b16 %v512, %v511
        %v561 = vpack.c.b16 %v514, %v513
        %v562 = vpack.c.b16 %v516, %v515
        %v563 = vpack.c.b16 %v518, %v517
        %v564 = vpack.c.b16 %v520, %v519
        %v565 = vpack.c.b16 %v522, %v521
        %v566 = vpack.c.b16 %v524, %v523
        %v567 = vpack.c.b16 %v526, %v525
        %v568 = vpack.c.b16 %v528, %v527
        %v569 = vpack.c.b16 %v530, %v529
        %v570 = vpack.c.b16 %v532, %v531
        %v571 = vpack.c.b16 %v534, %v533
        %v572 = vpack.c.b16 %v536, %v535
        %vm609 = vcmask 523264
        %v611 = vsel %vm609, %v361, 0
        %v614 = vsel %vm609, %v366, 0
        %v617 = vsel %vm609, %v371, 0
        %v620 = vsel %vm609, %v376, 0
        %622 = vmatprep.subr.bf16.mxu0 0
        %623 = vmatpush1.bf16.msra.mxu0 %v544
        %624 = vmatprep.subr.bf16.mxu0 0
        %625 = vmatpush1.bf16.msra.mxu0 %v543
        %626 = vmatprep.subr.bf16.mxu0 0
        %627 = vmatpush1.bf16.msra.mxu0 %v542
        %628 = vmatprep.subr.bf16.mxu0 0
        %629 = vmatpush1.bf16.msra.mxu0 %v541
        %630 = vmatprep.subr.bf16.mxu0 0
        %631 = vmatpush1.bf16.msra.mxu0 %v540
        %632 = vmatprep.subr.bf16.mxu0 0
        %633 = vmatpush1.bf16.msra.mxu0 %v539
        %634 = vmatprep.subr.bf16.mxu0 0
        %635 = vmatpush1.bf16.msra.mxu0 %v538
        %636 = vmatprep.subr.bf16.mxu0 0
        %637 = vmatpush1.bf16.msra.mxu0 %v537
        %638 = vmatprep.subr.bf16.mxu0 0
        %639 = vmatpush2.bf16.msra.mxu0 %v552
        %640 = vmatprep.subr.bf16.mxu0 0
        %641 = vmatpush2.bf16.msra.mxu0 %v551
        %642 = vmatprep.subr.bf16.mxu0 0
        %643 = vmatpush2.bf16.msra.mxu0 %v550
        %644 = vmatprep.subr.bf16.mxu0 0
        %645 = vmatpush2.bf16.msra.mxu0 %v549
        %646 = vmatprep.subr.bf16.mxu0 0
        %647 = vmatpush2.bf16.msra.mxu0 %v548
        %648 = vmatprep.subr.bf16.mxu0 0
        %649 = vmatpush2.bf16.msra.mxu0 %v547
        %650 = vmatprep.subr.bf16.mxu0 0
        %651 = vmatpush2.bf16.msra.mxu0 %v546
        %652 = vmatprep.subr.bf16.mxu0 0
        %653 = vmatpush2.bf16.msra.mxu0 %v545
        %654 = vmatprep.mubr.bf16.mxu0 %v358
        %655 = vmatmul.mubr.bf16.gmra.mxu0 %v357
        %v656 = vpop.f32.mrf.mxu0
        %v657 = vadd.f32 %v299, %v656
        %v658 = vpop.f32.mrf.mxu0
        %v659 = vpop.f32.mrf.mxu0
        %v660 = vadd.f32 %v299, %v659
        %v661 = vpop.f32.mrf.mxu0
        %662 = vmatprep.mubr.bf16.mxu0 %v363
        %663 = vmatmul.mubr.bf16.gmra.mxu0 %v362
        %v664 = vpop.f32.mrf.mxu0
        %v665 = vadd.f32 %v299, %v664
        %v666 = vpop.f32.mrf.mxu0
        %v667 = vpop.f32.mrf.mxu0
        %v668 = vadd.f32 %v299, %v667
        %v669 = vpop.f32.mrf.mxu0
        %670 = vmatprep.mubr.bf16.mxu0 %v368
        %671 = vmatmul.mubr.bf16.gmra.mxu0 %v367
        %v672 = vpop.f32.mrf.mxu0
        %v673 = vadd.f32 %v299, %v672
        %v674 = vpop.f32.mrf.mxu0
        %v675 = vpop.f32.mrf.mxu0
        %v676 = vadd.f32 %v299, %v675
        %v677 = vpop.f32.mrf.mxu0
        %678 = vmatprep.mubr.bf16.mxu0 %v373
        %679 = vmatmul.mubr.bf16.gmra.mxu0 %v372
        %v680 = vpop.f32.mrf.mxu0
        %v681 = vadd.f32 %v299, %v680
        %v682 = vpop.f32.mrf.mxu0
        %v683 = vpop.f32.mrf.mxu0
        %v684 = vpop.f32.mrf.mxu0
        %685 = vdwg.mxu0
        %686 = vmatprep.subr.bf16.mxu0 0
        %687 = vmatpush1.bf16.msra.mxu0 %v560
        %688 = vmatprep.subr.bf16.mxu0 0
        %689 = vmatpush1.bf16.msra.mxu0 %v559
        %690 = vmatprep.subr.bf16.mxu0 0
        %691 = vmatpush1.bf16.msra.mxu0 %v558
        %692 = vmatprep.subr.bf16.mxu0 0
        %693 = vmatpush1.bf16.msra.mxu0 %v557
        %694 = vmatprep.subr.bf16.mxu0 0
        %695 = vmatpush1.bf16.msra.mxu0 %v556
        %696 = vmatprep.subr.bf16.mxu0 0
        %697 = vmatpush1.bf16.msra.mxu0 %v555
        %698 = vmatprep.subr.bf16.mxu0 0
        %699 = vmatpush1.bf16.msra.mxu0 %v554
        %700 = vmatprep.subr.bf16.mxu0 0
        %701 = vmatpush1.bf16.msra.mxu0 %v553
        %702 = vmatprep.subr.bf16.mxu0 0
        %703 = vmatpush2.bf16.msra.mxu0 %v568
        %704 = vmatprep.subr.bf16.mxu0 0
        %705 = vmatpush2.bf16.msra.mxu0 %v567
        %706 = vmatprep.subr.bf16.mxu0 0
        %707 = vmatpush2.bf16.msra.mxu0 %v566
        %708 = vmatprep.subr.bf16.mxu0 0
        %709 = vmatpush2.bf16.msra.mxu0 %v565
        %710 = vmatprep.subr.bf16.mxu0 0
        %711 = vmatpush2.bf16.msra.mxu0 %v564
        %712 = vmatprep.subr.bf16.mxu0 0
        %713 = vmatpush2.bf16.msra.mxu0 %v563
        %714 = vmatprep.subr.bf16.mxu0 0
        %715 = vmatpush2.bf16.msra.mxu0 %v562
        %716 = vmatprep.subr.bf16.mxu0 0
        %717 = vmatpush2.bf16.msra.mxu0 %v561
        %718 = vmatprep.mubr.bf16.mxu0 %v360
        %719 = vmatmul.mubr.bf16.gmra.mxu0 %v359
        %v720 = vpop.f32.mrf.mxu0
        %v721 = vadd.f32 %v657, %v720
        %v722 = vpop.f32.mrf.mxu0
        %v723 = vpop.f32.mrf.mxu0
        %v724 = vadd.f32 %v660, %v723
        %v725 = vpop.f32.mrf.mxu0
        %726 = vmatprep.mubr.bf16.mxu0 %v365
        %727 = vmatmul.mubr.bf16.gmra.mxu0 %v364
        %v728 = vpop.f32.mrf.mxu0
        %v729 = vadd.f32 %v665, %v728
        %v730 = vpop.f32.mrf.mxu0
        %v731 = vpop.f32.mrf.mxu0
        %v732 = vadd.f32 %v668, %v731
        %v733 = vpop.f32.mrf.mxu0
        %734 = vmatprep.mubr.bf16.mxu0 %v370
        %735 = vmatmul.mubr.bf16.gmra.mxu0 %v369
        %v736 = vpop.f32.mrf.mxu0
        %v737 = vadd.f32 %v673, %v736
        %v738 = vpop.f32.mrf.mxu0
        %v739 = vpop.f32.mrf.mxu0
        %v740 = vadd.f32 %v676, %v739
        %v741 = vpop.f32.mrf.mxu0
        %742 = vmatprep.mubr.bf16.mxu0 %v375
        %743 = vmatmul.mubr.bf16.gmra.mxu0 %v374
        %v744 = vpop.f32.mrf.mxu0
        %v745 = vadd.f32 %v681, %v744
        %v746 = vpop.f32.mrf.mxu0
        %v747 = vpop.f32.mrf.mxu0
        %v748 = vpop.f32.mrf.mxu0
        %749 = vdwg.mxu0
        %750 = vmatprep.subr.bf16.mxu0 0
        %751 = vmatpush1.bf16.msra.mxu0 0
        %752 = vmatprep.subr.bf16.mxu0 0
        %753 = vmatpush1.bf16.msra.mxu0 0
        %754 = vmatprep.subr.bf16.mxu0 0
        %755 = vmatpush1.bf16.msra.mxu0 0
        %756 = vmatprep.subr.bf16.mxu0 0
        %757 = vmatpush1.bf16.msra.mxu0 0
        %758 = vmatprep.subr.bf16.mxu0 0
        %759 = vmatpush1.bf16.msra.mxu0 %v572
        %760 = vmatprep.subr.bf16.mxu0 0
        %761 = vmatpush1.bf16.msra.mxu0 %v571
        %762 = vmatprep.subr.bf16.mxu0 0
        %763 = vmatpush1.bf16.msra.mxu0 %v570
        %764 = vmatprep.subr.bf16.mxu0 0
        %765 = vmatpush1.bf16.msra.mxu0 %v569
        %766 = vmatprep.subr.bf16.mxu0 0
        %767 = vmatpush2.bf16.msra.mxu0 0
        %768 = vmatprep.subr.bf16.mxu0 0
        %769 = vmatpush2.bf16.msra.mxu0 0
        %770 = vmatprep.subr.bf16.mxu0 0
        %771 = vmatpush2.bf16.msra.mxu0 0
        %772 = vmatprep.subr.bf16.mxu0 0
        %773 = vmatpush2.bf16.msra.mxu0 0
        %774 = vmatprep.subr.bf16.mxu0 0
        %775 = vmatpush2.bf16.msra.mxu0 0
        %776 = vmatprep.subr.bf16.mxu0 0
        %777 = vmatpush2.bf16.msra.mxu0 0
        %778 = vmatprep.subr.bf16.mxu0 0
        %779 = vmatpush2.bf16.msra.mxu0 0
        %780 = vmatprep.subr.bf16.mxu0 0
        %781 = vmatpush2.bf16.msra.mxu0 0
        %782 = vmatprep.mubr.bf16.mxu0 0
        %783 = vmatmul.mubr.bf16.gmra.mxu0 %v611
        %v784 = vpop.f32.mrf.mxu0
        %v785 = vadd.f32 %v721, %v784
        %v786 = vpop.f32.mrf.mxu0
        %v787 = vpop.f32.mrf.mxu0
        %v788 = vadd.f32 %v724, %v787
        %v789 = vpop.f32.mrf.mxu0
        %790 = vmatprep.mubr.bf16.mxu0 0
        %791 = vmatmul.mubr.bf16.gmra.mxu0 %v614
        %v792 = vpop.f32.mrf.mxu0
        %v793 = vadd.f32 %v729, %v792
        %v794 = vpop.f32.mrf.mxu0
        %v795 = vpop.f32.mrf.mxu0
        %v796 = vadd.f32 %v732, %v795
        %v797 = vpop.f32.mrf.mxu0
        %798 = vmatprep.mubr.bf16.mxu0 0
        %799 = vmatmul.mubr.bf16.gmra.mxu0 %v617
        %v800 = vpop.f32.mrf.mxu0
        %v801 = vadd.f32 %v737, %v800
        %v802 = vpop.f32.mrf.mxu0
        %v803 = vpop.f32.mrf.mxu0
        %v804 = vadd.f32 %v740, %v803
        %v805 = vpop.f32.mrf.mxu0
        %806 = vmatprep.mubr.bf16.mxu0 0
        %807 = vmatmul.mubr.bf16.gmra.mxu0 %v620
        %v808 = vpop.f32.mrf.mxu0
        %v809 = vadd.f32 %v745, %v808
        %v810 = vpop.f32.mrf.mxu0
        %v811 = vpop.f32.mrf.mxu0
        %v812 = vpop.f32.mrf.mxu0
        %813 = vdwg.mxu0
        %v814 = vmax.f32 %v785, 0.0
        %v815 = vmax.f32 %v788, 0.0
        %v816 = vmax.f32 %v793, 0.0
        %v817 = vmax.f32 %v796, 0.0
        %v818 = vmax.f32 %v801, 0.0
        %v819 = vmax.f32 %v804, 0.0
        %v820 = vmax.f32 %v809, 0.0
        %v821 = vpack.c.bf16 %v815, %v814
        %v822 = vpack.c.bf16 %v817, %v816
        %v823 = vpack.c.bf16 %v819, %v818
        %v824 = vpack.c.bf16 %v820, %v820
        %v829 = vunpack.c.l.b16 %v821
        %v830 = vunpack.c.h.b16 %v821
        %v831 = vunpack.c.l.b16 %v822
        %v832 = vunpack.c.h.b16 %v822
        %v833 = vunpack.c.l.b16 %v823
        %v834 = vunpack.c.h.b16 %v823
        %v835 = vunpack.c.l.b16 %v824
        %v836 = vpack.c.b16 %v829, %v829
        %v837 = vpack.c.b16 %v830, %v830
        %v838 = vpack.c.b16 %v831, %v831
        %v839 = vpack.c.b16 %v832, %v832
        %v840 = vpack.c.b16 %v833, %v833
        %v841 = vpack.c.b16 %v834, %v834
        %v842 = vpack.c.b16 %v835, %v835
        %vm850 = vcmask 519168
        %851 = vst.msk [vmem:[%s177] sm:$0xf] %vm850, %v836
        %852 = vst.msk [vmem:[%s177 + $0x4] sm:$0xf] %vm850, %v837
        %853 = vst.msk [vmem:[%s177 + $0x8] sm:$0xf] %vm850, %v838
        %854 = vst.msk [vmem:[%s177 + $0xc] sm:$0xf] %vm850, %v839
        %855 = vst.msk [vmem:[%s177 + $0x10] sm:$0xf] %vm850, %v840
        %856 = vst.msk [vmem:[%s177 + $0x14] sm:$0xf] %vm850, %v841
        %857 = vst.msk [vmem:[%s177 + $0x18] sm:$0xf] %vm850, %v842
        %s858 = sand.u32 %s90, 1
        %s859 = sand.u32 %s90, 1
        %s860 = smul.addr %s859, 28
        %s861 = scalar_lea.vmem [#allocation2], %s860
        // Predicated region
        $region33: #{forward.6} parent=31 // pred_check
          %p862 = pneg %p100
        $region34: #{forward.6} parent=31 // pred_check_branch
          %864 = sbr.rel (%p862) target = $region36
        $region35: #{forward.6} parent=31 // pred_region
          %s865 = smul.u32 7, %s14
          %s866 = ssub.s32 13, %s865
          %p867 = scmp.lt.s32.totalorder %s866, 7
          %s868 = scalar_select %p867, %s866, 7
          %s869 = smul.u32 64, %s868
          %p870 = scmp.ne.s32.totalorder 0, %s869
          %s871 = smul.addr %s865, 4
          %s872 = scalar_lea.vmem %s3, %s871
          // Predicated region
          $region37: #{forward.6} parent=35 // pred_check
            %p873 = pneg %p870
          $region38: #{forward.6} parent=35 // pred_check_branch
            %875 = sbr.rel (%p873) target = $region40
          $region39: #{forward.6} parent=35 // pred_region
            // Predicated region
            $region41: #{forward.6} parent=39 // pred_check
              _
            $region42: #{forward.6} parent=39 // pred_check_branch
              %877 = sbr.rel target = $region44
            $region43: #{forward.6} parent=39 // pred_region
              // Predicated region
              $region63: #{forward.6} parent=43 // pred_check
                _
              $region64: #{forward.6} parent=43 // pred_check_branch
                %940 = sbr.rel (0) target = $region66
              $region65: #{forward.6} parent=43 // pred_region
                %s942 = ssub.s32 16, 1
                %s943 = sdiv.u32.pop %s868, 7
                %s944 = srem.u32.pop %s868, 7
                // While loop
                $region67: #{forward.6} parent=65 // loop_pre_header
                  _
                $region68: #{forward.6} parent=65 // loop_header
                  %s946 = sphi 0, %s948
                  %p947 = scmp.ge.s32.totalorder %s946, %s943
                  %s951 = sphi 0, %s970
                  %s952 = sphi %s861, %s973
                  %s953 = sphi %s872, %s974
                $region69: #{forward.6} parent=65 // loop_header_branch
                  %950 = sbr.rel (%p947) target = $region73
                $region70: #{forward.6} parent=65 // loop_body
                  %v954 = vld [vmem:[%s952] sm:%s942]
                  %955 = vst [vmem:[%s953] sm:%s942] %v954
                  %v956 = vld [vmem:[%s952 + $0x4] sm:%s942]
                  %957 = vst [vmem:[%s953 + $0x4] sm:%s942] %v956
                  %v958 = vld [vmem:[%s952 + $0x8] sm:%s942]
                  %959 = vst [vmem:[%s953 + $0x8] sm:%s942] %v958
                  %v960 = vld [vmem:[%s952 + $0xc] sm:%s942]
                  %961 = vst [vmem:[%s953 + $0xc] sm:%s942] %v960
                  %v962 = vld [vmem:[%s952 + $0x10] sm:%s942]
                  %963 = vst [vmem:[%s953 + $0x10] sm:%s942] %v962
                  %v964 = vld [vmem:[%s952 + $0x14] sm:%s942]
                  %965 = vst [vmem:[%s953 + $0x14] sm:%s942] %v964
                  %v966 = vld [vmem:[%s952 + $0x18] sm:%s942]
                  %967 = vst [vmem:[%s953 + $0x18] sm:%s942] %v966
                  %s968 = sadd.s32 1, %s951
                  %p969 = scmp.ge.s32.totalorder %s968, %s943
                  %s970 = scalar_select %p969, 0, %s968
                  %s971 = smul.u32 %s970, 28
                  %s972 = smul.u32 %s970, 28
                  %s973 = scalar_lea.vmem %s861, %s971 [#allocation2]
                  %s974 = scalar_lea.vmem %s872, %s972
                $region71: #{forward.6} parent=65 // loop_footer
                  %s948 = sadd.s32 %s946, 1
                $region72: #{forward.6} parent=65 // loop_footer_branch
                  %945 = sbr.rel target = $region68
                $region73: #{forward.6} parent=65 // loop_exit
                  _
                %s975 = sdiv.u32.pop %s868, 7
                %s976 = srem.u32.pop %s868, 7
                %s977 = smul.u32 %s975, 7
                %s978 = smul.u32 4, %s977
                %s979 = scalar_lea.vmem %s861, %s978 [#allocation2]
                %s980 = smul.u32 4, %s977
                %s981 = scalar_lea.vmem %s872, %s980
                // While loop
                $region74: #{forward.6} parent=65 // loop_pre_header
                  _
                $region75: #{forward.6} parent=65 // loop_header
                  %s983 = sphi 0, %s985
                  %p984 = scmp.ge.s32.totalorder %s983, %s976
                  %s988 = sphi 0, %s995
                  %s989 = sphi %s979, %s998
                  %s990 = sphi %s981, %s999
                $region76: #{forward.6} parent=65 // loop_header_branch
                  %987 = sbr.rel (%p984) target = $region80
                $region77: #{forward.6} parent=65 // loop_body
                  %v991 = vld [vmem:[%s989] sm:%s942]
                  %992 = vst [vmem:[%s990] sm:%s942] %v991
                  %s993 = sadd.s32 1, %s988
                  %p994 = scmp.ge.s32.totalorder %s993, %s976
                  %s995 = scalar_select %p994, 0, %s993
                  %s996 = smul.u32 %s995, 4
                  %s997 = smul.u32 %s995, 4
                  %s998 = scalar_lea.vmem %s979, %s996 [#allocation2]
                  %s999 = scalar_lea.vmem %s981, %s997
                $region78: #{forward.6} parent=65 // loop_footer
                  %s985 = sadd.s32 %s983, 1
                $region79: #{forward.6} parent=65 // loop_footer_branch
                  %982 = sbr.rel target = $region75
                $region80: #{forward.6} parent=65 // loop_exit
                  _
              $region66: #{forward.6} parent=43 // pred_fallthru
                _
            $region44: #{forward.6} parent=39 // pred_fallthru
              _
            // Predicated region
            $region45: #{forward.6} parent=39 // pred_check
              _
            $region46: #{forward.6} parent=39 // pred_check_branch
              %879 = sbr.rel (0) target = $region48
            $region47: #{forward.6} parent=39 // pred_region
              %s881 = ssub.s32 16, 1
              %s882 = sdiv.u32.pop %s868, 7
              %s883 = srem.u32.pop %s868, 7
              // While loop
              $region49: #{forward.6} parent=47 // loop_pre_header
                _
              $region50: #{forward.6} parent=47 // loop_header
                %s885 = sphi 0, %s887
                %p886 = scmp.ge.s32.totalorder %s885, %s882
                %s890 = sphi 0, %s909
                %s891 = sphi %s861, %s912
                %s892 = sphi %s872, %s913
              $region51: #{forward.6} parent=47 // loop_header_branch
                %889 = sbr.rel (%p886) target = $region55
              $region52: #{forward.6} parent=47 // loop_body
                %v893 = vld [vmem:[%s891] sm:%s881]
                %894 = vst [vmem:[%s892] sm:%s881] %v893
                %v895 = vld [vmem:[%s891 + $0x4] sm:%s881]
                %896 = vst [vmem:[%s892 + $0x4] sm:%s881] %v895
                %v897 = vld [vmem:[%s891 + $0x8] sm:%s881]
                %898 = vst [vmem:[%s892 + $0x8] sm:%s881] %v897
                %v899 = vld [vmem:[%s891 + $0xc] sm:%s881]
                %900 = vst [vmem:[%s892 + $0xc] sm:%s881] %v899
                %v901 = vld [vmem:[%s891 + $0x10] sm:%s881]
                %902 = vst [vmem:[%s892 + $0x10] sm:%s881] %v901
                %v903 = vld [vmem:[%s891 + $0x14] sm:%s881]
                %904 = vst [vmem:[%s892 + $0x14] sm:%s881] %v903
                %v905 = vld [vmem:[%s891 + $0x18] sm:%s881]
                %906 = vst [vmem:[%s892 + $0x18] sm:%s881] %v905
                %s907 = sadd.s32 1, %s890
                %p908 = scmp.ge.s32.totalorder %s907, %s882
                %s909 = scalar_select %p908, 0, %s907
                %s910 = smul.u32 %s909, 28
                %s911 = smul.u32 %s909, 28
                %s912 = scalar_lea.vmem %s861, %s910 [#allocation2]
                %s913 = scalar_lea.vmem %s872, %s911
              $region53: #{forward.6} parent=47 // loop_footer
                %s887 = sadd.s32 %s885, 1
              $region54: #{forward.6} parent=47 // loop_footer_branch
                %884 = sbr.rel target = $region50
              $region55: #{forward.6} parent=47 // loop_exit
                _
              %s914 = sdiv.u32.pop %s868, 7
              %s915 = srem.u32.pop %s868, 7
              %s916 = smul.u32 %s914, 7
              %s917 = smul.u32 4, %s916
              %s918 = scalar_lea.vmem %s861, %s917 [#allocation2]
              %s919 = smul.u32 4, %s916
              %s920 = scalar_lea.vmem %s872, %s919
              // While loop
              $region56: #{forward.6} parent=47 // loop_pre_header
                _
              $region57: #{forward.6} parent=47 // loop_header
                %s922 = sphi 0, %s924
                %p923 = scmp.ge.s32.totalorder %s922, %s915
                %s927 = sphi 0, %s934
                %s928 = sphi %s918, %s937
                %s929 = sphi %s920, %s938
              $region58: #{forward.6} parent=47 // loop_header_branch
                %926 = sbr.rel (%p923) target = $region62
              $region59: #{forward.6} parent=47 // loop_body
                %v930 = vld [vmem:[%s928] sm:%s881]
                %931 = vst [vmem:[%s929] sm:%s881] %v930
                %s932 = sadd.s32 1, %s927
                %p933 = scmp.ge.s32.totalorder %s932, %s915
                %s934 = scalar_select %p933, 0, %s932
                %s935 = smul.u32 %s934, 4
                %s936 = smul.u32 %s934, 4
                %s937 = scalar_lea.vmem %s918, %s935 [#allocation2]
                %s938 = scalar_lea.vmem %s920, %s936
              $region60: #{forward.6} parent=47 // loop_footer
                %s924 = sadd.s32 %s922, 1
              $region61: #{forward.6} parent=47 // loop_footer_branch
                %921 = sbr.rel target = $region57
              $region62: #{forward.6} parent=47 // loop_exit
                _
            $region48: #{forward.6} parent=39 // pred_fallthru
              _
          $region40: #{forward.6} parent=35 // pred_fallthru
            _
          %1000 = vnop
        $region36: #{forward.6} parent=31 // pred_fallthru
          _
      $region32: #{forward.6} parent=5 // pred_fallthru
        _
      %p1001 = scmp.le.s32.totalorder 2, %s9
      // Predicated region
      $region81: #{forward.6} parent=5 // pred_check
        %p1002 = pneg %p1001
      $region82: #{forward.6} parent=5 // pred_check_branch
        %1004 = sbr.rel (%p1002) target = $region84
      $region83: #{forward.6} parent=5 // pred_region
        %s1005 = ssub.s32 %s9, 2
        // Predicated region
        $region85: #{forward.6} parent=83 // pred_check
          %p1006 = pneg %p106
        $region86: #{forward.6} parent=83 // pred_check_branch
          %1008 = sbr.rel (%p1006) target = $region88
        $region87: #{forward.6} parent=83 // pred_region
          %s1009 = sand.u32 %s91, 1
          %s1010 = sand.u32 %s91, 1
          %s1011 = smul.addr %s1010, 28
          %s1012 = scalar_lea.vmem [#allocation2], %s1011
        $region88: #{forward.6} parent=83 // pred_fallthru
          _
      $region84: #{forward.6} parent=5 // pred_fallthru
        _
    $region6: #{forward.6} parent=1 // loop_footer
      %s13 = sadd.s32 1, %s9
    $region7: #{forward.6} parent=1 // loop_footer_branch
      %8 = sbr.rel target = $region3
    $region8: #{forward.6} parent=1 // loop_exit
      _

// kernel: forward.7
$region0: #{forward.7}
  #allocation0 [shape = 'u32[]', space=smem, size = 0x4, offset = 0x4, fixed_abs, tag = 'smem constant byte address 0x4 - core index']
  #allocation1 [shape = 'u32[144,128]{1,0:T(1,128)}', space=vmem, size = 0x12000, scoped, tag = 'internal scratch']
  %s0 = inlined_call_operand.vmem [shape: bf16[8,3136], index: 0, kind: input, shape index: {}]
  %s1 = inlined_call_operand.vmem [shape: bf16[3136,256], index: 1, kind: input, shape index: {}]
  %s2 = inlined_call_operand.vmem [shape: f32[1,256], index: 2, kind: input, shape index: {}]
  %s3 = inlined_call_operand.vmem [shape: bf16[256,512], index: 3, kind: input, shape index: {}]
  %s4 = inlined_call_operand.vmem [shape: f32[1,512], index: 4, kind: input, shape index: {}]
  %s5 = inlined_call_operand.vmem [shape: bf16[512,512], index: 5, kind: input, shape index: {}]
  %s6 = inlined_call_operand.vmem [shape: f32[1,512], index: 6, kind: input, shape index: {}]
  %s7 = inlined_call_operand.vmem [shape: bf16[512,128], index: 7, kind: input, shape index: {}]
  %s8 = inlined_call_operand.vmem [shape: f32[1,128], index: 8, kind: input, shape index: {}]
  %s9 = inlined_call_operand.vmem [shape: bf16[512,512], index: 9, kind: input, shape index: {}]
  %s10 = inlined_call_operand.vmem [shape: f32[1,512], index: 10, kind: input, shape index: {}]
  %s11 = inlined_call_operand.vmem [shape: bf16[512,128], index: 11, kind: input, shape index: {}]
  %s12 = inlined_call_operand.vmem [shape: f32[1,128], index: 12, kind: input, shape index: {}]
  %s13 = inlined_call_operand.vmem [shape: f32[8,128], index: 13, kind: output, shape index: {0}]
  %s14 = inlined_call_operand.vmem [shape: f32[8,128], index: 14, kind: output, shape index: {1}]
  %15 = xla_tuple %s13, %s14
  %s16 = sld [smem:[#allocation0]]
  $region70: #{forward.7} parent=0
    _
  %s18 = ssub.s32 1, %s16
  %s19 = scalar_select 0, %s18, %s16
  // Predicated region
  $region2: #{forward.7} parent=0 // pred_check
    _
  $region3: #{forward.7} parent=0 // pred_check_branch
    %21 = sbr.rel (0) target = $region5
  $region4: #{forward.7} parent=0 // pred_region
    _
  $region5: #{forward.7} parent=0 // pred_fallthru
    _
  // Predicated region
  $region6: #{forward.7} parent=0 // pred_check
    _
  $region7: #{forward.7} parent=0 // pred_check_branch
    %23 = sbr.rel (0) target = $region9
  $region8: #{forward.7} parent=0 // pred_region
    _
  $region9: #{forward.7} parent=0 // pred_fallthru
    _
  // Predicated region
  $region10: #{forward.7} parent=0 // pred_check
    _
  $region11: #{forward.7} parent=0 // pred_check_branch
    %25 = sbr.rel (0) target = $region13
  $region12: #{forward.7} parent=0 // pred_region
    _
  $region13: #{forward.7} parent=0 // pred_fallthru
    _
  // Predicated region
  $region14: #{forward.7} parent=0 // pred_check
    _
  $region15: #{forward.7} parent=0 // pred_check_branch
    %27 = sbr.rel (0) target = $region17
  $region16: #{forward.7} parent=0 // pred_region
    _
  $region17: #{forward.7} parent=0 // pred_fallthru
    _
  // Predicated region
  $region18: #{forward.7} parent=0 // pred_check
    _
  $region19: #{forward.7} parent=0 // pred_check_branch
    %29 = sbr.rel (0) target = $region21
  $region20: #{forward.7} parent=0 // pred_region
    _
  $region21: #{forward.7} parent=0 // pred_fallthru
    _
  // Predicated region
  $region22: #{forward.7} parent=0 // pred_check
    _
  $region23: #{forward.7} parent=0 // pred_check_branch
    %31 = sbr.rel (0) target = $region25
  $region24: #{forward.7} parent=0 // pred_region
    _
  $region25: #{forward.7} parent=0 // pred_fallthru
    _
  // Predicated region
  $region26: #{forward.7} parent=0 // pred_check
    _
  $region27: #{forward.7} parent=0 // pred_check_branch
    %33 = sbr.rel (0) target = $region29
  $region28: #{forward.7} parent=0 // pred_region
    _
  $region29: #{forward.7} parent=0 // pred_fallthru
    _
  // Predicated region
  $region30: #{forward.7} parent=0 // pred_check
    _
  $region31: #{forward.7} parent=0 // pred_check_branch
    %35 = sbr.rel (0) target = $region33
  $region32: #{forward.7} parent=0 // pred_region
    _
  $region33: #{forward.7} parent=0 // pred_fallthru
    _
  // Predicated region
  $region34: #{forward.7} parent=0 // pred_check
    _
  $region35: #{forward.7} parent=0 // pred_check_branch
    %37 = sbr.rel (0) target = $region37
  $region36: #{forward.7} parent=0 // pred_region
    _
  $region37: #{forward.7} parent=0 // pred_fallthru
    _
  // Predicated region
  $region38: #{forward.7} parent=0 // pred_check
    _
  $region39: #{forward.7} parent=0 // pred_check_branch
    %39 = sbr.rel (0) target = $region41
  $region40: #{forward.7} parent=0 // pred_region
    _
  $region41: #{forward.7} parent=0 // pred_fallthru
    _
  // Predicated region
  $region42: #{forward.7} parent=0 // pred_check
    _
  $region43: #{forward.7} parent=0 // pred_check_branch
    %41 = sbr.rel (0) target = $region45
  $region44: #{forward.7} parent=0 // pred_region
    _
  $region45: #{forward.7} parent=0 // pred_fallthru
    _
  // Predicated region
  $region46: #{forward.7} parent=0 // pred_check
    _
  $region47: #{forward.7} parent=0 // pred_check_branch
    %43 = sbr.rel (0) target = $region49
  $region48: #{forward.7} parent=0 // pred_region
    _
  $region49: #{forward.7} parent=0 // pred_fallthru
    _
  // Predicated region
  $region50: #{forward.7} parent=0 // pred_check
    _
  $region51: #{forward.7} parent=0 // pred_check_branch
    %45 = sbr.rel (0) target = $region53
  $region52: #{forward.7} parent=0 // pred_region
    _
  $region53: #{forward.7} parent=0 // pred_fallthru
    _
  %v47 = vld [vmem:[%s0] sm:$0xff]
  %v48 = vld [vmem:[%s0 + $0x8] sm:$0xff]
  %v49 = vld [vmem:[%s0 + $0x10] sm:$0xff]
  %v50 = vld [vmem:[%s0 + $0x18] sm:$0xff]
  %v51 = vld [vmem:[%s0 + $0x20] sm:$0xff]
  %v52 = vld [vmem:[%s0 + $0x28] sm:$0xff]
  %v53 = vld [vmem:[%s0 + $0x30] sm:$0xff]
  %v54 = vld [vmem:[%s0 + $0x38] sm:$0xff]
  %v55 = vld [vmem:[%s0 + $0x40] sm:$0xff]
  %v56 = vld [vmem:[%s0 + $0x48] sm:$0xff]
  %v57 = vld [vmem:[%s0 + $0x50] sm:$0xff]
  %v58 = vld [vmem:[%s0 + $0x58] sm:$0xff]
  %v59 = vld [vmem:[%s0 + $0x60] sm:$0xf]
  %v60 = vld [vmem:[%s1] sm:$0xff]
  %v61 = vld [vmem:[%s1 + $0x8] sm:$0xff]
  %v62 = vld [vmem:[%s1 + $0x10] sm:$0xff]
  %v63 = vld [vmem:[%s1 + $0x18] sm:$0xff]
  %v64 = vld [vmem:[%s1 + $0x20] sm:$0xff]
  %v65 = vld [vmem:[%s1 + $0x28] sm:$0xff]
  %v66 = vld [vmem:[%s1 + $0x30] sm:$0xff]
  %v67 = vld [vmem:[%s1 + $0x38] sm:$0xff]
  %v68 = vld [vmem:[%s1 + $0x40] sm:$0xff]
  %v69 = vld [vmem:[%s1 + $0x48] sm:$0xff]
  %v70 = vld [vmem:[%s1 + $0x50] sm:$0xff]
  %v71 = vld [vmem:[%s1 + $0x58] sm:$0xff]
  %v72 = vld [vmem:[%s1 + $0x60] sm:$0xff]
  %v73 = vld [vmem:[%s1 + $0x68] sm:$0xff]
  %v74 = vld [vmem:[%s1 + $0x70] sm:$0xff]
  %v75 = vld [vmem:[%s1 + $0x78] sm:$0xff]
  %v76 = vld [vmem:[%s1 + $0x80] sm:$0xff]
  %v77 = vld [vmem:[%s1 + $0x88] sm:$0xff]
  %v78 = vld [vmem:[%s1 + $0x90] sm:$0xff]
  %v79 = vld [vmem:[%s1 + $0x98] sm:$0xff]
  %v80 = vld [vmem:[%s1 + $0xa0] sm:$0xff]
  %v81 = vld [vmem:[%s1 + $0xa8] sm:$0xff]
  %v82 = vld [vmem:[%s1 + $0xb0] sm:$0xff]
  %v83 = vld [vmem:[%s1 + $0xb8] sm:$0xff]
  %v84 = vld [vmem:[%s1 + $0xc0] sm:$0xff]
  %v85 = vld [vmem:[%s1 + $0xc8] sm:$0xff]
  %v86 = vld [vmem:[%s1 + $0xd0] sm:$0xff]
  %v87 = vld [vmem:[%s1 + $0xd8] sm:$0xff]
  %v88 = vld [vmem:[%s1 + $0xe0] sm:$0xff]
  %v89 = vld [vmem:[%s1 + $0xe8] sm:$0xff]
  %v90 = vld [vmem:[%s1 + $0xf0] sm:$0xff]
  %v91 = vld [vmem:[%s1 + $0xf8] sm:$0xff]
  %v92 = vld [vmem:[%s1 + $0x100] sm:$0xff]
  %v93 = vld [vmem:[%s1 + $0x108] sm:$0xff]
  %v94 = vld [vmem:[%s1 + $0x110] sm:$0xff]
  %v95 = vld [vmem:[%s1 + $0x118] sm:$0xff]
  %v96 = vld [vmem:[%s1 + $0x120] sm:$0xff]
  %v97 = vld [vmem:[%s1 + $0x128] sm:$0xff]
  %v98 = vld [vmem:[%s1 + $0x130] sm:$0xff]
  %v99 = vld [vmem:[%s1 + $0x138] sm:$0xff]
  %v100 = vld [vmem:[%s1 + $0x140] sm:$0xff]
  %v101 = vld [vmem:[%s1 + $0x148] sm:$0xff]
  %v102 = vld [vmem:[%s1 + $0x150] sm:$0xff]
  %v103 = vld [vmem:[%s1 + $0x158] sm:$0xff]
  %v104 = vld [vmem:[%s1 + $0x160] sm:$0xff]
  %v105 = vld [vmem:[%s1 + $0x168] sm:$0xff]
  %v106 = vld [vmem:[%s1 + $0x170] sm:$0xff]
  %v107 = vld [vmem:[%s1 + $0x178] sm:$0xff]
  %v108 = vld [vmem:[%s1 + $0x180] sm:$0xff]
  %v109 = vld [vmem:[%s1 + $0x188] sm:$0xff]
  %v110 = vld [vmem:[%s1 + $0x190] sm:$0xff]
  %v111 = vld [vmem:[%s1 + $0x198] sm:$0xff]
  %v112 = vld [vmem:[%s1 + $0x1a0] sm:$0xff]
  %v113 = vld [vmem:[%s1 + $0x1a8] sm:$0xff]
  %v114 = vld [vmem:[%s1 + $0x1b0] sm:$0xff]
  %v115 = vld [vmem:[%s1 + $0x1b8] sm:$0xff]
  %v116 = vld [vmem:[%s1 + $0x1c0] sm:$0xff]
  %v117 = vld [vmem:[%s1 + $0x1c8] sm:$0xff]
  %v118 = vld [vmem:[%s1 + $0x1d0] sm:$0xff]
  %v119 = vld [vmem:[%s1 + $0x1d8] sm:$0xff]
  %v120 = vld [vmem:[%s1 + $0x1e0] sm:$0xff]
  %v121 = vld [vmem:[%s1 + $0x1e8] sm:$0xff]
  %v122 = vld [vmem:[%s1 + $0x1f0] sm:$0xff]
  %v123 = vld [vmem:[%s1 + $0x1f8] sm:$0xff]
  %v124 = vld [vmem:[%s1 + $0x200] sm:$0xff]
  %v125 = vld [vmem:[%s1 + $0x208] sm:$0xff]
  %v126 = vld [vmem:[%s1 + $0x210] sm:$0xff]
  %v127 = vld [vmem:[%s1 + $0x218] sm:$0xff]
  %v128 = vld [vmem:[%s1 + $0x220] sm:$0xff]
  %v129 = vld [vmem:[%s1 + $0x228] sm:$0xff]
  %v130 = vld [vmem:[%s1 + $0x230] sm:$0xff]
  %v131 = vld [vmem:[%s1 + $0x238] sm:$0xff]
  %v132 = vld [vmem:[%s1 + $0x240] sm:$0xff]
  %v133 = vld [vmem:[%s1 + $0x248] sm:$0xff]
  %v134 = vld [vmem:[%s1 + $0x250] sm:$0xff]
  %v135 = vld [vmem:[%s1 + $0x258] sm:$0xff]
  %v136 = vld [vmem:[%s1 + $0x260] sm:$0xff]
  %v137 = vld [vmem:[%s1 + $0x268] sm:$0xff]
  %v138 = vld [vmem:[%s1 + $0x270] sm:$0xff]
  %v139 = vld [vmem:[%s1 + $0x278] sm:$0xff]
  %v140 = vld [vmem:[%s1 + $0x280] sm:$0xff]
  %v141 = vld [vmem:[%s1 + $0x288] sm:$0xff]
  %v142 = vld [vmem:[%s1 + $0x290] sm:$0xff]
  %v143 = vld [vmem:[%s1 + $0x298] sm:$0xff]
  %v144 = vld [vmem:[%s1 + $0x2a0] sm:$0xff]
  %v145 = vld [vmem:[%s1 + $0x2a8] sm:$0xff]
  %v146 = vld [vmem:[%s1 + $0x2b0] sm:$0xff]
  %v147 = vld [vmem:[%s1 + $0x2b8] sm:$0xff]
  %v148 = vld [vmem:[%s1 + $0x2c0] sm:$0xff]
  %v149 = vld [vmem:[%s1 + $0x2c8] sm:$0xff]
  %v150 = vld [vmem:[%s1 + $0x2d0] sm:$0xff]
  %v151 = vld [vmem:[%s1 + $0x2d8] sm:$0xff]
  %v152 = vld [vmem:[%s1 + $0x2e0] sm:$0xff]
  %v153 = vld [vmem:[%s1 + $0x2e8] sm:$0xff]
  %v154 = vld [vmem:[%s1 + $0x2f0] sm:$0xff]
  %v155 = vld [vmem:[%s1 + $0x2f8] sm:$0xff]
  %v156 = vld [vmem:[%s1 + $0x300] sm:$0xff]
  %v157 = vld [vmem:[%s1 + $0x308] sm:$0xff]
  %v158 = vld [vmem:[%s1 + $0x310] sm:$0xff]
  %v159 = vld [vmem:[%s1 + $0x318] sm:$0xff]
  %v160 = vld [vmem:[%s1 + $0x320] sm:$0xff]
  %v161 = vld [vmem:[%s1 + $0x328] sm:$0xff]
  %v162 = vld [vmem:[%s1 + $0x330] sm:$0xff]
  %v163 = vld [vmem:[%s1 + $0x338] sm:$0xff]
  %v164 = vld [vmem:[%s1 + $0x340] sm:$0xff]
  %v165 = vld [vmem:[%s1 + $0x348] sm:$0xff]
  %v166 = vld [vmem:[%s1 + $0x350] sm:$0xff]
  %v167 = vld [vmem:[%s1 + $0x358] sm:$0xff]
  %v168 = vld [vmem:[%s1 + $0x360] sm:$0xff]
  %v169 = vld [vmem:[%s1 + $0x368] sm:$0xff]
  %v170 = vld [vmem:[%s1 + $0x370] sm:$0xff]
  %v171 = vld [vmem:[%s1 + $0x378] sm:$0xff]
  %v172 = vld [vmem:[%s1 + $0x380] sm:$0xff]
  %v173 = vld [vmem:[%s1 + $0x388] sm:$0xff]
  %v174 = vld [vmem:[%s1 + $0x390] sm:$0xff]
  %v175 = vld [vmem:[%s1 + $0x398] sm:$0xff]
  %v176 = vld [vmem:[%s1 + $0x3a0] sm:$0xff]
  %v177 = vld [vmem:[%s1 + $0x3a8] sm:$0xff]
  %v178 = vld [vmem:[%s1 + $0x3b0] sm:$0xff]
  %v179 = vld [vmem:[%s1 + $0x3b8] sm:$0xff]
  %v180 = vld [vmem:[%s1 + $0x3c0] sm:$0xff]
  %v181 = vld [vmem:[%s1 + $0x3c8] sm:$0xff]
  %v182 = vld [vmem:[%s1 + $0x3d0] sm:$0xff]
  %v183 = vld [vmem:[%s1 + $0x3d8] sm:$0xff]
  %v184 = vld [vmem:[%s1 + $0x3e0] sm:$0xff]
  %v185 = vld [vmem:[%s1 + $0x3e8] sm:$0xff]
  %v186 = vld [vmem:[%s1 + $0x3f0] sm:$0xff]
  %v187 = vld [vmem:[%s1 + $0x3f8] sm:$0xff]
  %v188 = vld [vmem:[%s1 + $0x400] sm:$0xff]
  %v189 = vld [vmem:[%s1 + $0x408] sm:$0xff]
  %v190 = vld [vmem:[%s1 + $0x410] sm:$0xff]
  %v191 = vld [vmem:[%s1 + $0x418] sm:$0xff]
  %v192 = vld [vmem:[%s1 + $0x420] sm:$0xff]
  %v193 = vld [vmem:[%s1 + $0x428] sm:$0xff]
  %v194 = vld [vmem:[%s1 + $0x430] sm:$0xff]
  %v195 = vld [vmem:[%s1 + $0x438] sm:$0xff]
  %v196 = vld [vmem:[%s1 + $0x440] sm:$0xff]
  %v197 = vld [vmem:[%s1 + $0x448] sm:$0xff]
  %v198 = vld [vmem:[%s1 + $0x450] sm:$0xff]
  %v199 = vld [vmem:[%s1 + $0x458] sm:$0xff]
  %v200 = vld [vmem:[%s1 + $0x460] sm:$0xff]
  %v201 = vld [vmem:[%s1 + $0x468] sm:$0xff]
  %v202 = vld [vmem:[%s1 + $0x470] sm:$0xff]
  %v203 = vld [vmem:[%s1 + $0x478] sm:$0xff]
  %v204 = vld [vmem:[%s1 + $0x480] sm:$0xff]
  %v205 = vld [vmem:[%s1 + $0x488] sm:$0xff]
  %v206 = vld [vmem:[%s1 + $0x490] sm:$0xff]
  %v207 = vld [vmem:[%s1 + $0x498] sm:$0xff]
  %v208 = vld [vmem:[%s1 + $0x4a0] sm:$0xff]
  %v209 = vld [vmem:[%s1 + $0x4a8] sm:$0xff]
  %v210 = vld [vmem:[%s1 + $0x4b0] sm:$0xff]
  %v211 = vld [vmem:[%s1 + $0x4b8] sm:$0xff]
  %v212 = vld [vmem:[%s1 + $0x4c0] sm:$0xff]
  %v213 = vld [vmem:[%s1 + $0x4c8] sm:$0xff]
  %v214 = vld [vmem:[%s1 + $0x4d0] sm:$0xff]
  %v215 = vld [vmem:[%s1 + $0x4d8] sm:$0xff]
  %v216 = vld [vmem:[%s1 + $0x4e0] sm:$0xff]
  %v217 = vld [vmem:[%s1 + $0x4e8] sm:$0xff]
  %v218 = vld [vmem:[%s1 + $0x4f0] sm:$0xff]
  %v219 = vld [vmem:[%s1 + $0x4f8] sm:$0xff]
  %v220 = vld [vmem:[%s1 + $0x500] sm:$0xff]
  %v221 = vld [vmem:[%s1 + $0x508] sm:$0xff]
  %v222 = vld [vmem:[%s1 + $0x510] sm:$0xff]
  %v223 = vld [vmem:[%s1 + $0x518] sm:$0xff]
  %v224 = vld [vmem:[%s1 + $0x520] sm:$0xff]
  %v225 = vld [vmem:[%s1 + $0x528] sm:$0xff]
  %v226 = vld [vmem:[%s1 + $0x530] sm:$0xff]
  %v227 = vld [vmem:[%s1 + $0x538] sm:$0xff]
  %v228 = vld [vmem:[%s1 + $0x540] sm:$0xff]
  %v229 = vld [vmem:[%s1 + $0x548] sm:$0xff]
  %v230 = vld [vmem:[%s1 + $0x550] sm:$0xff]
  %v231 = vld [vmem:[%s1 + $0x558] sm:$0xff]
  %v232 = vld [vmem:[%s1 + $0x560] sm:$0xff]
  %v233 = vld [vmem:[%s1 + $0x568] sm:$0xff]
  %v234 = vld [vmem:[%s1 + $0x570] sm:$0xff]
  %v235 = vld [vmem:[%s1 + $0x578] sm:$0xff]
  %v236 = vld [vmem:[%s1 + $0x580] sm:$0xff]
  %v237 = vld [vmem:[%s1 + $0x588] sm:$0xff]
  %v238 = vld [vmem:[%s1 + $0x590] sm:$0xff]
  %v239 = vld [vmem:[%s1 + $0x598] sm:$0xff]
  %v240 = vld [vmem:[%s1 + $0x5a0] sm:$0xff]
  %v241 = vld [vmem:[%s1 + $0x5a8] sm:$0xff]
  %v242 = vld [vmem:[%s1 + $0x5b0] sm:$0xff]
  %v243 = vld [vmem:[%s1 + $0x5b8] sm:$0xff]
  %v244 = vld [vmem:[%s1 + $0x5c0] sm:$0xff]
  %v245 = vld [vmem:[%s1 + $0x5c8] sm:$0xff]
  %v246 = vld [vmem:[%s1 + $0x5d0] sm:$0xff]
  %v247 = vld [vmem:[%s1 + $0x5d8] sm:$0xff]
  %v248 = vld [vmem:[%s1 + $0x5e0] sm:$0xff]
  %v249 = vld [vmem:[%s1 + $0x5e8] sm:$0xff]
  %v250 = vld [vmem:[%s1 + $0x5f0] sm:$0xff]
  %v251 = vld [vmem:[%s1 + $0x5f8] sm:$0xff]
  %v252 = vld [vmem:[%s1 + $0x600] sm:$0xff]
  %v253 = vld [vmem:[%s1 + $0x608] sm:$0xff]
  %v254 = vld [vmem:[%s1 + $0x610] sm:$0xff]
  %v255 = vld [vmem:[%s1 + $0x618] sm:$0xff]
  %v256 = vld [vmem:[%s1 + $0x620] sm:$0xff]
  %v257 = vld [vmem:[%s1 + $0x628] sm:$0xff]
  %v258 = vld [vmem:[%s1 + $0x630] sm:$0xff]
  %v259 = vld [vmem:[%s1 + $0x638] sm:$0xff]
  %v260 = vld [vmem:[%s1 + $0x640] sm:$0xff]
  %v261 = vld [vmem:[%s1 + $0x648] sm:$0xff]
  %v262 = vld [vmem:[%s1 + $0x650] sm:$0xff]
  %v263 = vld [vmem:[%s1 + $0x658] sm:$0xff]
  %v264 = vld [vmem:[%s1 + $0x660] sm:$0xff]
  %v265 = vld [vmem:[%s1 + $0x668] sm:$0xff]
  %v266 = vld [vmem:[%s1 + $0x670] sm:$0xff]
  %v267 = vld [vmem:[%s1 + $0x678] sm:$0xff]
  %v268 = vld [vmem:[%s1 + $0x680] sm:$0xff]
  %v269 = vld [vmem:[%s1 + $0x688] sm:$0xff]
  %v270 = vld [vmem:[%s1 + $0x690] sm:$0xff]
  %v271 = vld [vmem:[%s1 + $0x698] sm:$0xff]
  %v272 = vld [vmem:[%s1 + $0x6a0] sm:$0xff]
  %v273 = vld [vmem:[%s1 + $0x6a8] sm:$0xff]
  %v274 = vld [vmem:[%s1 + $0x6b0] sm:$0xff]
  %v275 = vld [vmem:[%s1 + $0x6b8] sm:$0xff]
  %v276 = vld [vmem:[%s1 + $0x6c0] sm:$0xff]
  %v277 = vld [vmem:[%s1 + $0x6c8] sm:$0xff]
  %v278 = vld [vmem:[%s1 + $0x6d0] sm:$0xff]
  %v279 = vld [vmem:[%s1 + $0x6d8] sm:$0xff]
  %v280 = vld [vmem:[%s1 + $0x6e0] sm:$0xff]
  %v281 = vld [vmem:[%s1 + $0x6e8] sm:$0xff]
  %v282 = vld [vmem:[%s1 + $0x6f0] sm:$0xff]
  %v283 = vld [vmem:[%s1 + $0x6f8] sm:$0xff]
  %v284 = vld [vmem:[%s1 + $0x700] sm:$0xff]
  %v285 = vld [vmem:[%s1 + $0x708] sm:$0xff]
  %v286 = vld [vmem:[%s1 + $0x710] sm:$0xff]
  %v287 = vld [vmem:[%s1 + $0x718] sm:$0xff]
  %v288 = vld [vmem:[%s1 + $0x720] sm:$0xff]
  %v289 = vld [vmem:[%s1 + $0x728] sm:$0xff]
  %v290 = vld [vmem:[%s1 + $0x730] sm:$0xff]
  %v291 = vld [vmem:[%s1 + $0x738] sm:$0xff]
  %v292 = vld [vmem:[%s1 + $0x740] sm:$0xff]
  %v293 = vld [vmem:[%s1 + $0x748] sm:$0xff]
  %v294 = vld [vmem:[%s1 + $0x750] sm:$0xff]
  %v295 = vld [vmem:[%s1 + $0x758] sm:$0xff]
  %v296 = vld [vmem:[%s1 + $0x760] sm:$0xff]
  %v297 = vld [vmem:[%s1 + $0x768] sm:$0xff]
  %v298 = vld [vmem:[%s1 + $0x770] sm:$0xff]
  %v299 = vld [vmem:[%s1 + $0x778] sm:$0xff]
  %v300 = vld [vmem:[%s1 + $0x780] sm:$0xff]
  %v301 = vld [vmem:[%s1 + $0x788] sm:$0xff]
  %v302 = vld [vmem:[%s1 + $0x790] sm:$0xff]
  %v303 = vld [vmem:[%s1 + $0x798] sm:$0xff]
  %v304 = vld [vmem:[%s1 + $0x7a0] sm:$0xff]
  %v305 = vld [vmem:[%s1 + $0x7a8] sm:$0xff]
  %v306 = vld [vmem:[%s1 + $0x7b0] sm:$0xff]
  %v307 = vld [vmem:[%s1 + $0x7b8] sm:$0xff]
  %v308 = vld [vmem:[%s1 + $0x7c0] sm:$0xff]
  %v309 = vld [vmem:[%s1 + $0x7c8] sm:$0xff]
  %v310 = vld [vmem:[%s1 + $0x7d0] sm:$0xff]
  %v311 = vld [vmem:[%s1 + $0x7d8] sm:$0xff]
  %v312 = vld [vmem:[%s1 + $0x7e0] sm:$0xff]
  %v313 = vld [vmem:[%s1 + $0x7e8] sm:$0xff]
  %v314 = vld [vmem:[%s1 + $0x7f0] sm:$0xff]
  %v315 = vld [vmem:[%s1 + $0x7f8] sm:$0xff]
  %v316 = vld [vmem:[%s1 + $0x800] sm:$0xff]
  %v317 = vld [vmem:[%s1 + $0x808] sm:$0xff]
  %v318 = vld [vmem:[%s1 + $0x810] sm:$0xff]
  %v319 = vld [vmem:[%s1 + $0x818] sm:$0xff]
  %v320 = vld [vmem:[%s1 + $0x820] sm:$0xff]
  %v321 = vld [vmem:[%s1 + $0x828] sm:$0xff]
  %v322 = vld [vmem:[%s1 + $0x830] sm:$0xff]
  %v323 = vld [vmem:[%s1 + $0x838] sm:$0xff]
  %v324 = vld [vmem:[%s1 + $0x840] sm:$0xff]
  %v325 = vld [vmem:[%s1 + $0x848] sm:$0xff]
  %v326 = vld [vmem:[%s1 + $0x850] sm:$0xff]
  %v327 = vld [vmem:[%s1 + $0x858] sm:$0xff]
  %v328 = vld [vmem:[%s1 + $0x860] sm:$0xff]
  %v329 = vld [vmem:[%s1 + $0x868] sm:$0xff]
  %v330 = vld [vmem:[%s1 + $0x870] sm:$0xff]
  %v331 = vld [vmem:[%s1 + $0x878] sm:$0xff]
  %v332 = vld [vmem:[%s1 + $0x880] sm:$0xff]
  %v333 = vld [vmem:[%s1 + $0x888] sm:$0xff]
  %v334 = vld [vmem:[%s1 + $0x890] sm:$0xff]
  %v335 = vld [vmem:[%s1 + $0x898] sm:$0xff]
  %v336 = vld [vmem:[%s1 + $0x8a0] sm:$0xff]
  %v337 = vld [vmem:[%s1 + $0x8a8] sm:$0xff]
  %v338 = vld [vmem:[%s1 + $0x8b0] sm:$0xff]
  %v339 = vld [vmem:[%s1 + $0x8b8] sm:$0xff]
  %v340 = vld [vmem:[%s1 + $0x8c0] sm:$0xff]
  %v341 = vld [vmem:[%s1 + $0x8c8] sm:$0xff]
  %v342 = vld [vmem:[%s1 + $0x8d0] sm:$0xff]
  %v343 = vld [vmem:[%s1 + $0x8d8] sm:$0xff]
  %v344 = vld [vmem:[%s1 + $0x8e0] sm:$0xff]
  %v345 = vld [vmem:[%s1 + $0x8e8] sm:$0xff]
  %v346 = vld [vmem:[%s1 + $0x8f0] sm:$0xff]
  %v347 = vld [vmem:[%s1 + $0x8f8] sm:$0xff]
  %v348 = vld [vmem:[%s1 + $0x900] sm:$0xff]
  %v349 = vld [vmem:[%s1 + $0x908] sm:$0xff]
  %v350 = vld [vmem:[%s1 + $0x910] sm:$0xff]
  %v351 = vld [vmem:[%s1 + $0x918] sm:$0xff]
  %v352 = vld [vmem:[%s1 + $0x920] sm:$0xff]
  %v353 = vld [vmem:[%s1 + $0x928] sm:$0xff]
  %v354 = vld [vmem:[%s1 + $0x930] sm:$0xff]
  %v355 = vld [vmem:[%s1 + $0x938] sm:$0xff]
  %v356 = vld [vmem:[%s1 + $0x940] sm:$0xff]
  %v357 = vld [vmem:[%s1 + $0x948] sm:$0xff]
  %v358 = vld [vmem:[%s1 + $0x950] sm:$0xff]
  %v359 = vld [vmem:[%s1 + $0x958] sm:$0xff]
  %v360 = vld [vmem:[%s1 + $0x960] sm:$0xff]
  %v361 = vld [vmem:[%s1 + $0x968] sm:$0xff]
  %v362 = vld [vmem:[%s1 + $0x970] sm:$0xff]
  %v363 = vld [vmem:[%s1 + $0x978] sm:$0xff]
  %v364 = vld [vmem:[%s1 + $0x980] sm:$0xff]
  %v365 = vld [vmem:[%s1 + $0x988] sm:$0xff]
  %v366 = vld [vmem:[%s1 + $0x990] sm:$0xff]
  %v367 = vld [vmem:[%s1 + $0x998] sm:$0xff]
  %v368 = vld [vmem:[%s1 + $0x9a0] sm:$0xff]
  %v369 = vld [vmem:[%s1 + $0x9a8] sm:$0xff]
  %v370 = vld [vmem:[%s1 + $0x9b0] sm:$0xff]
  %v371 = vld [vmem:[%s1 + $0x9b8] sm:$0xff]
  %v372 = vld [vmem:[%s1 + $0x9c0] sm:$0xff]
  %v373 = vld [vmem:[%s1 + $0x9c8] sm:$0xff]
  %v374 = vld [vmem:[%s1 + $0x9d0] sm:$0xff]
  %v375 = vld [vmem:[%s1 + $0x9d8] sm:$0xff]
  %v376 = vld [vmem:[%s1 + $0x9e0] sm:$0xff]
  %v377 = vld [vmem:[%s1 + $0x9e8] sm:$0xff]
  %v378 = vld [vmem:[%s1 + $0x9f0] sm:$0xff]
  %v379 = vld [vmem:[%s1 + $0x9f8] sm:$0xff]
  %v380 = vld [vmem:[%s1 + $0xa00] sm:$0xff]
  %v381 = vld [vmem:[%s1 + $0xa08] sm:$0xff]
  %v382 = vld [vmem:[%s1 + $0xa10] sm:$0xff]
  %v383 = vld [vmem:[%s1 + $0xa18] sm:$0xff]
  %v384 = vld [vmem:[%s1 + $0xa20] sm:$0xff]
  %v385 = vld [vmem:[%s1 + $0xa28] sm:$0xff]
  %v386 = vld [vmem:[%s1 + $0xa30] sm:$0xff]
  %v387 = vld [vmem:[%s1 + $0xa38] sm:$0xff]
  %v388 = vld [vmem:[%s1 + $0xa40] sm:$0xff]
  %v389 = vld [vmem:[%s1 + $0xa48] sm:$0xff]
  %v390 = vld [vmem:[%s1 + $0xa50] sm:$0xff]
  %v391 = vld [vmem:[%s1 + $0xa58] sm:$0xff]
  %v392 = vld [vmem:[%s1 + $0xa60] sm:$0xff]
  %v393 = vld [vmem:[%s1 + $0xa68] sm:$0xff]
  %v394 = vld [vmem:[%s1 + $0xa70] sm:$0xff]
  %v395 = vld [vmem:[%s1 + $0xa78] sm:$0xff]
  %v396 = vld [vmem:[%s1 + $0xa80] sm:$0xff]
  %v397 = vld [vmem:[%s1 + $0xa88] sm:$0xff]
  %v398 = vld [vmem:[%s1 + $0xa90] sm:$0xff]
  %v399 = vld [vmem:[%s1 + $0xa98] sm:$0xff]
  %v400 = vld [vmem:[%s1 + $0xaa0] sm:$0xff]
  %v401 = vld [vmem:[%s1 + $0xaa8] sm:$0xff]
  %v402 = vld [vmem:[%s1 + $0xab0] sm:$0xff]
  %v403 = vld [vmem:[%s1 + $0xab8] sm:$0xff]
  %v404 = vld [vmem:[%s1 + $0xac0] sm:$0xff]
  %v405 = vld [vmem:[%s1 + $0xac8] sm:$0xff]
  %v406 = vld [vmem:[%s1 + $0xad0] sm:$0xff]
  %v407 = vld [vmem:[%s1 + $0xad8] sm:$0xff]
  %v408 = vld [vmem:[%s1 + $0xae0] sm:$0xff]
  %v409 = vld [vmem:[%s1 + $0xae8] sm:$0xff]
  %v410 = vld [vmem:[%s1 + $0xaf0] sm:$0xff]
  %v411 = vld [vmem:[%s1 + $0xaf8] sm:$0xff]
  %v412 = vld [vmem:[%s1 + $0xb00] sm:$0xff]
  %v413 = vld [vmem:[%s1 + $0xb08] sm:$0xff]
  %v414 = vld [vmem:[%s1 + $0xb10] sm:$0xff]
  %v415 = vld [vmem:[%s1 + $0xb18] sm:$0xff]
  %v416 = vld [vmem:[%s1 + $0xb20] sm:$0xff]
  %v417 = vld [vmem:[%s1 + $0xb28] sm:$0xff]
  %v418 = vld [vmem:[%s1 + $0xb30] sm:$0xff]
  %v419 = vld [vmem:[%s1 + $0xb38] sm:$0xff]
  %v420 = vld [vmem:[%s1 + $0xb40] sm:$0xff]
  %v421 = vld [vmem:[%s1 + $0xb48] sm:$0xff]
  %v422 = vld [vmem:[%s1 + $0xb50] sm:$0xff]
  %v423 = vld [vmem:[%s1 + $0xb58] sm:$0xff]
  %v424 = vld [vmem:[%s1 + $0xb60] sm:$0xff]
  %v425 = vld [vmem:[%s1 + $0xb68] sm:$0xff]
  %v426 = vld [vmem:[%s1 + $0xb70] sm:$0xff]
  %v427 = vld [vmem:[%s1 + $0xb78] sm:$0xff]
  %v428 = vld [vmem:[%s1 + $0xb80] sm:$0xff]
  %v429 = vld [vmem:[%s1 + $0xb88] sm:$0xff]
  %v430 = vld [vmem:[%s1 + $0xb90] sm:$0xff]
  %v431 = vld [vmem:[%s1 + $0xb98] sm:$0xff]
  %v432 = vld [vmem:[%s1 + $0xba0] sm:$0xff]
  %v433 = vld [vmem:[%s1 + $0xba8] sm:$0xff]
  %v434 = vld [vmem:[%s1 + $0xbb0] sm:$0xff]
  %v435 = vld [vmem:[%s1 + $0xbb8] sm:$0xff]
  %v436 = vld [vmem:[%s1 + $0xbc0] sm:$0xff]
  %v437 = vld [vmem:[%s1 + $0xbc8] sm:$0xff]
  %v438 = vld [vmem:[%s1 + $0xbd0] sm:$0xff]
  %v439 = vld [vmem:[%s1 + $0xbd8] sm:$0xff]
  %v440 = vld [vmem:[%s1 + $0xbe0] sm:$0xff]
  %v441 = vld [vmem:[%s1 + $0xbe8] sm:$0xff]
  %v442 = vld [vmem:[%s1 + $0xbf0] sm:$0xff]
  %v443 = vld [vmem:[%s1 + $0xbf8] sm:$0xff]
  %v444 = vld [vmem:[%s1 + $0xc00] sm:$0xff]
  %v445 = vld [vmem:[%s1 + $0xc08] sm:$0xff]
  %v446 = vld [vmem:[%s1 + $0xc10] sm:$0xff]
  %v447 = vld [vmem:[%s1 + $0xc18] sm:$0xff]
  %v448 = vld [vmem:[%s1 + $0xc20] sm:$0xff]
  %v449 = vld [vmem:[%s1 + $0xc28] sm:$0xff]
  %v450 = vld [vmem:[%s1 + $0xc30] sm:$0xff]
  %v451 = vld [vmem:[%s1 + $0xc38] sm:$0xff]
  %v452 = vld [vmem:[%s2] sm:$0x3]
  %v454 = vlaneseq
  %v455 = vshrl.u32 %v454, 7
  %v456 = vsub.s32 0, %v455
  %v457 = vrot.slane %v452, %v456
  %v458 = vlaneseq
  %v459 = vshrl.u32 %v458, 7
  %v460 = vsub.s32 1, %v459
  %v461 = vrot.slane %v452, %v460
  %v477 = vunpack.c.l.b16 %v47
  %v478 = vunpack.c.h.b16 %v47
  %v479 = vunpack.c.l.b16 %v48
  %v480 = vunpack.c.h.b16 %v48
  %v481 = vunpack.c.l.b16 %v49
  %v482 = vunpack.c.h.b16 %v49
  %v483 = vunpack.c.l.b16 %v50
  %v484 = vunpack.c.h.b16 %v50
  %v485 = vunpack.c.l.b16 %v51
  %v486 = vunpack.c.h.b16 %v51
  %v487 = vunpack.c.l.b16 %v52
  %v488 = vunpack.c.h.b16 %v52
  %v489 = vunpack.c.l.b16 %v53
  %v490 = vunpack.c.h.b16 %v53
  %v491 = vunpack.c.l.b16 %v54
  %v492 = vunpack.c.h.b16 %v54
  %v493 = vunpack.c.l.b16 %v55
  %v494 = vunpack.c.h.b16 %v55
  %v495 = vunpack.c.l.b16 %v56
  %v496 = vunpack.c.h.b16 %v56
  %v497 = vunpack.c.l.b16 %v57
  %v498 = vunpack.c.h.b16 %v57
  %v499 = vunpack.c.l.b16 %v58
  %v500 = vunpack.c.h.b16 %v58
  %v501 = vunpack.c.l.b16 %v59
  %v502 = vpack.c.b16 %v477, %v477
  %v503 = vpack.c.b16 %v478, %v478
  %v504 = vpack.c.b16 %v479, %v479
  %v505 = vpack.c.b16 %v480, %v480
  %v506 = vpack.c.b16 %v481, %v481
  %v507 = vpack.c.b16 %v482, %v482
  %v508 = vpack.c.b16 %v483, %v483
  %v509 = vpack.c.b16 %v484, %v484
  %v510 = vpack.c.b16 %v485, %v485
  %v511 = vpack.c.b16 %v486, %v486
  %v512 = vpack.c.b16 %v487, %v487
  %v513 = vpack.c.b16 %v488, %v488
  %v514 = vpack.c.b16 %v489, %v489
  %v515 = vpack.c.b16 %v490, %v490
  %v516 = vpack.c.b16 %v491, %v491
  %v517 = vpack.c.b16 %v492, %v492
  %v518 = vpack.c.b16 %v493, %v493
  %v519 = vpack.c.b16 %v494, %v494
  %v520 = vpack.c.b16 %v495, %v495
  %v521 = vpack.c.b16 %v496, %v496
  %v522 = vpack.c.b16 %v497, %v497
  %v523 = vpack.c.b16 %v498, %v498
  %v524 = vpack.c.b16 %v499, %v499
  %v525 = vpack.c.b16 %v500, %v500
  %v526 = vpack.c.b16 %v501, %v501
  %v943 = vunpack.c.l.b16 %v60
  %v944 = vunpack.c.h.b16 %v60
  %v945 = vunpack.c.l.b16 %v61
  %v946 = vunpack.c.h.b16 %v61
  %v947 = vunpack.c.l.b16 %v62
  %v948 = vunpack.c.h.b16 %v62
  %v949 = vunpack.c.l.b16 %v63
  %v950 = vunpack.c.h.b16 %v63
  %v951 = vunpack.c.l.b16 %v64
  %v952 = vunpack.c.h.b16 %v64
  %v953 = vunpack.c.l.b16 %v65
  %v954 = vunpack.c.h.b16 %v65
  %v955 = vunpack.c.l.b16 %v66
  %v956 = vunpack.c.h.b16 %v66
  %v957 = vunpack.c.l.b16 %v67
  %v958 = vunpack.c.h.b16 %v67
  %v959 = vunpack.c.l.b16 %v68
  %v960 = vunpack.c.h.b16 %v68
  %v961 = vunpack.c.l.b16 %v69
  %v962 = vunpack.c.h.b16 %v69
  %v963 = vunpack.c.l.b16 %v70
  %v964 = vunpack.c.h.b16 %v70
  %v965 = vunpack.c.l.b16 %v71
  %v966 = vunpack.c.h.b16 %v71
  %v967 = vunpack.c.l.b16 %v72
  %v968 = vunpack.c.h.b16 %v72
  %v969 = vunpack.c.l.b16 %v73
  %v970 = vunpack.c.h.b16 %v73
  %v971 = vunpack.c.l.b16 %v74
  %v972 = vunpack.c.h.b16 %v74
  %v973 = vunpack.c.l.b16 %v75
  %v974 = vunpack.c.h.b16 %v75
  %v975 = vunpack.c.l.b16 %v76
  %v976 = vunpack.c.h.b16 %v76
  %v977 = vunpack.c.l.b16 %v77
  %v978 = vunpack.c.h.b16 %v77
  %v979 = vunpack.c.l.b16 %v78
  %v980 = vunpack.c.h.b16 %v78
  %v981 = vunpack.c.l.b16 %v79
  %v982 = vunpack.c.h.b16 %v79
  %v983 = vunpack.c.l.b16 %v80
  %v984 = vunpack.c.h.b16 %v80
  %v985 = vunpack.c.l.b16 %v81
  %v986 = vunpack.c.h.b16 %v81
  %v987 = vunpack.c.l.b16 %v82
  %v988 = vunpack.c.h.b16 %v82
  %v989 = vunpack.c.l.b16 %v83
  %v990 = vunpack.c.h.b16 %v83
  %v991 = vunpack.c.l.b16 %v84
  %v992 = vunpack.c.h.b16 %v84
  %v993 = vunpack.c.l.b16 %v85
  %v994 = vunpack.c.h.b16 %v85
  %v995 = vunpack.c.l.b16 %v86
  %v996 = vunpack.c.h.b16 %v86
  %v997 = vunpack.c.l.b16 %v87
  %v998 = vunpack.c.h.b16 %v87
  %v999 = vunpack.c.l.b16 %v88
  %v1000 = vunpack.c.h.b16 %v88
  %v1001 = vunpack.c.l.b16 %v89
  %v1002 = vunpack.c.h.b16 %v89
  %v1003 = vunpack.c.l.b16 %v90
  %v1004 = vunpack.c.h.b16 %v90
  %v1005 = vunpack.c.l.b16 %v91
  %v1006 = vunpack.c.h.b16 %v91
  %v1007 = vunpack.c.l.b16 %v92
  %v1008 = vunpack.c.h.b16 %v92
  %v1009 = vunpack.c.l.b16 %v93
  %v1010 = vunpack.c.h.b16 %v93
  %v1011 = vunpack.c.l.b16 %v94
  %v1012 = vunpack.c.h.b16 %v94
  %v1013 = vunpack.c.l.b16 %v95
  %v1014 = vunpack.c.h.b16 %v95
  %v1015 = vunpack.c.l.b16 %v96
  %v1016 = vunpack.c.h.b16 %v96
  %v1017 = vunpack.c.l.b16 %v97
  %v1018 = vunpack.c.h.b16 %v97
  %v1019 = vunpack.c.l.b16 %v98
  %v1020 = vunpack.c.h.b16 %v98
  %v1021 = vunpack.c.l.b16 %v99
  %v1022 = vunpack.c.h.b16 %v99
  %v1023 = vunpack.c.l.b16 %v100
  %v1024 = vunpack.c.h.b16 %v100
  %v1025 = vunpack.c.l.b16 %v101
  %v1026 = vunpack.c.h.b16 %v101
  %v1027 = vunpack.c.l.b16 %v102
  %v1028 = vunpack.c.h.b16 %v102
  %v1029 = vunpack.c.l.b16 %v103
  %v1030 = vunpack.c.h.b16 %v103
  %v1031 = vunpack.c.l.b16 %v104
  %v1032 = vunpack.c.h.b16 %v104
  %v1033 = vunpack.c.l.b16 %v105
  %v1034 = vunpack.c.h.b16 %v105
  %v1035 = vunpack.c.l.b16 %v106
  %v1036 = vunpack.c.h.b16 %v106
  %v1037 = vunpack.c.l.b16 %v107
  %v1038 = vunpack.c.h.b16 %v107
  %v1039 = vunpack.c.l.b16 %v108
  %v1040 = vunpack.c.h.b16 %v108
  %v1041 = vunpack.c.l.b16 %v109
  %v1042 = vunpack.c.h.b16 %v109
  %v1043 = vunpack.c.l.b16 %v110
  %v1044 = vunpack.c.h.b16 %v110
  %v1045 = vunpack.c.l.b16 %v111
  %v1046 = vunpack.c.h.b16 %v111
  %v1047 = vunpack.c.l.b16 %v112
  %v1048 = vunpack.c.h.b16 %v112
  %v1049 = vunpack.c.l.b16 %v113
  %v1050 = vunpack.c.h.b16 %v113
  %v1051 = vunpack.c.l.b16 %v114
  %v1052 = vunpack.c.h.b16 %v114
  %v1053 = vunpack.c.l.b16 %v115
  %v1054 = vunpack.c.h.b16 %v115
  %v1055 = vunpack.c.l.b16 %v116
  %v1056 = vunpack.c.h.b16 %v116
  %v1057 = vunpack.c.l.b16 %v117
  %v1058 = vunpack.c.h.b16 %v117
  %v1059 = vunpack.c.l.b16 %v118
  %v1060 = vunpack.c.h.b16 %v118
  %v1061 = vunpack.c.l.b16 %v119
  %v1062 = vunpack.c.h.b16 %v119
  %v1063 = vunpack.c.l.b16 %v120
  %v1064 = vunpack.c.h.b16 %v120
  %v1065 = vunpack.c.l.b16 %v121
  %v1066 = vunpack.c.h.b16 %v121
  %v1067 = vunpack.c.l.b16 %v122
  %v1068 = vunpack.c.h.b16 %v122
  %v1069 = vunpack.c.l.b16 %v123
  %v1070 = vunpack.c.h.b16 %v123
  %v1071 = vunpack.c.l.b16 %v124
  %v1072 = vunpack.c.h.b16 %v124
  %v1073 = vunpack.c.l.b16 %v125
  %v1074 = vunpack.c.h.b16 %v125
  %v1075 = vunpack.c.l.b16 %v126
  %v1076 = vunpack.c.h.b16 %v126
  %v1077 = vunpack.c.l.b16 %v127
  %v1078 = vunpack.c.h.b16 %v127
  %v1079 = vunpack.c.l.b16 %v128
  %v1080 = vunpack.c.h.b16 %v128
  %v1081 = vunpack.c.l.b16 %v129
  %v1082 = vunpack.c.h.b16 %v129
  %v1083 = vunpack.c.l.b16 %v130
  %v1084 = vunpack.c.h.b16 %v130
  %v1085 = vunpack.c.l.b16 %v131
  %v1086 = vunpack.c.h.b16 %v131
  %v1087 = vunpack.c.l.b16 %v132
  %v1088 = vunpack.c.h.b16 %v132
  %v1089 = vunpack.c.l.b16 %v133
  %v1090 = vunpack.c.h.b16 %v133
  %v1091 = vunpack.c.l.b16 %v134
  %v1092 = vunpack.c.h.b16 %v134
  %v1093 = vunpack.c.l.b16 %v135
  %v1094 = vunpack.c.h.b16 %v135
  %v1095 = vunpack.c.l.b16 %v136
  %v1096 = vunpack.c.h.b16 %v136
  %v1097 = vunpack.c.l.b16 %v137
  %v1098 = vunpack.c.h.b16 %v137
  %v1099 = vunpack.c.l.b16 %v138
  %v1100 = vunpack.c.h.b16 %v138
  %v1101 = vunpack.c.l.b16 %v139
  %v1102 = vunpack.c.h.b16 %v139
  %v1103 = vunpack.c.l.b16 %v140
  %v1104 = vunpack.c.h.b16 %v140
  %v1105 = vunpack.c.l.b16 %v141
  %v1106 = vunpack.c.h.b16 %v141
  %v1107 = vunpack.c.l.b16 %v142
  %v1108 = vunpack.c.h.b16 %v142
  %v1109 = vunpack.c.l.b16 %v143
  %v1110 = vunpack.c.h.b16 %v143
  %v1111 = vunpack.c.l.b16 %v144
  %v1112 = vunpack.c.h.b16 %v144
  %v1113 = vunpack.c.l.b16 %v145
  %v1114 = vunpack.c.h.b16 %v145
  %v1115 = vunpack.c.l.b16 %v146
  %v1116 = vunpack.c.h.b16 %v146
  %v1117 = vunpack.c.l.b16 %v147
  %v1118 = vunpack.c.h.b16 %v147
  %v1119 = vunpack.c.l.b16 %v148
  %v1120 = vunpack.c.h.b16 %v148
  %v1121 = vunpack.c.l.b16 %v149
  %v1122 = vunpack.c.h.b16 %v149
  %v1123 = vunpack.c.l.b16 %v150
  %v1124 = vunpack.c.h.b16 %v150
  %v1125 = vunpack.c.l.b16 %v151
  %v1126 = vunpack.c.h.b16 %v151
  %v1127 = vunpack.c.l.b16 %v152
  %v1128 = vunpack.c.h.b16 %v152
  %v1129 = vunpack.c.l.b16 %v153
  %v1130 = vunpack.c.h.b16 %v153
  %v1131 = vunpack.c.l.b16 %v154
  %v1132 = vunpack.c.h.b16 %v154
  %v1133 = vunpack.c.l.b16 %v155
  %v1134 = vunpack.c.h.b16 %v155
  %v1135 = vunpack.c.l.b16 %v156
  %v1136 = vunpack.c.h.b16 %v156
  %v1137 = vunpack.c.l.b16 %v157
  %v1138 = vunpack.c.h.b16 %v157
  %v1139 = vunpack.c.l.b16 %v158
  %v1140 = vunpack.c.h.b16 %v158
  %v1141 = vunpack.c.l.b16 %v159
  %v1142 = vunpack.c.h.b16 %v159
  %v1143 = vunpack.c.l.b16 %v160
  %v1144 = vunpack.c.h.b16 %v160
  %v1145 = vunpack.c.l.b16 %v161
  %v1146 = vunpack.c.h.b16 %v161
  %v1147 = vunpack.c.l.b16 %v162
  %v1148 = vunpack.c.h.b16 %v162
  %v1149 = vunpack.c.l.b16 %v163
  %v1150 = vunpack.c.h.b16 %v163
  %v1151 = vunpack.c.l.b16 %v164
  %v1152 = vunpack.c.h.b16 %v164
  %v1153 = vunpack.c.l.b16 %v165
  %v1154 = vunpack.c.h.b16 %v165
  %v1155 = vunpack.c.l.b16 %v166
  %v1156 = vunpack.c.h.b16 %v166
  %v1157 = vunpack.c.l.b16 %v167
  %v1158 = vunpack.c.h.b16 %v167
  %v1159 = vunpack.c.l.b16 %v168
  %v1160 = vunpack.c.h.b16 %v168
  %v1161 = vunpack.c.l.b16 %v169
  %v1162 = vunpack.c.h.b16 %v169
  %v1163 = vunpack.c.l.b16 %v170
  %v1164 = vunpack.c.h.b16 %v170
  %v1165 = vunpack.c.l.b16 %v171
  %v1166 = vunpack.c.h.b16 %v171
  %v1167 = vunpack.c.l.b16 %v172
  %v1168 = vunpack.c.h.b16 %v172
  %v1169 = vunpack.c.l.b16 %v173
  %v1170 = vunpack.c.h.b16 %v173
  %v1171 = vunpack.c.l.b16 %v174
  %v1172 = vunpack.c.h.b16 %v174
  %v1173 = vunpack.c.l.b16 %v175
  %v1174 = vunpack.c.h.b16 %v175
  %v1175 = vunpack.c.l.b16 %v176
  %v1176 = vunpack.c.h.b16 %v176
  %v1177 = vunpack.c.l.b16 %v177
  %v1178 = vunpack.c.h.b16 %v177
  %v1179 = vunpack.c.l.b16 %v178
  %v1180 = vunpack.c.h.b16 %v178
  %v1181 = vunpack.c.l.b16 %v179
  %v1182 = vunpack.c.h.b16 %v179
  %v1183 = vunpack.c.l.b16 %v180
  %v1184 = vunpack.c.h.b16 %v180
  %v1185 = vunpack.c.l.b16 %v181
  %v1186 = vunpack.c.h.b16 %v181
  %v1187 = vunpack.c.l.b16 %v182
  %v1188 = vunpack.c.h.b16 %v182
  %v1189 = vunpack.c.l.b16 %v183
  %v1190 = vunpack.c.h.b16 %v183
  %v1191 = vunpack.c.l.b16 %v184
  %v1192 = vunpack.c.h.b16 %v184
  %v1193 = vunpack.c.l.b16 %v185
  %v1194 = vunpack.c.h.b16 %v185
  %v1195 = vunpack.c.l.b16 %v186
  %v1196 = vunpack.c.h.b16 %v186
  %v1197 = vunpack.c.l.b16 %v187
  %v1198 = vunpack.c.h.b16 %v187
  %v1199 = vunpack.c.l.b16 %v188
  %v1200 = vunpack.c.h.b16 %v188
  %v1201 = vunpack.c.l.b16 %v189
  %v1202 = vunpack.c.h.b16 %v189
  %v1203 = vunpack.c.l.b16 %v190
  %v1204 = vunpack.c.h.b16 %v190
  %v1205 = vunpack.c.l.b16 %v191
  %v1206 = vunpack.c.h.b16 %v191
  %v1207 = vunpack.c.l.b16 %v192
  %v1208 = vunpack.c.h.b16 %v192
  %v1209 = vunpack.c.l.b16 %v193
  %v1210 = vunpack.c.h.b16 %v193
  %v1211 = vunpack.c.l.b16 %v194
  %v1212 = vunpack.c.h.b16 %v194
  %v1213 = vunpack.c.l.b16 %v195
  %v1214 = vunpack.c.h.b16 %v195
  %v1215 = vunpack.c.l.b16 %v196
  %v1216 = vunpack.c.h.b16 %v196
  %v1217 = vunpack.c.l.b16 %v197
  %v1218 = vunpack.c.h.b16 %v197
  %v1219 = vunpack.c.l.b16 %v198
  %v1220 = vunpack.c.h.b16 %v198
  %v1221 = vunpack.c.l.b16 %v199
  %v1222 = vunpack.c.h.b16 %v199
  %v1223 = vunpack.c.l.b16 %v200
  %v1224 = vunpack.c.h.b16 %v200
  %v1225 = vunpack.c.l.b16 %v201
  %v1226 = vunpack.c.h.b16 %v201
  %v1227 = vunpack.c.l.b16 %v202
  %v1228 = vunpack.c.h.b16 %v202
  %v1229 = vunpack.c.l.b16 %v203
  %v1230 = vunpack.c.h.b16 %v203
  %v1231 = vunpack.c.l.b16 %v204
  %v1232 = vunpack.c.h.b16 %v204
  %v1233 = vunpack.c.l.b16 %v205
  %v1234 = vunpack.c.h.b16 %v205
  %v1235 = vunpack.c.l.b16 %v206
  %v1236 = vunpack.c.h.b16 %v206
  %v1237 = vunpack.c.l.b16 %v207
  %v1238 = vunpack.c.h.b16 %v207
  %v1239 = vunpack.c.l.b16 %v208
  %v1240 = vunpack.c.h.b16 %v208
  %v1241 = vunpack.c.l.b16 %v209
  %v1242 = vunpack.c.h.b16 %v209
  %v1243 = vunpack.c.l.b16 %v210
  %v1244 = vunpack.c.h.b16 %v210
  %v1245 = vunpack.c.l.b16 %v211
  %v1246 = vunpack.c.h.b16 %v211
  %v1247 = vunpack.c.l.b16 %v212
  %v1248 = vunpack.c.h.b16 %v212
  %v1249 = vunpack.c.l.b16 %v213
  %v1250 = vunpack.c.h.b16 %v213
  %v1251 = vunpack.c.l.b16 %v214
  %v1252 = vunpack.c.h.b16 %v214
  %v1253 = vunpack.c.l.b16 %v215
  %v1254 = vunpack.c.h.b16 %v215
  %v1255 = vunpack.c.l.b16 %v216
  %v1256 = vunpack.c.h.b16 %v216
  %v1257 = vunpack.c.l.b16 %v217
  %v1258 = vunpack.c.h.b16 %v217
  %v1259 = vunpack.c.l.b16 %v218
  %v1260 = vunpack.c.h.b16 %v218
  %v1261 = vunpack.c.l.b16 %v219
  %v1262 = vunpack.c.h.b16 %v219
  %v1263 = vunpack.c.l.b16 %v220
  %v1264 = vunpack.c.h.b16 %v220
  %v1265 = vunpack.c.l.b16 %v221
  %v1266 = vunpack.c.h.b16 %v221
  %v1267 = vunpack.c.l.b16 %v222
  %v1268 = vunpack.c.h.b16 %v222
  %v1269 = vunpack.c.l.b16 %v223
  %v1270 = vunpack.c.h.b16 %v223
  %v1271 = vunpack.c.l.b16 %v224
  %v1272 = vunpack.c.h.b16 %v224
  %v1273 = vunpack.c.l.b16 %v225
  %v1274 = vunpack.c.h.b16 %v225
  %v1275 = vunpack.c.l.b16 %v226
  %v1276 = vunpack.c.h.b16 %v226
  %v1277 = vunpack.c.l.b16 %v227
  %v1278 = vunpack.c.h.b16 %v227
  %v1279 = vunpack.c.l.b16 %v228
  %v1280 = vunpack.c.h.b16 %v228
  %v1281 = vunpack.c.l.b16 %v229
  %v1282 = vunpack.c.h.b16 %v229
  %v1283 = vunpack.c.l.b16 %v230
  %v1284 = vunpack.c.h.b16 %v230
  %v1285 = vunpack.c.l.b16 %v231
  %v1286 = vunpack.c.h.b16 %v231
  %v1287 = vunpack.c.l.b16 %v232
  %v1288 = vunpack.c.h.b16 %v232
  %v1289 = vunpack.c.l.b16 %v233
  %v1290 = vunpack.c.h.b16 %v233
  %v1291 = vunpack.c.l.b16 %v234
  %v1292 = vunpack.c.h.b16 %v234
  %v1293 = vunpack.c.l.b16 %v235
  %v1294 = vunpack.c.h.b16 %v235
  %v1295 = vunpack.c.l.b16 %v236
  %v1296 = vunpack.c.h.b16 %v236
  %v1297 = vunpack.c.l.b16 %v237
  %v1298 = vunpack.c.h.b16 %v237
  %v1299 = vunpack.c.l.b16 %v238
  %v1300 = vunpack.c.h.b16 %v238
  %v1301 = vunpack.c.l.b16 %v239
  %v1302 = vunpack.c.h.b16 %v239
  %v1303 = vunpack.c.l.b16 %v240
  %v1304 = vunpack.c.h.b16 %v240
  %v1305 = vunpack.c.l.b16 %v241
  %v1306 = vunpack.c.h.b16 %v241
  %v1307 = vunpack.c.l.b16 %v242
  %v1308 = vunpack.c.h.b16 %v242
  %v1309 = vunpack.c.l.b16 %v243
  %v1310 = vunpack.c.h.b16 %v243
  %v1311 = vunpack.c.l.b16 %v244
  %v1312 = vunpack.c.h.b16 %v244
  %v1313 = vunpack.c.l.b16 %v245
  %v1314 = vunpack.c.h.b16 %v245
  %v1315 = vunpack.c.l.b16 %v246
  %v1316 = vunpack.c.h.b16 %v246
  %v1317 = vunpack.c.l.b16 %v247
  %v1318 = vunpack.c.h.b16 %v247
  %v1319 = vunpack.c.l.b16 %v248
  %v1320 = vunpack.c.h.b16 %v248
  %v1321 = vunpack.c.l.b16 %v249
  %v1322 = vunpack.c.h.b16 %v249
  %v1323 = vunpack.c.l.b16 %v250
  %v1324 = vunpack.c.h.b16 %v250
  %v1325 = vunpack.c.l.b16 %v251
  %v1326 = vunpack.c.h.b16 %v251
  %v1327 = vunpack.c.l.b16 %v252
  %v1328 = vunpack.c.h.b16 %v252
  %v1329 = vunpack.c.l.b16 %v253
  %v1330 = vunpack.c.h.b16 %v253
  %v1331 = vunpack.c.l.b16 %v254
  %v1332 = vunpack.c.h.b16 %v254
  %v1333 = vunpack.c.l.b16 %v255
  %v1334 = vunpack.c.h.b16 %v255
  %v1335 = vunpack.c.l.b16 %v256
  %v1336 = vunpack.c.h.b16 %v256
  %v1337 = vunpack.c.l.b16 %v257
  %v1338 = vunpack.c.h.b16 %v257
  %v1339 = vunpack.c.l.b16 %v258
  %v1340 = vunpack.c.h.b16 %v258
  %v1341 = vunpack.c.l.b16 %v259
  %v1342 = vunpack.c.h.b16 %v259
  %v1343 = vunpack.c.l.b16 %v260
  %v1344 = vunpack.c.h.b16 %v260
  %v1345 = vunpack.c.l.b16 %v261
  %v1346 = vunpack.c.h.b16 %v261
  %v1347 = vunpack.c.l.b16 %v262
  %v1348 = vunpack.c.h.b16 %v262
  %v1349 = vunpack.c.l.b16 %v263
  %v1350 = vunpack.c.h.b16 %v263
  %v1351 = vunpack.c.l.b16 %v264
  %v1352 = vunpack.c.h.b16 %v264
  %v1353 = vunpack.c.l.b16 %v265
  %v1354 = vunpack.c.h.b16 %v265
  %v1355 = vunpack.c.l.b16 %v266
  %v1356 = vunpack.c.h.b16 %v266
  %v1357 = vunpack.c.l.b16 %v267
  %v1358 = vunpack.c.h.b16 %v267
  %v1359 = vunpack.c.l.b16 %v268
  %v1360 = vunpack.c.h.b16 %v268
  %v1361 = vunpack.c.l.b16 %v269
  %v1362 = vunpack.c.h.b16 %v269
  %v1363 = vunpack.c.l.b16 %v270
  %v1364 = vunpack.c.h.b16 %v270
  %v1365 = vunpack.c.l.b16 %v271
  %v1366 = vunpack.c.h.b16 %v271
  %v1367 = vunpack.c.l.b16 %v272
  %v1368 = vunpack.c.h.b16 %v272
  %v1369 = vunpack.c.l.b16 %v273
  %v1370 = vunpack.c.h.b16 %v273
  %v1371 = vunpack.c.l.b16 %v274
  %v1372 = vunpack.c.h.b16 %v274
  %v1373 = vunpack.c.l.b16 %v275
  %v1374 = vunpack.c.h.b16 %v275
  %v1375 = vunpack.c.l.b16 %v276
  %v1376 = vunpack.c.h.b16 %v276
  %v1377 = vunpack.c.l.b16 %v277
  %v1378 = vunpack.c.h.b16 %v277
  %v1379 = vunpack.c.l.b16 %v278
  %v1380 = vunpack.c.h.b16 %v278
  %v1381 = vunpack.c.l.b16 %v279
  %v1382 = vunpack.c.h.b16 %v279
  %v1383 = vunpack.c.l.b16 %v280
  %v1384 = vunpack.c.h.b16 %v280
  %v1385 = vunpack.c.l.b16 %v281
  %v1386 = vunpack.c.h.b16 %v281
  %v1387 = vunpack.c.l.b16 %v282
  %v1388 = vunpack.c.h.b16 %v282
  %v1389 = vunpack.c.l.b16 %v283
  %v1390 = vunpack.c.h.b16 %v283
  %v1391 = vunpack.c.l.b16 %v284
  %v1392 = vunpack.c.h.b16 %v284
  %v1393 = vunpack.c.l.b16 %v285
  %v1394 = vunpack.c.h.b16 %v285
  %v1395 = vunpack.c.l.b16 %v286
  %v1396 = vunpack.c.h.b16 %v286
  %v1397 = vunpack.c.l.b16 %v287
  %v1398 = vunpack.c.h.b16 %v287
  %v1399 = vunpack.c.l.b16 %v288
  %v1400 = vunpack.c.h.b16 %v288
  %v1401 = vunpack.c.l.b16 %v289
  %v1402 = vunpack.c.h.b16 %v289
  %v1403 = vunpack.c.l.b16 %v290
  %v1404 = vunpack.c.h.b16 %v290
  %v1405 = vunpack.c.l.b16 %v291
  %v1406 = vunpack.c.h.b16 %v291
  %v1407 = vunpack.c.l.b16 %v292
  %v1408 = vunpack.c.h.b16 %v292
  %v1409 = vunpack.c.l.b16 %v293
  %v1410 = vunpack.c.h.b16 %v293
  %v1411 = vunpack.c.l.b16 %v294
  %v1412 = vunpack.c.h.b16 %v294
  %v1413 = vunpack.c.l.b16 %v295
  %v1414 = vunpack.c.h.b16 %v295
  %v1415 = vunpack.c.l.b16 %v296
  %v1416 = vunpack.c.h.b16 %v296
  %v1417 = vunpack.c.l.b16 %v297
  %v1418 = vunpack.c.h.b16 %v297
  %v1419 = vunpack.c.l.b16 %v298
  %v1420 = vunpack.c.h.b16 %v298
  %v1421 = vunpack.c.l.b16 %v299
  %v1422 = vunpack.c.h.b16 %v299
  %v1423 = vunpack.c.l.b16 %v300
  %v1424 = vunpack.c.h.b16 %v300
  %v1425 = vunpack.c.l.b16 %v301
  %v1426 = vunpack.c.h.b16 %v301
  %v1427 = vunpack.c.l.b16 %v302
  %v1428 = vunpack.c.h.b16 %v302
  %v1429 = vunpack.c.l.b16 %v303
  %v1430 = vunpack.c.h.b16 %v303
  %v1431 = vunpack.c.l.b16 %v304
  %v1432 = vunpack.c.h.b16 %v304
  %v1433 = vunpack.c.l.b16 %v305
  %v1434 = vunpack.c.h.b16 %v305
  %v1435 = vunpack.c.l.b16 %v306
  %v1436 = vunpack.c.h.b16 %v306
  %v1437 = vunpack.c.l.b16 %v307
  %v1438 = vunpack.c.h.b16 %v307
  %v1439 = vunpack.c.l.b16 %v308
  %v1440 = vunpack.c.h.b16 %v308
  %v1441 = vunpack.c.l.b16 %v309
  %v1442 = vunpack.c.h.b16 %v309
  %v1443 = vunpack.c.l.b16 %v310
  %v1444 = vunpack.c.h.b16 %v310
  %v1445 = vunpack.c.l.b16 %v311
  %v1446 = vunpack.c.h.b16 %v311
  %v1447 = vunpack.c.l.b16 %v312
  %v1448 = vunpack.c.h.b16 %v312
  %v1449 = vunpack.c.l.b16 %v313
  %v1450 = vunpack.c.h.b16 %v313
  %v1451 = vunpack.c.l.b16 %v314
  %v1452 = vunpack.c.h.b16 %v314
  %v1453 = vunpack.c.l.b16 %v315
  %v1454 = vunpack.c.h.b16 %v315
  %v1455 = vunpack.c.l.b16 %v316
  %v1456 = vunpack.c.h.b16 %v316
  %v1457 = vunpack.c.l.b16 %v317
  %v1458 = vunpack.c.h.b16 %v317
  %v1459 = vunpack.c.l.b16 %v318
  %v1460 = vunpack.c.h.b16 %v318
  %v1461 = vunpack.c.l.b16 %v319
  %v1462 = vunpack.c.h.b16 %v319
  %v1463 = vunpack.c.l.b16 %v320
  %v1464 = vunpack.c.h.b16 %v320
  %v1465 = vunpack.c.l.b16 %v321
  %v1466 = vunpack.c.h.b16 %v321
  %v1467 = vunpack.c.l.b16 %v322
  %v1468 = vunpack.c.h.b16 %v322
  %v1469 = vunpack.c.l.b16 %v323
  %v1470 = vunpack.c.h.b16 %v323
  %v1471 = vunpack.c.l.b16 %v324
  %v1472 = vunpack.c.h.b16 %v324
  %v1473 = vunpack.c.l.b16 %v325
  %v1474 = vunpack.c.h.b16 %v325
  %v1475 = vunpack.c.l.b16 %v326
  %v1476 = vunpack.c.h.b16 %v326
  %v1477 = vunpack.c.l.b16 %v327
  %v1478 = vunpack.c.h.b16 %v327
  %v1479 = vunpack.c.l.b16 %v328
  %v1480 = vunpack.c.h.b16 %v328
  %v1481 = vunpack.c.l.b16 %v329
  %v1482 = vunpack.c.h.b16 %v329
  %v1483 = vunpack.c.l.b16 %v330
  %v1484 = vunpack.c.h.b16 %v330
  %v1485 = vunpack.c.l.b16 %v331
  %v1486 = vunpack.c.h.b16 %v331
  %v1487 = vunpack.c.l.b16 %v332
  %v1488 = vunpack.c.h.b16 %v332
  %v1489 = vunpack.c.l.b16 %v333
  %v1490 = vunpack.c.h.b16 %v333
  %v1491 = vunpack.c.l.b16 %v334
  %v1492 = vunpack.c.h.b16 %v334
  %v1493 = vunpack.c.l.b16 %v335
  %v1494 = vunpack.c.h.b16 %v335
  %v1495 = vunpack.c.l.b16 %v336
  %v1496 = vunpack.c.h.b16 %v336
  %v1497 = vunpack.c.l.b16 %v337
  %v1498 = vunpack.c.h.b16 %v337
  %v1499 = vunpack.c.l.b16 %v338
  %v1500 = vunpack.c.h.b16 %v338
  %v1501 = vunpack.c.l.b16 %v339
  %v1502 = vunpack.c.h.b16 %v339
  %v1503 = vunpack.c.l.b16 %v340
  %v1504 = vunpack.c.h.b16 %v340
  %v1505 = vunpack.c.l.b16 %v341
  %v1506 = vunpack.c.h.b16 %v341
  %v1507 = vunpack.c.l.b16 %v342
  %v1508 = vunpack.c.h.b16 %v342
  %v1509 = vunpack.c.l.b16 %v343
  %v1510 = vunpack.c.h.b16 %v343
  %v1511 = vunpack.c.l.b16 %v344
  %v1512 = vunpack.c.h.b16 %v344
  %v1513 = vunpack.c.l.b16 %v345
  %v1514 = vunpack.c.h.b16 %v345
  %v1515 = vunpack.c.l.b16 %v346
  %v1516 = vunpack.c.h.b16 %v346
  %v1517 = vunpack.c.l.b16 %v347
  %v1518 = vunpack.c.h.b16 %v347
  %v1519 = vunpack.c.l.b16 %v348
  %v1520 = vunpack.c.h.b16 %v348
  %v1521 = vunpack.c.l.b16 %v349
  %v1522 = vunpack.c.h.b16 %v349
  %v1523 = vunpack.c.l.b16 %v350
  %v1524 = vunpack.c.h.b16 %v350
  %v1525 = vunpack.c.l.b16 %v351
  %v1526 = vunpack.c.h.b16 %v351
  %v1527 = vunpack.c.l.b16 %v352
  %v1528 = vunpack.c.h.b16 %v352
  %v1529 = vunpack.c.l.b16 %v353
  %v1530 = vunpack.c.h.b16 %v353
  %v1531 = vunpack.c.l.b16 %v354
  %v1532 = vunpack.c.h.b16 %v354
  %v1533 = vunpack.c.l.b16 %v355
  %v1534 = vunpack.c.h.b16 %v355
  %v1535 = vunpack.c.l.b16 %v356
  %v1536 = vunpack.c.h.b16 %v356
  %v1537 = vunpack.c.l.b16 %v357
  %v1538 = vunpack.c.h.b16 %v357
  %v1539 = vunpack.c.l.b16 %v358
  %v1540 = vunpack.c.h.b16 %v358
  %v1541 = vunpack.c.l.b16 %v359
  %v1542 = vunpack.c.h.b16 %v359
  %v1543 = vunpack.c.l.b16 %v360
  %v1544 = vunpack.c.h.b16 %v360
  %v1545 = vunpack.c.l.b16 %v361
  %v1546 = vunpack.c.h.b16 %v361
  %v1547 = vunpack.c.l.b16 %v362
  %v1548 = vunpack.c.h.b16 %v362
  %v1549 = vunpack.c.l.b16 %v363
  %v1550 = vunpack.c.h.b16 %v363
  %v1551 = vunpack.c.l.b16 %v364
  %v1552 = vunpack.c.h.b16 %v364
  %v1553 = vunpack.c.l.b16 %v365
  %v1554 = vunpack.c.h.b16 %v365
  %v1555 = vunpack.c.l.b16 %v366
  %v1556 = vunpack.c.h.b16 %v366
  %v1557 = vunpack.c.l.b16 %v367
  %v1558 = vunpack.c.h.b16 %v367
  %v1559 = vunpack.c.l.b16 %v368
  %v1560 = vunpack.c.h.b16 %v368
  %v1561 = vunpack.c.l.b16 %v369
  %v1562 = vunpack.c.h.b16 %v369
  %v1563 = vunpack.c.l.b16 %v370
  %v1564 = vunpack.c.h.b16 %v370
  %v1565 = vunpack.c.l.b16 %v371
  %v1566 = vunpack.c.h.b16 %v371
  %v1567 = vunpack.c.l.b16 %v372
  %v1568 = vunpack.c.h.b16 %v372
  %v1569 = vunpack.c.l.b16 %v373
  %v1570 = vunpack.c.h.b16 %v373
  %v1571 = vunpack.c.l.b16 %v374
  %v1572 = vunpack.c.h.b16 %v374
  %v1573 = vunpack.c.l.b16 %v375
  %v1574 = vunpack.c.h.b16 %v375
  %v1575 = vunpack.c.l.b16 %v376
  %v1576 = vunpack.c.h.b16 %v376
  %v1577 = vunpack.c.l.b16 %v377
  %v1578 = vunpack.c.h.b16 %v377
  %v1579 = vunpack.c.l.b16 %v378
  %v1580 = vunpack.c.h.b16 %v378
  %v1581 = vunpack.c.l.b16 %v379
  %v1582 = vunpack.c.h.b16 %v379
  %v1583 = vunpack.c.l.b16 %v380
  %v1584 = vunpack.c.h.b16 %v380
  %v1585 = vunpack.c.l.b16 %v381
  %v1586 = vunpack.c.h.b16 %v381
  %v1587 = vunpack.c.l.b16 %v382
  %v1588 = vunpack.c.h.b16 %v382
  %v1589 = vunpack.c.l.b16 %v383
  %v1590 = vunpack.c.h.b16 %v383
  %v1591 = vunpack.c.l.b16 %v384
  %v1592 = vunpack.c.h.b16 %v384
  %v1593 = vunpack.c.l.b16 %v385
  %v1594 = vunpack.c.h.b16 %v385
  %v1595 = vunpack.c.l.b16 %v386
  %v1596 = vunpack.c.h.b16 %v386
  %v1597 = vunpack.c.l.b16 %v387
  %v1598 = vunpack.c.h.b16 %v387
  %v1599 = vunpack.c.l.b16 %v388
  %v1600 = vunpack.c.h.b16 %v388
  %v1601 = vunpack.c.l.b16 %v389
  %v1602 = vunpack.c.h.b16 %v389
  %v1603 = vunpack.c.l.b16 %v390
  %v1604 = vunpack.c.h.b16 %v390
  %v1605 = vunpack.c.l.b16 %v391
  %v1606 = vunpack.c.h.b16 %v391
  %v1607 = vunpack.c.l.b16 %v392
  %v1608 = vunpack.c.h.b16 %v392
  %v1609 = vunpack.c.l.b16 %v393
  %v1610 = vunpack.c.h.b16 %v393
  %v1611 = vunpack.c.l.b16 %v394
  %v1612 = vunpack.c.h.b16 %v394
  %v1613 = vunpack.c.l.b16 %v395
  %v1614 = vunpack.c.h.b16 %v395
  %v1615 = vunpack.c.l.b16 %v396
  %v1616 = vunpack.c.h.b16 %v396
  %v1617 = vunpack.c.l.b16 %v397
  %v1618 = vunpack.c.h.b16 %v397
  %v1619 = vunpack.c.l.b16 %v398
  %v1620 = vunpack.c.h.b16 %v398
  %v1621 = vunpack.c.l.b16 %v399
  %v1622 = vunpack.c.h.b16 %v399
  %v1623 = vunpack.c.l.b16 %v400
  %v1624 = vunpack.c.h.b16 %v400
  %v1625 = vunpack.c.l.b16 %v401
  %v1626 = vunpack.c.h.b16 %v401
  %v1627 = vunpack.c.l.b16 %v402
  %v1628 = vunpack.c.h.b16 %v402
  %v1629 = vunpack.c.l.b16 %v403
  %v1630 = vunpack.c.h.b16 %v403
  %v1631 = vunpack.c.l.b16 %v404
  %v1632 = vunpack.c.h.b16 %v404
  %v1633 = vunpack.c.l.b16 %v405
  %v1634 = vunpack.c.h.b16 %v405
  %v1635 = vunpack.c.l.b16 %v406
  %v1636 = vunpack.c.h.b16 %v406
  %v1637 = vunpack.c.l.b16 %v407
  %v1638 = vunpack.c.h.b16 %v407
  %v1639 = vunpack.c.l.b16 %v408
  %v1640 = vunpack.c.h.b16 %v408
  %v1641 = vunpack.c.l.b16 %v409
  %v1642 = vunpack.c.h.b16 %v409
  %v1643 = vunpack.c.l.b16 %v410
  %v1644 = vunpack.c.h.b16 %v410
  %v1645 = vunpack.c.l.b16 %v411
  %v1646 = vunpack.c.h.b16 %v411
  %v1647 = vunpack.c.l.b16 %v412
  %v1648 = vunpack.c.h.b16 %v412
  %v1649 = vunpack.c.l.b16 %v413
  %v1650 = vunpack.c.h.b16 %v413
  %v1651 = vunpack.c.l.b16 %v414
  %v1652 = vunpack.c.h.b16 %v414
  %v1653 = vunpack.c.l.b16 %v415
  %v1654 = vunpack.c.h.b16 %v415
  %v1655 = vunpack.c.l.b16 %v416
  %v1656 = vunpack.c.h.b16 %v416
  %v1657 = vunpack.c.l.b16 %v417
  %v1658 = vunpack.c.h.b16 %v417
  %v1659 = vunpack.c.l.b16 %v418
  %v1660 = vunpack.c.h.b16 %v418
  %v1661 = vunpack.c.l.b16 %v419
  %v1662 = vunpack.c.h.b16 %v419
  %v1663 = vunpack.c.l.b16 %v420
  %v1664 = vunpack.c.h.b16 %v420
  %v1665 = vunpack.c.l.b16 %v421
  %v1666 = vunpack.c.h.b16 %v421
  %v1667 = vunpack.c.l.b16 %v422
  %v1668 = vunpack.c.h.b16 %v422
  %v1669 = vunpack.c.l.b16 %v423
  %v1670 = vunpack.c.h.b16 %v423
  %v1671 = vunpack.c.l.b16 %v424
  %v1672 = vunpack.c.h.b16 %v424
  %v1673 = vunpack.c.l.b16 %v425
  %v1674 = vunpack.c.h.b16 %v425
  %v1675 = vunpack.c.l.b16 %v426
  %v1676 = vunpack.c.h.b16 %v426
  %v1677 = vunpack.c.l.b16 %v427
  %v1678 = vunpack.c.h.b16 %v427
  %v1679 = vunpack.c.l.b16 %v428
  %v1680 = vunpack.c.h.b16 %v428
  %v1681 = vunpack.c.l.b16 %v429
  %v1682 = vunpack.c.h.b16 %v429
  %v1683 = vunpack.c.l.b16 %v430
  %v1684 = vunpack.c.h.b16 %v430
  %v1685 = vunpack.c.l.b16 %v431
  %v1686 = vunpack.c.h.b16 %v431
  %v1687 = vunpack.c.l.b16 %v432
  %v1688 = vunpack.c.h.b16 %v432
  %v1689 = vunpack.c.l.b16 %v433
  %v1690 = vunpack.c.h.b16 %v433
  %v1691 = vunpack.c.l.b16 %v434
  %v1692 = vunpack.c.h.b16 %v434
  %v1693 = vunpack.c.l.b16 %v435
  %v1694 = vunpack.c.h.b16 %v435
  %v1695 = vunpack.c.l.b16 %v436
  %v1696 = vunpack.c.h.b16 %v436
  %v1697 = vunpack.c.l.b16 %v437
  %v1698 = vunpack.c.h.b16 %v437
  %v1699 = vunpack.c.l.b16 %v438
  %v1700 = vunpack.c.h.b16 %v438
  %v1701 = vunpack.c.l.b16 %v439
  %v1702 = vunpack.c.h.b16 %v439
  %v1703 = vunpack.c.l.b16 %v440
  %v1704 = vunpack.c.h.b16 %v440
  %v1705 = vunpack.c.l.b16 %v441
  %v1706 = vunpack.c.h.b16 %v441
  %v1707 = vunpack.c.l.b16 %v442
  %v1708 = vunpack.c.h.b16 %v442
  %v1709 = vunpack.c.l.b16 %v443
  %v1710 = vunpack.c.h.b16 %v443
  %v1711 = vunpack.c.l.b16 %v444
  %v1712 = vunpack.c.h.b16 %v444
  %v1713 = vunpack.c.l.b16 %v445
  %v1714 = vunpack.c.h.b16 %v445
  %v1715 = vunpack.c.l.b16 %v446
  %v1716 = vunpack.c.h.b16 %v446
  %v1717 = vunpack.c.l.b16 %v447
  %v1718 = vunpack.c.h.b16 %v447
  %v1719 = vunpack.c.l.b16 %v448
  %v1720 = vunpack.c.h.b16 %v448
  %v1721 = vunpack.c.l.b16 %v449
  %v1722 = vunpack.c.h.b16 %v449
  %v1723 = vunpack.c.l.b16 %v450
  %v1724 = vunpack.c.h.b16 %v450
  %v1725 = vunpack.c.l.b16 %v451
  %v1726 = vunpack.c.h.b16 %v451
  %v1727 = vpack.c.b16 %v945, %v943
  %v1728 = vpack.c.b16 %v946, %v944
  %v1729 = vpack.c.b16 %v949, %v947
  %v1730 = vpack.c.b16 %v950, %v948
  %v1731 = vpack.c.b16 %v953, %v951
  %v1732 = vpack.c.b16 %v954, %v952
  %v1733 = vpack.c.b16 %v957, %v955
  %v1734 = vpack.c.b16 %v958, %v956
  %v1735 = vpack.c.b16 %v961, %v959
  %v1736 = vpack.c.b16 %v962, %v960
  %v1737 = vpack.c.b16 %v965, %v963
  %v1738 = vpack.c.b16 %v966, %v964
  %v1739 = vpack.c.b16 %v969, %v967
  %v1740 = vpack.c.b16 %v970, %v968
  %v1741 = vpack.c.b16 %v973, %v971
  %v1742 = vpack.c.b16 %v974, %v972
  %v1743 = vpack.c.b16 %v977, %v975
  %v1744 = vpack.c.b16 %v978, %v976
  %v1745 = vpack.c.b16 %v981, %v979
  %v1746 = vpack.c.b16 %v982, %v980
  %v1747 = vpack.c.b16 %v985, %v983
  %v1748 = vpack.c.b16 %v986, %v984
  %v1749 = vpack.c.b16 %v989, %v987
  %v1750 = vpack.c.b16 %v990, %v988
  %v1751 = vpack.c.b16 %v993, %v991
  %v1752 = vpack.c.b16 %v994, %v992
  %v1753 = vpack.c.b16 %v997, %v995
  %v1754 = vpack.c.b16 %v998, %v996
  %v1755 = vpack.c.b16 %v1001, %v999
  %v1756 = vpack.c.b16 %v1002, %v1000
  %v1757 = vpack.c.b16 %v1005, %v1003
  %v1758 = vpack.c.b16 %v1006, %v1004
  %v1759 = vpack.c.b16 %v1009, %v1007
  %v1760 = vpack.c.b16 %v1010, %v1008
  %v1761 = vpack.c.b16 %v1013, %v1011
  %v1762 = vpack.c.b16 %v1014, %v1012
  %v1763 = vpack.c.b16 %v1017, %v1015
  %v1764 = vpack.c.b16 %v1018, %v1016
  %v1765 = vpack.c.b16 %v1021, %v1019
  %v1766 = vpack.c.b16 %v1022, %v1020
  %v1767 = vpack.c.b16 %v1025, %v1023
  %v1768 = vpack.c.b16 %v1026, %v1024
  %v1769 = vpack.c.b16 %v1029, %v1027
  %v1770 = vpack.c.b16 %v1030, %v1028
  %v1771 = vpack.c.b16 %v1033, %v1031
  %v1772 = vpack.c.b16 %v1034, %v1032
  %v1773 = vpack.c.b16 %v1037, %v1035
  %v1774 = vpack.c.b16 %v1038, %v1036
  %v1775 = vpack.c.b16 %v1041, %v1039
  %v1776 = vpack.c.b16 %v1042, %v1040
  %v1777 = vpack.c.b16 %v1045, %v1043
  %v1778 = vpack.c.b16 %v1046, %v1044
  %v1779 = vpack.c.b16 %v1049, %v1047
  %v1780 = vpack.c.b16 %v1050, %v1048
  %v1781 = vpack.c.b16 %v1053, %v1051
  %v1782 = vpack.c.b16 %v1054, %v1052
  %v1783 = vpack.c.b16 %v1057, %v1055
  %v1784 = vpack.c.b16 %v1058, %v1056
  %v1785 = vpack.c.b16 %v1061, %v1059
  %v1786 = vpack.c.b16 %v1062, %v1060
  %v1787 = vpack.c.b16 %v1065, %v1063
  %v1788 = vpack.c.b16 %v1066, %v1064
  %v1789 = vpack.c.b16 %v1069, %v1067
  %v1790 = vpack.c.b16 %v1070, %v1068
  %v1791 = vpack.c.b16 %v1073, %v1071
  %v1792 = vpack.c.b16 %v1074, %v1072
  %v1793 = vpack.c.b16 %v1077, %v1075
  %v1794 = vpack.c.b16 %v1078, %v1076
  %v1795 = vpack.c.b16 %v1081, %v1079
  %v1796 = vpack.c.b16 %v1082, %v1080
  %v1797 = vpack.c.b16 %v1085, %v1083
  %v1798 = vpack.c.b16 %v1086, %v1084
  %v1799 = vpack.c.b16 %v1089, %v1087
  %v1800 = vpack.c.b16 %v1090, %v1088
  %v1801 = vpack.c.b16 %v1093, %v1091
  %v1802 = vpack.c.b16 %v1094, %v1092
  %v1803 = vpack.c.b16 %v1097, %v1095
  %v1804 = vpack.c.b16 %v1098, %v1096
  %v1805 = vpack.c.b16 %v1101, %v1099
  %v1806 = vpack.c.b16 %v1102, %v1100
  %v1807 = vpack.c.b16 %v1105, %v1103
  %v1808 = vpack.c.b16 %v1106, %v1104
  %v1809 = vpack.c.b16 %v1109, %v1107
  %v1810 = vpack.c.b16 %v1110, %v1108
  %v1811 = vpack.c.b16 %v1113, %v1111
  %v1812 = vpack.c.b16 %v1114, %v1112
  %v1813 = vpack.c.b16 %v1117, %v1115
  %v1814 = vpack.c.b16 %v1118, %v1116
  %v1815 = vpack.c.b16 %v1121, %v1119
  %v1816 = vpack.c.b16 %v1122, %v1120
  %v1817 = vpack.c.b16 %v1125, %v1123
  %v1818 = vpack.c.b16 %v1126, %v1124
  %v1819 = vpack.c.b16 %v1129, %v1127
  %v1820 = vpack.c.b16 %v1130, %v1128
  %v1821 = vpack.c.b16 %v1133, %v1131
  %v1822 = vpack.c.b16 %v1134, %v1132
  %v1823 = vpack.c.b16 %v1137, %v1135
  %v1824 = vpack.c.b16 %v1138, %v1136
  %v1825 = vpack.c.b16 %v1141, %v1139
  %v1826 = vpack.c.b16 %v1142, %v1140
  %v1827 = vpack.c.b16 %v1145, %v1143
  %v1828 = vpack.c.b16 %v1146, %v1144
  %v1829 = vpack.c.b16 %v1149, %v1147
  %v1830 = vpack.c.b16 %v1150, %v1148
  %v1831 = vpack.c.b16 %v1153, %v1151
  %v1832 = vpack.c.b16 %v1154, %v1152
  %v1833 = vpack.c.b16 %v1157, %v1155
  %v1834 = vpack.c.b16 %v1158, %v1156
  %v1835 = vpack.c.b16 %v1161, %v1159
  %v1836 = vpack.c.b16 %v1162, %v1160
  %v1837 = vpack.c.b16 %v1165, %v1163
  %v1838 = vpack.c.b16 %v1166, %v1164
  %v1839 = vpack.c.b16 %v1169, %v1167
  %v1840 = vpack.c.b16 %v1170, %v1168
  %v1841 = vpack.c.b16 %v1173, %v1171
  %v1842 = vpack.c.b16 %v1174, %v1172
  %v1843 = vpack.c.b16 %v1177, %v1175
  %v1844 = vpack.c.b16 %v1178, %v1176
  %v1845 = vpack.c.b16 %v1181, %v1179
  %v1846 = vpack.c.b16 %v1182, %v1180
  %v1847 = vpack.c.b16 %v1185, %v1183
  %v1848 = vpack.c.b16 %v1186, %v1184
  %v1849 = vpack.c.b16 %v1189, %v1187
  %v1850 = vpack.c.b16 %v1190, %v1188
  %v1851 = vpack.c.b16 %v1193, %v1191
  %v1852 = vpack.c.b16 %v1194, %v1192
  %v1853 = vpack.c.b16 %v1197, %v1195
  %v1854 = vpack.c.b16 %v1198, %v1196
  %v1855 = vpack.c.b16 %v1201, %v1199
  %v1856 = vpack.c.b16 %v1202, %v1200
  %v1857 = vpack.c.b16 %v1205, %v1203
  %v1858 = vpack.c.b16 %v1206, %v1204
  %v1859 = vpack.c.b16 %v1209, %v1207
  %v1860 = vpack.c.b16 %v1210, %v1208
  %v1861 = vpack.c.b16 %v1213, %v1211
  %v1862 = vpack.c.b16 %v1214, %v1212
  %v1863 = vpack.c.b16 %v1217, %v1215
  %v1864 = vpack.c.b16 %v1218, %v1216
  %v1865 = vpack.c.b16 %v1221, %v1219
  %v1866 = vpack.c.b16 %v1222, %v1220
  %v1867 = vpack.c.b16 %v1225, %v1223
  %v1868 = vpack.c.b16 %v1226, %v1224
  %v1869 = vpack.c.b16 %v1229, %v1227
  %v1870 = vpack.c.b16 %v1230, %v1228
  %v1871 = vpack.c.b16 %v1233, %v1231
  %v1872 = vpack.c.b16 %v1234, %v1232
  %v1873 = vpack.c.b16 %v1237, %v1235
  %v1874 = vpack.c.b16 %v1238, %v1236
  %v1875 = vpack.c.b16 %v1241, %v1239
  %v1876 = vpack.c.b16 %v1242, %v1240
  %v1877 = vpack.c.b16 %v1245, %v1243
  %v1878 = vpack.c.b16 %v1246, %v1244
  %v1879 = vpack.c.b16 %v1249, %v1247
  %v1880 = vpack.c.b16 %v1250, %v1248
  %v1881 = vpack.c.b16 %v1253, %v1251
  %v1882 = vpack.c.b16 %v1254, %v1252
  %v1883 = vpack.c.b16 %v1257, %v1255
  %v1884 = vpack.c.b16 %v1258, %v1256
  %v1885 = vpack.c.b16 %v1261, %v1259
  %v1886 = vpack.c.b16 %v1262, %v1260
  %v1887 = vpack.c.b16 %v1265, %v1263
  %v1888 = vpack.c.b16 %v1266, %v1264
  %v1889 = vpack.c.b16 %v1269, %v1267
  %v1890 = vpack.c.b16 %v1270, %v1268
  %v1891 = vpack.c.b16 %v1273, %v1271
  %v1892 = vpack.c.b16 %v1274, %v1272
  %v1893 = vpack.c.b16 %v1277, %v1275
  %v1894 = vpack.c.b16 %v1278, %v1276
  %v1895 = vpack.c.b16 %v1281, %v1279
  %v1896 = vpack.c.b16 %v1282, %v1280
  %v1897 = vpack.c.b16 %v1285, %v1283
  %v1898 = vpack.c.b16 %v1286, %v1284
  %v1899 = vpack.c.b16 %v1289, %v1287
  %v1900 = vpack.c.b16 %v1290, %v1288
  %v1901 = vpack.c.b16 %v1293, %v1291
  %v1902 = vpack.c.b16 %v1294, %v1292
  %v1903 = vpack.c.b16 %v1297, %v1295
  %v1904 = vpack.c.b16 %v1298, %v1296
  %v1905 = vpack.c.b16 %v1301, %v1299
  %v1906 = vpack.c.b16 %v1302, %v1300
  %v1907 = vpack.c.b16 %v1305, %v1303
  %v1908 = vpack.c.b16 %v1306, %v1304
  %v1909 = vpack.c.b16 %v1309, %v1307
  %v1910 = vpack.c.b16 %v1310, %v1308
  %v1911 = vpack.c.b16 %v1313, %v1311
  %v1912 = vpack.c.b16 %v1314, %v1312
  %v1913 = vpack.c.b16 %v1317, %v1315
  %v1914 = vpack.c.b16 %v1318, %v1316
  %v1915 = vpack.c.b16 %v1321, %v1319
  %v1916 = vpack.c.b16 %v1322, %v1320
  %v1917 = vpack.c.b16 %v1325, %v1323
  %v1918 = vpack.c.b16 %v1326, %v1324
  %v1919 = vpack.c.b16 %v1329, %v1327
  %v1920 = vpack.c.b16 %v1330, %v1328
  %v1921 = vpack.c.b16 %v1333, %v1331
  %v1922 = vpack.c.b16 %v1334, %v1332
  %v1923 = vpack.c.b16 %v1337, %v1335
  %v1924 = vpack.c.b16 %v1338, %v1336
  %v1925 = vpack.c.b16 %v1341, %v1339
  %v1926 = vpack.c.b16 %v1342, %v1340
  %v1927 = vpack.c.b16 %v1345, %v1343
  %v1928 = vpack.c.b16 %v1346, %v1344
  %v1929 = vpack.c.b16 %v1349, %v1347
  %v1930 = vpack.c.b16 %v1350, %v1348
  %v1931 = vpack.c.b16 %v1353, %v1351
  %v1932 = vpack.c.b16 %v1354, %v1352
  %v1933 = vpack.c.b16 %v1357, %v1355
  %v1934 = vpack.c.b16 %v1358, %v1356
  %v1935 = vpack.c.b16 %v1361, %v1359
  %v1936 = vpack.c.b16 %v1362, %v1360
  %v1937 = vpack.c.b16 %v1365, %v1363
  %v1938 = vpack.c.b16 %v1366, %v1364
  %v1939 = vpack.c.b16 %v1369, %v1367
  %v1940 = vpack.c.b16 %v1370, %v1368
  %v1941 = vpack.c.b16 %v1373, %v1371
  %v1942 = vpack.c.b16 %v1374, %v1372
  %v1943 = vpack.c.b16 %v1377, %v1375
  %v1944 = vpack.c.b16 %v1378, %v1376
  %v1945 = vpack.c.b16 %v1381, %v1379
  %v1946 = vpack.c.b16 %v1382, %v1380
  %v1947 = vpack.c.b16 %v1385, %v1383
  %v1948 = vpack.c.b16 %v1386, %v1384
  %v1949 = vpack.c.b16 %v1389, %v1387
  %v1950 = vpack.c.b16 %v1390, %v1388
  %v1951 = vpack.c.b16 %v1393, %v1391
  %v1952 = vpack.c.b16 %v1394, %v1392
  %v1953 = vpack.c.b16 %v1397, %v1395
  %v1954 = vpack.c.b16 %v1398, %v1396
  %v1955 = vpack.c.b16 %v1401, %v1399
  %v1956 = vpack.c.b16 %v1402, %v1400
  %v1957 = vpack.c.b16 %v1405, %v1403
  %v1958 = vpack.c.b16 %v1406, %v1404
  %v1959 = vpack.c.b16 %v1409, %v1407
  %v1960 = vpack.c.b16 %v1410, %v1408
  %v1961 = vpack.c.b16 %v1413, %v1411
  %v1962 = vpack.c.b16 %v1414, %v1412
  %v1963 = vpack.c.b16 %v1417, %v1415
  %v1964 = vpack.c.b16 %v1418, %v1416
  %v1965 = vpack.c.b16 %v1421, %v1419
  %v1966 = vpack.c.b16 %v1422, %v1420
  %v1967 = vpack.c.b16 %v1425, %v1423
  %v1968 = vpack.c.b16 %v1426, %v1424
  %v1969 = vpack.c.b16 %v1429, %v1427
  %v1970 = vpack.c.b16 %v1430, %v1428
  %v1971 = vpack.c.b16 %v1433, %v1431
  %v1972 = vpack.c.b16 %v1434, %v1432
  %v1973 = vpack.c.b16 %v1437, %v1435
  %v1974 = vpack.c.b16 %v1438, %v1436
  %v1975 = vpack.c.b16 %v1441, %v1439
  %v1976 = vpack.c.b16 %v1442, %v1440
  %v1977 = vpack.c.b16 %v1445, %v1443
  %v1978 = vpack.c.b16 %v1446, %v1444
  %v1979 = vpack.c.b16 %v1449, %v1447
  %v1980 = vpack.c.b16 %v1450, %v1448
  %v1981 = vpack.c.b16 %v1453, %v1451
  %v1982 = vpack.c.b16 %v1454, %v1452
  %v1983 = vpack.c.b16 %v1457, %v1455
  %v1984 = vpack.c.b16 %v1458, %v1456
  %v1985 = vpack.c.b16 %v1461, %v1459
  %v1986 = vpack.c.b16 %v1462, %v1460
  %v1987 = vpack.c.b16 %v1465, %v1463
  %v1988 = vpack.c.b16 %v1466, %v1464
  %v1989 = vpack.c.b16 %v1469, %v1467
  %v1990 = vpack.c.b16 %v1470, %v1468
  %v1991 = vpack.c.b16 %v1473, %v1471
  %v1992 = vpack.c.b16 %v1474, %v1472
  %v1993 = vpack.c.b16 %v1477, %v1475
  %v1994 = vpack.c.b16 %v1478, %v1476
  %v1995 = vpack.c.b16 %v1481, %v1479
  %v1996 = vpack.c.b16 %v1482, %v1480
  %v1997 = vpack.c.b16 %v1485, %v1483
  %v1998 = vpack.c.b16 %v1486, %v1484
  %v1999 = vpack.c.b16 %v1489, %v1487
  %v2000 = vpack.c.b16 %v1490, %v1488
  %v2001 = vpack.c.b16 %v1493, %v1491
  %v2002 = vpack.c.b16 %v1494, %v1492
  %v2003 = vpack.c.b16 %v1497, %v1495
  %v2004 = vpack.c.b16 %v1498, %v1496
  %v2005 = vpack.c.b16 %v1501, %v1499
  %v2006 = vpack.c.b16 %v1502, %v1500
  %v2007 = vpack.c.b16 %v1505, %v1503
  %v2008 = vpack.c.b16 %v1506, %v1504
  %v2009 = vpack.c.b16 %v1509, %v1507
  %v2010 = vpack.c.b16 %v1510, %v1508
  %v2011 = vpack.c.b16 %v1513, %v1511
  %v2012 = vpack.c.b16 %v1514, %v1512
  %v2013 = vpack.c.b16 %v1517, %v1515
  %v2014 = vpack.c.b16 %v1518, %v1516
  %v2015 = vpack.c.b16 %v1521, %v1519
  %v2016 = vpack.c.b16 %v1522, %v1520
  %v2017 = vpack.c.b16 %v1525, %v1523
  %v2018 = vpack.c.b16 %v1526, %v1524
  %v2019 = vpack.c.b16 %v1529, %v1527
  %v2020 = vpack.c.b16 %v1530, %v1528
  %v2021 = vpack.c.b16 %v1533, %v1531
  %v2022 = vpack.c.b16 %v1534, %v1532
  %v2023 = vpack.c.b16 %v1537, %v1535
  %v2024 = vpack.c.b16 %v1538, %v1536
  %v2025 = vpack.c.b16 %v1541, %v1539
  %v2026 = vpack.c.b16 %v1542, %v1540
  %v2027 = vpack.c.b16 %v1545, %v1543
  %v2028 = vpack.c.b16 %v1546, %v1544
  %v2029 = vpack.c.b16 %v1549, %v1547
  %v2030 = vpack.c.b16 %v1550, %v1548
  %v2031 = vpack.c.b16 %v1553, %v1551
  %v2032 = vpack.c.b16 %v1554, %v1552
  %v2033 = vpack.c.b16 %v1557, %v1555
  %v2034 = vpack.c.b16 %v1558, %v1556
  %v2035 = vpack.c.b16 %v1561, %v1559
  %v2036 = vpack.c.b16 %v1562, %v1560
  %v2037 = vpack.c.b16 %v1565, %v1563
  %v2038 = vpack.c.b16 %v1566, %v1564
  %v2039 = vpack.c.b16 %v1569, %v1567
  %v2040 = vpack.c.b16 %v1570, %v1568
  %v2041 = vpack.c.b16 %v1573, %v1571
  %v2042 = vpack.c.b16 %v1574, %v1572
  %v2043 = vpack.c.b16 %v1577, %v1575
  %v2044 = vpack.c.b16 %v1578, %v1576
  %v2045 = vpack.c.b16 %v1581, %v1579
  %v2046 = vpack.c.b16 %v1582, %v1580
  %v2047 = vpack.c.b16 %v1585, %v1583
  %v2048 = vpack.c.b16 %v1586, %v1584
  %v2049 = vpack.c.b16 %v1589, %v1587
  %v2050 = vpack.c.b16 %v1590, %v1588
  %v2051 = vpack.c.b16 %v1593, %v1591
  %v2052 = vpack.c.b16 %v1594, %v1592
  %v2053 = vpack.c.b16 %v1597, %v1595
  %v2054 = vpack.c.b16 %v1598, %v1596
  %v2055 = vpack.c.b16 %v1601, %v1599
  %v2056 = vpack.c.b16 %v1602, %v1600
  %v2057 = vpack.c.b16 %v1605, %v1603
  %v2058 = vpack.c.b16 %v1606, %v1604
  %v2059 = vpack.c.b16 %v1609, %v1607
  %v2060 = vpack.c.b16 %v1610, %v1608
  %v2061 = vpack.c.b16 %v1613, %v1611
  %v2062 = vpack.c.b16 %v1614, %v1612
  %v2063 = vpack.c.b16 %v1617, %v1615
  %v2064 = vpack.c.b16 %v1618, %v1616
  %v2065 = vpack.c.b16 %v1621, %v1619
  %v2066 = vpack.c.b16 %v1622, %v1620
  %v2067 = vpack.c.b16 %v1625, %v1623
  %v2068 = vpack.c.b16 %v1626, %v1624
  %v2069 = vpack.c.b16 %v1629, %v1627
  %v2070 = vpack.c.b16 %v1630, %v1628
  %v2071 = vpack.c.b16 %v1633, %v1631
  %v2072 = vpack.c.b16 %v1634, %v1632
  %v2073 = vpack.c.b16 %v1637, %v1635
  %v2074 = vpack.c.b16 %v1638, %v1636
  %v2075 = vpack.c.b16 %v1641, %v1639
  %v2076 = vpack.c.b16 %v1642, %v1640
  %v2077 = vpack.c.b16 %v1645, %v1643
  %v2078 = vpack.c.b16 %v1646, %v1644
  %v2079 = vpack.c.b16 %v1649, %v1647
  %v2080 = vpack.c.b16 %v1650, %v1648
  %v2081 = vpack.c.b16 %v1653, %v1651
  %v2082 = vpack.c.b16 %v1654, %v1652
  %v2083 = vpack.c.b16 %v1657, %v1655
  %v2084 = vpack.c.b16 %v1658, %v1656
  %v2085 = vpack.c.b16 %v1661, %v1659
  %v2086 = vpack.c.b16 %v1662, %v1660
  %v2087 = vpack.c.b16 %v1665, %v1663
  %v2088 = vpack.c.b16 %v1666, %v1664
  %v2089 = vpack.c.b16 %v1669, %v1667
  %v2090 = vpack.c.b16 %v1670, %v1668
  %v2091 = vpack.c.b16 %v1673, %v1671
  %v2092 = vpack.c.b16 %v1674, %v1672
  %v2093 = vpack.c.b16 %v1677, %v1675
  %v2094 = vpack.c.b16 %v1678, %v1676
  %v2095 = vpack.c.b16 %v1681, %v1679
  %v2096 = vpack.c.b16 %v1682, %v1680
  %v2097 = vpack.c.b16 %v1685, %v1683
  %v2098 = vpack.c.b16 %v1686, %v1684
  %v2099 = vpack.c.b16 %v1689, %v1687
  %v2100 = vpack.c.b16 %v1690, %v1688
  %v2101 = vpack.c.b16 %v1693, %v1691
  %v2102 = vpack.c.b16 %v1694, %v1692
  %v2103 = vpack.c.b16 %v1697, %v1695
  %v2104 = vpack.c.b16 %v1698, %v1696
  %v2105 = vpack.c.b16 %v1701, %v1699
  %v2106 = vpack.c.b16 %v1702, %v1700
  %v2107 = vpack.c.b16 %v1705, %v1703
  %v2108 = vpack.c.b16 %v1706, %v1704
  %v2109 = vpack.c.b16 %v1709, %v1707
  %v2110 = vpack.c.b16 %v1710, %v1708
  %v2111 = vpack.c.b16 %v1713, %v1711
  %v2112 = vpack.c.b16 %v1714, %v1712
  %v2113 = vpack.c.b16 %v1717, %v1715
  %v2114 = vpack.c.b16 %v1718, %v1716
  %v2115 = vpack.c.b16 %v1721, %v1719
  %v2116 = vpack.c.b16 %v1722, %v1720
  %v2117 = vpack.c.b16 %v1725, %v1723
  %v2118 = vpack.c.b16 %v1726, %v1724
  %vm2511 = vcmask 523264
  %v2513 = vsel %vm2511, %v526, 0
  %2515 = vmatprep.subr.bf16.mxu0 %v1742
  %2516 = vmatpush1.bf16.msra.mxu0 %v1741
  %2517 = vmatprep.subr.bf16.mxu0 %v1740
  %2518 = vmatpush1.bf16.msra.mxu0 %v1739
  %2519 = vmatprep.subr.bf16.mxu0 %v1738
  %2520 = vmatpush1.bf16.msra.mxu0 %v1737
  %2521 = vmatprep.subr.bf16.mxu0 %v1736
  %2522 = vmatpush1.bf16.msra.mxu0 %v1735
  %2523 = vmatprep.subr.bf16.mxu0 %v1734
  %2524 = vmatpush1.bf16.msra.mxu0 %v1733
  %2525 = vmatprep.subr.bf16.mxu0 %v1732
  %2526 = vmatpush1.bf16.msra.mxu0 %v1731
  %2527 = vmatprep.subr.bf16.mxu0 %v1730
  %2528 = vmatpush1.bf16.msra.mxu0 %v1729
  %2529 = vmatprep.subr.bf16.mxu0 %v1728
  %2530 = vmatpush1.bf16.msra.mxu0 %v1727
  %2531 = vmatprep.subr.bf16.mxu0 %v1758
  %2532 = vmatpush2.bf16.msra.mxu0 %v1757
  %2533 = vmatprep.subr.bf16.mxu0 %v1756
  %2534 = vmatpush2.bf16.msra.mxu0 %v1755
  %2535 = vmatprep.subr.bf16.mxu0 %v1754
  %2536 = vmatpush2.bf16.msra.mxu0 %v1753
  %2537 = vmatprep.subr.bf16.mxu0 %v1752
  %2538 = vmatpush2.bf16.msra.mxu0 %v1751
  %2539 = vmatprep.subr.bf16.mxu0 %v1750
  %2540 = vmatpush2.bf16.msra.mxu0 %v1749
  %2541 = vmatprep.subr.bf16.mxu0 %v1748
  %2542 = vmatpush2.bf16.msra.mxu0 %v1747
  %2543 = vmatprep.subr.bf16.mxu0 %v1746
  %2544 = vmatpush2.bf16.msra.mxu0 %v1745
  %2545 = vmatprep.subr.bf16.mxu0 %v1744
  %2546 = vmatpush2.bf16.msra.mxu0 %v1743
  %2547 = vmatprep.mubr.bf16.mxu0 %v503
  %2548 = vmatmul.mubr.bf16.gmra.mxu0 %v502
  %v2549 = vpop.f32.mrf.mxu0
  %v2550 = vadd.f32 %v457, %v2549
  %v2551 = vpop.f32.mrf.mxu0
  %v2552 = vadd.f32 %v461, %v2551
  %v2553 = vpop.f32.mrf.mxu0
  %v2554 = vpop.f32.mrf.mxu0
  %2555 = vdwg.mxu0
  %2556 = vmatprep.subr.bf16.mxu0 %v1774
  %2557 = vmatpush1.bf16.msra.mxu0 %v1773
  %2558 = vmatprep.subr.bf16.mxu0 %v1772
  %2559 = vmatpush1.bf16.msra.mxu0 %v1771
  %2560 = vmatprep.subr.bf16.mxu0 %v1770
  %2561 = vmatpush1.bf16.msra.mxu0 %v1769
  %2562 = vmatprep.subr.bf16.mxu0 %v1768
  %2563 = vmatpush1.bf16.msra.mxu0 %v1767
  %2564 = vmatprep.subr.bf16.mxu0 %v1766
  %2565 = vmatpush1.bf16.msra.mxu0 %v1765
  %2566 = vmatprep.subr.bf16.mxu0 %v1764
  %2567 = vmatpush1.bf16.msra.mxu0 %v1763
  %2568 = vmatprep.subr.bf16.mxu0 %v1762
  %2569 = vmatpush1.bf16.msra.mxu0 %v1761
  %2570 = vmatprep.subr.bf16.mxu0 %v1760
  %2571 = vmatpush1.bf16.msra.mxu0 %v1759
  %2572 = vmatprep.subr.bf16.mxu0 %v1790
  %2573 = vmatpush2.bf16.msra.mxu0 %v1789
  %2574 = vmatprep.subr.bf16.mxu0 %v1788
  %2575 = vmatpush2.bf16.msra.mxu0 %v1787
  %2576 = vmatprep.subr.bf16.mxu0 %v1786
  %2577 = vmatpush2.bf16.msra.mxu0 %v1785
  %2578 = vmatprep.subr.bf16.mxu0 %v1784
  %2579 = vmatpush2.bf16.msra.mxu0 %v1783
  %2580 = vmatprep.subr.bf16.mxu0 %v1782
  %2581 = vmatpush2.bf16.msra.mxu0 %v1781
  %2582 = vmatprep.subr.bf16.mxu0 %v1780
  %2583 = vmatpush2.bf16.msra.mxu0 %v1779
  %2584 = vmatprep.subr.bf16.mxu0 %v1778
  %2585 = vmatpush2.bf16.msra.mxu0 %v1777
  %2586 = vmatprep.subr.bf16.mxu0 %v1776
  %2587 = vmatpush2.bf16.msra.mxu0 %v1775
  %2588 = vmatprep.mubr.bf16.mxu0 %v505
  %2589 = vmatmul.mubr.bf16.gmra.mxu0 %v504
  %v2590 = vpop.f32.mrf.mxu0
  %v2591 = vadd.f32 %v2550, %v2590
  %v2592 = vpop.f32.mrf.mxu0
  %v2593 = vadd.f32 %v2552, %v2592
  %v2594 = vpop.f32.mrf.mxu0
  %v2595 = vpop.f32.mrf.mxu0
  %2596 = vdwg.mxu0
  %2597 = vmatprep.subr.bf16.mxu0 %v1806
  %2598 = vmatpush1.bf16.msra.mxu0 %v1805
  %2599 = vmatprep.subr.bf16.mxu0 %v1804
  %2600 = vmatpush1.bf16.msra.mxu0 %v1803
  %2601 = vmatprep.subr.bf16.mxu0 %v1802
  %2602 = vmatpush1.bf16.msra.mxu0 %v1801
  %2603 = vmatprep.subr.bf16.mxu0 %v1800
  %2604 = vmatpush1.bf16.msra.mxu0 %v1799
  %2605 = vmatprep.subr.bf16.mxu0 %v1798
  %2606 = vmatpush1.bf16.msra.mxu0 %v1797
  %2607 = vmatprep.subr.bf16.mxu0 %v1796
  %2608 = vmatpush1.bf16.msra.mxu0 %v1795
  %2609 = vmatprep.subr.bf16.mxu0 %v1794
  %2610 = vmatpush1.bf16.msra.mxu0 %v1793
  %2611 = vmatprep.subr.bf16.mxu0 %v1792
  %2612 = vmatpush1.bf16.msra.mxu0 %v1791
  %2613 = vmatprep.subr.bf16.mxu0 %v1822
  %2614 = vmatpush2.bf16.msra.mxu0 %v1821
  %2615 = vmatprep.subr.bf16.mxu0 %v1820
  %2616 = vmatpush2.bf16.msra.mxu0 %v1819
  %2617 = vmatprep.subr.bf16.mxu0 %v1818
  %2618 = vmatpush2.bf16.msra.mxu0 %v1817
  %2619 = vmatprep.subr.bf16.mxu0 %v1816
  %2620 = vmatpush2.bf16.msra.mxu0 %v1815
  %2621 = vmatprep.subr.bf16.mxu0 %v1814
  %2622 = vmatpush2.bf16.msra.mxu0 %v1813
  %2623 = vmatprep.subr.bf16.mxu0 %v1812
  %2624 = vmatpush2.bf16.msra.mxu0 %v1811
  %2625 = vmatprep.subr.bf16.mxu0 %v1810
  %2626 = vmatpush2.bf16.msra.mxu0 %v1809
  %2627 = vmatprep.subr.bf16.mxu0 %v1808
  %2628 = vmatpush2.bf16.msra.mxu0 %v1807
  %2629 = vmatprep.mubr.bf16.mxu0 %v507
  %2630 = vmatmul.mubr.bf16.gmra.mxu0 %v506
  %v2631 = vpop.f32.mrf.mxu0
  %v2632 = vadd.f32 %v2591, %v2631
  %v2633 = vpop.f32.mrf.mxu0
  %v2634 = vadd.f32 %v2593, %v2633
  %v2635 = vpop.f32.mrf.mxu0
  %v2636 = vpop.f32.mrf.mxu0
  %2637 = vdwg.mxu0
  %2638 = vmatprep.subr.bf16.mxu0 %v1838
  %2639 = vmatpush1.bf16.msra.mxu0 %v1837
  %2640 = vmatprep.subr.bf16.mxu0 %v1836
  %2641 = vmatpush1.bf16.msra.mxu0 %v1835
  %2642 = vmatprep.subr.bf16.mxu0 %v1834
  %2643 = vmatpush1.bf16.msra.mxu0 %v1833
  %2644 = vmatprep.subr.bf16.mxu0 %v1832
  %2645 = vmatpush1.bf16.msra.mxu0 %v1831
  %2646 = vmatprep.subr.bf16.mxu0 %v1830
  %2647 = vmatpush1.bf16.msra.mxu0 %v1829
  %2648 = vmatprep.subr.bf16.mxu0 %v1828
  %2649 = vmatpush1.bf16.msra.mxu0 %v1827
  %2650 = vmatprep.subr.bf16.mxu0 %v1826
  %2651 = vmatpush1.bf16.msra.mxu0 %v1825
  %2652 = vmatprep.subr.bf16.mxu0 %v1824
  %2653 = vmatpush1.bf16.msra.mxu0 %v1823
  %2654 = vmatprep.subr.bf16.mxu0 %v1854
  %2655 = vmatpush2.bf16.msra.mxu0 %v1853
  %2656 = vmatprep.subr.bf16.mxu0 %v1852
  %2657 = vmatpush2.bf16.msra.mxu0 %v1851
  %2658 = vmatprep.subr.bf16.mxu0 %v1850
  %2659 = vmatpush2.bf16.msra.mxu0 %v1849
  %2660 = vmatprep.subr.bf16.mxu0 %v1848
  %2661 = vmatpush2.bf16.msra.mxu0 %v1847
  %2662 = vmatprep.subr.bf16.mxu0 %v1846
  %2663 = vmatpush2.bf16.msra.mxu0 %v1845
  %2664 = vmatprep.subr.bf16.mxu0 %v1844
  %2665 = vmatpush2.bf16.msra.mxu0 %v1843
  %2666 = vmatprep.subr.bf16.mxu0 %v1842
  %2667 = vmatpush2.bf16.msra.mxu0 %v1841
  %2668 = vmatprep.subr.bf16.mxu0 %v1840
  %2669 = vmatpush2.bf16.msra.mxu0 %v1839
  %2670 = vmatprep.mubr.bf16.mxu0 %v509
  %2671 = vmatmul.mubr.bf16.gmra.mxu0 %v508
  %v2672 = vpop.f32.mrf.mxu0
  %v2673 = vadd.f32 %v2632, %v2672
  %v2674 = vpop.f32.mrf.mxu0
  %v2675 = vadd.f32 %v2634, %v2674
  %v2676 = vpop.f32.mrf.mxu0
  %v2677 = vpop.f32.mrf.mxu0
  %2678 = vdwg.mxu0
  %2679 = vmatprep.subr.bf16.mxu0 %v1870
  %2680 = vmatpush1.bf16.msra.mxu0 %v1869
  %2681 = vmatprep.subr.bf16.mxu0 %v1868
  %2682 = vmatpush1.bf16.msra.mxu0 %v1867
  %2683 = vmatprep.subr.bf16.mxu0 %v1866
  %2684 = vmatpush1.bf16.msra.mxu0 %v1865
  %2685 = vmatprep.subr.bf16.mxu0 %v1864
  %2686 = vmatpush1.bf16.msra.mxu0 %v1863
  %2687 = vmatprep.subr.bf16.mxu0 %v1862
  %2688 = vmatpush1.bf16.msra.mxu0 %v1861
  %2689 = vmatprep.subr.bf16.mxu0 %v1860
  %2690 = vmatpush1.bf16.msra.mxu0 %v1859
  %2691 = vmatprep.subr.bf16.mxu0 %v1858
  %2692 = vmatpush1.bf16.msra.mxu0 %v1857
  %2693 = vmatprep.subr.bf16.mxu0 %v1856
  %2694 = vmatpush1.bf16.msra.mxu0 %v1855
  %2695 = vmatprep.subr.bf16.mxu0 %v1886
  %2696 = vmatpush2.bf16.msra.mxu0 %v1885
  %2697 = vmatprep.subr.bf16.mxu0 %v1884
  %2698 = vmatpush2.bf16.msra.mxu0 %v1883
  %2699 = vmatprep.subr.bf16.mxu0 %v1882
  %2700 = vmatpush2.bf16.msra.mxu0 %v1881
  %2701 = vmatprep.subr.bf16.mxu0 %v1880
  %2702 = vmatpush2.bf16.msra.mxu0 %v1879
  %2703 = vmatprep.subr.bf16.mxu0 %v1878
  %2704 = vmatpush2.bf16.msra.mxu0 %v1877
  %2705 = vmatprep.subr.bf16.mxu0 %v1876
  %2706 = vmatpush2.bf16.msra.mxu0 %v1875
  %2707 = vmatprep.subr.bf16.mxu0 %v1874
  %2708 = vmatpush2.bf16.msra.mxu0 %v1873
  %2709 = vmatprep.subr.bf16.mxu0 %v1872
  %2710 = vmatpush2.bf16.msra.mxu0 %v1871
  %2711 = vmatprep.mubr.bf16.mxu0 %v511
  %2712 = vmatmul.mubr.bf16.gmra.mxu0 %v510
  %v2713 = vpop.f32.mrf.mxu0
  %v2714 = vadd.f32 %v2673, %v2713
  %v2715 = vpop.f32.mrf.mxu0
  %v2716 = vadd.f32 %v2675, %v2715
  %v2717 = vpop.f32.mrf.mxu0
  %v2718 = vpop.f32.mrf.mxu0
  %2719 = vdwg.mxu0
  %2720 = vmatprep.subr.bf16.mxu0 %v1902
  %2721 = vmatpush1.bf16.msra.mxu0 %v1901
  %2722 = vmatprep.subr.bf16.mxu0 %v1900
  %2723 = vmatpush1.bf16.msra.mxu0 %v1899
  %2724 = vmatprep.subr.bf16.mxu0 %v1898
  %2725 = vmatpush1.bf16.msra.mxu0 %v1897
  %2726 = vmatprep.subr.bf16.mxu0 %v1896
  %2727 = vmatpush1.bf16.msra.mxu0 %v1895
  %2728 = vmatprep.subr.bf16.mxu0 %v1894
  %2729 = vmatpush1.bf16.msra.mxu0 %v1893
  %2730 = vmatprep.subr.bf16.mxu0 %v1892
  %2731 = vmatpush1.bf16.msra.mxu0 %v1891
  %2732 = vmatprep.subr.bf16.mxu0 %v1890
  %2733 = vmatpush1.bf16.msra.mxu0 %v1889
  %2734 = vmatprep.subr.bf16.mxu0 %v1888
  %2735 = vmatpush1.bf16.msra.mxu0 %v1887
  %2736 = vmatprep.subr.bf16.mxu0 %v1918
  %2737 = vmatpush2.bf16.msra.mxu0 %v1917
  %2738 = vmatprep.subr.bf16.mxu0 %v1916
  %2739 = vmatpush2.bf16.msra.mxu0 %v1915
  %2740 = vmatprep.subr.bf16.mxu0 %v1914
  %2741 = vmatpush2.bf16.msra.mxu0 %v1913
  %2742 = vmatprep.subr.bf16.mxu0 %v1912
  %2743 = vmatpush2.bf16.msra.mxu0 %v1911
  %2744 = vmatprep.subr.bf16.mxu0 %v1910
  %2745 = vmatpush2.bf16.msra.mxu0 %v1909
  %2746 = vmatprep.subr.bf16.mxu0 %v1908
  %2747 = vmatpush2.bf16.msra.mxu0 %v1907
  %2748 = vmatprep.subr.bf16.mxu0 %v1906
  %2749 = vmatpush2.bf16.msra.mxu0 %v1905
  %2750 = vmatprep.subr.bf16.mxu0 %v1904
  %2751 = vmatpush2.bf16.msra.mxu0 %v1903
  %2752 = vmatprep.mubr.bf16.mxu0 %v513
  %2753 = vmatmul.mubr.bf16.gmra.mxu0 %v512
  %v2754 = vpop.f32.mrf.mxu0
  %v2755 = vadd.f32 %v2714, %v2754
  %v2756 = vpop.f32.mrf.mxu0
  %v2757 = vadd.f32 %v2716, %v2756
  %v2758 = vpop.f32.mrf.mxu0
  %v2759 = vpop.f32.mrf.mxu0
  %2760 = vdwg.mxu0
  %2761 = vmatprep.subr.bf16.mxu0 %v1934
  %2762 = vmatpush1.bf16.msra.mxu0 %v1933
  %2763 = vmatprep.subr.bf16.mxu0 %v1932
  %2764 = vmatpush1.bf16.msra.mxu0 %v1931
  %2765 = vmatprep.subr.bf16.mxu0 %v1930
  %2766 = vmatpush1.bf16.msra.mxu0 %v1929
  %2767 = vmatprep.subr.bf16.mxu0 %v1928
  %2768 = vmatpush1.bf16.msra.mxu0 %v1927
  %2769 = vmatprep.subr.bf16.mxu0 %v1926
  %2770 = vmatpush1.bf16.msra.mxu0 %v1925
  %2771 = vmatprep.subr.bf16.mxu0 %v1924
  %2772 = vmatpush1.bf16.msra.mxu0 %v1923
  %2773 = vmatprep.subr.bf16.mxu0 %v1922
  %2774 = vmatpush1.bf16.msra.mxu0 %v1921
  %2775 = vmatprep.subr.bf16.mxu0 %v1920
  %2776 = vmatpush1.bf16.msra.mxu0 %v1919
  %2777 = vmatprep.subr.bf16.mxu0 %v1950
  %2778 = vmatpush2.bf16.msra.mxu0 %v1949
  %2779 = vmatprep.subr.bf16.mxu0 %v1948
  %2780 = vmatpush2.bf16.msra.mxu0 %v1947
  %2781 = vmatprep.subr.bf16.mxu0 %v1946
  %2782 = vmatpush2.bf16.msra.mxu0 %v1945
  %2783 = vmatprep.subr.bf16.mxu0 %v1944
  %2784 = vmatpush2.bf16.msra.mxu0 %v1943
  %2785 = vmatprep.subr.bf16.mxu0 %v1942
  %2786 = vmatpush2.bf16.msra.mxu0 %v1941
  %2787 = vmatprep.subr.bf16.mxu0 %v1940
  %2788 = vmatpush2.bf16.msra.mxu0 %v1939
  %2789 = vmatprep.subr.bf16.mxu0 %v1938
  %2790 = vmatpush2.bf16.msra.mxu0 %v1937
  %2791 = vmatprep.subr.bf16.mxu0 %v1936
  %2792 = vmatpush2.bf16.msra.mxu0 %v1935
  %2793 = vmatprep.mubr.bf16.mxu0 %v515
  %2794 = vmatmul.mubr.bf16.gmra.mxu0 %v514
  %v2795 = vpop.f32.mrf.mxu0
  %v2796 = vadd.f32 %v2755, %v2795
  %v2797 = vpop.f32.mrf.mxu0
  %v2798 = vadd.f32 %v2757, %v2797
  %v2799 = vpop.f32.mrf.mxu0
  %v2800 = vpop.f32.mrf.mxu0
  %2801 = vdwg.mxu0
  %2802 = vmatprep.subr.bf16.mxu0 %v1966
  %2803 = vmatpush1.bf16.msra.mxu0 %v1965
  %2804 = vmatprep.subr.bf16.mxu0 %v1964
  %2805 = vmatpush1.bf16.msra.mxu0 %v1963
  %2806 = vmatprep.subr.bf16.mxu0 %v1962
  %2807 = vmatpush1.bf16.msra.mxu0 %v1961
  %2808 = vmatprep.subr.bf16.mxu0 %v1960
  %2809 = vmatpush1.bf16.msra.mxu0 %v1959
  %2810 = vmatprep.subr.bf16.mxu0 %v1958
  %2811 = vmatpush1.bf16.msra.mxu0 %v1957
  %2812 = vmatprep.subr.bf16.mxu0 %v1956
  %2813 = vmatpush1.bf16.msra.mxu0 %v1955
  %2814 = vmatprep.subr.bf16.mxu0 %v1954
  %2815 = vmatpush1.bf16.msra.mxu0 %v1953
  %2816 = vmatprep.subr.bf16.mxu0 %v1952
  %2817 = vmatpush1.bf16.msra.mxu0 %v1951
  %2818 = vmatprep.subr.bf16.mxu0 %v1982
  %2819 = vmatpush2.bf16.msra.mxu0 %v1981
  %2820 = vmatprep.subr.bf16.mxu0 %v1980
  %2821 = vmatpush2.bf16.msra.mxu0 %v1979
  %2822 = vmatprep.subr.bf16.mxu0 %v1978
  %2823 = vmatpush2.bf16.msra.mxu0 %v1977
  %2824 = vmatprep.subr.bf16.mxu0 %v1976
  %2825 = vmatpush2.bf16.msra.mxu0 %v1975
  %2826 = vmatprep.subr.bf16.mxu0 %v1974
  %2827 = vmatpush2.bf16.msra.mxu0 %v1973
  %2828 = vmatprep.subr.bf16.mxu0 %v1972
  %2829 = vmatpush2.bf16.msra.mxu0 %v1971
  %2830 = vmatprep.subr.bf16.mxu0 %v1970
  %2831 = vmatpush2.bf16.msra.mxu0 %v1969
  %2832 = vmatprep.subr.bf16.mxu0 %v1968
  %2833 = vmatpush2.bf16.msra.mxu0 %v1967
  %2834 = vmatprep.mubr.bf16.mxu0 %v517
  %2835 = vmatmul.mubr.bf16.gmra.mxu0 %v516
  %v2836 = vpop.f32.mrf.mxu0
  %v2837 = vadd.f32 %v2796, %v2836
  %v2838 = vpop.f32.mrf.mxu0
  %v2839 = vadd.f32 %v2798, %v2838
  %v2840 = vpop.f32.mrf.mxu0
  %v2841 = vpop.f32.mrf.mxu0
  %2842 = vdwg.mxu0
  %2843 = vmatprep.subr.bf16.mxu0 %v1998
  %2844 = vmatpush1.bf16.msra.mxu0 %v1997
  %2845 = vmatprep.subr.bf16.mxu0 %v1996
  %2846 = vmatpush1.bf16.msra.mxu0 %v1995
  %2847 = vmatprep.subr.bf16.mxu0 %v1994
  %2848 = vmatpush1.bf16.msra.mxu0 %v1993
  %2849 = vmatprep.subr.bf16.mxu0 %v1992
  %2850 = vmatpush1.bf16.msra.mxu0 %v1991
  %2851 = vmatprep.subr.bf16.mxu0 %v1990
  %2852 = vmatpush1.bf16.msra.mxu0 %v1989
  %2853 = vmatprep.subr.bf16.mxu0 %v1988
  %2854 = vmatpush1.bf16.msra.mxu0 %v1987
  %2855 = vmatprep.subr.bf16.mxu0 %v1986
  %2856 = vmatpush1.bf16.msra.mxu0 %v1985
  %2857 = vmatprep.subr.bf16.mxu0 %v1984
  %2858 = vmatpush1.bf16.msra.mxu0 %v1983
  %2859 = vmatprep.subr.bf16.mxu0 %v2014
  %2860 = vmatpush2.bf16.msra.mxu0 %v2013
  %2861 = vmatprep.subr.bf16.mxu0 %v2012
  %2862 = vmatpush2.bf16.msra.mxu0 %v2011
  %2863 = vmatprep.subr.bf16.mxu0 %v2010
  %2864 = vmatpush2.bf16.msra.mxu0 %v2009
  %2865 = vmatprep.subr.bf16.mxu0 %v2008
  %2866 = vmatpush2.bf16.msra.mxu0 %v2007
  %2867 = vmatprep.subr.bf16.mxu0 %v2006
  %2868 = vmatpush2.bf16.msra.mxu0 %v2005
  %2869 = vmatprep.subr.bf16.mxu0 %v2004
  %2870 = vmatpush2.bf16.msra.mxu0 %v2003
  %2871 = vmatprep.subr.bf16.mxu0 %v2002
  %2872 = vmatpush2.bf16.msra.mxu0 %v2001
  %2873 = vmatprep.subr.bf16.mxu0 %v2000
  %2874 = vmatpush2.bf16.msra.mxu0 %v1999
  %2875 = vmatprep.mubr.bf16.mxu0 %v519
  %2876 = vmatmul.mubr.bf16.gmra.mxu0 %v518
  %v2877 = vpop.f32.mrf.mxu0
  %v2878 = vadd.f32 %v2837, %v2877
  %v2879 = vpop.f32.mrf.mxu0
  %v2880 = vadd.f32 %v2839, %v2879
  %v2881 = vpop.f32.mrf.mxu0
  %v2882 = vpop.f32.mrf.mxu0
  %2883 = vdwg.mxu0
  %2884 = vmatprep.subr.bf16.mxu0 %v2030
  %2885 = vmatpush1.bf16.msra.mxu0 %v2029
  %2886 = vmatprep.subr.bf16.mxu0 %v2028
  %2887 = vmatpush1.bf16.msra.mxu0 %v2027
  %2888 = vmatprep.subr.bf16.mxu0 %v2026
  %2889 = vmatpush1.bf16.msra.mxu0 %v2025
  %2890 = vmatprep.subr.bf16.mxu0 %v2024
  %2891 = vmatpush1.bf16.msra.mxu0 %v2023
  %2892 = vmatprep.subr.bf16.mxu0 %v2022
  %2893 = vmatpush1.bf16.msra.mxu0 %v2021
  %2894 = vmatprep.subr.bf16.mxu0 %v2020
  %2895 = vmatpush1.bf16.msra.mxu0 %v2019
  %2896 = vmatprep.subr.bf16.mxu0 %v2018
  %2897 = vmatpush1.bf16.msra.mxu0 %v2017
  %2898 = vmatprep.subr.bf16.mxu0 %v2016
  %2899 = vmatpush1.bf16.msra.mxu0 %v2015
  %2900 = vmatprep.subr.bf16.mxu0 %v2046
  %2901 = vmatpush2.bf16.msra.mxu0 %v2045
  %2902 = vmatprep.subr.bf16.mxu0 %v2044
  %2903 = vmatpush2.bf16.msra.mxu0 %v2043
  %2904 = vmatprep.subr.bf16.mxu0 %v2042
  %2905 = vmatpush2.bf16.msra.mxu0 %v2041
  %2906 = vmatprep.subr.bf16.mxu0 %v2040
  %2907 = vmatpush2.bf16.msra.mxu0 %v2039
  %2908 = vmatprep.subr.bf16.mxu0 %v2038
  %2909 = vmatpush2.bf16.msra.mxu0 %v2037
  %2910 = vmatprep.subr.bf16.mxu0 %v2036
  %2911 = vmatpush2.bf16.msra.mxu0 %v2035
  %2912 = vmatprep.subr.bf16.mxu0 %v2034
  %2913 = vmatpush2.bf16.msra.mxu0 %v2033
  %2914 = vmatprep.subr.bf16.mxu0 %v2032
  %2915 = vmatpush2.bf16.msra.mxu0 %v2031
  %2916 = vmatprep.mubr.bf16.mxu0 %v521
  %2917 = vmatmul.mubr.bf16.gmra.mxu0 %v520
  %v2918 = vpop.f32.mrf.mxu0
  %v2919 = vadd.f32 %v2878, %v2918
  %v2920 = vpop.f32.mrf.mxu0
  %v2921 = vadd.f32 %v2880, %v2920
  %v2922 = vpop.f32.mrf.mxu0
  %v2923 = vpop.f32.mrf.mxu0
  %2924 = vdwg.mxu0
  %2925 = vmatprep.subr.bf16.mxu0 %v2062
  %2926 = vmatpush1.bf16.msra.mxu0 %v2061
  %2927 = vmatprep.subr.bf16.mxu0 %v2060
  %2928 = vmatpush1.bf16.msra.mxu0 %v2059
  %2929 = vmatprep.subr.bf16.mxu0 %v2058
  %2930 = vmatpush1.bf16.msra.mxu0 %v2057
  %2931 = vmatprep.subr.bf16.mxu0 %v2056
  %2932 = vmatpush1.bf16.msra.mxu0 %v2055
  %2933 = vmatprep.subr.bf16.mxu0 %v2054
  %2934 = vmatpush1.bf16.msra.mxu0 %v2053
  %2935 = vmatprep.subr.bf16.mxu0 %v2052
  %2936 = vmatpush1.bf16.msra.mxu0 %v2051
  %2937 = vmatprep.subr.bf16.mxu0 %v2050
  %2938 = vmatpush1.bf16.msra.mxu0 %v2049
  %2939 = vmatprep.subr.bf16.mxu0 %v2048
  %2940 = vmatpush1.bf16.msra.mxu0 %v2047
  %2941 = vmatprep.subr.bf16.mxu0 %v2078
  %2942 = vmatpush2.bf16.msra.mxu0 %v2077
  %2943 = vmatprep.subr.bf16.mxu0 %v2076
  %2944 = vmatpush2.bf16.msra.mxu0 %v2075
  %2945 = vmatprep.subr.bf16.mxu0 %v2074
  %2946 = vmatpush2.bf16.msra.mxu0 %v2073
  %2947 = vmatprep.subr.bf16.mxu0 %v2072
  %2948 = vmatpush2.bf16.msra.mxu0 %v2071
  %2949 = vmatprep.subr.bf16.mxu0 %v2070
  %2950 = vmatpush2.bf16.msra.mxu0 %v2069
  %2951 = vmatprep.subr.bf16.mxu0 %v2068
  %2952 = vmatpush2.bf16.msra.mxu0 %v2067
  %2953 = vmatprep.subr.bf16.mxu0 %v2066
  %2954 = vmatpush2.bf16.msra.mxu0 %v2065
  %2955 = vmatprep.subr.bf16.mxu0 %v2064
  %2956 = vmatpush2.bf16.msra.mxu0 %v2063
  %2957 = vmatprep.mubr.bf16.mxu0 %v523
  %2958 = vmatmul.mubr.bf16.gmra.mxu0 %v522
  %v2959 = vpop.f32.mrf.mxu0
  %v2960 = vadd.f32 %v2919, %v2959
  %v2961 = vpop.f32.mrf.mxu0
  %v2962 = vadd.f32 %v2921, %v2961
  %v2963 = vpop.f32.mrf.mxu0
  %v2964 = vpop.f32.mrf.mxu0
  %2965 = vdwg.mxu0
  %2966 = vmatprep.subr.bf16.mxu0 %v2094
  %2967 = vmatpush1.bf16.msra.mxu0 %v2093
  %2968 = vmatprep.subr.bf16.mxu0 %v2092
  %2969 = vmatpush1.bf16.msra.mxu0 %v2091
  %2970 = vmatprep.subr.bf16.mxu0 %v2090
  %2971 = vmatpush1.bf16.msra.mxu0 %v2089
  %2972 = vmatprep.subr.bf16.mxu0 %v2088
  %2973 = vmatpush1.bf16.msra.mxu0 %v2087
  %2974 = vmatprep.subr.bf16.mxu0 %v2086
  %2975 = vmatpush1.bf16.msra.mxu0 %v2085
  %2976 = vmatprep.subr.bf16.mxu0 %v2084
  %2977 = vmatpush1.bf16.msra.mxu0 %v2083
  %2978 = vmatprep.subr.bf16.mxu0 %v2082
  %2979 = vmatpush1.bf16.msra.mxu0 %v2081
  %2980 = vmatprep.subr.bf16.mxu0 %v2080
  %2981 = vmatpush1.bf16.msra.mxu0 %v2079
  %2982 = vmatprep.subr.bf16.mxu0 %v2110
  %2983 = vmatpush2.bf16.msra.mxu0 %v2109
  %2984 = vmatprep.subr.bf16.mxu0 %v2108
  %2985 = vmatpush2.bf16.msra.mxu0 %v2107
  %2986 = vmatprep.subr.bf16.mxu0 %v2106
  %2987 = vmatpush2.bf16.msra.mxu0 %v2105
  %2988 = vmatprep.subr.bf16.mxu0 %v2104
  %2989 = vmatpush2.bf16.msra.mxu0 %v2103
  %2990 = vmatprep.subr.bf16.mxu0 %v2102
  %2991 = vmatpush2.bf16.msra.mxu0 %v2101
  %2992 = vmatprep.subr.bf16.mxu0 %v2100
  %2993 = vmatpush2.bf16.msra.mxu0 %v2099
  %2994 = vmatprep.subr.bf16.mxu0 %v2098
  %2995 = vmatpush2.bf16.msra.mxu0 %v2097
  %2996 = vmatprep.subr.bf16.mxu0 %v2096
  %2997 = vmatpush2.bf16.msra.mxu0 %v2095
  %2998 = vmatprep.mubr.bf16.mxu0 %v525
  %2999 = vmatmul.mubr.bf16.gmra.mxu0 %v524
  %v3000 = vpop.f32.mrf.mxu0
  %v3001 = vadd.f32 %v2960, %v3000
  %v3002 = vpop.f32.mrf.mxu0
  %v3003 = vadd.f32 %v2962, %v3002
  %v3004 = vpop.f32.mrf.mxu0
  %v3005 = vpop.f32.mrf.mxu0
  %3006 = vdwg.mxu0
  %3007 = vmatprep.subr.bf16.mxu0 0
  %3008 = vmatpush1.bf16.msra.mxu0 0
  %3009 = vmatprep.subr.bf16.mxu0 0
  %3010 = vmatpush1.bf16.msra.mxu0 0
  %3011 = vmatprep.subr.bf16.mxu0 0
  %3012 = vmatpush1.bf16.msra.mxu0 0
  %3013 = vmatprep.subr.bf16.mxu0 0
  %3014 = vmatpush1.bf16.msra.mxu0 0
  %3015 = vmatprep.subr.bf16.mxu0 %v2118
  %3016 = vmatpush1.bf16.msra.mxu0 %v2117
  %3017 = vmatprep.subr.bf16.mxu0 %v2116
  %3018 = vmatpush1.bf16.msra.mxu0 %v2115
  %3019 = vmatprep.subr.bf16.mxu0 %v2114
  %3020 = vmatpush1.bf16.msra.mxu0 %v2113
  %3021 = vmatprep.subr.bf16.mxu0 %v2112
  %3022 = vmatpush1.bf16.msra.mxu0 %v2111
  %3023 = vmatprep.subr.bf16.mxu0 0
  %3024 = vmatpush2.bf16.msra.mxu0 0
  %3025 = vmatprep.subr.bf16.mxu0 0
  %3026 = vmatpush2.bf16.msra.mxu0 0
  %3027 = vmatprep.subr.bf16.mxu0 0
  %3028 = vmatpush2.bf16.msra.mxu0 0
  %3029 = vmatprep.subr.bf16.mxu0 0
  %3030 = vmatpush2.bf16.msra.mxu0 0
  %3031 = vmatprep.subr.bf16.mxu0 0
  %3032 = vmatpush2.bf16.msra.mxu0 0
  %3033 = vmatprep.subr.bf16.mxu0 0
  %3034 = vmatpush2.bf16.msra.mxu0 0
  %3035 = vmatprep.subr.bf16.mxu0 0
  %3036 = vmatpush2.bf16.msra.mxu0 0
  %3037 = vmatprep.subr.bf16.mxu0 0
  %3038 = vmatpush2.bf16.msra.mxu0 0
  %3039 = vmatprep.mubr.bf16.mxu0 0
  %3040 = vmatmul.mubr.bf16.gmra.mxu0 %v2513
  %v3041 = vpop.f32.mrf.mxu0
  %v3042 = vadd.f32 %v3001, %v3041
  %v3043 = vpop.f32.mrf.mxu0
  %v3044 = vadd.f32 %v3003, %v3043
  %v3045 = vpop.f32.mrf.mxu0
  %v3046 = vpop.f32.mrf.mxu0
  %3047 = vdwg.mxu0
  %v3048 = vmax.f32 %v3042, 0.0
  %v3049 = vmax.f32 %v3044, 0.0
  %v3050 = vpack.c.bf16 %v3048, %v3048
  %v3051 = vpack.c.bf16 %v3049, %v3049
  %v3052 = vld [vmem:[%s3] sm:$0xff]
  %v3053 = vld [vmem:[%s3 + $0x8] sm:$0xff]
  %v3054 = vld [vmem:[%s3 + $0x10] sm:$0xff]
  %v3055 = vld [vmem:[%s3 + $0x18] sm:$0xff]
  %v3056 = vld [vmem:[%s3 + $0x20] sm:$0xff]
  %v3057 = vld [vmem:[%s3 + $0x28] sm:$0xff]
  %v3058 = vld [vmem:[%s3 + $0x30] sm:$0xff]
  %v3059 = vld [vmem:[%s3 + $0x38] sm:$0xff]
  %v3060 = vld [vmem:[%s3 + $0x40] sm:$0xff]
  %v3061 = vld [vmem:[%s3 + $0x48] sm:$0xff]
  %v3062 = vld [vmem:[%s3 + $0x50] sm:$0xff]
  %v3063 = vld [vmem:[%s3 + $0x58] sm:$0xff]
  %v3064 = vld [vmem:[%s3 + $0x60] sm:$0xff]
  %v3065 = vld [vmem:[%s3 + $0x68] sm:$0xff]
  %v3066 = vld [vmem:[%s3 + $0x70] sm:$0xff]
  %v3067 = vld [vmem:[%s3 + $0x78] sm:$0xff]
  %v3068 = vld [vmem:[%s3 + $0x80] sm:$0xff]
  %v3069 = vld [vmem:[%s3 + $0x88] sm:$0xff]
  %v3070 = vld [vmem:[%s3 + $0x90] sm:$0xff]
  %v3071 = vld [vmem:[%s3 + $0x98] sm:$0xff]
  %v3072 = vld [vmem:[%s3 + $0xa0] sm:$0xff]
  %v3073 = vld [vmem:[%s3 + $0xa8] sm:$0xff]
  %v3074 = vld [vmem:[%s3 + $0xb0] sm:$0xff]
  %v3075 = vld [vmem:[%s3 + $0xb8] sm:$0xff]
  %v3076 = vld [vmem:[%s3 + $0xc0] sm:$0xff]
  %v3077 = vld [vmem:[%s3 + $0xc8] sm:$0xff]
  %v3078 = vld [vmem:[%s3 + $0xd0] sm:$0xff]
  %v3079 = vld [vmem:[%s3 + $0xd8] sm:$0xff]
  %v3080 = vld [vmem:[%s3 + $0xe0] sm:$0xff]
  %v3081 = vld [vmem:[%s3 + $0xe8] sm:$0xff]
  %v3082 = vld [vmem:[%s3 + $0xf0] sm:$0xff]
  %v3083 = vld [vmem:[%s3 + $0xf8] sm:$0xff]
  %v3084 = vld [vmem:[%s3 + $0x100] sm:$0xff]
  %v3085 = vld [vmem:[%s3 + $0x108] sm:$0xff]
  %v3086 = vld [vmem:[%s3 + $0x110] sm:$0xff]
  %v3087 = vld [vmem:[%s3 + $0x118] sm:$0xff]
  %v3088 = vld [vmem:[%s3 + $0x120] sm:$0xff]
  %v3089 = vld [vmem:[%s3 + $0x128] sm:$0xff]
  %v3090 = vld [vmem:[%s3 + $0x130] sm:$0xff]
  %v3091 = vld [vmem:[%s3 + $0x138] sm:$0xff]
  %v3092 = vld [vmem:[%s3 + $0x140] sm:$0xff]
  %v3093 = vld [vmem:[%s3 + $0x148] sm:$0xff]
  %v3094 = vld [vmem:[%s3 + $0x150] sm:$0xff]
  %v3095 = vld [vmem:[%s3 + $0x158] sm:$0xff]
  %v3096 = vld [vmem:[%s3 + $0x160] sm:$0xff]
  %v3097 = vld [vmem:[%s3 + $0x168] sm:$0xff]
  %v3098 = vld [vmem:[%s3 + $0x170] sm:$0xff]
  %v3099 = vld [vmem:[%s3 + $0x178] sm:$0xff]
  %v3100 = vld [vmem:[%s3 + $0x180] sm:$0xff]
  %v3101 = vld [vmem:[%s3 + $0x188] sm:$0xff]
  %v3102 = vld [vmem:[%s3 + $0x190] sm:$0xff]
  %v3103 = vld [vmem:[%s3 + $0x198] sm:$0xff]
  %v3104 = vld [vmem:[%s3 + $0x1a0] sm:$0xff]
  %v3105 = vld [vmem:[%s3 + $0x1a8] sm:$0xff]
  %v3106 = vld [vmem:[%s3 + $0x1b0] sm:$0xff]
  %v3107 = vld [vmem:[%s3 + $0x1b8] sm:$0xff]
  %v3108 = vld [vmem:[%s3 + $0x1c0] sm:$0xff]
  %v3109 = vld [vmem:[%s3 + $0x1c8] sm:$0xff]
  %v3110 = vld [vmem:[%s3 + $0x1d0] sm:$0xff]
  %v3111 = vld [vmem:[%s3 + $0x1d8] sm:$0xff]
  %v3112 = vld [vmem:[%s3 + $0x1e0] sm:$0xff]
  %v3113 = vld [vmem:[%s3 + $0x1e8] sm:$0xff]
  %v3114 = vld [vmem:[%s3 + $0x1f0] sm:$0xff]
  %v3115 = vld [vmem:[%s3 + $0x1f8] sm:$0xff]
  %v3116 = vld [vmem:[%s4] sm:$0xf]
  %v3118 = vlaneseq
  %v3119 = vshrl.u32 %v3118, 7
  %v3120 = vsub.s32 0, %v3119
  %v3121 = vrot.slane %v3116, %v3120
  %v3122 = vlaneseq
  %v3123 = vshrl.u32 %v3122, 7
  %v3124 = vsub.s32 1, %v3123
  %v3125 = vrot.slane %v3116, %v3124
  %v3126 = vlaneseq
  %v3127 = vshrl.u32 %v3126, 7
  %v3128 = vsub.s32 2, %v3127
  %v3129 = vrot.slane %v3116, %v3128
  %v3130 = vlaneseq
  %v3131 = vshrl.u32 %v3130, 7
  %v3132 = vsub.s32 3, %v3131
  %v3133 = vrot.slane %v3116, %v3132
  %v3202 = vunpack.c.l.b16 %v3052
  %v3203 = vunpack.c.h.b16 %v3052
  %v3204 = vunpack.c.l.b16 %v3053
  %v3205 = vunpack.c.h.b16 %v3053
  %v3206 = vunpack.c.l.b16 %v3054
  %v3207 = vunpack.c.h.b16 %v3054
  %v3208 = vunpack.c.l.b16 %v3055
  %v3209 = vunpack.c.h.b16 %v3055
  %v3210 = vunpack.c.l.b16 %v3056
  %v3211 = vunpack.c.h.b16 %v3056
  %v3212 = vunpack.c.l.b16 %v3057
  %v3213 = vunpack.c.h.b16 %v3057
  %v3214 = vunpack.c.l.b16 %v3058
  %v3215 = vunpack.c.h.b16 %v3058
  %v3216 = vunpack.c.l.b16 %v3059
  %v3217 = vunpack.c.h.b16 %v3059
  %v3218 = vunpack.c.l.b16 %v3060
  %v3219 = vunpack.c.h.b16 %v3060
  %v3220 = vunpack.c.l.b16 %v3061
  %v3221 = vunpack.c.h.b16 %v3061
  %v3222 = vunpack.c.l.b16 %v3062
  %v3223 = vunpack.c.h.b16 %v3062
  %v3224 = vunpack.c.l.b16 %v3063
  %v3225 = vunpack.c.h.b16 %v3063
  %v3226 = vunpack.c.l.b16 %v3064
  %v3227 = vunpack.c.h.b16 %v3064
  %v3228 = vunpack.c.l.b16 %v3065
  %v3229 = vunpack.c.h.b16 %v3065
  %v3230 = vunpack.c.l.b16 %v3066
  %v3231 = vunpack.c.h.b16 %v3066
  %v3232 = vunpack.c.l.b16 %v3067
  %v3233 = vunpack.c.h.b16 %v3067
  %v3234 = vunpack.c.l.b16 %v3068
  %v3235 = vunpack.c.h.b16 %v3068
  %v3236 = vunpack.c.l.b16 %v3069
  %v3237 = vunpack.c.h.b16 %v3069
  %v3238 = vunpack.c.l.b16 %v3070
  %v3239 = vunpack.c.h.b16 %v3070
  %v3240 = vunpack.c.l.b16 %v3071
  %v3241 = vunpack.c.h.b16 %v3071
  %v3242 = vunpack.c.l.b16 %v3072
  %v3243 = vunpack.c.h.b16 %v3072
  %v3244 = vunpack.c.l.b16 %v3073
  %v3245 = vunpack.c.h.b16 %v3073
  %v3246 = vunpack.c.l.b16 %v3074
  %v3247 = vunpack.c.h.b16 %v3074
  %v3248 = vunpack.c.l.b16 %v3075
  %v3249 = vunpack.c.h.b16 %v3075
  %v3250 = vunpack.c.l.b16 %v3076
  %v3251 = vunpack.c.h.b16 %v3076
  %v3252 = vunpack.c.l.b16 %v3077
  %v3253 = vunpack.c.h.b16 %v3077
  %v3254 = vunpack.c.l.b16 %v3078
  %v3255 = vunpack.c.h.b16 %v3078
  %v3256 = vunpack.c.l.b16 %v3079
  %v3257 = vunpack.c.h.b16 %v3079
  %v3258 = vunpack.c.l.b16 %v3080
  %v3259 = vunpack.c.h.b16 %v3080
  %v3260 = vunpack.c.l.b16 %v3081
  %v3261 = vunpack.c.h.b16 %v3081
  %v3262 = vunpack.c.l.b16 %v3082
  %v3263 = vunpack.c.h.b16 %v3082
  %v3264 = vunpack.c.l.b16 %v3083
  %v3265 = vunpack.c.h.b16 %v3083
  %v3266 = vunpack.c.l.b16 %v3084
  %v3267 = vunpack.c.h.b16 %v3084
  %v3268 = vunpack.c.l.b16 %v3085
  %v3269 = vunpack.c.h.b16 %v3085
  %v3270 = vunpack.c.l.b16 %v3086
  %v3271 = vunpack.c.h.b16 %v3086
  %v3272 = vunpack.c.l.b16 %v3087
  %v3273 = vunpack.c.h.b16 %v3087
  %v3274 = vunpack.c.l.b16 %v3088
  %v3275 = vunpack.c.h.b16 %v3088
  %v3276 = vunpack.c.l.b16 %v3089
  %v3277 = vunpack.c.h.b16 %v3089
  %v3278 = vunpack.c.l.b16 %v3090
  %v3279 = vunpack.c.h.b16 %v3090
  %v3280 = vunpack.c.l.b16 %v3091
  %v3281 = vunpack.c.h.b16 %v3091
  %v3282 = vunpack.c.l.b16 %v3092
  %v3283 = vunpack.c.h.b16 %v3092
  %v3284 = vunpack.c.l.b16 %v3093
  %v3285 = vunpack.c.h.b16 %v3093
  %v3286 = vunpack.c.l.b16 %v3094
  %v3287 = vunpack.c.h.b16 %v3094
  %v3288 = vunpack.c.l.b16 %v3095
  %v3289 = vunpack.c.h.b16 %v3095
  %v3290 = vunpack.c.l.b16 %v3096
  %v3291 = vunpack.c.h.b16 %v3096
  %v3292 = vunpack.c.l.b16 %v3097
  %v3293 = vunpack.c.h.b16 %v3097
  %v3294 = vunpack.c.l.b16 %v3098
  %v3295 = vunpack.c.h.b16 %v3098
  %v3296 = vunpack.c.l.b16 %v3099
  %v3297 = vunpack.c.h.b16 %v3099
  %v3298 = vunpack.c.l.b16 %v3100
  %v3299 = vunpack.c.h.b16 %v3100
  %v3300 = vunpack.c.l.b16 %v3101
  %v3301 = vunpack.c.h.b16 %v3101
  %v3302 = vunpack.c.l.b16 %v3102
  %v3303 = vunpack.c.h.b16 %v3102
  %v3304 = vunpack.c.l.b16 %v3103
  %v3305 = vunpack.c.h.b16 %v3103
  %v3306 = vunpack.c.l.b16 %v3104
  %v3307 = vunpack.c.h.b16 %v3104
  %v3308 = vunpack.c.l.b16 %v3105
  %v3309 = vunpack.c.h.b16 %v3105
  %v3310 = vunpack.c.l.b16 %v3106
  %v3311 = vunpack.c.h.b16 %v3106
  %v3312 = vunpack.c.l.b16 %v3107
  %v3313 = vunpack.c.h.b16 %v3107
  %v3314 = vunpack.c.l.b16 %v3108
  %v3315 = vunpack.c.h.b16 %v3108
  %v3316 = vunpack.c.l.b16 %v3109
  %v3317 = vunpack.c.h.b16 %v3109
  %v3318 = vunpack.c.l.b16 %v3110
  %v3319 = vunpack.c.h.b16 %v3110
  %v3320 = vunpack.c.l.b16 %v3111
  %v3321 = vunpack.c.h.b16 %v3111
  %v3322 = vunpack.c.l.b16 %v3112
  %v3323 = vunpack.c.h.b16 %v3112
  %v3324 = vunpack.c.l.b16 %v3113
  %v3325 = vunpack.c.h.b16 %v3113
  %v3326 = vunpack.c.l.b16 %v3114
  %v3327 = vunpack.c.h.b16 %v3114
  %v3328 = vunpack.c.l.b16 %v3115
  %v3329 = vunpack.c.h.b16 %v3115
  %v3330 = vpack.c.b16 %v3206, %v3202
  %v3331 = vpack.c.b16 %v3207, %v3203
  %v3332 = vpack.c.b16 %v3208, %v3204
  %v3333 = vpack.c.b16 %v3209, %v3205
  %v3334 = vpack.c.b16 %v3214, %v3210
  %v3335 = vpack.c.b16 %v3215, %v3211
  %v3336 = vpack.c.b16 %v3216, %v3212
  %v3337 = vpack.c.b16 %v3217, %v3213
  %v3338 = vpack.c.b16 %v3222, %v3218
  %v3339 = vpack.c.b16 %v3223, %v3219
  %v3340 = vpack.c.b16 %v3224, %v3220
  %v3341 = vpack.c.b16 %v3225, %v3221
  %v3342 = vpack.c.b16 %v3230, %v3226
  %v3343 = vpack.c.b16 %v3231, %v3227
  %v3344 = vpack.c.b16 %v3232, %v3228
  %v3345 = vpack.c.b16 %v3233, %v3229
  %v3346 = vpack.c.b16 %v3238, %v3234
  %v3347 = vpack.c.b16 %v3239, %v3235
  %v3348 = vpack.c.b16 %v3240, %v3236
  %v3349 = vpack.c.b16 %v3241, %v3237
  %v3350 = vpack.c.b16 %v3246, %v3242
  %v3351 = vpack.c.b16 %v3247, %v3243
  %v3352 = vpack.c.b16 %v3248, %v3244
  %v3353 = vpack.c.b16 %v3249, %v3245
  %v3354 = vpack.c.b16 %v3254, %v3250
  %v3355 = vpack.c.b16 %v3255, %v3251
  %v3356 = vpack.c.b16 %v3256, %v3252
  %v3357 = vpack.c.b16 %v3257, %v3253
  %v3358 = vpack.c.b16 %v3262, %v3258
  %v3359 = vpack.c.b16 %v3263, %v3259
  %v3360 = vpack.c.b16 %v3264, %v3260
  %v3361 = vpack.c.b16 %v3265, %v3261
  %v3362 = vpack.c.b16 %v3270, %v3266
  %v3363 = vpack.c.b16 %v3271, %v3267
  %v3364 = vpack.c.b16 %v3272, %v3268
  %v3365 = vpack.c.b16 %v3273, %v3269
  %v3366 = vpack.c.b16 %v3278, %v3274
  %v3367 = vpack.c.b16 %v3279, %v3275
  %v3368 = vpack.c.b16 %v3280, %v3276
  %v3369 = vpack.c.b16 %v3281, %v3277
  %v3370 = vpack.c.b16 %v3286, %v3282
  %v3371 = vpack.c.b16 %v3287, %v3283
  %v3372 = vpack.c.b16 %v3288, %v3284
  %v3373 = vpack.c.b16 %v3289, %v3285
  %v3374 = vpack.c.b16 %v3294, %v3290
  %v3375 = vpack.c.b16 %v3295, %v3291
  %v3376 = vpack.c.b16 %v3296, %v3292
  %v3377 = vpack.c.b16 %v3297, %v3293
  %v3378 = vpack.c.b16 %v3302, %v3298
  %v3379 = vpack.c.b16 %v3303, %v3299
  %v3380 = vpack.c.b16 %v3304, %v3300
  %v3381 = vpack.c.b16 %v3305, %v3301
  %v3382 = vpack.c.b16 %v3310, %v3306
  %v3383 = vpack.c.b16 %v3311, %v3307
  %v3384 = vpack.c.b16 %v3312, %v3308
  %v3385 = vpack.c.b16 %v3313, %v3309
  %v3386 = vpack.c.b16 %v3318, %v3314
  %v3387 = vpack.c.b16 %v3319, %v3315
  %v3388 = vpack.c.b16 %v3320, %v3316
  %v3389 = vpack.c.b16 %v3321, %v3317
  %v3390 = vpack.c.b16 %v3326, %v3322
  %v3391 = vpack.c.b16 %v3327, %v3323
  %v3392 = vpack.c.b16 %v3328, %v3324
  %v3393 = vpack.c.b16 %v3329, %v3325
  %3458 = vmatprep.subr.bf16.mxu0 %v3359
  %3459 = vmatpush1.bf16.msra.mxu0 %v3358
  %3460 = vmatprep.subr.bf16.mxu0 %v3355
  %3461 = vmatpush1.bf16.msra.mxu0 %v3354
  %3462 = vmatprep.subr.bf16.mxu0 %v3351
  %3463 = vmatpush1.bf16.msra.mxu0 %v3350
  %3464 = vmatprep.subr.bf16.mxu0 %v3347
  %3465 = vmatpush1.bf16.msra.mxu0 %v3346
  %3466 = vmatprep.subr.bf16.mxu0 %v3343
  %3467 = vmatpush1.bf16.msra.mxu0 %v3342
  %3468 = vmatprep.subr.bf16.mxu0 %v3339
  %3469 = vmatpush1.bf16.msra.mxu0 %v3338
  %3470 = vmatprep.subr.bf16.mxu0 %v3335
  %3471 = vmatpush1.bf16.msra.mxu0 %v3334
  %3472 = vmatprep.subr.bf16.mxu0 %v3331
  %3473 = vmatpush1.bf16.msra.mxu0 %v3330
  %3474 = vmatprep.subr.bf16.mxu0 %v3391
  %3475 = vmatpush2.bf16.msra.mxu0 %v3390
  %3476 = vmatprep.subr.bf16.mxu0 %v3387
  %3477 = vmatpush2.bf16.msra.mxu0 %v3386
  %3478 = vmatprep.subr.bf16.mxu0 %v3383
  %3479 = vmatpush2.bf16.msra.mxu0 %v3382
  %3480 = vmatprep.subr.bf16.mxu0 %v3379
  %3481 = vmatpush2.bf16.msra.mxu0 %v3378
  %3482 = vmatprep.subr.bf16.mxu0 %v3375
  %3483 = vmatpush2.bf16.msra.mxu0 %v3374
  %3484 = vmatprep.subr.bf16.mxu0 %v3371
  %3485 = vmatpush2.bf16.msra.mxu0 %v3370
  %3486 = vmatprep.subr.bf16.mxu0 %v3367
  %3487 = vmatpush2.bf16.msra.mxu0 %v3366
  %3488 = vmatprep.subr.bf16.mxu0 %v3363
  %3489 = vmatpush2.bf16.msra.mxu0 %v3362
  %3490 = vmatprep.mubr.bf16.mxu0 %v3051
  %3491 = vmatmul.mubr.bf16.gmra.mxu0 %v3050
  %v3492 = vpop.f32.mrf.mxu0
  %v3493 = vadd.f32 %v3121, %v3492
  %v3494 = vpop.f32.mrf.mxu0
  %v3495 = vadd.f32 %v3125, %v3494
  %v3496 = vpop.f32.mrf.mxu0
  %v3497 = vpop.f32.mrf.mxu0
  %3498 = vdwg.mxu0
  %3499 = vmatprep.subr.bf16.mxu0 %v3361
  %3500 = vmatpush1.bf16.msra.mxu0 %v3360
  %3501 = vmatprep.subr.bf16.mxu0 %v3357
  %3502 = vmatpush1.bf16.msra.mxu0 %v3356
  %3503 = vmatprep.subr.bf16.mxu0 %v3353
  %3504 = vmatpush1.bf16.msra.mxu0 %v3352
  %3505 = vmatprep.subr.bf16.mxu0 %v3349
  %3506 = vmatpush1.bf16.msra.mxu0 %v3348
  %3507 = vmatprep.subr.bf16.mxu0 %v3345
  %3508 = vmatpush1.bf16.msra.mxu0 %v3344
  %3509 = vmatprep.subr.bf16.mxu0 %v3341
  %3510 = vmatpush1.bf16.msra.mxu0 %v3340
  %3511 = vmatprep.subr.bf16.mxu0 %v3337
  %3512 = vmatpush1.bf16.msra.mxu0 %v3336
  %3513 = vmatprep.subr.bf16.mxu0 %v3333
  %3514 = vmatpush1.bf16.msra.mxu0 %v3332
  %3515 = vmatprep.subr.bf16.mxu0 %v3393
  %3516 = vmatpush2.bf16.msra.mxu0 %v3392
  %3517 = vmatprep.subr.bf16.mxu0 %v3389
  %3518 = vmatpush2.bf16.msra.mxu0 %v3388
  %3519 = vmatprep.subr.bf16.mxu0 %v3385
  %3520 = vmatpush2.bf16.msra.mxu0 %v3384
  %3521 = vmatprep.subr.bf16.mxu0 %v3381
  %3522 = vmatpush2.bf16.msra.mxu0 %v3380
  %3523 = vmatprep.subr.bf16.mxu0 %v3377
  %3524 = vmatpush2.bf16.msra.mxu0 %v3376
  %3525 = vmatprep.subr.bf16.mxu0 %v3373
  %3526 = vmatpush2.bf16.msra.mxu0 %v3372
  %3527 = vmatprep.subr.bf16.mxu0 %v3369
  %3528 = vmatpush2.bf16.msra.mxu0 %v3368
  %3529 = vmatprep.subr.bf16.mxu0 %v3365
  %3530 = vmatpush2.bf16.msra.mxu0 %v3364
  %3531 = vmatprep.mubr.bf16.mxu0 %v3051
  %3532 = vmatmul.mubr.bf16.gmra.mxu0 %v3050
  %v3533 = vpop.f32.mrf.mxu0
  %v3534 = vadd.f32 %v3129, %v3533
  %v3535 = vpop.f32.mrf.mxu0
  %v3536 = vadd.f32 %v3133, %v3535
  %v3537 = vpop.f32.mrf.mxu0
  %v3538 = vpop.f32.mrf.mxu0
  %3539 = vdwg.mxu0
  %v3540 = vmax.f32 %v3493, 0.0
  %v3541 = vmax.f32 %v3495, 0.0
  %v3542 = vmax.f32 %v3534, 0.0
  %v3543 = vmax.f32 %v3536, 0.0
  %v3544 = vpack.c.bf16 %v3540, %v3540
  %v3545 = vpack.c.bf16 %v3541, %v3541
  %v3546 = vpack.c.bf16 %v3542, %v3542
  %v3547 = vpack.c.bf16 %v3543, %v3543
  %v3548 = vld [vmem:[%s5] sm:$0xff]
  %v3549 = vld [vmem:[%s5 + $0x8] sm:$0xff]
  %v3550 = vld [vmem:[%s5 + $0x10] sm:$0xff]
  %v3551 = vld [vmem:[%s5 + $0x18] sm:$0xff]
  %v3552 = vld [vmem:[%s5 + $0x20] sm:$0xff]
  %v3553 = vld [vmem:[%s5 + $0x28] sm:$0xff]
  %v3554 = vld [vmem:[%s5 + $0x30] sm:$0xff]
  %v3555 = vld [vmem:[%s5 + $0x38] sm:$0xff]
  %v3556 = vld [vmem:[%s5 + $0x40] sm:$0xff]
  %v3557 = vld [vmem:[%s5 + $0x48] sm:$0xff]
  %v3558 = vld [vmem:[%s5 + $0x50] sm:$0xff]
  %v3559 = vld [vmem:[%s5 + $0x58] sm:$0xff]
  %v3560 = vld [vmem:[%s5 + $0x60] sm:$0xff]
  %v3561 = vld [vmem:[%s5 + $0x68] sm:$0xff]
  %v3562 = vld [vmem:[%s5 + $0x70] sm:$0xff]
  %v3563 = vld [vmem:[%s5 + $0x78] sm:$0xff]
  %v3564 = vld [vmem:[%s5 + $0x80] sm:$0xff]
  %v3565 = vld [vmem:[%s5 + $0x88] sm:$0xff]
  %v3566 = vld [vmem:[%s5 + $0x90] sm:$0xff]
  %v3567 = vld [vmem:[%s5 + $0x98] sm:$0xff]
  %v3568 = vld [vmem:[%s5 + $0xa0] sm:$0xff]
  %v3569 = vld [vmem:[%s5 + $0xa8] sm:$0xff]
  %v3570 = vld [vmem:[%s5 + $0xb0] sm:$0xff]
  %v3571 = vld [vmem:[%s5 + $0xb8] sm:$0xff]
  %v3572 = vld [vmem:[%s5 + $0xc0] sm:$0xff]
  %v3573 = vld [vmem:[%s5 + $0xc8] sm:$0xff]
  %v3574 = vld [vmem:[%s5 + $0xd0] sm:$0xff]
  %v3575 = vld [vmem:[%s5 + $0xd8] sm:$0xff]
  %v3576 = vld [vmem:[%s5 + $0xe0] sm:$0xff]
  %v3577 = vld [vmem:[%s5 + $0xe8] sm:$0xff]
  %v3578 = vld [vmem:[%s5 + $0xf0] sm:$0xff]
  %v3579 = vld [vmem:[%s5 + $0xf8] sm:$0xff]
  %v3580 = vld [vmem:[%s5 + $0x100] sm:$0xff]
  %v3581 = vld [vmem:[%s5 + $0x108] sm:$0xff]
  %v3582 = vld [vmem:[%s5 + $0x110] sm:$0xff]
  %v3583 = vld [vmem:[%s5 + $0x118] sm:$0xff]
  %v3584 = vld [vmem:[%s5 + $0x120] sm:$0xff]
  %v3585 = vld [vmem:[%s5 + $0x128] sm:$0xff]
  %v3586 = vld [vmem:[%s5 + $0x130] sm:$0xff]
  %v3587 = vld [vmem:[%s5 + $0x138] sm:$0xff]
  %v3588 = vld [vmem:[%s5 + $0x140] sm:$0xff]
  %v3589 = vld [vmem:[%s5 + $0x148] sm:$0xff]
  %v3590 = vld [vmem:[%s5 + $0x150] sm:$0xff]
  %v3591 = vld [vmem:[%s5 + $0x158] sm:$0xff]
  %v3592 = vld [vmem:[%s5 + $0x160] sm:$0xff]
  %v3593 = vld [vmem:[%s5 + $0x168] sm:$0xff]
  %v3594 = vld [vmem:[%s5 + $0x170] sm:$0xff]
  %v3595 = vld [vmem:[%s5 + $0x178] sm:$0xff]
  %v3596 = vld [vmem:[%s5 + $0x180] sm:$0xff]
  %v3597 = vld [vmem:[%s5 + $0x188] sm:$0xff]
  %v3598 = vld [vmem:[%s5 + $0x190] sm:$0xff]
  %v3599 = vld [vmem:[%s5 + $0x198] sm:$0xff]
  %v3600 = vld [vmem:[%s5 + $0x1a0] sm:$0xff]
  %v3601 = vld [vmem:[%s5 + $0x1a8] sm:$0xff]
  %v3602 = vld [vmem:[%s5 + $0x1b0] sm:$0xff]
  %v3603 = vld [vmem:[%s5 + $0x1b8] sm:$0xff]
  %v3604 = vld [vmem:[%s5 + $0x1c0] sm:$0xff]
  %v3605 = vld [vmem:[%s5 + $0x1c8] sm:$0xff]
  %v3606 = vld [vmem:[%s5 + $0x1d0] sm:$0xff]
  %v3607 = vld [vmem:[%s5 + $0x1d8] sm:$0xff]
  %v3608 = vld [vmem:[%s5 + $0x1e0] sm:$0xff]
  %v3609 = vld [vmem:[%s5 + $0x1e8] sm:$0xff]
  %v3610 = vld [vmem:[%s5 + $0x1f0] sm:$0xff]
  %v3611 = vld [vmem:[%s5 + $0x1f8] sm:$0xff]
  %v3612 = vld [vmem:[%s5 + $0x200] sm:$0xff]
  %v3613 = vld [vmem:[%s5 + $0x208] sm:$0xff]
  %v3614 = vld [vmem:[%s5 + $0x210] sm:$0xff]
  %v3615 = vld [vmem:[%s5 + $0x218] sm:$0xff]
  %v3616 = vld [vmem:[%s5 + $0x220] sm:$0xff]
  %v3617 = vld [vmem:[%s5 + $0x228] sm:$0xff]
  %v3618 = vld [vmem:[%s5 + $0x230] sm:$0xff]
  %v3619 = vld [vmem:[%s5 + $0x238] sm:$0xff]
  %v3620 = vld [vmem:[%s5 + $0x240] sm:$0xff]
  %v3621 = vld [vmem:[%s5 + $0x248] sm:$0xff]
  %v3622 = vld [vmem:[%s5 + $0x250] sm:$0xff]
  %v3623 = vld [vmem:[%s5 + $0x258] sm:$0xff]
  %v3624 = vld [vmem:[%s5 + $0x260] sm:$0xff]
  %v3625 = vld [vmem:[%s5 + $0x268] sm:$0xff]
  %v3626 = vld [vmem:[%s5 + $0x270] sm:$0xff]
  %v3627 = vld [vmem:[%s5 + $0x278] sm:$0xff]
  %v3628 = vld [vmem:[%s5 + $0x280] sm:$0xff]
  %v3629 = vld [vmem:[%s5 + $0x288] sm:$0xff]
  %v3630 = vld [vmem:[%s5 + $0x290] sm:$0xff]
  %v3631 = vld [vmem:[%s5 + $0x298] sm:$0xff]
  %v3632 = vld [vmem:[%s5 + $0x2a0] sm:$0xff]
  %v3633 = vld [vmem:[%s5 + $0x2a8] sm:$0xff]
  %v3634 = vld [vmem:[%s5 + $0x2b0] sm:$0xff]
  %v3635 = vld [vmem:[%s5 + $0x2b8] sm:$0xff]
  %v3636 = vld [vmem:[%s5 + $0x2c0] sm:$0xff]
  %v3637 = vld [vmem:[%s5 + $0x2c8] sm:$0xff]
  %v3638 = vld [vmem:[%s5 + $0x2d0] sm:$0xff]
  %v3639 = vld [vmem:[%s5 + $0x2d8] sm:$0xff]
  %v3640 = vld [vmem:[%s5 + $0x2e0] sm:$0xff]
  %v3641 = vld [vmem:[%s5 + $0x2e8] sm:$0xff]
  %v3642 = vld [vmem:[%s5 + $0x2f0] sm:$0xff]
  %v3643 = vld [vmem:[%s5 + $0x2f8] sm:$0xff]
  %v3644 = vld [vmem:[%s5 + $0x300] sm:$0xff]
  %v3645 = vld [vmem:[%s5 + $0x308] sm:$0xff]
  %v3646 = vld [vmem:[%s5 + $0x310] sm:$0xff]
  %v3647 = vld [vmem:[%s5 + $0x318] sm:$0xff]
  %v3648 = vld [vmem:[%s5 + $0x320] sm:$0xff]
  %v3649 = vld [vmem:[%s5 + $0x328] sm:$0xff]
  %v3650 = vld [vmem:[%s5 + $0x330] sm:$0xff]
  %v3651 = vld [vmem:[%s5 + $0x338] sm:$0xff]
  %v3652 = vld [vmem:[%s5 + $0x340] sm:$0xff]
  %v3653 = vld [vmem:[%s5 + $0x348] sm:$0xff]
  %v3654 = vld [vmem:[%s5 + $0x350] sm:$0xff]
  %v3655 = vld [vmem:[%s5 + $0x358] sm:$0xff]
  %v3656 = vld [vmem:[%s5 + $0x360] sm:$0xff]
  %v3657 = vld [vmem:[%s5 + $0x368] sm:$0xff]
  %v3658 = vld [vmem:[%s5 + $0x370] sm:$0xff]
  %v3659 = vld [vmem:[%s5 + $0x378] sm:$0xff]
  %v3660 = vld [vmem:[%s5 + $0x380] sm:$0xff]
  %v3661 = vld [vmem:[%s5 + $0x388] sm:$0xff]
  %v3662 = vld [vmem:[%s5 + $0x390] sm:$0xff]
  %v3663 = vld [vmem:[%s5 + $0x398] sm:$0xff]
  %v3664 = vld [vmem:[%s5 + $0x3a0] sm:$0xff]
  %v3665 = vld [vmem:[%s5 + $0x3a8] sm:$0xff]
  %v3666 = vld [vmem:[%s5 + $0x3b0] sm:$0xff]
  %v3667 = vld [vmem:[%s5 + $0x3b8] sm:$0xff]
  %v3668 = vld [vmem:[%s5 + $0x3c0] sm:$0xff]
  %v3669 = vld [vmem:[%s5 + $0x3c8] sm:$0xff]
  %v3670 = vld [vmem:[%s5 + $0x3d0] sm:$0xff]
  %v3671 = vld [vmem:[%s5 + $0x3d8] sm:$0xff]
  %v3672 = vld [vmem:[%s5 + $0x3e0] sm:$0xff]
  %v3673 = vld [vmem:[%s5 + $0x3e8] sm:$0xff]
  %v3674 = vld [vmem:[%s5 + $0x3f0] sm:$0xff]
  %v3675 = vld [vmem:[%s5 + $0x3f8] sm:$0xff]
  %v3676 = vld [vmem:[%s6] sm:$0xf]
  %v3678 = vlaneseq
  %v3679 = vshrl.u32 %v3678, 7
  %v3680 = vsub.s32 0, %v3679
  %v3681 = vrot.slane %v3676, %v3680
  %v3682 = vlaneseq
  %v3683 = vshrl.u32 %v3682, 7
  %v3684 = vsub.s32 1, %v3683
  %v3685 = vrot.slane %v3676, %v3684
  %v3686 = vlaneseq
  %v3687 = vshrl.u32 %v3686, 7
  %v3688 = vsub.s32 2, %v3687
  %v3689 = vrot.slane %v3676, %v3688
  %v3690 = vlaneseq
  %v3691 = vshrl.u32 %v3690, 7
  %v3692 = vsub.s32 3, %v3691
  %v3693 = vrot.slane %v3676, %v3692
  %v3826 = vunpack.c.l.b16 %v3548
  %v3827 = vunpack.c.h.b16 %v3548
  %v3828 = vunpack.c.l.b16 %v3549
  %v3829 = vunpack.c.h.b16 %v3549
  %v3830 = vunpack.c.l.b16 %v3550
  %v3831 = vunpack.c.h.b16 %v3550
  %v3832 = vunpack.c.l.b16 %v3551
  %v3833 = vunpack.c.h.b16 %v3551
  %v3834 = vunpack.c.l.b16 %v3552
  %v3835 = vunpack.c.h.b16 %v3552
  %v3836 = vunpack.c.l.b16 %v3553
  %v3837 = vunpack.c.h.b16 %v3553
  %v3838 = vunpack.c.l.b16 %v3554
  %v3839 = vunpack.c.h.b16 %v3554
  %v3840 = vunpack.c.l.b16 %v3555
  %v3841 = vunpack.c.h.b16 %v3555
  %v3842 = vunpack.c.l.b16 %v3556
  %v3843 = vunpack.c.h.b16 %v3556
  %v3844 = vunpack.c.l.b16 %v3557
  %v3845 = vunpack.c.h.b16 %v3557
  %v3846 = vunpack.c.l.b16 %v3558
  %v3847 = vunpack.c.h.b16 %v3558
  %v3848 = vunpack.c.l.b16 %v3559
  %v3849 = vunpack.c.h.b16 %v3559
  %v3850 = vunpack.c.l.b16 %v3560
  %v3851 = vunpack.c.h.b16 %v3560
  %v3852 = vunpack.c.l.b16 %v3561
  %v3853 = vunpack.c.h.b16 %v3561
  %v3854 = vunpack.c.l.b16 %v3562
  %v3855 = vunpack.c.h.b16 %v3562
  %v3856 = vunpack.c.l.b16 %v3563
  %v3857 = vunpack.c.h.b16 %v3563
  %v3858 = vunpack.c.l.b16 %v3564
  %v3859 = vunpack.c.h.b16 %v3564
  %v3860 = vunpack.c.l.b16 %v3565
  %v3861 = vunpack.c.h.b16 %v3565
  %v3862 = vunpack.c.l.b16 %v3566
  %v3863 = vunpack.c.h.b16 %v3566
  %v3864 = vunpack.c.l.b16 %v3567
  %v3865 = vunpack.c.h.b16 %v3567
  %v3866 = vunpack.c.l.b16 %v3568
  %v3867 = vunpack.c.h.b16 %v3568
  %v3868 = vunpack.c.l.b16 %v3569
  %v3869 = vunpack.c.h.b16 %v3569
  %v3870 = vunpack.c.l.b16 %v3570
  %v3871 = vunpack.c.h.b16 %v3570
  %v3872 = vunpack.c.l.b16 %v3571
  %v3873 = vunpack.c.h.b16 %v3571
  %v3874 = vunpack.c.l.b16 %v3572
  %v3875 = vunpack.c.h.b16 %v3572
  %v3876 = vunpack.c.l.b16 %v3573
  %v3877 = vunpack.c.h.b16 %v3573
  %v3878 = vunpack.c.l.b16 %v3574
  %v3879 = vunpack.c.h.b16 %v3574
  %v3880 = vunpack.c.l.b16 %v3575
  %v3881 = vunpack.c.h.b16 %v3575
  %v3882 = vunpack.c.l.b16 %v3576
  %v3883 = vunpack.c.h.b16 %v3576
  %v3884 = vunpack.c.l.b16 %v3577
  %v3885 = vunpack.c.h.b16 %v3577
  %v3886 = vunpack.c.l.b16 %v3578
  %v3887 = vunpack.c.h.b16 %v3578
  %v3888 = vunpack.c.l.b16 %v3579
  %v3889 = vunpack.c.h.b16 %v3579
  %v3890 = vunpack.c.l.b16 %v3580
  %v3891 = vunpack.c.h.b16 %v3580
  %v3892 = vunpack.c.l.b16 %v3581
  %v3893 = vunpack.c.h.b16 %v3581
  %v3894 = vunpack.c.l.b16 %v3582
  %v3895 = vunpack.c.h.b16 %v3582
  %v3896 = vunpack.c.l.b16 %v3583
  %v3897 = vunpack.c.h.b16 %v3583
  %v3898 = vunpack.c.l.b16 %v3584
  %v3899 = vunpack.c.h.b16 %v3584
  %v3900 = vunpack.c.l.b16 %v3585
  %v3901 = vunpack.c.h.b16 %v3585
  %v3902 = vunpack.c.l.b16 %v3586
  %v3903 = vunpack.c.h.b16 %v3586
  %v3904 = vunpack.c.l.b16 %v3587
  %v3905 = vunpack.c.h.b16 %v3587
  %v3906 = vunpack.c.l.b16 %v3588
  %v3907 = vunpack.c.h.b16 %v3588
  %v3908 = vunpack.c.l.b16 %v3589
  %v3909 = vunpack.c.h.b16 %v3589
  %v3910 = vunpack.c.l.b16 %v3590
  %v3911 = vunpack.c.h.b16 %v3590
  %v3912 = vunpack.c.l.b16 %v3591
  %v3913 = vunpack.c.h.b16 %v3591
  %v3914 = vunpack.c.l.b16 %v3592
  %v3915 = vunpack.c.h.b16 %v3592
  %v3916 = vunpack.c.l.b16 %v3593
  %v3917 = vunpack.c.h.b16 %v3593
  %v3918 = vunpack.c.l.b16 %v3594
  %v3919 = vunpack.c.h.b16 %v3594
  %v3920 = vunpack.c.l.b16 %v3595
  %v3921 = vunpack.c.h.b16 %v3595
  %v3922 = vunpack.c.l.b16 %v3596
  %v3923 = vunpack.c.h.b16 %v3596
  %v3924 = vunpack.c.l.b16 %v3597
  %v3925 = vunpack.c.h.b16 %v3597
  %v3926 = vunpack.c.l.b16 %v3598
  %v3927 = vunpack.c.h.b16 %v3598
  %v3928 = vunpack.c.l.b16 %v3599
  %v3929 = vunpack.c.h.b16 %v3599
  %v3930 = vunpack.c.l.b16 %v3600
  %v3931 = vunpack.c.h.b16 %v3600
  %v3932 = vunpack.c.l.b16 %v3601
  %v3933 = vunpack.c.h.b16 %v3601
  %v3934 = vunpack.c.l.b16 %v3602
  %v3935 = vunpack.c.h.b16 %v3602
  %v3936 = vunpack.c.l.b16 %v3603
  %v3937 = vunpack.c.h.b16 %v3603
  %v3938 = vunpack.c.l.b16 %v3604
  %v3939 = vunpack.c.h.b16 %v3604
  %v3940 = vunpack.c.l.b16 %v3605
  %v3941 = vunpack.c.h.b16 %v3605
  %v3942 = vunpack.c.l.b16 %v3606
  %v3943 = vunpack.c.h.b16 %v3606
  %v3944 = vunpack.c.l.b16 %v3607
  %v3945 = vunpack.c.h.b16 %v3607
  %v3946 = vunpack.c.l.b16 %v3608
  %v3947 = vunpack.c.h.b16 %v3608
  %v3948 = vunpack.c.l.b16 %v3609
  %v3949 = vunpack.c.h.b16 %v3609
  %v3950 = vunpack.c.l.b16 %v3610
  %v3951 = vunpack.c.h.b16 %v3610
  %v3952 = vunpack.c.l.b16 %v3611
  %v3953 = vunpack.c.h.b16 %v3611
  %v3954 = vunpack.c.l.b16 %v3612
  %v3955 = vunpack.c.h.b16 %v3612
  %v3956 = vunpack.c.l.b16 %v3613
  %v3957 = vunpack.c.h.b16 %v3613
  %v3958 = vunpack.c.l.b16 %v3614
  %v3959 = vunpack.c.h.b16 %v3614
  %v3960 = vunpack.c.l.b16 %v3615
  %v3961 = vunpack.c.h.b16 %v3615
  %v3962 = vunpack.c.l.b16 %v3616
  %v3963 = vunpack.c.h.b16 %v3616
  %v3964 = vunpack.c.l.b16 %v3617
  %v3965 = vunpack.c.h.b16 %v3617
  %v3966 = vunpack.c.l.b16 %v3618
  %v3967 = vunpack.c.h.b16 %v3618
  %v3968 = vunpack.c.l.b16 %v3619
  %v3969 = vunpack.c.h.b16 %v3619
  %v3970 = vunpack.c.l.b16 %v3620
  %v3971 = vunpack.c.h.b16 %v3620
  %v3972 = vunpack.c.l.b16 %v3621
  %v3973 = vunpack.c.h.b16 %v3621
  %v3974 = vunpack.c.l.b16 %v3622
  %v3975 = vunpack.c.h.b16 %v3622
  %v3976 = vunpack.c.l.b16 %v3623
  %v3977 = vunpack.c.h.b16 %v3623
  %v3978 = vunpack.c.l.b16 %v3624
  %v3979 = vunpack.c.h.b16 %v3624
  %v3980 = vunpack.c.l.b16 %v3625
  %v3981 = vunpack.c.h.b16 %v3625
  %v3982 = vunpack.c.l.b16 %v3626
  %v3983 = vunpack.c.h.b16 %v3626
  %v3984 = vunpack.c.l.b16 %v3627
  %v3985 = vunpack.c.h.b16 %v3627
  %v3986 = vunpack.c.l.b16 %v3628
  %v3987 = vunpack.c.h.b16 %v3628
  %v3988 = vunpack.c.l.b16 %v3629
  %v3989 = vunpack.c.h.b16 %v3629
  %v3990 = vunpack.c.l.b16 %v3630
  %v3991 = vunpack.c.h.b16 %v3630
  %v3992 = vunpack.c.l.b16 %v3631
  %v3993 = vunpack.c.h.b16 %v3631
  %v3994 = vunpack.c.l.b16 %v3632
  %v3995 = vunpack.c.h.b16 %v3632
  %v3996 = vunpack.c.l.b16 %v3633
  %v3997 = vunpack.c.h.b16 %v3633
  %v3998 = vunpack.c.l.b16 %v3634
  %v3999 = vunpack.c.h.b16 %v3634
  %v4000 = vunpack.c.l.b16 %v3635
  %v4001 = vunpack.c.h.b16 %v3635
  %v4002 = vunpack.c.l.b16 %v3636
  %v4003 = vunpack.c.h.b16 %v3636
  %v4004 = vunpack.c.l.b16 %v3637
  %v4005 = vunpack.c.h.b16 %v3637
  %v4006 = vunpack.c.l.b16 %v3638
  %v4007 = vunpack.c.h.b16 %v3638
  %v4008 = vunpack.c.l.b16 %v3639
  %v4009 = vunpack.c.h.b16 %v3639
  %v4010 = vunpack.c.l.b16 %v3640
  %v4011 = vunpack.c.h.b16 %v3640
  %v4012 = vunpack.c.l.b16 %v3641
  %v4013 = vunpack.c.h.b16 %v3641
  %v4014 = vunpack.c.l.b16 %v3642
  %v4015 = vunpack.c.h.b16 %v3642
  %v4016 = vunpack.c.l.b16 %v3643
  %v4017 = vunpack.c.h.b16 %v3643
  %v4018 = vunpack.c.l.b16 %v3644
  %v4019 = vunpack.c.h.b16 %v3644
  %v4020 = vunpack.c.l.b16 %v3645
  %v4021 = vunpack.c.h.b16 %v3645
  %v4022 = vunpack.c.l.b16 %v3646
  %v4023 = vunpack.c.h.b16 %v3646
  %v4024 = vunpack.c.l.b16 %v3647
  %v4025 = vunpack.c.h.b16 %v3647
  %v4026 = vunpack.c.l.b16 %v3648
  %v4027 = vunpack.c.h.b16 %v3648
  %v4028 = vunpack.c.l.b16 %v3649
  %v4029 = vunpack.c.h.b16 %v3649
  %v4030 = vunpack.c.l.b16 %v3650
  %v4031 = vunpack.c.h.b16 %v3650
  %v4032 = vunpack.c.l.b16 %v3651
  %v4033 = vunpack.c.h.b16 %v3651
  %v4034 = vunpack.c.l.b16 %v3652
  %v4035 = vunpack.c.h.b16 %v3652
  %v4036 = vunpack.c.l.b16 %v3653
  %v4037 = vunpack.c.h.b16 %v3653
  %v4038 = vunpack.c.l.b16 %v3654
  %v4039 = vunpack.c.h.b16 %v3654
  %v4040 = vunpack.c.l.b16 %v3655
  %v4041 = vunpack.c.h.b16 %v3655
  %v4042 = vunpack.c.l.b16 %v3656
  %v4043 = vunpack.c.h.b16 %v3656
  %v4044 = vunpack.c.l.b16 %v3657
  %v4045 = vunpack.c.h.b16 %v3657
  %v4046 = vunpack.c.l.b16 %v3658
  %v4047 = vunpack.c.h.b16 %v3658
  %v4048 = vunpack.c.l.b16 %v3659
  %v4049 = vunpack.c.h.b16 %v3659
  %v4050 = vunpack.c.l.b16 %v3660
  %v4051 = vunpack.c.h.b16 %v3660
  %v4052 = vunpack.c.l.b16 %v3661
  %v4053 = vunpack.c.h.b16 %v3661
  %v4054 = vunpack.c.l.b16 %v3662
  %v4055 = vunpack.c.h.b16 %v3662
  %v4056 = vunpack.c.l.b16 %v3663
  %v4057 = vunpack.c.h.b16 %v3663
  %v4058 = vunpack.c.l.b16 %v3664
  %v4059 = vunpack.c.h.b16 %v3664
  %v4060 = vunpack.c.l.b16 %v3665
  %v4061 = vunpack.c.h.b16 %v3665
  %v4062 = vunpack.c.l.b16 %v3666
  %v4063 = vunpack.c.h.b16 %v3666
  %v4064 = vunpack.c.l.b16 %v3667
  %v4065 = vunpack.c.h.b16 %v3667
  %v4066 = vunpack.c.l.b16 %v3668
  %v4067 = vunpack.c.h.b16 %v3668
  %v4068 = vunpack.c.l.b16 %v3669
  %v4069 = vunpack.c.h.b16 %v3669
  %v4070 = vunpack.c.l.b16 %v3670
  %v4071 = vunpack.c.h.b16 %v3670
  %v4072 = vunpack.c.l.b16 %v3671
  %v4073 = vunpack.c.h.b16 %v3671
  %v4074 = vunpack.c.l.b16 %v3672
  %v4075 = vunpack.c.h.b16 %v3672
  %v4076 = vunpack.c.l.b16 %v3673
  %v4077 = vunpack.c.h.b16 %v3673
  %v4078 = vunpack.c.l.b16 %v3674
  %v4079 = vunpack.c.h.b16 %v3674
  %v4080 = vunpack.c.l.b16 %v3675
  %v4081 = vunpack.c.h.b16 %v3675
  %v4082 = vpack.c.b16 %v3830, %v3826
  %v4083 = vpack.c.b16 %v3831, %v3827
  %v4084 = vpack.c.b16 %v3832, %v3828
  %v4085 = vpack.c.b16 %v3833, %v3829
  %v4086 = vpack.c.b16 %v3838, %v3834
  %v4087 = vpack.c.b16 %v3839, %v3835
  %v4088 = vpack.c.b16 %v3840, %v3836
  %v4089 = vpack.c.b16 %v3841, %v3837
  %v4090 = vpack.c.b16 %v3846, %v3842
  %v4091 = vpack.c.b16 %v3847, %v3843
  %v4092 = vpack.c.b16 %v3848, %v3844
  %v4093 = vpack.c.b16 %v3849, %v3845
  %v4094 = vpack.c.b16 %v3854, %v3850
  %v4095 = vpack.c.b16 %v3855, %v3851
  %v4096 = vpack.c.b16 %v3856, %v3852
  %v4097 = vpack.c.b16 %v3857, %v3853
  %v4098 = vpack.c.b16 %v3862, %v3858
  %v4099 = vpack.c.b16 %v3863, %v3859
  %v4100 = vpack.c.b16 %v3864, %v3860
  %v4101 = vpack.c.b16 %v3865, %v3861
  %v4102 = vpack.c.b16 %v3870, %v3866
  %v4103 = vpack.c.b16 %v3871, %v3867
  %v4104 = vpack.c.b16 %v3872, %v3868
  %v4105 = vpack.c.b16 %v3873, %v3869
  %v4106 = vpack.c.b16 %v3878, %v3874
  %v4107 = vpack.c.b16 %v3879, %v3875
  %v4108 = vpack.c.b16 %v3880, %v3876
  %v4109 = vpack.c.b16 %v3881, %v3877
  %v4110 = vpack.c.b16 %v3886, %v3882
  %v4111 = vpack.c.b16 %v3887, %v3883
  %v4112 = vpack.c.b16 %v3888, %v3884
  %v4113 = vpack.c.b16 %v3889, %v3885
  %v4114 = vpack.c.b16 %v3894, %v3890
  %v4115 = vpack.c.b16 %v3895, %v3891
  %v4116 = vpack.c.b16 %v3896, %v3892
  %v4117 = vpack.c.b16 %v3897, %v3893
  %v4118 = vpack.c.b16 %v3902, %v3898
  %v4119 = vpack.c.b16 %v3903, %v3899
  %v4120 = vpack.c.b16 %v3904, %v3900
  %v4121 = vpack.c.b16 %v3905, %v3901
  %v4122 = vpack.c.b16 %v3910, %v3906
  %v4123 = vpack.c.b16 %v3911, %v3907
  %v4124 = vpack.c.b16 %v3912, %v3908
  %v4125 = vpack.c.b16 %v3913, %v3909
  %v4126 = vpack.c.b16 %v3918, %v3914
  %v4127 = vpack.c.b16 %v3919, %v3915
  %v4128 = vpack.c.b16 %v3920, %v3916
  %v4129 = vpack.c.b16 %v3921, %v3917
  %v4130 = vpack.c.b16 %v3926, %v3922
  %v4131 = vpack.c.b16 %v3927, %v3923
  %v4132 = vpack.c.b16 %v3928, %v3924
  %v4133 = vpack.c.b16 %v3929, %v3925
  %v4134 = vpack.c.b16 %v3934, %v3930
  %v4135 = vpack.c.b16 %v3935, %v3931
  %v4136 = vpack.c.b16 %v3936, %v3932
  %v4137 = vpack.c.b16 %v3937, %v3933
  %v4138 = vpack.c.b16 %v3942, %v3938
  %v4139 = vpack.c.b16 %v3943, %v3939
  %v4140 = vpack.c.b16 %v3944, %v3940
  %v4141 = vpack.c.b16 %v3945, %v3941
  %v4142 = vpack.c.b16 %v3950, %v3946
  %v4143 = vpack.c.b16 %v3951, %v3947
  %v4144 = vpack.c.b16 %v3952, %v3948
  %v4145 = vpack.c.b16 %v3953, %v3949
  %v4146 = vpack.c.b16 %v3958, %v3954
  %v4147 = vpack.c.b16 %v3959, %v3955
  %v4148 = vpack.c.b16 %v3960, %v3956
  %v4149 = vpack.c.b16 %v3961, %v3957
  %v4150 = vpack.c.b16 %v3966, %v3962
  %v4151 = vpack.c.b16 %v3967, %v3963
  %v4152 = vpack.c.b16 %v3968, %v3964
  %v4153 = vpack.c.b16 %v3969, %v3965
  %v4154 = vpack.c.b16 %v3974, %v3970
  %v4155 = vpack.c.b16 %v3975, %v3971
  %v4156 = vpack.c.b16 %v3976, %v3972
  %v4157 = vpack.c.b16 %v3977, %v3973
  %v4158 = vpack.c.b16 %v3982, %v3978
  %v4159 = vpack.c.b16 %v3983, %v3979
  %v4160 = vpack.c.b16 %v3984, %v3980
  %v4161 = vpack.c.b16 %v3985, %v3981
  %v4162 = vpack.c.b16 %v3990, %v3986
  %v4163 = vpack.c.b16 %v3991, %v3987
  %v4164 = vpack.c.b16 %v3992, %v3988
  %v4165 = vpack.c.b16 %v3993, %v3989
  %v4166 = vpack.c.b16 %v3998, %v3994
  %v4167 = vpack.c.b16 %v3999, %v3995
  %v4168 = vpack.c.b16 %v4000, %v3996
  %v4169 = vpack.c.b16 %v4001, %v3997
  %v4170 = vpack.c.b16 %v4006, %v4002
  %v4171 = vpack.c.b16 %v4007, %v4003
  %v4172 = vpack.c.b16 %v4008, %v4004
  %v4173 = vpack.c.b16 %v4009, %v4005
  %v4174 = vpack.c.b16 %v4014, %v4010
  %v4175 = vpack.c.b16 %v4015, %v4011
  %v4176 = vpack.c.b16 %v4016, %v4012
  %v4177 = vpack.c.b16 %v4017, %v4013
  %v4178 = vpack.c.b16 %v4022, %v4018
  %v4179 = vpack.c.b16 %v4023, %v4019
  %v4180 = vpack.c.b16 %v4024, %v4020
  %v4181 = vpack.c.b16 %v4025, %v4021
  %v4182 = vpack.c.b16 %v4030, %v4026
  %v4183 = vpack.c.b16 %v4031, %v4027
  %v4184 = vpack.c.b16 %v4032, %v4028
  %v4185 = vpack.c.b16 %v4033, %v4029
  %v4186 = vpack.c.b16 %v4038, %v4034
  %v4187 = vpack.c.b16 %v4039, %v4035
  %v4188 = vpack.c.b16 %v4040, %v4036
  %v4189 = vpack.c.b16 %v4041, %v4037
  %v4190 = vpack.c.b16 %v4046, %v4042
  %v4191 = vpack.c.b16 %v4047, %v4043
  %v4192 = vpack.c.b16 %v4048, %v4044
  %v4193 = vpack.c.b16 %v4049, %v4045
  %v4194 = vpack.c.b16 %v4054, %v4050
  %v4195 = vpack.c.b16 %v4055, %v4051
  %v4196 = vpack.c.b16 %v4056, %v4052
  %v4197 = vpack.c.b16 %v4057, %v4053
  %v4198 = vpack.c.b16 %v4062, %v4058
  %v4199 = vpack.c.b16 %v4063, %v4059
  %v4200 = vpack.c.b16 %v4064, %v4060
  %v4201 = vpack.c.b16 %v4065, %v4061
  %v4202 = vpack.c.b16 %v4070, %v4066
  %v4203 = vpack.c.b16 %v4071, %v4067
  %v4204 = vpack.c.b16 %v4072, %v4068
  %v4205 = vpack.c.b16 %v4073, %v4069
  %v4206 = vpack.c.b16 %v4078, %v4074
  %v4207 = vpack.c.b16 %v4079, %v4075
  %v4208 = vpack.c.b16 %v4080, %v4076
  %v4209 = vpack.c.b16 %v4081, %v4077
  %4338 = vmatprep.subr.bf16.mxu0 %v4111
  %4339 = vmatpush1.bf16.msra.mxu0 %v4110
  %4340 = vmatprep.subr.bf16.mxu0 %v4107
  %4341 = vmatpush1.bf16.msra.mxu0 %v4106
  %4342 = vmatprep.subr.bf16.mxu0 %v4103
  %4343 = vmatpush1.bf16.msra.mxu0 %v4102
  %4344 = vmatprep.subr.bf16.mxu0 %v4099
  %4345 = vmatpush1.bf16.msra.mxu0 %v4098
  %4346 = vmatprep.subr.bf16.mxu0 %v4095
  %4347 = vmatpush1.bf16.msra.mxu0 %v4094
  %4348 = vmatprep.subr.bf16.mxu0 %v4091
  %4349 = vmatpush1.bf16.msra.mxu0 %v4090
  %4350 = vmatprep.subr.bf16.mxu0 %v4087
  %4351 = vmatpush1.bf16.msra.mxu0 %v4086
  %4352 = vmatprep.subr.bf16.mxu0 %v4083
  %4353 = vmatpush1.bf16.msra.mxu0 %v4082
  %4354 = vmatprep.subr.bf16.mxu0 %v4143
  %4355 = vmatpush2.bf16.msra.mxu0 %v4142
  %4356 = vmatprep.subr.bf16.mxu0 %v4139
  %4357 = vmatpush2.bf16.msra.mxu0 %v4138
  %4358 = vmatprep.subr.bf16.mxu0 %v4135
  %4359 = vmatpush2.bf16.msra.mxu0 %v4134
  %4360 = vmatprep.subr.bf16.mxu0 %v4131
  %4361 = vmatpush2.bf16.msra.mxu0 %v4130
  %4362 = vmatprep.subr.bf16.mxu0 %v4127
  %4363 = vmatpush2.bf16.msra.mxu0 %v4126
  %4364 = vmatprep.subr.bf16.mxu0 %v4123
  %4365 = vmatpush2.bf16.msra.mxu0 %v4122
  %4366 = vmatprep.subr.bf16.mxu0 %v4119
  %4367 = vmatpush2.bf16.msra.mxu0 %v4118
  %4368 = vmatprep.subr.bf16.mxu0 %v4115
  %4369 = vmatpush2.bf16.msra.mxu0 %v4114
  %4370 = vmatprep.mubr.bf16.mxu0 %v3545
  %4371 = vmatmul.mubr.bf16.gmra.mxu0 %v3544
  %v4372 = vpop.f32.mrf.mxu0
  %v4373 = vadd.f32 %v3681, %v4372
  %v4374 = vpop.f32.mrf.mxu0
  %v4375 = vadd.f32 %v3685, %v4374
  %v4376 = vpop.f32.mrf.mxu0
  %v4377 = vpop.f32.mrf.mxu0
  %4378 = vdwg.mxu0
  %4379 = vmatprep.subr.bf16.mxu0 %v4175
  %4380 = vmatpush1.bf16.msra.mxu0 %v4174
  %4381 = vmatprep.subr.bf16.mxu0 %v4171
  %4382 = vmatpush1.bf16.msra.mxu0 %v4170
  %4383 = vmatprep.subr.bf16.mxu0 %v4167
  %4384 = vmatpush1.bf16.msra.mxu0 %v4166
  %4385 = vmatprep.subr.bf16.mxu0 %v4163
  %4386 = vmatpush1.bf16.msra.mxu0 %v4162
  %4387 = vmatprep.subr.bf16.mxu0 %v4159
  %4388 = vmatpush1.bf16.msra.mxu0 %v4158
  %4389 = vmatprep.subr.bf16.mxu0 %v4155
  %4390 = vmatpush1.bf16.msra.mxu0 %v4154
  %4391 = vmatprep.subr.bf16.mxu0 %v4151
  %4392 = vmatpush1.bf16.msra.mxu0 %v4150
  %4393 = vmatprep.subr.bf16.mxu0 %v4147
  %4394 = vmatpush1.bf16.msra.mxu0 %v4146
  %4395 = vmatprep.subr.bf16.mxu0 %v4207
  %4396 = vmatpush2.bf16.msra.mxu0 %v4206
  %4397 = vmatprep.subr.bf16.mxu0 %v4203
  %4398 = vmatpush2.bf16.msra.mxu0 %v4202
  %4399 = vmatprep.subr.bf16.mxu0 %v4199
  %4400 = vmatpush2.bf16.msra.mxu0 %v4198
  %4401 = vmatprep.subr.bf16.mxu0 %v4195
  %4402 = vmatpush2.bf16.msra.mxu0 %v4194
  %4403 = vmatprep.subr.bf16.mxu0 %v4191
  %4404 = vmatpush2.bf16.msra.mxu0 %v4190
  %4405 = vmatprep.subr.bf16.mxu0 %v4187
  %4406 = vmatpush2.bf16.msra.mxu0 %v4186
  %4407 = vmatprep.subr.bf16.mxu0 %v4183
  %4408 = vmatpush2.bf16.msra.mxu0 %v4182
  %4409 = vmatprep.subr.bf16.mxu0 %v4179
  %4410 = vmatpush2.bf16.msra.mxu0 %v4178
  %4411 = vmatprep.mubr.bf16.mxu0 %v3547
  %4412 = vmatmul.mubr.bf16.gmra.mxu0 %v3546
  %v4413 = vpop.f32.mrf.mxu0
  %v4414 = vadd.f32 %v4373, %v4413
  %v4415 = vpop.f32.mrf.mxu0
  %v4416 = vadd.f32 %v4375, %v4415
  %v4417 = vpop.f32.mrf.mxu0
  %v4418 = vpop.f32.mrf.mxu0
  %4419 = vdwg.mxu0
  %4420 = vmatprep.subr.bf16.mxu0 %v4113
  %4421 = vmatpush1.bf16.msra.mxu0 %v4112
  %4422 = vmatprep.subr.bf16.mxu0 %v4109
  %4423 = vmatpush1.bf16.msra.mxu0 %v4108
  %4424 = vmatprep.subr.bf16.mxu0 %v4105
  %4425 = vmatpush1.bf16.msra.mxu0 %v4104
  %4426 = vmatprep.subr.bf16.mxu0 %v4101
  %4427 = vmatpush1.bf16.msra.mxu0 %v4100
  %4428 = vmatprep.subr.bf16.mxu0 %v4097
  %4429 = vmatpush1.bf16.msra.mxu0 %v4096
  %4430 = vmatprep.subr.bf16.mxu0 %v4093
  %4431 = vmatpush1.bf16.msra.mxu0 %v4092
  %4432 = vmatprep.subr.bf16.mxu0 %v4089
  %4433 = vmatpush1.bf16.msra.mxu0 %v4088
  %4434 = vmatprep.subr.bf16.mxu0 %v4085
  %4435 = vmatpush1.bf16.msra.mxu0 %v4084
  %4436 = vmatprep.subr.bf16.mxu0 %v4145
  %4437 = vmatpush2.bf16.msra.mxu0 %v4144
  %4438 = vmatprep.subr.bf16.mxu0 %v4141
  %4439 = vmatpush2.bf16.msra.mxu0 %v4140
  %4440 = vmatprep.subr.bf16.mxu0 %v4137
  %4441 = vmatpush2.bf16.msra.mxu0 %v4136
  %4442 = vmatprep.subr.bf16.mxu0 %v4133
  %4443 = vmatpush2.bf16.msra.mxu0 %v4132
  %4444 = vmatprep.subr.bf16.mxu0 %v4129
  %4445 = vmatpush2.bf16.msra.mxu0 %v4128
  %4446 = vmatprep.subr.bf16.mxu0 %v4125
  %4447 = vmatpush2.bf16.msra.mxu0 %v4124
  %4448 = vmatprep.subr.bf16.mxu0 %v4121
  %4449 = vmatpush2.bf16.msra.mxu0 %v4120
  %4450 = vmatprep.subr.bf16.mxu0 %v4117
  %4451 = vmatpush2.bf16.msra.mxu0 %v4116
  %4452 = vmatprep.mubr.bf16.mxu0 %v3545
  %4453 = vmatmul.mubr.bf16.gmra.mxu0 %v3544
  %v4454 = vpop.f32.mrf.mxu0
  %v4455 = vadd.f32 %v3689, %v4454
  %v4456 = vpop.f32.mrf.mxu0
  %v4457 = vadd.f32 %v3693, %v4456
  %v4458 = vpop.f32.mrf.mxu0
  %v4459 = vpop.f32.mrf.mxu0
  %4460 = vdwg.mxu0
  %4461 = vmatprep.subr.bf16.mxu0 %v4177
  %4462 = vmatpush1.bf16.msra.mxu0 %v4176
  %4463 = vmatprep.subr.bf16.mxu0 %v4173
  %4464 = vmatpush1.bf16.msra.mxu0 %v4172
  %4465 = vmatprep.subr.bf16.mxu0 %v4169
  %4466 = vmatpush1.bf16.msra.mxu0 %v4168
  %4467 = vmatprep.subr.bf16.mxu0 %v4165
  %4468 = vmatpush1.bf16.msra.mxu0 %v4164
  %4469 = vmatprep.subr.bf16.mxu0 %v4161
  %4470 = vmatpush1.bf16.msra.mxu0 %v4160
  %4471 = vmatprep.subr.bf16.mxu0 %v4157
  %4472 = vmatpush1.bf16.msra.mxu0 %v4156
  %4473 = vmatprep.subr.bf16.mxu0 %v4153
  %4474 = vmatpush1.bf16.msra.mxu0 %v4152
  %4475 = vmatprep.subr.bf16.mxu0 %v4149
  %4476 = vmatpush1.bf16.msra.mxu0 %v4148
  %4477 = vmatprep.subr.bf16.mxu0 %v4209
  %4478 = vmatpush2.bf16.msra.mxu0 %v4208
  %4479 = vmatprep.subr.bf16.mxu0 %v4205
  %4480 = vmatpush2.bf16.msra.mxu0 %v4204
  %4481 = vmatprep.subr.bf16.mxu0 %v4201
  %4482 = vmatpush2.bf16.msra.mxu0 %v4200
  %4483 = vmatprep.subr.bf16.mxu0 %v4197
  %4484 = vmatpush2.bf16.msra.mxu0 %v4196
  %4485 = vmatprep.subr.bf16.mxu0 %v4193
  %4486 = vmatpush2.bf16.msra.mxu0 %v4192
  %4487 = vmatprep.subr.bf16.mxu0 %v4189
  %4488 = vmatpush2.bf16.msra.mxu0 %v4188
  %4489 = vmatprep.subr.bf16.mxu0 %v4185
  %4490 = vmatpush2.bf16.msra.mxu0 %v4184
  %4491 = vmatprep.subr.bf16.mxu0 %v4181
  %4492 = vmatpush2.bf16.msra.mxu0 %v4180
  %4493 = vmatprep.mubr.bf16.mxu0 %v3547
  %4494 = vmatmul.mubr.bf16.gmra.mxu0 %v3546
  %v4495 = vpop.f32.mrf.mxu0
  %v4496 = vadd.f32 %v4455, %v4495
  %v4497 = vpop.f32.mrf.mxu0
  %v4498 = vadd.f32 %v4457, %v4497
  %v4499 = vpop.f32.mrf.mxu0
  %v4500 = vpop.f32.mrf.mxu0
  %4501 = vdwg.mxu0
  %v4502 = vmax.f32 %v4414, 0.0
  %v4503 = vmax.f32 %v4416, 0.0
  %v4504 = vmax.f32 %v4496, 0.0
  %v4505 = vmax.f32 %v4498, 0.0
  %v4506 = vpack.c.bf16 %v4502, %v4502
  %v4507 = vpack.c.bf16 %v4503, %v4503
  %v4508 = vpack.c.bf16 %v4504, %v4504
  %v4509 = vpack.c.bf16 %v4505, %v4505
  %v4510 = vld [vmem:[%s7] sm:$0xf]
  %v4511 = vld [vmem:[%s7 + $0x4] sm:$0xf]
  %v4512 = vld [vmem:[%s7 + $0x8] sm:$0xf]
  %v4513 = vld [vmem:[%s7 + $0xc] sm:$0xf]
  %v4514 = vld [vmem:[%s7 + $0x10] sm:$0xf]
  %v4515 = vld [vmem:[%s7 + $0x14] sm:$0xf]
  %v4516 = vld [vmem:[%s7 + $0x18] sm:$0xf]
  %v4517 = vld [vmem:[%s7 + $0x1c] sm:$0xf]
  %v4518 = vld [vmem:[%s7 + $0x20] sm:$0xf]
  %v4519 = vld [vmem:[%s7 + $0x24] sm:$0xf]
  %v4520 = vld [vmem:[%s7 + $0x28] sm:$0xf]
  %v4521 = vld [vmem:[%s7 + $0x2c] sm:$0xf]
  %v4522 = vld [vmem:[%s7 + $0x30] sm:$0xf]
  %v4523 = vld [vmem:[%s7 + $0x34] sm:$0xf]
  %v4524 = vld [vmem:[%s7 + $0x38] sm:$0xf]
  %v4525 = vld [vmem:[%s7 + $0x3c] sm:$0xf]
  %v4526 = vld [vmem:[%s7 + $0x40] sm:$0xf]
  %v4527 = vld [vmem:[%s7 + $0x44] sm:$0xf]
  %v4528 = vld [vmem:[%s7 + $0x48] sm:$0xf]
  %v4529 = vld [vmem:[%s7 + $0x4c] sm:$0xf]
  %v4530 = vld [vmem:[%s7 + $0x50] sm:$0xf]
  %v4531 = vld [vmem:[%s7 + $0x54] sm:$0xf]
  %v4532 = vld [vmem:[%s7 + $0x58] sm:$0xf]
  %v4533 = vld [vmem:[%s7 + $0x5c] sm:$0xf]
  %v4534 = vld [vmem:[%s7 + $0x60] sm:$0xf]
  %v4535 = vld [vmem:[%s7 + $0x64] sm:$0xf]
  %v4536 = vld [vmem:[%s7 + $0x68] sm:$0xf]
  %v4537 = vld [vmem:[%s7 + $0x6c] sm:$0xf]
  %v4538 = vld [vmem:[%s7 + $0x70] sm:$0xf]
  %v4539 = vld [vmem:[%s7 + $0x74] sm:$0xf]
  %v4540 = vld [vmem:[%s7 + $0x78] sm:$0xf]
  %v4541 = vld [vmem:[%s7 + $0x7c] sm:$0xf]
  %v4542 = vld [vmem:[%s7 + $0x80] sm:$0xf]
  %v4543 = vld [vmem:[%s7 + $0x84] sm:$0xf]
  %v4544 = vld [vmem:[%s7 + $0x88] sm:$0xf]
  %v4545 = vld [vmem:[%s7 + $0x8c] sm:$0xf]
  %v4546 = vld [vmem:[%s7 + $0x90] sm:$0xf]
  %v4547 = vld [vmem:[%s7 + $0x94] sm:$0xf]
  %v4548 = vld [vmem:[%s7 + $0x98] sm:$0xf]
  %v4549 = vld [vmem:[%s7 + $0x9c] sm:$0xf]
  %v4550 = vld [vmem:[%s7 + $0xa0] sm:$0xf]
  %v4551 = vld [vmem:[%s7 + $0xa4] sm:$0xf]
  %v4552 = vld [vmem:[%s7 + $0xa8] sm:$0xf]
  %v4553 = vld [vmem:[%s7 + $0xac] sm:$0xf]
  %v4554 = vld [vmem:[%s7 + $0xb0] sm:$0xf]
  %v4555 = vld [vmem:[%s7 + $0xb4] sm:$0xf]
  %v4556 = vld [vmem:[%s7 + $0xb8] sm:$0xf]
  %v4557 = vld [vmem:[%s7 + $0xbc] sm:$0xf]
  %v4558 = vld [vmem:[%s7 + $0xc0] sm:$0xf]
  %v4559 = vld [vmem:[%s7 + $0xc4] sm:$0xf]
  %v4560 = vld [vmem:[%s7 + $0xc8] sm:$0xf]
  %v4561 = vld [vmem:[%s7 + $0xcc] sm:$0xf]
  %v4562 = vld [vmem:[%s7 + $0xd0] sm:$0xf]
  %v4563 = vld [vmem:[%s7 + $0xd4] sm:$0xf]
  %v4564 = vld [vmem:[%s7 + $0xd8] sm:$0xf]
  %v4565 = vld [vmem:[%s7 + $0xdc] sm:$0xf]
  %v4566 = vld [vmem:[%s7 + $0xe0] sm:$0xf]
  %v4567 = vld [vmem:[%s7 + $0xe4] sm:$0xf]
  %v4568 = vld [vmem:[%s7 + $0xe8] sm:$0xf]
  %v4569 = vld [vmem:[%s7 + $0xec] sm:$0xf]
  %v4570 = vld [vmem:[%s7 + $0xf0] sm:$0xf]
  %v4571 = vld [vmem:[%s7 + $0xf4] sm:$0xf]
  %v4572 = vld [vmem:[%s7 + $0xf8] sm:$0xf]
  %v4573 = vld [vmem:[%s7 + $0xfc] sm:$0xf]
  %v4574 = vld [vmem:[%s8] sm:$0x1]
  %v4576 = vlaneseq
  %v4577 = vshrl.u32 %v4576, 7
  %v4578 = vsub.s32 0, %v4577
  %v4579 = vrot.slane %v4574, %v4578
  %v4645 = vunpack.c.l.b16 %v4510
  %v4646 = vunpack.c.l.b16 %v4511
  %v4647 = vunpack.c.l.b16 %v4512
  %v4648 = vunpack.c.l.b16 %v4513
  %v4649 = vunpack.c.l.b16 %v4514
  %v4650 = vunpack.c.l.b16 %v4515
  %v4651 = vunpack.c.l.b16 %v4516
  %v4652 = vunpack.c.l.b16 %v4517
  %v4653 = vunpack.c.l.b16 %v4518
  %v4654 = vunpack.c.l.b16 %v4519
  %v4655 = vunpack.c.l.b16 %v4520
  %v4656 = vunpack.c.l.b16 %v4521
  %v4657 = vunpack.c.l.b16 %v4522
  %v4658 = vunpack.c.l.b16 %v4523
  %v4659 = vunpack.c.l.b16 %v4524
  %v4660 = vunpack.c.l.b16 %v4525
  %v4661 = vunpack.c.l.b16 %v4526
  %v4662 = vunpack.c.l.b16 %v4527
  %v4663 = vunpack.c.l.b16 %v4528
  %v4664 = vunpack.c.l.b16 %v4529
  %v4665 = vunpack.c.l.b16 %v4530
  %v4666 = vunpack.c.l.b16 %v4531
  %v4667 = vunpack.c.l.b16 %v4532
  %v4668 = vunpack.c.l.b16 %v4533
  %v4669 = vunpack.c.l.b16 %v4534
  %v4670 = vunpack.c.l.b16 %v4535
  %v4671 = vunpack.c.l.b16 %v4536
  %v4672 = vunpack.c.l.b16 %v4537
  %v4673 = vunpack.c.l.b16 %v4538
  %v4674 = vunpack.c.l.b16 %v4539
  %v4675 = vunpack.c.l.b16 %v4540
  %v4676 = vunpack.c.l.b16 %v4541
  %v4677 = vunpack.c.l.b16 %v4542
  %v4678 = vunpack.c.l.b16 %v4543
  %v4679 = vunpack.c.l.b16 %v4544
  %v4680 = vunpack.c.l.b16 %v4545
  %v4681 = vunpack.c.l.b16 %v4546
  %v4682 = vunpack.c.l.b16 %v4547
  %v4683 = vunpack.c.l.b16 %v4548
  %v4684 = vunpack.c.l.b16 %v4549
  %v4685 = vunpack.c.l.b16 %v4550
  %v4686 = vunpack.c.l.b16 %v4551
  %v4687 = vunpack.c.l.b16 %v4552
  %v4688 = vunpack.c.l.b16 %v4553
  %v4689 = vunpack.c.l.b16 %v4554
  %v4690 = vunpack.c.l.b16 %v4555
  %v4691 = vunpack.c.l.b16 %v4556
  %v4692 = vunpack.c.l.b16 %v4557
  %v4693 = vunpack.c.l.b16 %v4558
  %v4694 = vunpack.c.l.b16 %v4559
  %v4695 = vunpack.c.l.b16 %v4560
  %v4696 = vunpack.c.l.b16 %v4561
  %v4697 = vunpack.c.l.b16 %v4562
  %v4698 = vunpack.c.l.b16 %v4563
  %v4699 = vunpack.c.l.b16 %v4564
  %v4700 = vunpack.c.l.b16 %v4565
  %v4701 = vunpack.c.l.b16 %v4566
  %v4702 = vunpack.c.l.b16 %v4567
  %v4703 = vunpack.c.l.b16 %v4568
  %v4704 = vunpack.c.l.b16 %v4569
  %v4705 = vunpack.c.l.b16 %v4570
  %v4706 = vunpack.c.l.b16 %v4571
  %v4707 = vunpack.c.l.b16 %v4572
  %v4708 = vunpack.c.l.b16 %v4573
  %v4709 = vpack.c.b16 %v4646, %v4645
  %v4710 = vpack.c.b16 %v4648, %v4647
  %v4711 = vpack.c.b16 %v4650, %v4649
  %v4712 = vpack.c.b16 %v4652, %v4651
  %v4713 = vpack.c.b16 %v4654, %v4653
  %v4714 = vpack.c.b16 %v4656, %v4655
  %v4715 = vpack.c.b16 %v4658, %v4657
  %v4716 = vpack.c.b16 %v4660, %v4659
  %v4717 = vpack.c.b16 %v4662, %v4661
  %v4718 = vpack.c.b16 %v4664, %v4663
  %v4719 = vpack.c.b16 %v4666, %v4665
  %v4720 = vpack.c.b16 %v4668, %v4667
  %v4721 = vpack.c.b16 %v4670, %v4669
  %v4722 = vpack.c.b16 %v4672, %v4671
  %v4723 = vpack.c.b16 %v4674, %v4673
  %v4724 = vpack.c.b16 %v4676, %v4675
  %v4725 = vpack.c.b16 %v4678, %v4677
  %v4726 = vpack.c.b16 %v4680, %v4679
  %v4727 = vpack.c.b16 %v4682, %v4681
  %v4728 = vpack.c.b16 %v4684, %v4683
  %v4729 = vpack.c.b16 %v4686, %v4685
  %v4730 = vpack.c.b16 %v4688, %v4687
  %v4731 = vpack.c.b16 %v4690, %v4689
  %v4732 = vpack.c.b16 %v4692, %v4691
  %v4733 = vpack.c.b16 %v4694, %v4693
  %v4734 = vpack.c.b16 %v4696, %v4695
  %v4735 = vpack.c.b16 %v4698, %v4697
  %v4736 = vpack.c.b16 %v4700, %v4699
  %v4737 = vpack.c.b16 %v4702, %v4701
  %v4738 = vpack.c.b16 %v4704, %v4703
  %v4739 = vpack.c.b16 %v4706, %v4705
  %v4740 = vpack.c.b16 %v4708, %v4707
  %4773 = vmatprep.subr.bf16.mxu0 0
  %4774 = vmatpush1.bf16.msra.mxu0 %v4716
  %4775 = vmatprep.subr.bf16.mxu0 0
  %4776 = vmatpush1.bf16.msra.mxu0 %v4715
  %4777 = vmatprep.subr.bf16.mxu0 0
  %4778 = vmatpush1.bf16.msra.mxu0 %v4714
  %4779 = vmatprep.subr.bf16.mxu0 0
  %4780 = vmatpush1.bf16.msra.mxu0 %v4713
  %4781 = vmatprep.subr.bf16.mxu0 0
  %4782 = vmatpush1.bf16.msra.mxu0 %v4712
  %4783 = vmatprep.subr.bf16.mxu0 0
  %4784 = vmatpush1.bf16.msra.mxu0 %v4711
  %4785 = vmatprep.subr.bf16.mxu0 0
  %4786 = vmatpush1.bf16.msra.mxu0 %v4710
  %4787 = vmatprep.subr.bf16.mxu0 0
  %4788 = vmatpush1.bf16.msra.mxu0 %v4709
  %4789 = vmatprep.subr.bf16.mxu0 0
  %4790 = vmatpush2.bf16.msra.mxu0 %v4724
  %4791 = vmatprep.subr.bf16.mxu0 0
  %4792 = vmatpush2.bf16.msra.mxu0 %v4723
  %4793 = vmatprep.subr.bf16.mxu0 0
  %4794 = vmatpush2.bf16.msra.mxu0 %v4722
  %4795 = vmatprep.subr.bf16.mxu0 0
  %4796 = vmatpush2.bf16.msra.mxu0 %v4721
  %4797 = vmatprep.subr.bf16.mxu0 0
  %4798 = vmatpush2.bf16.msra.mxu0 %v4720
  %4799 = vmatprep.subr.bf16.mxu0 0
  %4800 = vmatpush2.bf16.msra.mxu0 %v4719
  %4801 = vmatprep.subr.bf16.mxu0 0
  %4802 = vmatpush2.bf16.msra.mxu0 %v4718
  %4803 = vmatprep.subr.bf16.mxu0 0
  %4804 = vmatpush2.bf16.msra.mxu0 %v4717
  %4805 = vmatprep.mubr.bf16.mxu0 %v4507
  %4806 = vmatmul.mubr.bf16.gmra.mxu0 %v4506
  %v4807 = vpop.f32.mrf.mxu0
  %v4808 = vadd.f32 %v4579, %v4807
  %v4809 = vpop.f32.mrf.mxu0
  %v4810 = vpop.f32.mrf.mxu0
  %v4811 = vpop.f32.mrf.mxu0
  %4812 = vdwg.mxu0
  %4813 = vmatprep.subr.bf16.mxu0 0
  %4814 = vmatpush1.bf16.msra.mxu0 %v4732
  %4815 = vmatprep.subr.bf16.mxu0 0
  %4816 = vmatpush1.bf16.msra.mxu0 %v4731
  %4817 = vmatprep.subr.bf16.mxu0 0
  %4818 = vmatpush1.bf16.msra.mxu0 %v4730
  %4819 = vmatprep.subr.bf16.mxu0 0
  %4820 = vmatpush1.bf16.msra.mxu0 %v4729
  %4821 = vmatprep.subr.bf16.mxu0 0
  %4822 = vmatpush1.bf16.msra.mxu0 %v4728
  %4823 = vmatprep.subr.bf16.mxu0 0
  %4824 = vmatpush1.bf16.msra.mxu0 %v4727
  %4825 = vmatprep.subr.bf16.mxu0 0
  %4826 = vmatpush1.bf16.msra.mxu0 %v4726
  %4827 = vmatprep.subr.bf16.mxu0 0
  %4828 = vmatpush1.bf16.msra.mxu0 %v4725
  %4829 = vmatprep.subr.bf16.mxu0 0
  %4830 = vmatpush2.bf16.msra.mxu0 %v4740
  %4831 = vmatprep.subr.bf16.mxu0 0
  %4832 = vmatpush2.bf16.msra.mxu0 %v4739
  %4833 = vmatprep.subr.bf16.mxu0 0
  %4834 = vmatpush2.bf16.msra.mxu0 %v4738
  %4835 = vmatprep.subr.bf16.mxu0 0
  %4836 = vmatpush2.bf16.msra.mxu0 %v4737
  %4837 = vmatprep.subr.bf16.mxu0 0
  %4838 = vmatpush2.bf16.msra.mxu0 %v4736
  %4839 = vmatprep.subr.bf16.mxu0 0
  %4840 = vmatpush2.bf16.msra.mxu0 %v4735
  %4841 = vmatprep.subr.bf16.mxu0 0
  %4842 = vmatpush2.bf16.msra.mxu0 %v4734
  %4843 = vmatprep.subr.bf16.mxu0 0
  %4844 = vmatpush2.bf16.msra.mxu0 %v4733
  %4845 = vmatprep.mubr.bf16.mxu0 %v4509
  %4846 = vmatmul.mubr.bf16.gmra.mxu0 %v4508
  %v4847 = vpop.f32.mrf.mxu0
  %v4848 = vadd.f32 %v4808, %v4847
  %v4849 = vpop.f32.mrf.mxu0
  %v4850 = vpop.f32.mrf.mxu0
  %v4851 = vpop.f32.mrf.mxu0
  %4852 = vdwg.mxu0
  %v4853 = vld [vmem:[%s9] sm:$0xff]
  %v4854 = vld [vmem:[%s9 + $0x8] sm:$0xff]
  %v4855 = vld [vmem:[%s9 + $0x10] sm:$0xff]
  %v4856 = vld [vmem:[%s9 + $0x18] sm:$0xff]
  %v4857 = vld [vmem:[%s9 + $0x20] sm:$0xff]
  %v4858 = vld [vmem:[%s9 + $0x28] sm:$0xff]
  %v4859 = vld [vmem:[%s9 + $0x30] sm:$0xff]
  %v4860 = vld [vmem:[%s9 + $0x38] sm:$0xff]
  %v4861 = vld [vmem:[%s9 + $0x40] sm:$0xff]
  %v4862 = vld [vmem:[%s9 + $0x48] sm:$0xff]
  %v4863 = vld [vmem:[%s9 + $0x50] sm:$0xff]
  %v4864 = vld [vmem:[%s9 + $0x58] sm:$0xff]
  %v4865 = vld [vmem:[%s9 + $0x60] sm:$0xff]
  %v4866 = vld [vmem:[%s9 + $0x68] sm:$0xff]
  %v4867 = vld [vmem:[%s9 + $0x70] sm:$0xff]
  %v4868 = vld [vmem:[%s9 + $0x78] sm:$0xff]
  %v4869 = vld [vmem:[%s9 + $0x80] sm:$0xff]
  %v4870 = vld [vmem:[%s9 + $0x88] sm:$0xff]
  %v4871 = vld [vmem:[%s9 + $0x90] sm:$0xff]
  %v4872 = vld [vmem:[%s9 + $0x98] sm:$0xff]
  %v4873 = vld [vmem:[%s9 + $0xa0] sm:$0xff]
  %v4874 = vld [vmem:[%s9 + $0xa8] sm:$0xff]
  %v4875 = vld [vmem:[%s9 + $0xb0] sm:$0xff]
  %v4876 = vld [vmem:[%s9 + $0xb8] sm:$0xff]
  %v4877 = vld [vmem:[%s9 + $0xc0] sm:$0xff]
  %v4878 = vld [vmem:[%s9 + $0xc8] sm:$0xff]
  %v4879 = vld [vmem:[%s9 + $0xd0] sm:$0xff]
  %v4880 = vld [vmem:[%s9 + $0xd8] sm:$0xff]
  %v4881 = vld [vmem:[%s9 + $0xe0] sm:$0xff]
  %v4882 = vld [vmem:[%s9 + $0xe8] sm:$0xff]
  %v4883 = vld [vmem:[%s9 + $0xf0] sm:$0xff]
  %v4884 = vld [vmem:[%s9 + $0xf8] sm:$0xff]
  %v4885 = vld [vmem:[%s9 + $0x100] sm:$0xff]
  %v4886 = vld [vmem:[%s9 + $0x108] sm:$0xff]
  %v4887 = vld [vmem:[%s9 + $0x110] sm:$0xff]
  %v4888 = vld [vmem:[%s9 + $0x118] sm:$0xff]
  %v4889 = vld [vmem:[%s9 + $0x120] sm:$0xff]
  %v4890 = vld [vmem:[%s9 + $0x128] sm:$0xff]
  %v4891 = vld [vmem:[%s9 + $0x130] sm:$0xff]
  %v4892 = vld [vmem:[%s9 + $0x138] sm:$0xff]
  %v4893 = vld [vmem:[%s9 + $0x140] sm:$0xff]
  %v4894 = vld [vmem:[%s9 + $0x148] sm:$0xff]
  %v4895 = vld [vmem:[%s9 + $0x150] sm:$0xff]
  %v4896 = vld [vmem:[%s9 + $0x158] sm:$0xff]
  %v4897 = vld [vmem:[%s9 + $0x160] sm:$0xff]
  %v4898 = vld [vmem:[%s9 + $0x168] sm:$0xff]
  %v4899 = vld [vmem:[%s9 + $0x170] sm:$0xff]
  %v4900 = vld [vmem:[%s9 + $0x178] sm:$0xff]
  %v4901 = vld [vmem:[%s9 + $0x180] sm:$0xff]
  %v4902 = vld [vmem:[%s9 + $0x188] sm:$0xff]
  %v4903 = vld [vmem:[%s9 + $0x190] sm:$0xff]
  %v4904 = vld [vmem:[%s9 + $0x198] sm:$0xff]
  %v4905 = vld [vmem:[%s9 + $0x1a0] sm:$0xff]
  %v4906 = vld [vmem:[%s9 + $0x1a8] sm:$0xff]
  %v4907 = vld [vmem:[%s9 + $0x1b0] sm:$0xff]
  %v4908 = vld [vmem:[%s9 + $0x1b8] sm:$0xff]
  %v4909 = vld [vmem:[%s9 + $0x1c0] sm:$0xff]
  %v4910 = vld [vmem:[%s9 + $0x1c8] sm:$0xff]
  %v4911 = vld [vmem:[%s9 + $0x1d0] sm:$0xff]
  %v4912 = vld [vmem:[%s9 + $0x1d8] sm:$0xff]
  %v4913 = vld [vmem:[%s9 + $0x1e0] sm:$0xff]
  %v4914 = vld [vmem:[%s9 + $0x1e8] sm:$0xff]
  %v4915 = vld [vmem:[%s9 + $0x1f0] sm:$0xff]
  %v4916 = vld [vmem:[%s9 + $0x1f8] sm:$0xff]
  %v4917 = vld [vmem:[%s9 + $0x200] sm:$0xff]
  %v4918 = vld [vmem:[%s9 + $0x208] sm:$0xff]
  %v4919 = vld [vmem:[%s9 + $0x210] sm:$0xff]
  %v4920 = vld [vmem:[%s9 + $0x218] sm:$0xff]
  %v4921 = vld [vmem:[%s9 + $0x220] sm:$0xff]
  %v4922 = vld [vmem:[%s9 + $0x228] sm:$0xff]
  %v4923 = vld [vmem:[%s9 + $0x230] sm:$0xff]
  %v4924 = vld [vmem:[%s9 + $0x238] sm:$0xff]
  %v4925 = vld [vmem:[%s9 + $0x240] sm:$0xff]
  %v4926 = vld [vmem:[%s9 + $0x248] sm:$0xff]
  %v4927 = vld [vmem:[%s9 + $0x250] sm:$0xff]
  %v4928 = vld [vmem:[%s9 + $0x258] sm:$0xff]
  %v4929 = vld [vmem:[%s9 + $0x260] sm:$0xff]
  %v4930 = vld [vmem:[%s9 + $0x268] sm:$0xff]
  %v4931 = vld [vmem:[%s9 + $0x270] sm:$0xff]
  %v4932 = vld [vmem:[%s9 + $0x278] sm:$0xff]
  %v4933 = vld [vmem:[%s9 + $0x280] sm:$0xff]
  %v4934 = vld [vmem:[%s9 + $0x288] sm:$0xff]
  %v4935 = vld [vmem:[%s9 + $0x290] sm:$0xff]
  %v4936 = vld [vmem:[%s9 + $0x298] sm:$0xff]
  %v4937 = vld [vmem:[%s9 + $0x2a0] sm:$0xff]
  %v4938 = vld [vmem:[%s9 + $0x2a8] sm:$0xff]
  %v4939 = vld [vmem:[%s9 + $0x2b0] sm:$0xff]
  %v4940 = vld [vmem:[%s9 + $0x2b8] sm:$0xff]
  %v4941 = vld [vmem:[%s9 + $0x2c0] sm:$0xff]
  %v4942 = vld [vmem:[%s9 + $0x2c8] sm:$0xff]
  %v4943 = vld [vmem:[%s9 + $0x2d0] sm:$0xff]
  %v4944 = vld [vmem:[%s9 + $0x2d8] sm:$0xff]
  %v4945 = vld [vmem:[%s9 + $0x2e0] sm:$0xff]
  %v4946 = vld [vmem:[%s9 + $0x2e8] sm:$0xff]
  %v4947 = vld [vmem:[%s9 + $0x2f0] sm:$0xff]
  %v4948 = vld [vmem:[%s9 + $0x2f8] sm:$0xff]
  %v4949 = vld [vmem:[%s9 + $0x300] sm:$0xff]
  %v4950 = vld [vmem:[%s9 + $0x308] sm:$0xff]
  %v4951 = vld [vmem:[%s9 + $0x310] sm:$0xff]
  %v4952 = vld [vmem:[%s9 + $0x318] sm:$0xff]
  %v4953 = vld [vmem:[%s9 + $0x320] sm:$0xff]
  %v4954 = vld [vmem:[%s9 + $0x328] sm:$0xff]
  %v4955 = vld [vmem:[%s9 + $0x330] sm:$0xff]
  %v4956 = vld [vmem:[%s9 + $0x338] sm:$0xff]
  %v4957 = vld [vmem:[%s9 + $0x340] sm:$0xff]
  %v4958 = vld [vmem:[%s9 + $0x348] sm:$0xff]
  %v4959 = vld [vmem:[%s9 + $0x350] sm:$0xff]
  %v4960 = vld [vmem:[%s9 + $0x358] sm:$0xff]
  %v4961 = vld [vmem:[%s9 + $0x360] sm:$0xff]
  %v4962 = vld [vmem:[%s9 + $0x368] sm:$0xff]
  %v4963 = vld [vmem:[%s9 + $0x370] sm:$0xff]
  %v4964 = vld [vmem:[%s9 + $0x378] sm:$0xff]
  %v4965 = vld [vmem:[%s9 + $0x380] sm:$0xff]
  %v4966 = vld [vmem:[%s9 + $0x388] sm:$0xff]
  %v4967 = vld [vmem:[%s9 + $0x390] sm:$0xff]
  %v4968 = vld [vmem:[%s9 + $0x398] sm:$0xff]
  %v4969 = vld [vmem:[%s9 + $0x3a0] sm:$0xff]
  %v4970 = vld [vmem:[%s9 + $0x3a8] sm:$0xff]
  %v4971 = vld [vmem:[%s9 + $0x3b0] sm:$0xff]
  %v4972 = vld [vmem:[%s9 + $0x3b8] sm:$0xff]
  %v4973 = vld [vmem:[%s9 + $0x3c0] sm:$0xff]
  %v4974 = vld [vmem:[%s9 + $0x3c8] sm:$0xff]
  %v4975 = vld [vmem:[%s9 + $0x3d0] sm:$0xff]
  %v4976 = vld [vmem:[%s9 + $0x3d8] sm:$0xff]
  %v4977 = vld [vmem:[%s9 + $0x3e0] sm:$0xff]
  %v4978 = vld [vmem:[%s9 + $0x3e8] sm:$0xff]
  %v4979 = vld [vmem:[%s9 + $0x3f0] sm:$0xff]
  %v4980 = vld [vmem:[%s9 + $0x3f8] sm:$0xff]
  %v4981 = vld [vmem:[%s10] sm:$0xf]
  %v4983 = vlaneseq
  %v4984 = vshrl.u32 %v4983, 7
  %v4985 = vsub.s32 0, %v4984
  %v4986 = vrot.slane %v4981, %v4985
  %v4987 = vlaneseq
  %v4988 = vshrl.u32 %v4987, 7
  %v4989 = vsub.s32 1, %v4988
  %v4990 = vrot.slane %v4981, %v4989
  %v4991 = vlaneseq
  %v4992 = vshrl.u32 %v4991, 7
  %v4993 = vsub.s32 2, %v4992
  %v4994 = vrot.slane %v4981, %v4993
  %v4995 = vlaneseq
  %v4996 = vshrl.u32 %v4995, 7
  %v4997 = vsub.s32 3, %v4996
  %v4998 = vrot.slane %v4981, %v4997
  %v5131 = vunpack.c.l.b16 %v4853
  %v5132 = vunpack.c.h.b16 %v4853
  %v5133 = vunpack.c.l.b16 %v4854
  %v5134 = vunpack.c.h.b16 %v4854
  %v5135 = vunpack.c.l.b16 %v4855
  %v5136 = vunpack.c.h.b16 %v4855
  %v5137 = vunpack.c.l.b16 %v4856
  %v5138 = vunpack.c.h.b16 %v4856
  %v5139 = vunpack.c.l.b16 %v4857
  %v5140 = vunpack.c.h.b16 %v4857
  %v5141 = vunpack.c.l.b16 %v4858
  %v5142 = vunpack.c.h.b16 %v4858
  %v5143 = vunpack.c.l.b16 %v4859
  %v5144 = vunpack.c.h.b16 %v4859
  %v5145 = vunpack.c.l.b16 %v4860
  %v5146 = vunpack.c.h.b16 %v4860
  %v5147 = vunpack.c.l.b16 %v4861
  %v5148 = vunpack.c.h.b16 %v4861
  %v5149 = vunpack.c.l.b16 %v4862
  %v5150 = vunpack.c.h.b16 %v4862
  %v5151 = vunpack.c.l.b16 %v4863
  %v5152 = vunpack.c.h.b16 %v4863
  %v5153 = vunpack.c.l.b16 %v4864
  %v5154 = vunpack.c.h.b16 %v4864
  %v5155 = vunpack.c.l.b16 %v4865
  %v5156 = vunpack.c.h.b16 %v4865
  %v5157 = vunpack.c.l.b16 %v4866
  %v5158 = vunpack.c.h.b16 %v4866
  %v5159 = vunpack.c.l.b16 %v4867
  %v5160 = vunpack.c.h.b16 %v4867
  %v5161 = vunpack.c.l.b16 %v4868
  %v5162 = vunpack.c.h.b16 %v4868
  %v5163 = vunpack.c.l.b16 %v4869
  %v5164 = vunpack.c.h.b16 %v4869
  %v5165 = vunpack.c.l.b16 %v4870
  %v5166 = vunpack.c.h.b16 %v4870
  %v5167 = vunpack.c.l.b16 %v4871
  %v5168 = vunpack.c.h.b16 %v4871
  %v5169 = vunpack.c.l.b16 %v4872
  %v5170 = vunpack.c.h.b16 %v4872
  %v5171 = vunpack.c.l.b16 %v4873
  %v5172 = vunpack.c.h.b16 %v4873
  %v5173 = vunpack.c.l.b16 %v4874
  %v5174 = vunpack.c.h.b16 %v4874
  %v5175 = vunpack.c.l.b16 %v4875
  %v5176 = vunpack.c.h.b16 %v4875
  %v5177 = vunpack.c.l.b16 %v4876
  %v5178 = vunpack.c.h.b16 %v4876
  %v5179 = vunpack.c.l.b16 %v4877
  %v5180 = vunpack.c.h.b16 %v4877
  %v5181 = vunpack.c.l.b16 %v4878
  %v5182 = vunpack.c.h.b16 %v4878
  %v5183 = vunpack.c.l.b16 %v4879
  %v5184 = vunpack.c.h.b16 %v4879
  %v5185 = vunpack.c.l.b16 %v4880
  %v5186 = vunpack.c.h.b16 %v4880
  %v5187 = vunpack.c.l.b16 %v4881
  %v5188 = vunpack.c.h.b16 %v4881
  %v5189 = vunpack.c.l.b16 %v4882
  %v5190 = vunpack.c.h.b16 %v4882
  %v5191 = vunpack.c.l.b16 %v4883
  %v5192 = vunpack.c.h.b16 %v4883
  %v5193 = vunpack.c.l.b16 %v4884
  %v5194 = vunpack.c.h.b16 %v4884
  %v5195 = vunpack.c.l.b16 %v4885
  %v5196 = vunpack.c.h.b16 %v4885
  %v5197 = vunpack.c.l.b16 %v4886
  %v5198 = vunpack.c.h.b16 %v4886
  %v5199 = vunpack.c.l.b16 %v4887
  %v5200 = vunpack.c.h.b16 %v4887
  %v5201 = vunpack.c.l.b16 %v4888
  %v5202 = vunpack.c.h.b16 %v4888
  %v5203 = vunpack.c.l.b16 %v4889
  %v5204 = vunpack.c.h.b16 %v4889
  %v5205 = vunpack.c.l.b16 %v4890
  %v5206 = vunpack.c.h.b16 %v4890
  %v5207 = vunpack.c.l.b16 %v4891
  %v5208 = vunpack.c.h.b16 %v4891
  %v5209 = vunpack.c.l.b16 %v4892
  %v5210 = vunpack.c.h.b16 %v4892
  %v5211 = vunpack.c.l.b16 %v4893
  %v5212 = vunpack.c.h.b16 %v4893
  %v5213 = vunpack.c.l.b16 %v4894
  %v5214 = vunpack.c.h.b16 %v4894
  %v5215 = vunpack.c.l.b16 %v4895
  %v5216 = vunpack.c.h.b16 %v4895
  %v5217 = vunpack.c.l.b16 %v4896
  %v5218 = vunpack.c.h.b16 %v4896
  %v5219 = vunpack.c.l.b16 %v4897
  %v5220 = vunpack.c.h.b16 %v4897
  %v5221 = vunpack.c.l.b16 %v4898
  %v5222 = vunpack.c.h.b16 %v4898
  %v5223 = vunpack.c.l.b16 %v4899
  %v5224 = vunpack.c.h.b16 %v4899
  %v5225 = vunpack.c.l.b16 %v4900
  %v5226 = vunpack.c.h.b16 %v4900
  %v5227 = vunpack.c.l.b16 %v4901
  %v5228 = vunpack.c.h.b16 %v4901
  %v5229 = vunpack.c.l.b16 %v4902
  %v5230 = vunpack.c.h.b16 %v4902
  %v5231 = vunpack.c.l.b16 %v4903
  %v5232 = vunpack.c.h.b16 %v4903
  %v5233 = vunpack.c.l.b16 %v4904
  %v5234 = vunpack.c.h.b16 %v4904
  %v5235 = vunpack.c.l.b16 %v4905
  %v5236 = vunpack.c.h.b16 %v4905
  %v5237 = vunpack.c.l.b16 %v4906
  %v5238 = vunpack.c.h.b16 %v4906
  %v5239 = vunpack.c.l.b16 %v4907
  %v5240 = vunpack.c.h.b16 %v4907
  %v5241 = vunpack.c.l.b16 %v4908
  %v5242 = vunpack.c.h.b16 %v4908
  %v5243 = vunpack.c.l.b16 %v4909
  %v5244 = vunpack.c.h.b16 %v4909
  %v5245 = vunpack.c.l.b16 %v4910
  %v5246 = vunpack.c.h.b16 %v4910
  %v5247 = vunpack.c.l.b16 %v4911
  %v5248 = vunpack.c.h.b16 %v4911
  %v5249 = vunpack.c.l.b16 %v4912
  %v5250 = vunpack.c.h.b16 %v4912
  %v5251 = vunpack.c.l.b16 %v4913
  %v5252 = vunpack.c.h.b16 %v4913
  %v5253 = vunpack.c.l.b16 %v4914
  %v5254 = vunpack.c.h.b16 %v4914
  %v5255 = vunpack.c.l.b16 %v4915
  %v5256 = vunpack.c.h.b16 %v4915
  %v5257 = vunpack.c.l.b16 %v4916
  %v5258 = vunpack.c.h.b16 %v4916
  %v5259 = vunpack.c.l.b16 %v4917
  %v5260 = vunpack.c.h.b16 %v4917
  %v5261 = vunpack.c.l.b16 %v4918
  %v5262 = vunpack.c.h.b16 %v4918
  %v5263 = vunpack.c.l.b16 %v4919
  %v5264 = vunpack.c.h.b16 %v4919
  %v5265 = vunpack.c.l.b16 %v4920
  %v5266 = vunpack.c.h.b16 %v4920
  %v5267 = vunpack.c.l.b16 %v4921
  %v5268 = vunpack.c.h.b16 %v4921
  %v5269 = vunpack.c.l.b16 %v4922
  %v5270 = vunpack.c.h.b16 %v4922
  %v5271 = vunpack.c.l.b16 %v4923
  %v5272 = vunpack.c.h.b16 %v4923
  %v5273 = vunpack.c.l.b16 %v4924
  %v5274 = vunpack.c.h.b16 %v4924
  %v5275 = vunpack.c.l.b16 %v4925
  %v5276 = vunpack.c.h.b16 %v4925
  %v5277 = vunpack.c.l.b16 %v4926
  %v5278 = vunpack.c.h.b16 %v4926
  %v5279 = vunpack.c.l.b16 %v4927
  %v5280 = vunpack.c.h.b16 %v4927
  %v5281 = vunpack.c.l.b16 %v4928
  %v5282 = vunpack.c.h.b16 %v4928
  %v5283 = vunpack.c.l.b16 %v4929
  %v5284 = vunpack.c.h.b16 %v4929
  %v5285 = vunpack.c.l.b16 %v4930
  %v5286 = vunpack.c.h.b16 %v4930
  %v5287 = vunpack.c.l.b16 %v4931
  %v5288 = vunpack.c.h.b16 %v4931
  %v5289 = vunpack.c.l.b16 %v4932
  %v5290 = vunpack.c.h.b16 %v4932
  %v5291 = vunpack.c.l.b16 %v4933
  %v5292 = vunpack.c.h.b16 %v4933
  %v5293 = vunpack.c.l.b16 %v4934
  %v5294 = vunpack.c.h.b16 %v4934
  %v5295 = vunpack.c.l.b16 %v4935
  %v5296 = vunpack.c.h.b16 %v4935
  %v5297 = vunpack.c.l.b16 %v4936
  %v5298 = vunpack.c.h.b16 %v4936
  %v5299 = vunpack.c.l.b16 %v4937
  %v5300 = vunpack.c.h.b16 %v4937
  %v5301 = vunpack.c.l.b16 %v4938
  %v5302 = vunpack.c.h.b16 %v4938
  %v5303 = vunpack.c.l.b16 %v4939
  %v5304 = vunpack.c.h.b16 %v4939
  %v5305 = vunpack.c.l.b16 %v4940
  %v5306 = vunpack.c.h.b16 %v4940
  %v5307 = vunpack.c.l.b16 %v4941
  %v5308 = vunpack.c.h.b16 %v4941
  %v5309 = vunpack.c.l.b16 %v4942
  %v5310 = vunpack.c.h.b16 %v4942
  %v5311 = vunpack.c.l.b16 %v4943
  %v5312 = vunpack.c.h.b16 %v4943
  %v5313 = vunpack.c.l.b16 %v4944
  %v5314 = vunpack.c.h.b16 %v4944
  %v5315 = vunpack.c.l.b16 %v4945
  %v5316 = vunpack.c.h.b16 %v4945
  %v5317 = vunpack.c.l.b16 %v4946
  %v5318 = vunpack.c.h.b16 %v4946
  %v5319 = vunpack.c.l.b16 %v4947
  %v5320 = vunpack.c.h.b16 %v4947
  %v5321 = vunpack.c.l.b16 %v4948
  %v5322 = vunpack.c.h.b16 %v4948
  %v5323 = vunpack.c.l.b16 %v4949
  %v5324 = vunpack.c.h.b16 %v4949
  %v5325 = vunpack.c.l.b16 %v4950
  %v5326 = vunpack.c.h.b16 %v4950
  %v5327 = vunpack.c.l.b16 %v4951
  %v5328 = vunpack.c.h.b16 %v4951
  %v5329 = vunpack.c.l.b16 %v4952
  %v5330 = vunpack.c.h.b16 %v4952
  %v5331 = vunpack.c.l.b16 %v4953
  %v5332 = vunpack.c.h.b16 %v4953
  %v5333 = vunpack.c.l.b16 %v4954
  %v5334 = vunpack.c.h.b16 %v4954
  %v5335 = vunpack.c.l.b16 %v4955
  %v5336 = vunpack.c.h.b16 %v4955
  %v5337 = vunpack.c.l.b16 %v4956
  %v5338 = vunpack.c.h.b16 %v4956
  %v5339 = vunpack.c.l.b16 %v4957
  %v5340 = vunpack.c.h.b16 %v4957
  %v5341 = vunpack.c.l.b16 %v4958
  %v5342 = vunpack.c.h.b16 %v4958
  %v5343 = vunpack.c.l.b16 %v4959
  %v5344 = vunpack.c.h.b16 %v4959
  %v5345 = vunpack.c.l.b16 %v4960
  %v5346 = vunpack.c.h.b16 %v4960
  %v5347 = vunpack.c.l.b16 %v4961
  %v5348 = vunpack.c.h.b16 %v4961
  %v5349 = vunpack.c.l.b16 %v4962
  %v5350 = vunpack.c.h.b16 %v4962
  %v5351 = vunpack.c.l.b16 %v4963
  %v5352 = vunpack.c.h.b16 %v4963
  %v5353 = vunpack.c.l.b16 %v4964
  %v5354 = vunpack.c.h.b16 %v4964
  %v5355 = vunpack.c.l.b16 %v4965
  %v5356 = vunpack.c.h.b16 %v4965
  %v5357 = vunpack.c.l.b16 %v4966
  %v5358 = vunpack.c.h.b16 %v4966
  %v5359 = vunpack.c.l.b16 %v4967
  %v5360 = vunpack.c.h.b16 %v4967
  %v5361 = vunpack.c.l.b16 %v4968
  %v5362 = vunpack.c.h.b16 %v4968
  %v5363 = vunpack.c.l.b16 %v4969
  %v5364 = vunpack.c.h.b16 %v4969
  %v5365 = vunpack.c.l.b16 %v4970
  %v5366 = vunpack.c.h.b16 %v4970
  %v5367 = vunpack.c.l.b16 %v4971
  %v5368 = vunpack.c.h.b16 %v4971
  %v5369 = vunpack.c.l.b16 %v4972
  %v5370 = vunpack.c.h.b16 %v4972
  %v5371 = vunpack.c.l.b16 %v4973
  %v5372 = vunpack.c.h.b16 %v4973
  %v5373 = vunpack.c.l.b16 %v4974
  %v5374 = vunpack.c.h.b16 %v4974
  %v5375 = vunpack.c.l.b16 %v4975
  %v5376 = vunpack.c.h.b16 %v4975
  %v5377 = vunpack.c.l.b16 %v4976
  %v5378 = vunpack.c.h.b16 %v4976
  %v5379 = vunpack.c.l.b16 %v4977
  %v5380 = vunpack.c.h.b16 %v4977
  %v5381 = vunpack.c.l.b16 %v4978
  %v5382 = vunpack.c.h.b16 %v4978
  %v5383 = vunpack.c.l.b16 %v4979
  %v5384 = vunpack.c.h.b16 %v4979
  %v5385 = vunpack.c.l.b16 %v4980
  %v5386 = vunpack.c.h.b16 %v4980
  %v5387 = vpack.c.b16 %v5135, %v5131
  %v5388 = vpack.c.b16 %v5136, %v5132
  %v5389 = vpack.c.b16 %v5137, %v5133
  %v5390 = vpack.c.b16 %v5138, %v5134
  %v5391 = vpack.c.b16 %v5143, %v5139
  %v5392 = vpack.c.b16 %v5144, %v5140
  %v5393 = vpack.c.b16 %v5145, %v5141
  %v5394 = vpack.c.b16 %v5146, %v5142
  %v5395 = vpack.c.b16 %v5151, %v5147
  %v5396 = vpack.c.b16 %v5152, %v5148
  %v5397 = vpack.c.b16 %v5153, %v5149
  %v5398 = vpack.c.b16 %v5154, %v5150
  %v5399 = vpack.c.b16 %v5159, %v5155
  %v5400 = vpack.c.b16 %v5160, %v5156
  %v5401 = vpack.c.b16 %v5161, %v5157
  %v5402 = vpack.c.b16 %v5162, %v5158
  %v5403 = vpack.c.b16 %v5167, %v5163
  %v5404 = vpack.c.b16 %v5168, %v5164
  %v5405 = vpack.c.b16 %v5169, %v5165
  %v5406 = vpack.c.b16 %v5170, %v5166
  %v5407 = vpack.c.b16 %v5175, %v5171
  %v5408 = vpack.c.b16 %v5176, %v5172
  %v5409 = vpack.c.b16 %v5177, %v5173
  %v5410 = vpack.c.b16 %v5178, %v5174
  %v5411 = vpack.c.b16 %v5183, %v5179
  %v5412 = vpack.c.b16 %v5184, %v5180
  %v5413 = vpack.c.b16 %v5185, %v5181
  %v5414 = vpack.c.b16 %v5186, %v5182
  %v5415 = vpack.c.b16 %v5191, %v5187
  %v5416 = vpack.c.b16 %v5192, %v5188
  %v5417 = vpack.c.b16 %v5193, %v5189
  %v5418 = vpack.c.b16 %v5194, %v5190
  %v5419 = vpack.c.b16 %v5199, %v5195
  %v5420 = vpack.c.b16 %v5200, %v5196
  %v5421 = vpack.c.b16 %v5201, %v5197
  %v5422 = vpack.c.b16 %v5202, %v5198
  %v5423 = vpack.c.b16 %v5207, %v5203
  %v5424 = vpack.c.b16 %v5208, %v5204
  %v5425 = vpack.c.b16 %v5209, %v5205
  %v5426 = vpack.c.b16 %v5210, %v5206
  %v5427 = vpack.c.b16 %v5215, %v5211
  %v5428 = vpack.c.b16 %v5216, %v5212
  %v5429 = vpack.c.b16 %v5217, %v5213
  %v5430 = vpack.c.b16 %v5218, %v5214
  %v5431 = vpack.c.b16 %v5223, %v5219
  %v5432 = vpack.c.b16 %v5224, %v5220
  %v5433 = vpack.c.b16 %v5225, %v5221
  %v5434 = vpack.c.b16 %v5226, %v5222
  %v5435 = vpack.c.b16 %v5231, %v5227
  %v5436 = vpack.c.b16 %v5232, %v5228
  %v5437 = vpack.c.b16 %v5233, %v5229
  %v5438 = vpack.c.b16 %v5234, %v5230
  %v5439 = vpack.c.b16 %v5239, %v5235
  %v5440 = vpack.c.b16 %v5240, %v5236
  %v5441 = vpack.c.b16 %v5241, %v5237
  %v5442 = vpack.c.b16 %v5242, %v5238
  %v5443 = vpack.c.b16 %v5247, %v5243
  %v5444 = vpack.c.b16 %v5248, %v5244
  %v5445 = vpack.c.b16 %v5249, %v5245
  %v5446 = vpack.c.b16 %v5250, %v5246
  %v5447 = vpack.c.b16 %v5255, %v5251
  %v5448 = vpack.c.b16 %v5256, %v5252
  %v5449 = vpack.c.b16 %v5257, %v5253
  %v5450 = vpack.c.b16 %v5258, %v5254
  %v5451 = vpack.c.b16 %v5263, %v5259
  %v5452 = vpack.c.b16 %v5264, %v5260
  %v5453 = vpack.c.b16 %v5265, %v5261
  %v5454 = vpack.c.b16 %v5266, %v5262
  %v5455 = vpack.c.b16 %v5271, %v5267
  %v5456 = vpack.c.b16 %v5272, %v5268
  %v5457 = vpack.c.b16 %v5273, %v5269
  %v5458 = vpack.c.b16 %v5274, %v5270
  %v5459 = vpack.c.b16 %v5279, %v5275
  %v5460 = vpack.c.b16 %v5280, %v5276
  %v5461 = vpack.c.b16 %v5281, %v5277
  %v5462 = vpack.c.b16 %v5282, %v5278
  %v5463 = vpack.c.b16 %v5287, %v5283
  %v5464 = vpack.c.b16 %v5288, %v5284
  %v5465 = vpack.c.b16 %v5289, %v5285
  %v5466 = vpack.c.b16 %v5290, %v5286
  %v5467 = vpack.c.b16 %v5295, %v5291
  %v5468 = vpack.c.b16 %v5296, %v5292
  %v5469 = vpack.c.b16 %v5297, %v5293
  %v5470 = vpack.c.b16 %v5298, %v5294
  %v5471 = vpack.c.b16 %v5303, %v5299
  %v5472 = vpack.c.b16 %v5304, %v5300
  %v5473 = vpack.c.b16 %v5305, %v5301
  %v5474 = vpack.c.b16 %v5306, %v5302
  %v5475 = vpack.c.b16 %v5311, %v5307
  %v5476 = vpack.c.b16 %v5312, %v5308
  %v5477 = vpack.c.b16 %v5313, %v5309
  %v5478 = vpack.c.b16 %v5314, %v5310
  %v5479 = vpack.c.b16 %v5319, %v5315
  %v5480 = vpack.c.b16 %v5320, %v5316
  %v5481 = vpack.c.b16 %v5321, %v5317
  %v5482 = vpack.c.b16 %v5322, %v5318
  %v5483 = vpack.c.b16 %v5327, %v5323
  %v5484 = vpack.c.b16 %v5328, %v5324
  %v5485 = vpack.c.b16 %v5329, %v5325
  %v5486 = vpack.c.b16 %v5330, %v5326
  %v5487 = vpack.c.b16 %v5335, %v5331
  %v5488 = vpack.c.b16 %v5336, %v5332
  %v5489 = vpack.c.b16 %v5337, %v5333
  %v5490 = vpack.c.b16 %v5338, %v5334
  %v5491 = vpack.c.b16 %v5343, %v5339
  %v5492 = vpack.c.b16 %v5344, %v5340
  %v5493 = vpack.c.b16 %v5345, %v5341
  %v5494 = vpack.c.b16 %v5346, %v5342
  %v5495 = vpack.c.b16 %v5351, %v5347
  %v5496 = vpack.c.b16 %v5352, %v5348
  %v5497 = vpack.c.b16 %v5353, %v5349
  %v5498 = vpack.c.b16 %v5354, %v5350
  %v5499 = vpack.c.b16 %v5359, %v5355
  %v5500 = vpack.c.b16 %v5360, %v5356
  %v5501 = vpack.c.b16 %v5361, %v5357
  %v5502 = vpack.c.b16 %v5362, %v5358
  %v5503 = vpack.c.b16 %v5367, %v5363
  %v5504 = vpack.c.b16 %v5368, %v5364
  %v5505 = vpack.c.b16 %v5369, %v5365
  %v5506 = vpack.c.b16 %v5370, %v5366
  %v5507 = vpack.c.b16 %v5375, %v5371
  %v5508 = vpack.c.b16 %v5376, %v5372
  %v5509 = vpack.c.b16 %v5377, %v5373
  %v5510 = vpack.c.b16 %v5378, %v5374
  %v5511 = vpack.c.b16 %v5383, %v5379
  %v5512 = vpack.c.b16 %v5384, %v5380
  %v5513 = vpack.c.b16 %v5385, %v5381
  %v5514 = vpack.c.b16 %v5386, %v5382
  %5643 = vmatprep.subr.bf16.mxu0 %v5416
  %5644 = vmatpush1.bf16.msra.mxu0 %v5415
  %5645 = vmatprep.subr.bf16.mxu0 %v5412
  %5646 = vmatpush1.bf16.msra.mxu0 %v5411
  %5647 = vmatprep.subr.bf16.mxu0 %v5408
  %5648 = vmatpush1.bf16.msra.mxu0 %v5407
  %5649 = vmatprep.subr.bf16.mxu0 %v5404
  %5650 = vmatpush1.bf16.msra.mxu0 %v5403
  %5651 = vmatprep.subr.bf16.mxu0 %v5400
  %5652 = vmatpush1.bf16.msra.mxu0 %v5399
  %5653 = vmatprep.subr.bf16.mxu0 %v5396
  %5654 = vmatpush1.bf16.msra.mxu0 %v5395
  %5655 = vmatprep.subr.bf16.mxu0 %v5392
  %5656 = vmatpush1.bf16.msra.mxu0 %v5391
  %5657 = vmatprep.subr.bf16.mxu0 %v5388
  %5658 = vmatpush1.bf16.msra.mxu0 %v5387
  %5659 = vmatprep.subr.bf16.mxu0 %v5448
  %5660 = vmatpush2.bf16.msra.mxu0 %v5447
  %5661 = vmatprep.subr.bf16.mxu0 %v5444
  %5662 = vmatpush2.bf16.msra.mxu0 %v5443
  %5663 = vmatprep.subr.bf16.mxu0 %v5440
  %5664 = vmatpush2.bf16.msra.mxu0 %v5439
  %5665 = vmatprep.subr.bf16.mxu0 %v5436
  %5666 = vmatpush2.bf16.msra.mxu0 %v5435
  %5667 = vmatprep.subr.bf16.mxu0 %v5432
  %5668 = vmatpush2.bf16.msra.mxu0 %v5431
  %5669 = vmatprep.subr.bf16.mxu0 %v5428
  %5670 = vmatpush2.bf16.msra.mxu0 %v5427
  %5671 = vmatprep.subr.bf16.mxu0 %v5424
  %5672 = vmatpush2.bf16.msra.mxu0 %v5423
  %5673 = vmatprep.subr.bf16.mxu0 %v5420
  %5674 = vmatpush2.bf16.msra.mxu0 %v5419
  %5675 = vmatprep.mubr.bf16.mxu0 %v3545
  %5676 = vmatmul.mubr.bf16.gmra.mxu0 %v3544
  %v5677 = vpop.f32.mrf.mxu0
  %v5678 = vadd.f32 %v4986, %v5677
  %v5679 = vpop.f32.mrf.mxu0
  %v5680 = vadd.f32 %v4990, %v5679
  %v5681 = vpop.f32.mrf.mxu0
  %v5682 = vpop.f32.mrf.mxu0
  %5683 = vdwg.mxu0
  %5684 = vmatprep.subr.bf16.mxu0 %v5480
  %5685 = vmatpush1.bf16.msra.mxu0 %v5479
  %5686 = vmatprep.subr.bf16.mxu0 %v5476
  %5687 = vmatpush1.bf16.msra.mxu0 %v5475
  %5688 = vmatprep.subr.bf16.mxu0 %v5472
  %5689 = vmatpush1.bf16.msra.mxu0 %v5471
  %5690 = vmatprep.subr.bf16.mxu0 %v5468
  %5691 = vmatpush1.bf16.msra.mxu0 %v5467
  %5692 = vmatprep.subr.bf16.mxu0 %v5464
  %5693 = vmatpush1.bf16.msra.mxu0 %v5463
  %5694 = vmatprep.subr.bf16.mxu0 %v5460
  %5695 = vmatpush1.bf16.msra.mxu0 %v5459
  %5696 = vmatprep.subr.bf16.mxu0 %v5456
  %5697 = vmatpush1.bf16.msra.mxu0 %v5455
  %5698 = vmatprep.subr.bf16.mxu0 %v5452
  %5699 = vmatpush1.bf16.msra.mxu0 %v5451
  %5700 = vmatprep.subr.bf16.mxu0 %v5512
  %5701 = vmatpush2.bf16.msra.mxu0 %v5511
  %5702 = vmatprep.subr.bf16.mxu0 %v5508
  %5703 = vmatpush2.bf16.msra.mxu0 %v5507
  %5704 = vmatprep.subr.bf16.mxu0 %v5504
  %5705 = vmatpush2.bf16.msra.mxu0 %v5503
  %5706 = vmatprep.subr.bf16.mxu0 %v5500
  %5707 = vmatpush2.bf16.msra.mxu0 %v5499
  %5708 = vmatprep.subr.bf16.mxu0 %v5496
  %5709 = vmatpush2.bf16.msra.mxu0 %v5495
  %5710 = vmatprep.subr.bf16.mxu0 %v5492
  %5711 = vmatpush2.bf16.msra.mxu0 %v5491
  %5712 = vmatprep.subr.bf16.mxu0 %v5488
  %5713 = vmatpush2.bf16.msra.mxu0 %v5487
  %5714 = vmatprep.subr.bf16.mxu0 %v5484
  %5715 = vmatpush2.bf16.msra.mxu0 %v5483
  %5716 = vmatprep.mubr.bf16.mxu0 %v3547
  %5717 = vmatmul.mubr.bf16.gmra.mxu0 %v3546
  %v5718 = vpop.f32.mrf.mxu0
  %v5719 = vadd.f32 %v5678, %v5718
  %v5720 = vpop.f32.mrf.mxu0
  %v5721 = vadd.f32 %v5680, %v5720
  %v5722 = vpop.f32.mrf.mxu0
  %v5723 = vpop.f32.mrf.mxu0
  %5724 = vdwg.mxu0
  %5725 = vmatprep.subr.bf16.mxu0 %v5418
  %5726 = vmatpush1.bf16.msra.mxu0 %v5417
  %5727 = vmatprep.subr.bf16.mxu0 %v5414
  %5728 = vmatpush1.bf16.msra.mxu0 %v5413
  %5729 = vmatprep.subr.bf16.mxu0 %v5410
  %5730 = vmatpush1.bf16.msra.mxu0 %v5409
  %5731 = vmatprep.subr.bf16.mxu0 %v5406
  %5732 = vmatpush1.bf16.msra.mxu0 %v5405
  %5733 = vmatprep.subr.bf16.mxu0 %v5402
  %5734 = vmatpush1.bf16.msra.mxu0 %v5401
  %5735 = vmatprep.subr.bf16.mxu0 %v5398
  %5736 = vmatpush1.bf16.msra.mxu0 %v5397
  %5737 = vmatprep.subr.bf16.mxu0 %v5394
  %5738 = vmatpush1.bf16.msra.mxu0 %v5393
  %5739 = vmatprep.subr.bf16.mxu0 %v5390
  %5740 = vmatpush1.bf16.msra.mxu0 %v5389
  %5741 = vmatprep.subr.bf16.mxu0 %v5450
  %5742 = vmatpush2.bf16.msra.mxu0 %v5449
  %5743 = vmatprep.subr.bf16.mxu0 %v5446
  %5744 = vmatpush2.bf16.msra.mxu0 %v5445
  %5745 = vmatprep.subr.bf16.mxu0 %v5442
  %5746 = vmatpush2.bf16.msra.mxu0 %v5441
  %5747 = vmatprep.subr.bf16.mxu0 %v5438
  %5748 = vmatpush2.bf16.msra.mxu0 %v5437
  %5749 = vmatprep.subr.bf16.mxu0 %v5434
  %5750 = vmatpush2.bf16.msra.mxu0 %v5433
  %5751 = vmatprep.subr.bf16.mxu0 %v5430
  %5752 = vmatpush2.bf16.msra.mxu0 %v5429
  %5753 = vmatprep.subr.bf16.mxu0 %v5426
  %5754 = vmatpush2.bf16.msra.mxu0 %v5425
  %5755 = vmatprep.subr.bf16.mxu0 %v5422
  %5756 = vmatpush2.bf16.msra.mxu0 %v5421
  %5757 = vmatprep.mubr.bf16.mxu0 %v3545
  %5758 = vmatmul.mubr.bf16.gmra.mxu0 %v3544
  %v5759 = vpop.f32.mrf.mxu0
  %v5760 = vadd.f32 %v4994, %v5759
  %v5761 = vpop.f32.mrf.mxu0
  %v5762 = vadd.f32 %v4998, %v5761
  %v5763 = vpop.f32.mrf.mxu0
  %v5764 = vpop.f32.mrf.mxu0
  %5765 = vdwg.mxu0
  %5766 = vmatprep.subr.bf16.mxu0 %v5482
  %5767 = vmatpush1.bf16.msra.mxu0 %v5481
  %5768 = vmatprep.subr.bf16.mxu0 %v5478
  %5769 = vmatpush1.bf16.msra.mxu0 %v5477
  %5770 = vmatprep.subr.bf16.mxu0 %v5474
  %5771 = vmatpush1.bf16.msra.mxu0 %v5473
  %5772 = vmatprep.subr.bf16.mxu0 %v5470
  %5773 = vmatpush1.bf16.msra.mxu0 %v5469
  %5774 = vmatprep.subr.bf16.mxu0 %v5466
  %5775 = vmatpush1.bf16.msra.mxu0 %v5465
  %5776 = vmatprep.subr.bf16.mxu0 %v5462
  %5777 = vmatpush1.bf16.msra.mxu0 %v5461
  %5778 = vmatprep.subr.bf16.mxu0 %v5458
  %5779 = vmatpush1.bf16.msra.mxu0 %v5457
  %5780 = vmatprep.subr.bf16.mxu0 %v5454
  %5781 = vmatpush1.bf16.msra.mxu0 %v5453
  %5782 = vmatprep.subr.bf16.mxu0 %v5514
  %5783 = vmatpush2.bf16.msra.mxu0 %v5513
  %5784 = vmatprep.subr.bf16.mxu0 %v5510
  %5785 = vmatpush2.bf16.msra.mxu0 %v5509
  %5786 = vmatprep.subr.bf16.mxu0 %v5506
  %5787 = vmatpush2.bf16.msra.mxu0 %v5505
  %5788 = vmatprep.subr.bf16.mxu0 %v5502
  %5789 = vmatpush2.bf16.msra.mxu0 %v5501
  %5790 = vmatprep.subr.bf16.mxu0 %v5498
  %5791 = vmatpush2.bf16.msra.mxu0 %v5497
  %5792 = vmatprep.subr.bf16.mxu0 %v5494
  %5793 = vmatpush2.bf16.msra.mxu0 %v5493
  %5794 = vmatprep.subr.bf16.mxu0 %v5490
  %5795 = vmatpush2.bf16.msra.mxu0 %v5489
  %5796 = vmatprep.subr.bf16.mxu0 %v5486
  %5797 = vmatpush2.bf16.msra.mxu0 %v5485
  %5798 = vmatprep.mubr.bf16.mxu0 %v3547
  %5799 = vmatmul.mubr.bf16.gmra.mxu0 %v3546
  %v5800 = vpop.f32.mrf.mxu0
  %v5801 = vadd.f32 %v5760, %v5800
  %v5802 = vpop.f32.mrf.mxu0
  %v5803 = vadd.f32 %v5762, %v5802
  %v5804 = vpop.f32.mrf.mxu0
  %v5805 = vpop.f32.mrf.mxu0
  %5806 = vdwg.mxu0
  %v5807 = vmax.f32 %v5719, 0.0
  %v5808 = vmax.f32 %v5721, 0.0
  %v5809 = vmax.f32 %v5801, 0.0
  %v5810 = vmax.f32 %v5803, 0.0
  %v5811 = vadd.f32 %v5807, %v3540
  %v5812 = vadd.f32 %v5808, %v3541
  %v5813 = vadd.f32 %v5809, %v3542
  %v5814 = vadd.f32 %v5810, %v3543
  %v5815 = vpack.c.bf16 %v5811, %v5811
  %v5816 = vpack.c.bf16 %v5812, %v5812
  %v5817 = vpack.c.bf16 %v5813, %v5813
  %v5818 = vpack.c.bf16 %v5814, %v5814
  %v5819 = vld [vmem:[%s11] sm:$0xf]
  %v5820 = vld [vmem:[%s11 + $0x4] sm:$0xf]
  %v5821 = vld [vmem:[%s11 + $0x8] sm:$0xf]
  %v5822 = vld [vmem:[%s11 + $0xc] sm:$0xf]
  %v5823 = vld [vmem:[%s11 + $0x10] sm:$0xf]
  %v5824 = vld [vmem:[%s11 + $0x14] sm:$0xf]
  %v5825 = vld [vmem:[%s11 + $0x18] sm:$0xf]
  %v5826 = vld [vmem:[%s11 + $0x1c] sm:$0xf]
  %v5827 = vld [vmem:[%s11 + $0x20] sm:$0xf]
  %v5828 = vld [vmem:[%s11 + $0x24] sm:$0xf]
  %v5829 = vld [vmem:[%s11 + $0x28] sm:$0xf]
  %v5830 = vld [vmem:[%s11 + $0x2c] sm:$0xf]
  %v5831 = vld [vmem:[%s11 + $0x30] sm:$0xf]
  %v5832 = vld [vmem:[%s11 + $0x34] sm:$0xf]
  %v5833 = vld [vmem:[%s11 + $0x38] sm:$0xf]
  %v5834 = vld [vmem:[%s11 + $0x3c] sm:$0xf]
  %v5835 = vld [vmem:[%s11 + $0x40] sm:$0xf]
  %v5836 = vld [vmem:[%s11 + $0x44] sm:$0xf]
  %v5837 = vld [vmem:[%s11 + $0x48] sm:$0xf]
  %v5838 = vld [vmem:[%s11 + $0x4c] sm:$0xf]
  %v5839 = vld [vmem:[%s11 + $0x50] sm:$0xf]
  %v5840 = vld [vmem:[%s11 + $0x54] sm:$0xf]
  %v5841 = vld [vmem:[%s11 + $0x58] sm:$0xf]
  %v5842 = vld [vmem:[%s11 + $0x5c] sm:$0xf]
  %v5843 = vld [vmem:[%s11 + $0x60] sm:$0xf]
  %v5844 = vld [vmem:[%s11 + $0x64] sm:$0xf]
  %v5845 = vld [vmem:[%s11 + $0x68] sm:$0xf]
  %v5846 = vld [vmem:[%s11 + $0x6c] sm:$0xf]
  %v5847 = vld [vmem:[%s11 + $0x70] sm:$0xf]
  %v5848 = vld [vmem:[%s11 + $0x74] sm:$0xf]
  %v5849 = vld [vmem:[%s11 + $0x78] sm:$0xf]
  %v5850 = vld [vmem:[%s11 + $0x7c] sm:$0xf]
  %v5851 = vld [vmem:[%s11 + $0x80] sm:$0xf]
  %v5852 = vld [vmem:[%s11 + $0x84] sm:$0xf]
  %v5853 = vld [vmem:[%s11 + $0x88] sm:$0xf]
  %v5854 = vld [vmem:[%s11 + $0x8c] sm:$0xf]
  %v5855 = vld [vmem:[%s11 + $0x90] sm:$0xf]
  %v5856 = vld [vmem:[%s11 + $0x94] sm:$0xf]
  %v5857 = vld [vmem:[%s11 + $0x98] sm:$0xf]
  %v5858 = vld [vmem:[%s11 + $0x9c] sm:$0xf]
  %v5859 = vld [vmem:[%s11 + $0xa0] sm:$0xf]
  %v5860 = vld [vmem:[%s11 + $0xa4] sm:$0xf]
  %v5861 = vld [vmem:[%s11 + $0xa8] sm:$0xf]
  %v5862 = vld [vmem:[%s11 + $0xac] sm:$0xf]
  %v5863 = vld [vmem:[%s11 + $0xb0] sm:$0xf]
  %v5864 = vld [vmem:[%s11 + $0xb4] sm:$0xf]
  %v5865 = vld [vmem:[%s11 + $0xb8] sm:$0xf]
  %v5866 = vld [vmem:[%s11 + $0xbc] sm:$0xf]
  %v5867 = vld [vmem:[%s11 + $0xc0] sm:$0xf]
  %v5868 = vld [vmem:[%s11 + $0xc4] sm:$0xf]
  %v5869 = vld [vmem:[%s11 + $0xc8] sm:$0xf]
  %v5870 = vld [vmem:[%s11 + $0xcc] sm:$0xf]
  %v5871 = vld [vmem:[%s11 + $0xd0] sm:$0xf]
  %v5872 = vld [vmem:[%s11 + $0xd4] sm:$0xf]
  %v5873 = vld [vmem:[%s11 + $0xd8] sm:$0xf]
  %v5874 = vld [vmem:[%s11 + $0xdc] sm:$0xf]
  %v5875 = vld [vmem:[%s11 + $0xe0] sm:$0xf]
  %v5876 = vld [vmem:[%s11 + $0xe4] sm:$0xf]
  %v5877 = vld [vmem:[%s11 + $0xe8] sm:$0xf]
  %v5878 = vld [vmem:[%s11 + $0xec] sm:$0xf]
  %v5879 = vld [vmem:[%s11 + $0xf0] sm:$0xf]
  %v5880 = vld [vmem:[%s11 + $0xf4] sm:$0xf]
  %v5881 = vld [vmem:[%s11 + $0xf8] sm:$0xf]
  %v5882 = vld [vmem:[%s11 + $0xfc] sm:$0xf]
  %v5883 = vld [vmem:[%s12] sm:$0x1]
  %v5885 = vlaneseq
  %v5886 = vshrl.u32 %v5885, 7
  %v5887 = vsub.s32 0, %v5886
  %v5888 = vrot.slane %v5883, %v5887
  %v5954 = vunpack.c.l.b16 %v5819
  %v5955 = vunpack.c.l.b16 %v5820
  %v5956 = vunpack.c.l.b16 %v5821
  %v5957 = vunpack.c.l.b16 %v5822
  %v5958 = vunpack.c.l.b16 %v5823
  %v5959 = vunpack.c.l.b16 %v5824
  %v5960 = vunpack.c.l.b16 %v5825
  %v5961 = vunpack.c.l.b16 %v5826
  %v5962 = vunpack.c.l.b16 %v5827
  %v5963 = vunpack.c.l.b16 %v5828
  %v5964 = vunpack.c.l.b16 %v5829
  %v5965 = vunpack.c.l.b16 %v5830
  %v5966 = vunpack.c.l.b16 %v5831
  %v5967 = vunpack.c.l.b16 %v5832
  %v5968 = vunpack.c.l.b16 %v5833
  %v5969 = vunpack.c.l.b16 %v5834
  %v5970 = vunpack.c.l.b16 %v5835
  %v5971 = vunpack.c.l.b16 %v5836
  %v5972 = vunpack.c.l.b16 %v5837
  %v5973 = vunpack.c.l.b16 %v5838
  %v5974 = vunpack.c.l.b16 %v5839
  %v5975 = vunpack.c.l.b16 %v5840
  %v5976 = vunpack.c.l.b16 %v5841
  %v5977 = vunpack.c.l.b16 %v5842
  %v5978 = vunpack.c.l.b16 %v5843
  %v5979 = vunpack.c.l.b16 %v5844
  %v5980 = vunpack.c.l.b16 %v5845
  %v5981 = vunpack.c.l.b16 %v5846
  %v5982 = vunpack.c.l.b16 %v5847
  %v5983 = vunpack.c.l.b16 %v5848
  %v5984 = vunpack.c.l.b16 %v5849
  %v5985 = vunpack.c.l.b16 %v5850
  %v5986 = vunpack.c.l.b16 %v5851
  %v5987 = vunpack.c.l.b16 %v5852
  %v5988 = vunpack.c.l.b16 %v5853
  %v5989 = vunpack.c.l.b16 %v5854
  %v5990 = vunpack.c.l.b16 %v5855
  %v5991 = vunpack.c.l.b16 %v5856
  %v5992 = vunpack.c.l.b16 %v5857
  %v5993 = vunpack.c.l.b16 %v5858
  %v5994 = vunpack.c.l.b16 %v5859
  %v5995 = vunpack.c.l.b16 %v5860
  %v5996 = vunpack.c.l.b16 %v5861
  %v5997 = vunpack.c.l.b16 %v5862
  %v5998 = vunpack.c.l.b16 %v5863
  %v5999 = vunpack.c.l.b16 %v5864
  %v6000 = vunpack.c.l.b16 %v5865
  %v6001 = vunpack.c.l.b16 %v5866
  %v6002 = vunpack.c.l.b16 %v5867
  %v6003 = vunpack.c.l.b16 %v5868
  %v6004 = vunpack.c.l.b16 %v5869
  %v6005 = vunpack.c.l.b16 %v5870
  %v6006 = vunpack.c.l.b16 %v5871
  %v6007 = vunpack.c.l.b16 %v5872
  %v6008 = vunpack.c.l.b16 %v5873
  %v6009 = vunpack.c.l.b16 %v5874
  %v6010 = vunpack.c.l.b16 %v5875
  %v6011 = vunpack.c.l.b16 %v5876
  %v6012 = vunpack.c.l.b16 %v5877
  %v6013 = vunpack.c.l.b16 %v5878
  %v6014 = vunpack.c.l.b16 %v5879
  %v6015 = vunpack.c.l.b16 %v5880
  %v6016 = vunpack.c.l.b16 %v5881
  %v6017 = vunpack.c.l.b16 %v5882
  %v6018 = vpack.c.b16 %v5955, %v5954
  %v6019 = vpack.c.b16 %v5957, %v5956
  %v6020 = vpack.c.b16 %v5959, %v5958
  %v6021 = vpack.c.b16 %v5961, %v5960
  %v6022 = vpack.c.b16 %v5963, %v5962
  %v6023 = vpack.c.b16 %v5965, %v5964
  %v6024 = vpack.c.b16 %v5967, %v5966
  %v6025 = vpack.c.b16 %v5969, %v5968
  %v6026 = vpack.c.b16 %v5971, %v5970
  %v6027 = vpack.c.b16 %v5973, %v5972
  %v6028 = vpack.c.b16 %v5975, %v5974
  %v6029 = vpack.c.b16 %v5977, %v5976
  %v6030 = vpack.c.b16 %v5979, %v5978
  %v6031 = vpack.c.b16 %v5981, %v5980
  %v6032 = vpack.c.b16 %v5983, %v5982
  %v6033 = vpack.c.b16 %v5985, %v5984
  %v6034 = vpack.c.b16 %v5987, %v5986
  %v6035 = vpack.c.b16 %v5989, %v5988
  %v6036 = vpack.c.b16 %v5991, %v5990
  %v6037 = vpack.c.b16 %v5993, %v5992
  %v6038 = vpack.c.b16 %v5995, %v5994
  %v6039 = vpack.c.b16 %v5997, %v5996
  %v6040 = vpack.c.b16 %v5999, %v5998
  %v6041 = vpack.c.b16 %v6001, %v6000
  %v6042 = vpack.c.b16 %v6003, %v6002
  %v6043 = vpack.c.b16 %v6005, %v6004
  %v6044 = vpack.c.b16 %v6007, %v6006
  %v6045 = vpack.c.b16 %v6009, %v6008
  %v6046 = vpack.c.b16 %v6011, %v6010
  %v6047 = vpack.c.b16 %v6013, %v6012
  %v6048 = vpack.c.b16 %v6015, %v6014
  %v6049 = vpack.c.b16 %v6017, %v6016
  %6082 = vmatprep.subr.bf16.mxu0 0
  %6083 = vmatpush1.bf16.msra.mxu0 %v6025
  %6084 = vmatprep.subr.bf16.mxu0 0
  %6085 = vmatpush1.bf16.msra.mxu0 %v6024
  %6086 = vmatprep.subr.bf16.mxu0 0
  %6087 = vmatpush1.bf16.msra.mxu0 %v6023
  %6088 = vmatprep.subr.bf16.mxu0 0
  %6089 = vmatpush1.bf16.msra.mxu0 %v6022
  %6090 = vmatprep.subr.bf16.mxu0 0
  %6091 = vmatpush1.bf16.msra.mxu0 %v6021
  %6092 = vmatprep.subr.bf16.mxu0 0
  %6093 = vmatpush1.bf16.msra.mxu0 %v6020
  %6094 = vmatprep.subr.bf16.mxu0 0
  %6095 = vmatpush1.bf16.msra.mxu0 %v6019
  %6096 = vmatprep.subr.bf16.mxu0 0
  %6097 = vmatpush1.bf16.msra.mxu0 %v6018
  %6098 = vmatprep.subr.bf16.mxu0 0
  %6099 = vmatpush2.bf16.msra.mxu0 %v6033
  %6100 = vmatprep.subr.bf16.mxu0 0
  %6101 = vmatpush2.bf16.msra.mxu0 %v6032
  %6102 = vmatprep.subr.bf16.mxu0 0
  %6103 = vmatpush2.bf16.msra.mxu0 %v6031
  %6104 = vmatprep.subr.bf16.mxu0 0
  %6105 = vmatpush2.bf16.msra.mxu0 %v6030
  %6106 = vmatprep.subr.bf16.mxu0 0
  %6107 = vmatpush2.bf16.msra.mxu0 %v6029
  %6108 = vmatprep.subr.bf16.mxu0 0
  %6109 = vmatpush2.bf16.msra.mxu0 %v6028
  %6110 = vmatprep.subr.bf16.mxu0 0
  %6111 = vmatpush2.bf16.msra.mxu0 %v6027
  %6112 = vmatprep.subr.bf16.mxu0 0
  %6113 = vmatpush2.bf16.msra.mxu0 %v6026
  %6114 = vmatprep.mubr.bf16.mxu0 %v5816
  %6115 = vmatmul.mubr.bf16.gmra.mxu0 %v5815
  %v6116 = vpop.f32.mrf.mxu0
  %v6117 = vadd.f32 %v5888, %v6116
  %v6118 = vpop.f32.mrf.mxu0
  %v6119 = vpop.f32.mrf.mxu0
  %v6120 = vpop.f32.mrf.mxu0
  %6121 = vdwg.mxu0
  %6122 = vmatprep.subr.bf16.mxu0 0
  %6123 = vmatpush1.bf16.msra.mxu0 %v6041
  %6124 = vmatprep.subr.bf16.mxu0 0
  %6125 = vmatpush1.bf16.msra.mxu0 %v6040
  %6126 = vmatprep.subr.bf16.mxu0 0
  %6127 = vmatpush1.bf16.msra.mxu0 %v6039
  %6128 = vmatprep.subr.bf16.mxu0 0
  %6129 = vmatpush1.bf16.msra.mxu0 %v6038
  %6130 = vmatprep.subr.bf16.mxu0 0
  %6131 = vmatpush1.bf16.msra.mxu0 %v6037
  %6132 = vmatprep.subr.bf16.mxu0 0
  %6133 = vmatpush1.bf16.msra.mxu0 %v6036
  %6134 = vmatprep.subr.bf16.mxu0 0
  %6135 = vmatpush1.bf16.msra.mxu0 %v6035
  %6136 = vmatprep.subr.bf16.mxu0 0
  %6137 = vmatpush1.bf16.msra.mxu0 %v6034
  %6138 = vmatprep.subr.bf16.mxu0 0
  %6139 = vmatpush2.bf16.msra.mxu0 %v6049
  %6140 = vmatprep.subr.bf16.mxu0 0
  %6141 = vmatpush2.bf16.msra.mxu0 %v6048
  %6142 = vmatprep.subr.bf16.mxu0 0
  %6143 = vmatpush2.bf16.msra.mxu0 %v6047
  %6144 = vmatprep.subr.bf16.mxu0 0
  %6145 = vmatpush2.bf16.msra.mxu0 %v6046
  %6146 = vmatprep.subr.bf16.mxu0 0
  %6147 = vmatpush2.bf16.msra.mxu0 %v6045
  %6148 = vmatprep.subr.bf16.mxu0 0
  %6149 = vmatpush2.bf16.msra.mxu0 %v6044
  %6150 = vmatprep.subr.bf16.mxu0 0
  %6151 = vmatpush2.bf16.msra.mxu0 %v6043
  %6152 = vmatprep.subr.bf16.mxu0 0
  %6153 = vmatpush2.bf16.msra.mxu0 %v6042
  %6154 = vmatprep.mubr.bf16.mxu0 %v5818
  %6155 = vmatmul.mubr.bf16.gmra.mxu0 %v5817
  %v6156 = vpop.f32.mrf.mxu0
  %v6157 = vadd.f32 %v6117, %v6156
  %v6158 = vpop.f32.mrf.mxu0
  %v6159 = vpop.f32.mrf.mxu0
  %v6160 = vpop.f32.mrf.mxu0
  %6161 = vdwg.mxu0
  %6162 = vst [vmem:[%s13] sm:$0xff] %v4848
  %6163 = vst [vmem:[%s14] sm:$0xff] %v6157
  // Predicated region
  $region54: #{forward.7} parent=0 // pred_check
    _
  $region55: #{forward.7} parent=0 // pred_check_branch
    %6165 = sbr.rel (0) target = $region57
  $region56: #{forward.7} parent=0 // pred_region
    _
  $region57: #{forward.7} parent=0 // pred_fallthru
    _
  // Predicated region
  $region58: #{forward.7} parent=0 // pred_check
    _
  $region59: #{forward.7} parent=0 // pred_check_branch
    %6167 = sbr.rel (0) target = $region61
  $region60: #{forward.7} parent=0 // pred_region
    _
  $region61: #{forward.7} parent=0 // pred_fallthru
    _
  // Predicated region
  $region62: #{forward.7} parent=0 // pred_check
    _
  $region63: #{forward.7} parent=0 // pred_check_branch
    %6169 = sbr.rel (0) target = $region65
  $region64: #{forward.7} parent=0 // pred_region
    _
  $region65: #{forward.7} parent=0 // pred_fallthru
    _
  // Predicated region
  $region66: #{forward.7} parent=0 // pred_check
    _
  $region67: #{forward.7} parent=0 // pred_check_branch
    %6171 = sbr.rel (0) target = $region69
  $region68: #{forward.7} parent=0 // pred_region
    _
  $region69: #{forward.7} parent=0 // pred_fallthru
    _

</llo_original>
